<compile_context>
chip_gen: v7x
topology: tpu7x:2x2x1
jax: 0.10.0
libtpu: 0.0.40
codegen_flags: <defaults>
</compile_context>

<pallas_src>
import math
from functools import partial

import jax
import jax.numpy as jnp
from jax import lax
from jax.experimental import pallas as pl
from jax.experimental.pallas import tpu as pltpu

# ---------------- small, self-consistent config (scaled down from d_model=512) ----------
D_MODEL = 128            # multiple of 128 -> lane-dense stores, fuller MXU columns
NUM_HEADS = 4
HEAD_DIM = D_MODEL // NUM_HEADS
FFN_HIDDEN = 256
MAX_LEN = 16
EPS = 1e-5
NEG_INF = -1e9

START_TOKEN = "<S>"
END_TOKEN = "<E>"
PADDING_TOKEN = "<P>"
VOCAB = [START_TOKEN] + list(" abcdefghijklmnopqrstuvwxyz.!?'") + [PADDING_TOKEN, END_TOKEN]
STOI = {tok: i for i, tok in enumerate(VOCAB)}
VOCAB_SIZE = len(VOCAB)


# ------------------------------------ fused kernel --------------------------------------
def _fused_decoder_kernel(tok_ref, x_ref, emb_ref, pe_ref,
                          ws_in_ref, bs_in_ref, ws_o_ref, bs_o_ref,
                          wc_in_ref, bc_in_ref, wc_o_ref, bc_o_ref,
                          w1_ref, b1_ref, w2_ref, b2_ref, g_ref, beta_ref,
                          o_ref, *, batch_block, seq_len, num_heads, head_dim, eps):
    N = batch_block * seq_len
    D = pe_ref.shape[1]
    V = emb_ref.shape[0]

    # ---- SentenceEmbedding: embedding gather (one-hot matmul on the MXU) + positional enc.
    # TODO(synk): nn.Dropout(p=0.1) is identity here (eval mode); no in-kernel RNG needed.
    tok = tok_ref[...]                                                   # (N, 1) int32
    onehot = (lax.broadcasted_iota(jnp.int32, (N, V), 1) == tok).astype(jnp.float32)
    emb_rows = jnp.dot(onehot, emb_ref[...], preferred_element_type=jnp.float32)
    y = (emb_rows.reshape(batch_block, seq_len, D) + pe_ref[...]).reshape(N, D)

    x = x_ref[...]                                                       # (N, D) encoder output

    # causal mask built in-kernel (VPU iota + compare) -> no (B,S,S) HBM->VMEM DMA
    row = lax.broadcasted_iota(jnp.int32, (seq_len, seq_len), 0)
    col = lax.broadcasted_iota(jnp.int32, (seq_len, seq_len), 1)
    causal = (row >= col)[None]                                          # (1, S, S) bool

    def mha(q_src, kv_src, w_in, b_in, w_o, b_o, mask):
        # w_in: (3, H, D, hd) stacked [Q, K, V]; w_o: (H, hd, D).
        # 1/sqrt(head_dim) is already folded into w_in[0]/b_in[0] at init.
        out = None
        for h in range(num_heads):                                       # static unroll, H=4
            q = jnp.dot(q_src, w_in[0, h], preferred_element_type=jnp.float32) + b_in[0, h]
            k = jnp.dot(kv_src, w_in[1, h], preferred_element_type=jnp.float32) + b_in[1, h]
            v = jnp.dot(kv_src, w_in[2, h], preferred_element_type=jnp.float32) + b_in[2, h]
            q3 = q.reshape(batch_block, seq_len, head_dim)               # sublane split: free
            k3 = k.reshape(batch_block, seq_len, head_dim)
            v3 = v.reshape(batch_block, seq_len, head_dim)
            s = jnp.einsum("bqd,bkd->bqk", q3, k3, preferred_element_type=jnp.float32)
            if mask is not None:
                s = jnp.where(mask, s, NEG_INF)
            s = s - jnp.max(s, axis=-1, keepdims=True)
            p = jnp.exp(s)
            p = p * pl.reciprocal(jnp.sum(p, axis=-1, keepdims=True), approx=True)
            o = jnp.einsum("bqk,bkd->bqd", p, v3, preferred_element_type=jnp.float32)
            oh = jnp.dot(o.reshape(N, head_dim), w_o[h], preferred_element_type=jnp.float32)
            out = oh if out is None else out + oh                        # accumulate over heads
        return out + b_o[...]

    def layer_norm(v, i):
        # single-pass LN: sum(x) and sum(x*x) are independent reductions (shorter chain)
        mean = jnp.mean(v, axis=-1, keepdims=True)
        mean_sq = jnp.mean(v * v, axis=-1, keepdims=True)
        var = mean_sq - mean * mean
        return g_ref[i] * ((v - mean) * lax.rsqrt(var + eps)) + beta_ref[i]

    # self-attention + add & norm
    y1 = layer_norm(mha(y, y, ws_in_ref, bs_in_ref, ws_o_ref, bs_o_ref, causal) + y, 0)
    # cross-attention (all-zero mask elided) + norm (no residual: intentionally matches the
    # pure-JAX reference / previous submission)
    y2 = layer_norm(mha(y1, x, wc_in_ref, bc_in_ref, wc_o_ref, bc_o_ref, None), 1)
    # feed-forward + add & norm
    hdn = jnp.maximum(jnp.dot(y2, w1_ref[...], preferred_element_type=jnp.float32) + b1_ref[...], 0.0)
    ff = jnp.dot(hdn, w2_ref[...], preferred_element_type=jnp.float32) + b2_ref[...]
    o_ref[...] = layer_norm(ff + y1, 2)


# ---------------------------------- pallas wrapper ---------------------------------------
def _fixed_spec(shape):
    zeros = (0,) * len(shape)
    return pl.BlockSpec(tuple(shape), lambda i, _z=zeros: _z)


def fused_decoder_layer(tokens, x, params, *, batch_block=None):
    """tokens: (B, S) int32; x: (B, S, D) f32 encoder output.

    batch_block=None folds the whole batch into one grid step (best on single-TC v5e/v6e);
    batch_block=1 keeps a per-batch 'parallel' grid so v7x's 2 TensorCores split the batch.
    """
    B, S = tokens.shape
    D = D_MODEL
    bb = B if batch_block is None else batch_block
    assert B % bb == 0
    L = params["layer"]

    tok2 = tokens.reshape(B * S, 1).astype(jnp.int32)
    x2 = x.reshape(B * S, D)

    kernel = partial(_fused_decoder_kernel, batch_block=bb, seq_len=S,
                     num_heads=NUM_HEADS, head_dim=HEAD_DIM, eps=EPS)
    row_map = lambda i: (i, 0)

    weights = [params["embedding"], params["pe"],
               L["w_self_in"], L["b_self_in"], L["w_self_o"], L["b_self_o"],
               L["w_cross_in"], L["b_cross_in"], L["w_cross_o"], L["b_cross_o"],
               L["w1"], L["b1"], L["w2"], L["b2"], L["ln_g"], L["ln_b"]]

    out = pl.pallas_call(
        kernel,
        out_shape=jax.ShapeDtypeStruct((B * S, D), jnp.float32),
        grid=(B // bb,),
        in_specs=[pl.BlockSpec((bb * S, 1), row_map),        # tokens (flattened batch)
                  pl.BlockSpec((bb * S, D), row_map)]        # encoder output x
                 + [_fixed_spec(w.shape) for w in weights],  # grid-invariant weights
        out_specs=pl.BlockSpec((bb * S, D), row_map),
        compiler_params=pltpu.CompilerParams(dimension_semantics=("parallel",)),
    )(tok2, x2, *weights)
    return out.reshape(B, S, D)


# ------------------------------ params / embedding glue ----------------------------------
def positional_encoding(max_len, d_model):
    even_i = jnp.arange(0, d_model, 2, dtype=jnp.float32)
    denom = jnp.power(10000.0, even_i / d_model)
    pos = jnp.arange(max_len, dtype=jnp.float32).reshape(max_len, 1)
    even_pe = jnp.sin(pos / denom)
    odd_pe = jnp.cos(pos / denom)
    stacked = jnp.stack([even_pe, odd_pe], axis=2)           # (L, D/2, 2)
    return stacked.reshape(max_len, d_model)


def _linear(key, fan_in, fan_out):
    k1, k2 = jax.random.split(key)
    bound = 1.0 / math.sqrt(fan_in)
    w = jax.random.uniform(k1, (fan_in, fan_out), jnp.float32, -bound, bound)
    b = jax.random.uniform(k2, (fan_out,), jnp.float32, -bound, bound)
    return w, b


def init_params(key):
    keys = jax.random.split(key, 11)
    emb = jax.random.normal(keys[0], (VOCAB_SIZE, D_MODEL), jnp.float32)

    wq_s, bq_s = _linear(keys[1], D_MODEL, D_MODEL)
    wk_s, bk_s = _linear(keys[2], D_MODEL, D_MODEL)
    wv_s, bv_s = _linear(keys[3], D_MODEL, D_MODEL)
    wo_s, bo_s = _linear(keys[4], D_MODEL, D_MODEL)
    wq_c, bq_c = _linear(keys[5], D_MODEL, D_MODEL)
    wk_c, bk_c = _linear(keys[6], D_MODEL, D_MODEL)
    wv_c, bv_c = _linear(keys[7], D_MODEL, D_MODEL)
    wo_c, bo_c = _linear(keys[8], D_MODEL, D_MODEL)
    w1, b1 = _linear(keys[9], D_MODEL, FFN_HIDDEN)
    w2, b2 = _linear(keys[10], FFN_HIDDEN, D_MODEL)

    scale = 1.0 / math.sqrt(HEAD_DIM)        # folded into Wq / bq (perf review)

    def split_in(w, b):                      # (D,D),(D,) -> (H,D,hd),(H,1,hd)
        return (w.reshape(D_MODEL, NUM_HEADS, HEAD_DIM).transpose(1, 0, 2),
                b.reshape(NUM_HEADS, 1, HEAD_DIM))

    def stack_qkv(wq, bq, wk, bk, wv, bv):
        wqh, bqh = split_in(wq * scale, bq * scale)
        wkh, bkh = split_in(wk, bk)
        wvh, bvh = split_in(wv, bv)
        return jnp.stack([wqh, wkh, wvh]), jnp.stack([bqh, bkh, bvh])

    w_self_in, b_self_in = stack_qkv(wq_s, bq_s, wk_s, bk_s, wv_s, bv_s)
    w_cross_in, b_cross_in = stack_qkv(wq_c, bq_c, wk_c, bk_c, wv_c, bv_c)

    layer = {
        "w_self_in": w_self_in, "b_self_in": b_self_in,                    # (3,H,D,hd)/(3,H,1,hd)
        "w_self_o": wo_s.reshape(NUM_HEADS, HEAD_DIM, D_MODEL),            # (H,hd,D)
        "b_self_o": bo_s[None, :],
        "w_cross_in": w_cross_in, "b_cross_in": b_cross_in,
        "w_cross_o": wo_c.reshape(NUM_HEADS, HEAD_DIM, D_MODEL),
        "b_cross_o": bo_c[None, :],
        "w1": w1, "b1": b1[None, :], "w2": w2, "b2": b2[None, :],
        "ln_g": jnp.ones((3, 1, D_MODEL), jnp.float32),
        "ln_b": jnp.zeros((3, 1, D_MODEL), jnp.float32),
    }
    ref = {  # unmodified full-layout weights for the independent pure-JAX reference
        "wq_s": wq_s, "bq_s": bq_s, "wk_s": wk_s, "bk_s": bk_s,
        "wv_s": wv_s, "bv_s": bv_s, "wo_s": wo_s, "bo_s": bo_s,
        "wq_c": wq_c, "bq_c": bq_c, "wk_c": wk_c, "bk_c": bk_c,
        "wv_c": wv_c, "bv_c": bv_c, "wo_c": wo_c, "bo_c": bo_c,
        "w1": w1, "b1": b1, "w2": w2, "b2": b2,
    }
    return {"embedding": emb, "pe": positional_encoding(MAX_LEN, D_MODEL),
            "layer": layer, "ref": ref}


def batch_tokenize(sentences, start_token=True, end_token=True):
    # TODO(synk): Python string -> index tokenization has no Pallas equivalent (host glue).
    out = []
    for s in sentences:
        ids = [STOI[c] for c in list(s)]
        if start_token:
            ids.insert(0, STOI[START_TOKEN])
        if end_token:
            ids.append(STOI[END_TOKEN])
        while len(ids) < MAX_LEN:
            ids.append(STOI[PADDING_TOKEN])
        out.append(ids[:MAX_LEN])
    return jnp.asarray(out, dtype=jnp.int32)


# ------------------------------------ pure-JAX reference ---------------------------------
def _ref_mha(q_in, kv_in, wq, bq, wk, bk, wv, bv, wo, bo, mask):
    B, S, D = q_in.shape
    H, hd = NUM_HEADS, HEAD_DIM
    q = (q_in @ wq + bq).reshape(B, S, H, hd).transpose(0, 2, 1, 3)
    k = (kv_in @ wk + bk).reshape(B, S, H, hd).transpose(0, 2, 1, 3)
    v = (kv_in @ wv + bv).reshape(B, S, H, hd).transpose(0, 2, 1, 3)
    s = jnp.einsum("bhqd,bhkd->bhqk", q, k) / math.sqrt(hd)
    if mask is not None:
        s = s + mask
    p = jax.nn.softmax(s, axis=-1)
    o = jnp.einsum("bhqk,bhkd->bhqd", p, v).transpose(0, 2, 1, 3).reshape(B, S, D)
    return o @ wo + bo


def _ref_ln(v, g, b):
    mean = jnp.mean(v, axis=-1, keepdims=True)
    var = jnp.mean((v - mean) ** 2, axis=-1, keepdims=True)
    return g * ((v - mean) / jnp.sqrt(var + EPS)) + b


def decoder_reference(params, x, tokens):
    R, L = params["ref"], params["layer"]
    B, S = tokens.shape
    y = params["embedding"][tokens] + params["pe"][None]
    causal = jnp.where(jnp.tril(jnp.ones((S, S), jnp.float32)) == 1.0, 0.0, NEG_INF)[None, None]
    att = _ref_mha(y, y, R["wq_s"], R["bq_s"], R["wk_s"], R["bk_s"],
                   R["wv_s"], R["bv_s"], R["wo_s"], R["bo_s"], causal)
    y1 = _ref_ln(att + y, L["ln_g"][0], L["ln_b"][0])
    att2 = _ref_mha(y1, x, R["wq_c"], R["bq_c"], R["wk_c"], R["bk_c"],
                    R["wv_c"], R["bv_c"], R["wo_c"], R["bo_c"], None)
    y2 = _ref_ln(att2, L["ln_g"][1], L["ln_b"][1])
    ff = jnp.maximum(y2 @ R["w1"] + R["b1"], 0.0) @ R["w2"] + R["b2"]
    return _ref_ln(ff + y1, L["ln_g"][2], L["ln_b"][2])


# ---------------------------------------- main -------------------------------------------
if __name__ == "__main__":
    key = jax.random.PRNGKey(0)
    pkey, xkey = jax.random.split(key)
    params = init_params(pkey)

    B, S, D = 2, MAX_LEN, D_MODEL
    # x: "encoder output" (already embedded); y: target sentences through SentenceEmbedding.
    x = jax.random.normal(xkey, (B, S, D), jnp.float32)
    y_sentences = ["hello world", "bonjour"]
    tokens = batch_tokenize(y_sentences, start_token=True, end_token=True)   # (B, S) int32
    # causal mask + cross mask are no longer host inputs: generated / elided in-kernel.

    out = fused_decoder_layer(tokens, x, params)     # batch folded into a single grid step
    out = jax.block_until_ready(out)

    ref = decoder_reference(params, x, tokens)
    assert out.shape == (B, S, D)
    assert bool(jnp.all(jnp.isfinite(out)))
    assert bool(jnp.allclose(out, ref, atol=2e-2, rtol=2e-2)), "mismatch vs pure-JAX reference"

    print("KERNEL_OK")
</pallas_src>

<mosaic_0001>
module attributes {stable_mosaic.version = 11 : i64} {
  func.func @_fused_decoder_kernel(%arg0: i32, %arg1: memref<32x1xi32, #tpu.memory_space<vmem>>, %arg2: memref<32x128xf32, #tpu.memory_space<vmem>>, %arg3: memref<34x128xf32, #tpu.memory_space<vmem>>, %arg4: memref<16x128xf32, #tpu.memory_space<vmem>>, %arg5: memref<3x4x128x32xf32, #tpu.memory_space<vmem>>, %arg6: memref<3x4x1x32xf32, #tpu.memory_space<vmem>>, %arg7: memref<4x32x128xf32, #tpu.memory_space<vmem>>, %arg8: memref<1x128xf32, #tpu.memory_space<vmem>>, %arg9: memref<3x4x128x32xf32, #tpu.memory_space<vmem>>, %arg10: memref<3x4x1x32xf32, #tpu.memory_space<vmem>>, %arg11: memref<4x32x128xf32, #tpu.memory_space<vmem>>, %arg12: memref<1x128xf32, #tpu.memory_space<vmem>>, %arg13: memref<128x256xf32, #tpu.memory_space<vmem>>, %arg14: memref<1x256xf32, #tpu.memory_space<vmem>>, %arg15: memref<256x128xf32, #tpu.memory_space<vmem>>, %arg16: memref<1x128xf32, #tpu.memory_space<vmem>>, %arg17: memref<3x1x128xf32, #tpu.memory_space<vmem>>, %arg18: memref<3x1x128xf32, #tpu.memory_space<vmem>>, %arg19: memref<32x128xf32, #tpu.memory_space<vmem>>) attributes {dimension_semantics = [#tpu.dimension_semantics<parallel>], iteration_bounds = array<i64: 1>, scalar_prefetch = 0 : i64, scratch_operands = 0 : i64, tpu.core_type = #tpu.core_type<tc>, window_params = [{transform_indices = @transform_0, window_bounds = array<i64: 32, 1>}, {transform_indices = @transform_1, window_bounds = array<i64: 32, 128>}, {pipeline_mode = #tpu.pipeline_mode<synchronous>, transform_indices = @transform_2, window_bounds = array<i64: 34, 128>}, {pipeline_mode = #tpu.pipeline_mode<synchronous>, transform_indices = @transform_3, window_bounds = array<i64: 16, 128>}, {pipeline_mode = #tpu.pipeline_mode<synchronous>, transform_indices = @transform_4, window_bounds = array<i64: 3, 4, 128, 32>}, {pipeline_mode = #tpu.pipeline_mode<synchronous>, transform_indices = @transform_5, window_bounds = array<i64: 3, 4, 1, 32>}, {pipeline_mode = #tpu.pipeline_mode<synchronous>, transform_indices = @transform_6, window_bounds = array<i64: 4, 32, 128>}, {pipeline_mode = #tpu.pipeline_mode<synchronous>, transform_indices = @transform_7, window_bounds = array<i64: 1, 128>}, {pipeline_mode = #tpu.pipeline_mode<synchronous>, transform_indices = @transform_8, window_bounds = array<i64: 3, 4, 128, 32>}, {pipeline_mode = #tpu.pipeline_mode<synchronous>, transform_indices = @transform_9, window_bounds = array<i64: 3, 4, 1, 32>}, {pipeline_mode = #tpu.pipeline_mode<synchronous>, transform_indices = @transform_10, window_bounds = array<i64: 4, 32, 128>}, {pipeline_mode = #tpu.pipeline_mode<synchronous>, transform_indices = @transform_11, window_bounds = array<i64: 1, 128>}, {pipeline_mode = #tpu.pipeline_mode<synchronous>, transform_indices = @transform_12, window_bounds = array<i64: 128, 256>}, {pipeline_mode = #tpu.pipeline_mode<synchronous>, transform_indices = @transform_13, window_bounds = array<i64: 1, 256>}, {pipeline_mode = #tpu.pipeline_mode<synchronous>, transform_indices = @transform_14, window_bounds = array<i64: 256, 128>}, {pipeline_mode = #tpu.pipeline_mode<synchronous>, transform_indices = @transform_15, window_bounds = array<i64: 1, 128>}, {pipeline_mode = #tpu.pipeline_mode<synchronous>, transform_indices = @transform_16, window_bounds = array<i64: 3, 1, 128>}, {pipeline_mode = #tpu.pipeline_mode<synchronous>, transform_indices = @transform_17, window_bounds = array<i64: 3, 1, 128>}, {transform_indices = @transform_18, window_bounds = array<i64: 32, 128>}]} {
    %c0 = arith.constant 0 : index
    %c0_0 = arith.constant 0 : index
    %0 = vector.load %arg1[%c0, %c0_0] : memref<32x1xi32, #tpu.memory_space<vmem>>, vector<32x1xi32>
    %1 = tpu.iota {dimensions = array<i32: 1>} : vector<32x34xi32>
    %2 = vector.broadcast %0 : vector<32x1xi32> to vector<32x34xi32>
    %3 = arith.cmpi eq, %1, %2 : vector<32x34xi32>
    %4 = arith.extui %3 : vector<32x34xi1> to vector<32x34xi32>
    %5 = arith.sitofp %4 : vector<32x34xi32> to vector<32x34xf32>
    %c0_1 = arith.constant 0 : index
    %c0_2 = arith.constant 0 : index
    %6 = vector.load %arg3[%c0_1, %c0_2] : memref<34x128xf32, #tpu.memory_space<vmem>>, vector<34x128xf32>
    %cst = arith.constant dense<0.000000e+00> : vector<32x128xf32>
    %7 = tpu.matmul %5, %6, %cst {dimension_numbers = #tpu.dot_dimension_numbers<[1], [0], [0], [1], [0, 0, 1, 1], [], []>} : vector<32x34xf32>, vector<34x128xf32>, vector<32x128xf32> -> vector<32x128xf32>
    %8 = vector.shape_cast %7 : vector<32x128xf32> to vector<2x16x128xf32>
    %c0_3 = arith.constant 0 : index
    %c0_4 = arith.constant 0 : index
    %9 = vector.load %arg4[%c0_3, %c0_4] : memref<16x128xf32, #tpu.memory_space<vmem>>, vector<16x128xf32>
    %10 = vector.shape_cast %9 : vector<16x128xf32> to vector<1x16x128xf32>
    %11 = vector.broadcast %10 : vector<1x16x128xf32> to vector<2x16x128xf32>
    %12 = arith.addf %8, %11 : vector<2x16x128xf32>
    %13 = vector.shape_cast %12 : vector<2x16x128xf32> to vector<32x128xf32>
    %c0_5 = arith.constant 0 : index
    %c0_6 = arith.constant 0 : index
    %14 = vector.load %arg2[%c0_5, %c0_6] : memref<32x128xf32, #tpu.memory_space<vmem>>, vector<32x128xf32>
    %15 = tpu.iota {dimensions = array<i32: 0>} : vector<16x16xi32>
    %16 = tpu.iota {dimensions = array<i32: 1>} : vector<16x16xi32>
    %17 = arith.cmpi sge, %15, %16 : vector<16x16xi32>
    %18 = vector.shape_cast %17 : vector<16x16xi1> to vector<1x16x16xi1>
    %c0_7 = arith.constant 0 : index
    %c0_8 = arith.constant 0 : index
    %c0_9 = arith.constant 0 : index
    %c0_10 = arith.constant 0 : index
    %19 = vector.load %arg5[%c0_7, %c0_8, %c0_9, %c0_10] : memref<3x4x128x32xf32, #tpu.memory_space<vmem>>, vector<1x1x128x32xf32>
    %20 = vector.shape_cast %19 : vector<1x1x128x32xf32> to vector<128x32xf32>
    %cst_11 = arith.constant dense<0.000000e+00> : vector<32x32xf32>
    %21 = tpu.matmul %13, %20, %cst_11 {dimension_numbers = #tpu.dot_dimension_numbers<[1], [0], [0], [1], [0, 0, 1, 1], [], []>} : vector<32x128xf32>, vector<128x32xf32>, vector<32x32xf32> -> vector<32x32xf32>
    %c0_12 = arith.constant 0 : index
    %c0_13 = arith.constant 0 : index
    %c0_14 = arith.constant 0 : index
    %c0_15 = arith.constant 0 : index
    %22 = vector.load %arg6[%c0_12, %c0_13, %c0_14, %c0_15] : memref<3x4x1x32xf32, #tpu.memory_space<vmem>>, vector<1x1x1x32xf32>
    %23 = vector.shape_cast %22 : vector<1x1x1x32xf32> to vector<1x32xf32>
    %24 = vector.broadcast %23 : vector<1x32xf32> to vector<32x32xf32>
    %25 = arith.addf %21, %24 : vector<32x32xf32>
    %c1 = arith.constant 1 : index
    %c0_16 = arith.constant 0 : index
    %c0_17 = arith.constant 0 : index
    %c0_18 = arith.constant 0 : index
    %26 = vector.load %arg5[%c1, %c0_16, %c0_17, %c0_18] : memref<3x4x128x32xf32, #tpu.memory_space<vmem>>, vector<1x1x128x32xf32>
    %27 = vector.shape_cast %26 : vector<1x1x128x32xf32> to vector<128x32xf32>
    %cst_19 = arith.constant dense<0.000000e+00> : vector<32x32xf32>
    %28 = tpu.matmul %13, %27, %cst_19 {dimension_numbers = #tpu.dot_dimension_numbers<[1], [0], [0], [1], [0, 0, 1, 1], [], []>} : vector<32x128xf32>, vector<128x32xf32>, vector<32x32xf32> -> vector<32x32xf32>
    %c1_20 = arith.constant 1 : index
    %c0_21 = arith.constant 0 : index
    %c0_22 = arith.constant 0 : index
    %c0_23 = arith.constant 0 : index
    %29 = vector.load %arg6[%c1_20, %c0_21, %c0_22, %c0_23] : memref<3x4x1x32xf32, #tpu.memory_space<vmem>>, vector<1x1x1x32xf32>
    %30 = vector.shape_cast %29 : vector<1x1x1x32xf32> to vector<1x32xf32>
    %31 = vector.broadcast %30 : vector<1x32xf32> to vector<32x32xf32>
    %32 = arith.addf %28, %31 : vector<32x32xf32>
    %c2 = arith.constant 2 : index
    %c0_24 = arith.constant 0 : index
    %c0_25 = arith.constant 0 : index
    %c0_26 = arith.constant 0 : index
    %33 = vector.load %arg5[%c2, %c0_24, %c0_25, %c0_26] : memref<3x4x128x32xf32, #tpu.memory_space<vmem>>, vector<1x1x128x32xf32>
    %34 = vector.shape_cast %33 : vector<1x1x128x32xf32> to vector<128x32xf32>
    %cst_27 = arith.constant dense<0.000000e+00> : vector<32x32xf32>
    %35 = tpu.matmul %13, %34, %cst_27 {dimension_numbers = #tpu.dot_dimension_numbers<[1], [0], [0], [1], [0, 0, 1, 1], [], []>} : vector<32x128xf32>, vector<128x32xf32>, vector<32x32xf32> -> vector<32x32xf32>
    %c2_28 = arith.constant 2 : index
    %c0_29 = arith.constant 0 : index
    %c0_30 = arith.constant 0 : index
    %c0_31 = arith.constant 0 : index
    %36 = vector.load %arg6[%c2_28, %c0_29, %c0_30, %c0_31] : memref<3x4x1x32xf32, #tpu.memory_space<vmem>>, vector<1x1x1x32xf32>
    %37 = vector.shape_cast %36 : vector<1x1x1x32xf32> to vector<1x32xf32>
    %38 = vector.broadcast %37 : vector<1x32xf32> to vector<32x32xf32>
    %39 = arith.addf %35, %38 : vector<32x32xf32>
    %40 = vector.shape_cast %25 : vector<32x32xf32> to vector<2x16x32xf32>
    %41 = vector.shape_cast %32 : vector<32x32xf32> to vector<2x16x32xf32>
    %42 = vector.shape_cast %39 : vector<32x32xf32> to vector<2x16x32xf32>
    "tpu.trace_start"() <{level = 10 : i32, message = "bqd,bkd->bqk"}> : () -> ()
    %cst_32 = arith.constant dense<0.000000e+00> : vector<2x16x16xf32>
    %43 = tpu.matmul %40, %41, %cst_32 {dimension_numbers = #tpu.dot_dimension_numbers<[2], [2], [1], [1], [0, 0, 0, 1, 1, 1], [0], [0]>} : vector<2x16x32xf32>, vector<2x16x32xf32>, vector<2x16x16xf32> -> vector<2x16x16xf32>
    %cst_33 = arith.constant -1.000000e+09 : f32
    "tpu.trace_stop"() : () -> ()
    %44 = vector.shape_cast %18 : vector<1x16x16xi1> to vector<1x16x16xi1>
    %45 = vector.broadcast %44 : vector<1x16x16xi1> to vector<2x16x16xi1>
    %46 = vector.broadcast %cst_33 : f32 to vector<2x16x16xf32>
    %47 = arith.select %45, %43, %46 : vector<2x16x16xi1>, vector<2x16x16xf32>
    %cst_34 = arith.constant dense<0xFF800000> : vector<2x16xf32>
    %48 = vector.multi_reduction <maximumf>, %47, %cst_34 [2] : vector<2x16x16xf32> to vector<2x16xf32>
    %49 = vector.shape_cast %48 : vector<2x16xf32> to vector<2x16x1xf32>
    %50 = vector.broadcast %49 : vector<2x16x1xf32> to vector<2x16x16xf32>
    %51 = arith.subf %47, %50 : vector<2x16x16xf32>
    %52 = math.exp %51 : vector<2x16x16xf32>
    %cst_35 = arith.constant dense<0.000000e+00> : vector<2x16xf32>
    %53 = vector.multi_reduction <add>, %52, %cst_35 [2] : vector<2x16x16xf32> to vector<2x16xf32>
    %54 = vector.shape_cast %53 : vector<2x16xf32> to vector<2x16x1xf32>
    %55 = tpu.reciprocal %54 {approx = true} : vector<2x16x1xf32> -> vector<2x16x1xf32>
    %56 = vector.broadcast %55 : vector<2x16x1xf32> to vector<2x16x16xf32>
    %57 = arith.mulf %52, %56 : vector<2x16x16xf32>
    "tpu.trace_start"() <{level = 10 : i32, message = "bqk,bkd->bqd"}> : () -> ()
    %cst_36 = arith.constant dense<0.000000e+00> : vector<2x16x32xf32>
    %58 = tpu.matmul %57, %42, %cst_36 {dimension_numbers = #tpu.dot_dimension_numbers<[2], [1], [1], [2], [0, 0, 0, 1, 1, 2], [0], [0]>} : vector<2x16x16xf32>, vector<2x16x32xf32>, vector<2x16x32xf32> -> vector<2x16x32xf32>
    "tpu.trace_stop"() : () -> ()
    %59 = vector.shape_cast %58 : vector<2x16x32xf32> to vector<32x32xf32>
    %c0_37 = arith.constant 0 : index
    %c0_38 = arith.constant 0 : index
    %c0_39 = arith.constant 0 : index
    %60 = vector.load %arg7[%c0_37, %c0_38, %c0_39] : memref<4x32x128xf32, #tpu.memory_space<vmem>>, vector<1x32x128xf32>
    %61 = vector.shape_cast %60 : vector<1x32x128xf32> to vector<32x128xf32>
    %cst_40 = arith.constant dense<0.000000e+00> : vector<32x128xf32>
    %62 = tpu.matmul %59, %61, %cst_40 {dimension_numbers = #tpu.dot_dimension_numbers<[1], [0], [0], [1], [0, 0, 1, 1], [], []>} : vector<32x32xf32>, vector<32x128xf32>, vector<32x128xf32> -> vector<32x128xf32>
    %c0_41 = arith.constant 0 : index
    %c1_42 = arith.constant 1 : index
    %c0_43 = arith.constant 0 : index
    %c0_44 = arith.constant 0 : index
    %63 = vector.load %arg5[%c0_41, %c1_42, %c0_43, %c0_44] : memref<3x4x128x32xf32, #tpu.memory_space<vmem>>, vector<1x1x128x32xf32>
    %64 = vector.shape_cast %63 : vector<1x1x128x32xf32> to vector<128x32xf32>
    %cst_45 = arith.constant dense<0.000000e+00> : vector<32x32xf32>
    %65 = tpu.matmul %13, %64, %cst_45 {dimension_numbers = #tpu.dot_dimension_numbers<[1], [0], [0], [1], [0, 0, 1, 1], [], []>} : vector<32x128xf32>, vector<128x32xf32>, vector<32x32xf32> -> vector<32x32xf32>
    %c0_46 = arith.constant 0 : index
    %c1_47 = arith.constant 1 : index
    %c0_48 = arith.constant 0 : index
    %c0_49 = arith.constant 0 : index
    %66 = vector.load %arg6[%c0_46, %c1_47, %c0_48, %c0_49] : memref<3x4x1x32xf32, #tpu.memory_space<vmem>>, vector<1x1x1x32xf32>
    %67 = vector.shape_cast %66 : vector<1x1x1x32xf32> to vector<1x32xf32>
    %68 = vector.broadcast %67 : vector<1x32xf32> to vector<32x32xf32>
    %69 = arith.addf %65, %68 : vector<32x32xf32>
    %c1_50 = arith.constant 1 : index
    %c1_51 = arith.constant 1 : index
    %c0_52 = arith.constant 0 : index
    %c0_53 = arith.constant 0 : index
    %70 = vector.load %arg5[%c1_50, %c1_51, %c0_52, %c0_53] : memref<3x4x128x32xf32, #tpu.memory_space<vmem>>, vector<1x1x128x32xf32>
    %71 = vector.shape_cast %70 : vector<1x1x128x32xf32> to vector<128x32xf32>
    %cst_54 = arith.constant dense<0.000000e+00> : vector<32x32xf32>
    %72 = tpu.matmul %13, %71, %cst_54 {dimension_numbers = #tpu.dot_dimension_numbers<[1], [0], [0], [1], [0, 0, 1, 1], [], []>} : vector<32x128xf32>, vector<128x32xf32>, vector<32x32xf32> -> vector<32x32xf32>
    %c1_55 = arith.constant 1 : index
    %c1_56 = arith.constant 1 : index
    %c0_57 = arith.constant 0 : index
    %c0_58 = arith.constant 0 : index
    %73 = vector.load %arg6[%c1_55, %c1_56, %c0_57, %c0_58] : memref<3x4x1x32xf32, #tpu.memory_space<vmem>>, vector<1x1x1x32xf32>
    %74 = vector.shape_cast %73 : vector<1x1x1x32xf32> to vector<1x32xf32>
    %75 = vector.broadcast %74 : vector<1x32xf32> to vector<32x32xf32>
    %76 = arith.addf %72, %75 : vector<32x32xf32>
    %c2_59 = arith.constant 2 : index
    %c1_60 = arith.constant 1 : index
    %c0_61 = arith.constant 0 : index
    %c0_62 = arith.constant 0 : index
    %77 = vector.load %arg5[%c2_59, %c1_60, %c0_61, %c0_62] : memref<3x4x128x32xf32, #tpu.memory_space<vmem>>, vector<1x1x128x32xf32>
    %78 = vector.shape_cast %77 : vector<1x1x128x32xf32> to vector<128x32xf32>
    %cst_63 = arith.constant dense<0.000000e+00> : vector<32x32xf32>
    %79 = tpu.matmul %13, %78, %cst_63 {dimension_numbers = #tpu.dot_dimension_numbers<[1], [0], [0], [1], [0, 0, 1, 1], [], []>} : vector<32x128xf32>, vector<128x32xf32>, vector<32x32xf32> -> vector<32x32xf32>
    %c2_64 = arith.constant 2 : index
    %c1_65 = arith.constant 1 : index
    %c0_66 = arith.constant 0 : index
    %c0_67 = arith.constant 0 : index
    %80 = vector.load %arg6[%c2_64, %c1_65, %c0_66, %c0_67] : memref<3x4x1x32xf32, #tpu.memory_space<vmem>>, vector<1x1x1x32xf32>
    %81 = vector.shape_cast %80 : vector<1x1x1x32xf32> to vector<1x32xf32>
    %82 = vector.broadcast %81 : vector<1x32xf32> to vector<32x32xf32>
    %83 = arith.addf %79, %82 : vector<32x32xf32>
    %84 = vector.shape_cast %69 : vector<32x32xf32> to vector<2x16x32xf32>
    %85 = vector.shape_cast %76 : vector<32x32xf32> to vector<2x16x32xf32>
    %86 = vector.shape_cast %83 : vector<32x32xf32> to vector<2x16x32xf32>
    "tpu.trace_start"() <{level = 10 : i32, message = "bqd,bkd->bqk"}> : () -> ()
    %cst_68 = arith.constant dense<0.000000e+00> : vector<2x16x16xf32>
    %87 = tpu.matmul %84, %85, %cst_68 {dimension_numbers = #tpu.dot_dimension_numbers<[2], [2], [1], [1], [0, 0, 0, 1, 1, 1], [0], [0]>} : vector<2x16x32xf32>, vector<2x16x32xf32>, vector<2x16x16xf32> -> vector<2x16x16xf32>
    %cst_69 = arith.constant -1.000000e+09 : f32
    "tpu.trace_stop"() : () -> ()
    %88 = vector.shape_cast %18 : vector<1x16x16xi1> to vector<1x16x16xi1>
    %89 = vector.broadcast %88 : vector<1x16x16xi1> to vector<2x16x16xi1>
    %90 = vector.broadcast %cst_69 : f32 to vector<2x16x16xf32>
    %91 = arith.select %89, %87, %90 : vector<2x16x16xi1>, vector<2x16x16xf32>
    %cst_70 = arith.constant dense<0xFF800000> : vector<2x16xf32>
    %92 = vector.multi_reduction <maximumf>, %91, %cst_70 [2] : vector<2x16x16xf32> to vector<2x16xf32>
    %93 = vector.shape_cast %92 : vector<2x16xf32> to vector<2x16x1xf32>
    %94 = vector.broadcast %93 : vector<2x16x1xf32> to vector<2x16x16xf32>
    %95 = arith.subf %91, %94 : vector<2x16x16xf32>
    %96 = math.exp %95 : vector<2x16x16xf32>
    %cst_71 = arith.constant dense<0.000000e+00> : vector<2x16xf32>
    %97 = vector.multi_reduction <add>, %96, %cst_71 [2] : vector<2x16x16xf32> to vector<2x16xf32>
    %98 = vector.shape_cast %97 : vector<2x16xf32> to vector<2x16x1xf32>
    %99 = tpu.reciprocal %98 {approx = true} : vector<2x16x1xf32> -> vector<2x16x1xf32>
    %100 = vector.broadcast %99 : vector<2x16x1xf32> to vector<2x16x16xf32>
    %101 = arith.mulf %96, %100 : vector<2x16x16xf32>
    "tpu.trace_start"() <{level = 10 : i32, message = "bqk,bkd->bqd"}> : () -> ()
    %cst_72 = arith.constant dense<0.000000e+00> : vector<2x16x32xf32>
    %102 = tpu.matmul %101, %86, %cst_72 {dimension_numbers = #tpu.dot_dimension_numbers<[2], [1], [1], [2], [0, 0, 0, 1, 1, 2], [0], [0]>} : vector<2x16x16xf32>, vector<2x16x32xf32>, vector<2x16x32xf32> -> vector<2x16x32xf32>
    "tpu.trace_stop"() : () -> ()
    %103 = vector.shape_cast %102 : vector<2x16x32xf32> to vector<32x32xf32>
    %c1_73 = arith.constant 1 : index
    %c0_74 = arith.constant 0 : index
    %c0_75 = arith.constant 0 : index
    %104 = vector.load %arg7[%c1_73, %c0_74, %c0_75] : memref<4x32x128xf32, #tpu.memory_space<vmem>>, vector<1x32x128xf32>
    %105 = vector.shape_cast %104 : vector<1x32x128xf32> to vector<32x128xf32>
    %cst_76 = arith.constant dense<0.000000e+00> : vector<32x128xf32>
    %106 = tpu.matmul %103, %105, %cst_76 {dimension_numbers = #tpu.dot_dimension_numbers<[1], [0], [0], [1], [0, 0, 1, 1], [], []>} : vector<32x32xf32>, vector<32x128xf32>, vector<32x128xf32> -> vector<32x128xf32>
    %107 = arith.addf %62, %106 : vector<32x128xf32>
    %c0_77 = arith.constant 0 : index
    %c2_78 = arith.constant 2 : index
    %c0_79 = arith.constant 0 : index
    %c0_80 = arith.constant 0 : index
    %108 = vector.load %arg5[%c0_77, %c2_78, %c0_79, %c0_80] : memref<3x4x128x32xf32, #tpu.memory_space<vmem>>, vector<1x1x128x32xf32>
    %109 = vector.shape_cast %108 : vector<1x1x128x32xf32> to vector<128x32xf32>
    %cst_81 = arith.constant dense<0.000000e+00> : vector<32x32xf32>
    %110 = tpu.matmul %13, %109, %cst_81 {dimension_numbers = #tpu.dot_dimension_numbers<[1], [0], [0], [1], [0, 0, 1, 1], [], []>} : vector<32x128xf32>, vector<128x32xf32>, vector<32x32xf32> -> vector<32x32xf32>
    %c0_82 = arith.constant 0 : index
    %c2_83 = arith.constant 2 : index
    %c0_84 = arith.constant 0 : index
    %c0_85 = arith.constant 0 : index
    %111 = vector.load %arg6[%c0_82, %c2_83, %c0_84, %c0_85] : memref<3x4x1x32xf32, #tpu.memory_space<vmem>>, vector<1x1x1x32xf32>
    %112 = vector.shape_cast %111 : vector<1x1x1x32xf32> to vector<1x32xf32>
    %113 = vector.broadcast %112 : vector<1x32xf32> to vector<32x32xf32>
    %114 = arith.addf %110, %113 : vector<32x32xf32>
    %c1_86 = arith.constant 1 : index
    %c2_87 = arith.constant 2 : index
    %c0_88 = arith.constant 0 : index
    %c0_89 = arith.constant 0 : index
    %115 = vector.load %arg5[%c1_86, %c2_87, %c0_88, %c0_89] : memref<3x4x128x32xf32, #tpu.memory_space<vmem>>, vector<1x1x128x32xf32>
    %116 = vector.shape_cast %115 : vector<1x1x128x32xf32> to vector<128x32xf32>
    %cst_90 = arith.constant dense<0.000000e+00> : vector<32x32xf32>
    %117 = tpu.matmul %13, %116, %cst_90 {dimension_numbers = #tpu.dot_dimension_numbers<[1], [0], [0], [1], [0, 0, 1, 1], [], []>} : vector<32x128xf32>, vector<128x32xf32>, vector<32x32xf32> -> vector<32x32xf32>
    %c1_91 = arith.constant 1 : index
    %c2_92 = arith.constant 2 : index
    %c0_93 = arith.constant 0 : index
    %c0_94 = arith.constant 0 : index
    %118 = vector.load %arg6[%c1_91, %c2_92, %c0_93, %c0_94] : memref<3x4x1x32xf32, #tpu.memory_space<vmem>>, vector<1x1x1x32xf32>
    %119 = vector.shape_cast %118 : vector<1x1x1x32xf32> to vector<1x32xf32>
    %120 = vector.broadcast %119 : vector<1x32xf32> to vector<32x32xf32>
    %121 = arith.addf %117, %120 : vector<32x32xf32>
    %c2_95 = arith.constant 2 : index
    %c2_96 = arith.constant 2 : index
    %c0_97 = arith.constant 0 : index
    %c0_98 = arith.constant 0 : index
    %122 = vector.load %arg5[%c2_95, %c2_96, %c0_97, %c0_98] : memref<3x4x128x32xf32, #tpu.memory_space<vmem>>, vector<1x1x128x32xf32>
    %123 = vector.shape_cast %122 : vector<1x1x128x32xf32> to vector<128x32xf32>
    %cst_99 = arith.constant dense<0.000000e+00> : vector<32x32xf32>
    %124 = tpu.matmul %13, %123, %cst_99 {dimension_numbers = #tpu.dot_dimension_numbers<[1], [0], [0], [1], [0, 0, 1, 1], [], []>} : vector<32x128xf32>, vector<128x32xf32>, vector<32x32xf32> -> vector<32x32xf32>
    %c2_100 = arith.constant 2 : index
    %c2_101 = arith.constant 2 : index
    %c0_102 = arith.constant 0 : index
    %c0_103 = arith.constant 0 : index
    %125 = vector.load %arg6[%c2_100, %c2_101, %c0_102, %c0_103] : memref<3x4x1x32xf32, #tpu.memory_space<vmem>>, vector<1x1x1x32xf32>
    %126 = vector.shape_cast %125 : vector<1x1x1x32xf32> to vector<1x32xf32>
    %127 = vector.broadcast %126 : vector<1x32xf32> to vector<32x32xf32>
    %128 = arith.addf %124, %127 : vector<32x32xf32>
    %129 = vector.shape_cast %114 : vector<32x32xf32> to vector<2x16x32xf32>
    %130 = vector.shape_cast %121 : vector<32x32xf32> to vector<2x16x32xf32>
    %131 = vector.shape_cast %128 : vector<32x32xf32> to vector<2x16x32xf32>
    "tpu.trace_start"() <{level = 10 : i32, message = "bqd,bkd->bqk"}> : () -> ()
    %cst_104 = arith.constant dense<0.000000e+00> : vector<2x16x16xf32>
    %132 = tpu.matmul %129, %130, %cst_104 {dimension_numbers = #tpu.dot_dimension_numbers<[2], [2], [1], [1], [0, 0, 0, 1, 1, 1], [0], [0]>} : vector<2x16x32xf32>, vector<2x16x32xf32>, vector<2x16x16xf32> -> vector<2x16x16xf32>
    %cst_105 = arith.constant -1.000000e+09 : f32
    "tpu.trace_stop"() : () -> ()
    %133 = vector.shape_cast %18 : vector<1x16x16xi1> to vector<1x16x16xi1>
    %134 = vector.broadcast %133 : vector<1x16x16xi1> to vector<2x16x16xi1>
    %135 = vector.broadcast %cst_105 : f32 to vector<2x16x16xf32>
    %136 = arith.select %134, %132, %135 : vector<2x16x16xi1>, vector<2x16x16xf32>
    %cst_106 = arith.constant dense<0xFF800000> : vector<2x16xf32>
    %137 = vector.multi_reduction <maximumf>, %136, %cst_106 [2] : vector<2x16x16xf32> to vector<2x16xf32>
    %138 = vector.shape_cast %137 : vector<2x16xf32> to vector<2x16x1xf32>
    %139 = vector.broadcast %138 : vector<2x16x1xf32> to vector<2x16x16xf32>
    %140 = arith.subf %136, %139 : vector<2x16x16xf32>
    %141 = math.exp %140 : vector<2x16x16xf32>
    %cst_107 = arith.constant dense<0.000000e+00> : vector<2x16xf32>
    %142 = vector.multi_reduction <add>, %141, %cst_107 [2] : vector<2x16x16xf32> to vector<2x16xf32>
    %143 = vector.shape_cast %142 : vector<2x16xf32> to vector<2x16x1xf32>
    %144 = tpu.reciprocal %143 {approx = true} : vector<2x16x1xf32> -> vector<2x16x1xf32>
    %145 = vector.broadcast %144 : vector<2x16x1xf32> to vector<2x16x16xf32>
    %146 = arith.mulf %141, %145 : vector<2x16x16xf32>
    "tpu.trace_start"() <{level = 10 : i32, message = "bqk,bkd->bqd"}> : () -> ()
    %cst_108 = arith.constant dense<0.000000e+00> : vector<2x16x32xf32>
    %147 = tpu.matmul %146, %131, %cst_108 {dimension_numbers = #tpu.dot_dimension_numbers<[2], [1], [1], [2], [0, 0, 0, 1, 1, 2], [0], [0]>} : vector<2x16x16xf32>, vector<2x16x32xf32>, vector<2x16x32xf32> -> vector<2x16x32xf32>
    "tpu.trace_stop"() : () -> ()
    %148 = vector.shape_cast %147 : vector<2x16x32xf32> to vector<32x32xf32>
    %c2_109 = arith.constant 2 : index
    %c0_110 = arith.constant 0 : index
    %c0_111 = arith.constant 0 : index
    %149 = vector.load %arg7[%c2_109, %c0_110, %c0_111] : memref<4x32x128xf32, #tpu.memory_space<vmem>>, vector<1x32x128xf32>
    %150 = vector.shape_cast %149 : vector<1x32x128xf32> to vector<32x128xf32>
    %cst_112 = arith.constant dense<0.000000e+00> : vector<32x128xf32>
    %151 = tpu.matmul %148, %150, %cst_112 {dimension_numbers = #tpu.dot_dimension_numbers<[1], [0], [0], [1], [0, 0, 1, 1], [], []>} : vector<32x32xf32>, vector<32x128xf32>, vector<32x128xf32> -> vector<32x128xf32>
    %152 = arith.addf %107, %151 : vector<32x128xf32>
    %c0_113 = arith.constant 0 : index
    %c3 = arith.constant 3 : index
    %c0_114 = arith.constant 0 : index
    %c0_115 = arith.constant 0 : index
    %153 = vector.load %arg5[%c0_113, %c3, %c0_114, %c0_115] : memref<3x4x128x32xf32, #tpu.memory_space<vmem>>, vector<1x1x128x32xf32>
    %154 = vector.shape_cast %153 : vector<1x1x128x32xf32> to vector<128x32xf32>
    %cst_116 = arith.constant dense<0.000000e+00> : vector<32x32xf32>
    %155 = tpu.matmul %13, %154, %cst_116 {dimension_numbers = #tpu.dot_dimension_numbers<[1], [0], [0], [1], [0, 0, 1, 1], [], []>} : vector<32x128xf32>, vector<128x32xf32>, vector<32x32xf32> -> vector<32x32xf32>
    %c0_117 = arith.constant 0 : index
    %c3_118 = arith.constant 3 : index
    %c0_119 = arith.constant 0 : index
    %c0_120 = arith.constant 0 : index
    %156 = vector.load %arg6[%c0_117, %c3_118, %c0_119, %c0_120] : memref<3x4x1x32xf32, #tpu.memory_space<vmem>>, vector<1x1x1x32xf32>
    %157 = vector.shape_cast %156 : vector<1x1x1x32xf32> to vector<1x32xf32>
    %158 = vector.broadcast %157 : vector<1x32xf32> to vector<32x32xf32>
    %159 = arith.addf %155, %158 : vector<32x32xf32>
    %c1_121 = arith.constant 1 : index
    %c3_122 = arith.constant 3 : index
    %c0_123 = arith.constant 0 : index
    %c0_124 = arith.constant 0 : index
    %160 = vector.load %arg5[%c1_121, %c3_122, %c0_123, %c0_124] : memref<3x4x128x32xf32, #tpu.memory_space<vmem>>, vector<1x1x128x32xf32>
    %161 = vector.shape_cast %160 : vector<1x1x128x32xf32> to vector<128x32xf32>
    %cst_125 = arith.constant dense<0.000000e+00> : vector<32x32xf32>
    %162 = tpu.matmul %13, %161, %cst_125 {dimension_numbers = #tpu.dot_dimension_numbers<[1], [0], [0], [1], [0, 0, 1, 1], [], []>} : vector<32x128xf32>, vector<128x32xf32>, vector<32x32xf32> -> vector<32x32xf32>
    %c1_126 = arith.constant 1 : index
    %c3_127 = arith.constant 3 : index
    %c0_128 = arith.constant 0 : index
    %c0_129 = arith.constant 0 : index
    %163 = vector.load %arg6[%c1_126, %c3_127, %c0_128, %c0_129] : memref<3x4x1x32xf32, #tpu.memory_space<vmem>>, vector<1x1x1x32xf32>
    %164 = vector.shape_cast %163 : vector<1x1x1x32xf32> to vector<1x32xf32>
    %165 = vector.broadcast %164 : vector<1x32xf32> to vector<32x32xf32>
    %166 = arith.addf %162, %165 : vector<32x32xf32>
    %c2_130 = arith.constant 2 : index
    %c3_131 = arith.constant 3 : index
    %c0_132 = arith.constant 0 : index
    %c0_133 = arith.constant 0 : index
    %167 = vector.load %arg5[%c2_130, %c3_131, %c0_132, %c0_133] : memref<3x4x128x32xf32, #tpu.memory_space<vmem>>, vector<1x1x128x32xf32>
    %168 = vector.shape_cast %167 : vector<1x1x128x32xf32> to vector<128x32xf32>
    %cst_134 = arith.constant dense<0.000000e+00> : vector<32x32xf32>
    %169 = tpu.matmul %13, %168, %cst_134 {dimension_numbers = #tpu.dot_dimension_numbers<[1], [0], [0], [1], [0, 0, 1, 1], [], []>} : vector<32x128xf32>, vector<128x32xf32>, vector<32x32xf32> -> vector<32x32xf32>
    %c2_135 = arith.constant 2 : index
    %c3_136 = arith.constant 3 : index
    %c0_137 = arith.constant 0 : index
    %c0_138 = arith.constant 0 : index
    %170 = vector.load %arg6[%c2_135, %c3_136, %c0_137, %c0_138] : memref<3x4x1x32xf32, #tpu.memory_space<vmem>>, vector<1x1x1x32xf32>
    %171 = vector.shape_cast %170 : vector<1x1x1x32xf32> to vector<1x32xf32>
    %172 = vector.broadcast %171 : vector<1x32xf32> to vector<32x32xf32>
    %173 = arith.addf %169, %172 : vector<32x32xf32>
    %174 = vector.shape_cast %159 : vector<32x32xf32> to vector<2x16x32xf32>
    %175 = vector.shape_cast %166 : vector<32x32xf32> to vector<2x16x32xf32>
    %176 = vector.shape_cast %173 : vector<32x32xf32> to vector<2x16x32xf32>
    "tpu.trace_start"() <{level = 10 : i32, message = "bqd,bkd->bqk"}> : () -> ()
    %cst_139 = arith.constant dense<0.000000e+00> : vector<2x16x16xf32>
    %177 = tpu.matmul %174, %175, %cst_139 {dimension_numbers = #tpu.dot_dimension_numbers<[2], [2], [1], [1], [0, 0, 0, 1, 1, 1], [0], [0]>} : vector<2x16x32xf32>, vector<2x16x32xf32>, vector<2x16x16xf32> -> vector<2x16x16xf32>
    %cst_140 = arith.constant -1.000000e+09 : f32
    "tpu.trace_stop"() : () -> ()
    %178 = vector.shape_cast %18 : vector<1x16x16xi1> to vector<1x16x16xi1>
    %179 = vector.broadcast %178 : vector<1x16x16xi1> to vector<2x16x16xi1>
    %180 = vector.broadcast %cst_140 : f32 to vector<2x16x16xf32>
    %181 = arith.select %179, %177, %180 : vector<2x16x16xi1>, vector<2x16x16xf32>
    %cst_141 = arith.constant dense<0xFF800000> : vector<2x16xf32>
    %182 = vector.multi_reduction <maximumf>, %181, %cst_141 [2] : vector<2x16x16xf32> to vector<2x16xf32>
    %183 = vector.shape_cast %182 : vector<2x16xf32> to vector<2x16x1xf32>
    %184 = vector.broadcast %183 : vector<2x16x1xf32> to vector<2x16x16xf32>
    %185 = arith.subf %181, %184 : vector<2x16x16xf32>
    %186 = math.exp %185 : vector<2x16x16xf32>
    %cst_142 = arith.constant dense<0.000000e+00> : vector<2x16xf32>
    %187 = vector.multi_reduction <add>, %186, %cst_142 [2] : vector<2x16x16xf32> to vector<2x16xf32>
    %188 = vector.shape_cast %187 : vector<2x16xf32> to vector<2x16x1xf32>
    %189 = tpu.reciprocal %188 {approx = true} : vector<2x16x1xf32> -> vector<2x16x1xf32>
    %190 = vector.broadcast %189 : vector<2x16x1xf32> to vector<2x16x16xf32>
    %191 = arith.mulf %186, %190 : vector<2x16x16xf32>
    "tpu.trace_start"() <{level = 10 : i32, message = "bqk,bkd->bqd"}> : () -> ()
    %cst_143 = arith.constant dense<0.000000e+00> : vector<2x16x32xf32>
    %192 = tpu.matmul %191, %176, %cst_143 {dimension_numbers = #tpu.dot_dimension_numbers<[2], [1], [1], [2], [0, 0, 0, 1, 1, 2], [0], [0]>} : vector<2x16x16xf32>, vector<2x16x32xf32>, vector<2x16x32xf32> -> vector<2x16x32xf32>
    "tpu.trace_stop"() : () -> ()
    %193 = vector.shape_cast %192 : vector<2x16x32xf32> to vector<32x32xf32>
    %c3_144 = arith.constant 3 : index
    %c0_145 = arith.constant 0 : index
    %c0_146 = arith.constant 0 : index
    %194 = vector.load %arg7[%c3_144, %c0_145, %c0_146] : memref<4x32x128xf32, #tpu.memory_space<vmem>>, vector<1x32x128xf32>
    %195 = vector.shape_cast %194 : vector<1x32x128xf32> to vector<32x128xf32>
    %cst_147 = arith.constant dense<0.000000e+00> : vector<32x128xf32>
    %196 = tpu.matmul %193, %195, %cst_147 {dimension_numbers = #tpu.dot_dimension_numbers<[1], [0], [0], [1], [0, 0, 1, 1], [], []>} : vector<32x32xf32>, vector<32x128xf32>, vector<32x128xf32> -> vector<32x128xf32>
    %197 = arith.addf %152, %196 : vector<32x128xf32>
    %c0_148 = arith.constant 0 : index
    %c0_149 = arith.constant 0 : index
    %198 = vector.load %arg8[%c0_148, %c0_149] : memref<1x128xf32, #tpu.memory_space<vmem>>, vector<1x128xf32>
    %199 = vector.broadcast %198 : vector<1x128xf32> to vector<32x128xf32>
    %200 = arith.addf %197, %199 : vector<32x128xf32>
    %201 = arith.addf %200, %13 : vector<32x128xf32>
    %cst_150 = arith.constant dense<0.000000e+00> : vector<32xf32>
    %202 = vector.multi_reduction <add>, %201, %cst_150 [1] : vector<32x128xf32> to vector<32xf32>
    %203 = vector.shape_cast %202 : vector<32xf32> to vector<32x1xf32>
    %cst_151 = arith.constant 1.280000e+02 : f32
    %204 = vector.broadcast %cst_151 : f32 to vector<32x1xf32>
    %205 = arith.divf %203, %204 : vector<32x1xf32>
    %206 = arith.mulf %201, %201 : vector<32x128xf32>
    %cst_152 = arith.constant dense<0.000000e+00> : vector<32xf32>
    %207 = vector.multi_reduction <add>, %206, %cst_152 [1] : vector<32x128xf32> to vector<32xf32>
    %208 = vector.shape_cast %207 : vector<32xf32> to vector<32x1xf32>
    %cst_153 = arith.constant 1.280000e+02 : f32
    %209 = vector.broadcast %cst_153 : f32 to vector<32x1xf32>
    %210 = arith.divf %208, %209 : vector<32x1xf32>
    %211 = arith.mulf %205, %205 : vector<32x1xf32>
    %212 = arith.subf %210, %211 : vector<32x1xf32>
    %c0_154 = arith.constant 0 : index
    %c0_155 = arith.constant 0 : index
    %c0_156 = arith.constant 0 : index
    %213 = vector.load %arg17[%c0_154, %c0_155, %c0_156] : memref<3x1x128xf32, #tpu.memory_space<vmem>>, vector<1x1x128xf32>
    %214 = vector.shape_cast %213 : vector<1x1x128xf32> to vector<1x128xf32>
    %215 = vector.broadcast %205 : vector<32x1xf32> to vector<32x128xf32>
    %216 = arith.subf %201, %215 : vector<32x128xf32>
    %cst_157 = arith.constant 9.99999974E-6 : f32
    %217 = vector.broadcast %cst_157 : f32 to vector<32x1xf32>
    %218 = arith.addf %212, %217 : vector<32x1xf32>
    %219 = math.rsqrt %218 : vector<32x1xf32>
    %220 = vector.broadcast %219 : vector<32x1xf32> to vector<32x128xf32>
    %221 = arith.mulf %216, %220 : vector<32x128xf32>
    %222 = vector.broadcast %214 : vector<1x128xf32> to vector<32x128xf32>
    %223 = arith.mulf %222, %221 : vector<32x128xf32>
    %c0_158 = arith.constant 0 : index
    %c0_159 = arith.constant 0 : index
    %c0_160 = arith.constant 0 : index
    %224 = vector.load %arg18[%c0_158, %c0_159, %c0_160] : memref<3x1x128xf32, #tpu.memory_space<vmem>>, vector<1x1x128xf32>
    %225 = vector.shape_cast %224 : vector<1x1x128xf32> to vector<1x128xf32>
    %226 = vector.broadcast %225 : vector<1x128xf32> to vector<32x128xf32>
    %227 = arith.addf %223, %226 : vector<32x128xf32>
    %c0_161 = arith.constant 0 : index
    %c0_162 = arith.constant 0 : index
    %c0_163 = arith.constant 0 : index
    %c0_164 = arith.constant 0 : index
    %228 = vector.load %arg9[%c0_161, %c0_162, %c0_163, %c0_164] : memref<3x4x128x32xf32, #tpu.memory_space<vmem>>, vector<1x1x128x32xf32>
    %229 = vector.shape_cast %228 : vector<1x1x128x32xf32> to vector<128x32xf32>
    %cst_165 = arith.constant dense<0.000000e+00> : vector<32x32xf32>
    %230 = tpu.matmul %227, %229, %cst_165 {dimension_numbers = #tpu.dot_dimension_numbers<[1], [0], [0], [1], [0, 0, 1, 1], [], []>} : vector<32x128xf32>, vector<128x32xf32>, vector<32x32xf32> -> vector<32x32xf32>
    %c0_166 = arith.constant 0 : index
    %c0_167 = arith.constant 0 : index
    %c0_168 = arith.constant 0 : index
    %c0_169 = arith.constant 0 : index
    %231 = vector.load %arg10[%c0_166, %c0_167, %c0_168, %c0_169] : memref<3x4x1x32xf32, #tpu.memory_space<vmem>>, vector<1x1x1x32xf32>
    %232 = vector.shape_cast %231 : vector<1x1x1x32xf32> to vector<1x32xf32>
    %233 = vector.broadcast %232 : vector<1x32xf32> to vector<32x32xf32>
    %234 = arith.addf %230, %233 : vector<32x32xf32>
    %c1_170 = arith.constant 1 : index
    %c0_171 = arith.constant 0 : index
    %c0_172 = arith.constant 0 : index
    %c0_173 = arith.constant 0 : index
    %235 = vector.load %arg9[%c1_170, %c0_171, %c0_172, %c0_173] : memref<3x4x128x32xf32, #tpu.memory_space<vmem>>, vector<1x1x128x32xf32>
    %236 = vector.shape_cast %235 : vector<1x1x128x32xf32> to vector<128x32xf32>
    %cst_174 = arith.constant dense<0.000000e+00> : vector<32x32xf32>
    %237 = tpu.matmul %14, %236, %cst_174 {dimension_numbers = #tpu.dot_dimension_numbers<[1], [0], [0], [1], [0, 0, 1, 1], [], []>} : vector<32x128xf32>, vector<128x32xf32>, vector<32x32xf32> -> vector<32x32xf32>
    %c1_175 = arith.constant 1 : index
    %c0_176 = arith.constant 0 : index
    %c0_177 = arith.constant 0 : index
    %c0_178 = arith.constant 0 : index
    %238 = vector.load %arg10[%c1_175, %c0_176, %c0_177, %c0_178] : memref<3x4x1x32xf32, #tpu.memory_space<vmem>>, vector<1x1x1x32xf32>
    %239 = vector.shape_cast %238 : vector<1x1x1x32xf32> to vector<1x32xf32>
    %240 = vector.broadcast %239 : vector<1x32xf32> to vector<32x32xf32>
    %241 = arith.addf %237, %240 : vector<32x32xf32>
    %c2_179 = arith.constant 2 : index
    %c0_180 = arith.constant 0 : index
    %c0_181 = arith.constant 0 : index
    %c0_182 = arith.constant 0 : index
    %242 = vector.load %arg9[%c2_179, %c0_180, %c0_181, %c0_182] : memref<3x4x128x32xf32, #tpu.memory_space<vmem>>, vector<1x1x128x32xf32>
    %243 = vector.shape_cast %242 : vector<1x1x128x32xf32> to vector<128x32xf32>
    %cst_183 = arith.constant dense<0.000000e+00> : vector<32x32xf32>
    %244 = tpu.matmul %14, %243, %cst_183 {dimension_numbers = #tpu.dot_dimension_numbers<[1], [0], [0], [1], [0, 0, 1, 1], [], []>} : vector<32x128xf32>, vector<128x32xf32>, vector<32x32xf32> -> vector<32x32xf32>
    %c2_184 = arith.constant 2 : index
    %c0_185 = arith.constant 0 : index
    %c0_186 = arith.constant 0 : index
    %c0_187 = arith.constant 0 : index
    %245 = vector.load %arg10[%c2_184, %c0_185, %c0_186, %c0_187] : memref<3x4x1x32xf32, #tpu.memory_space<vmem>>, vector<1x1x1x32xf32>
    %246 = vector.shape_cast %245 : vector<1x1x1x32xf32> to vector<1x32xf32>
    %247 = vector.broadcast %246 : vector<1x32xf32> to vector<32x32xf32>
    %248 = arith.addf %244, %247 : vector<32x32xf32>
    %249 = vector.shape_cast %234 : vector<32x32xf32> to vector<2x16x32xf32>
    %250 = vector.shape_cast %241 : vector<32x32xf32> to vector<2x16x32xf32>
    %251 = vector.shape_cast %248 : vector<32x32xf32> to vector<2x16x32xf32>
    "tpu.trace_start"() <{level = 10 : i32, message = "bqd,bkd->bqk"}> : () -> ()
    %cst_188 = arith.constant dense<0.000000e+00> : vector<2x16x16xf32>
    %252 = tpu.matmul %249, %250, %cst_188 {dimension_numbers = #tpu.dot_dimension_numbers<[2], [2], [1], [1], [0, 0, 0, 1, 1, 1], [0], [0]>} : vector<2x16x32xf32>, vector<2x16x32xf32>, vector<2x16x16xf32> -> vector<2x16x16xf32>
    "tpu.trace_stop"() : () -> ()
    %cst_189 = arith.constant dense<0xFF800000> : vector<2x16xf32>
    %253 = vector.multi_reduction <maximumf>, %252, %cst_189 [2] : vector<2x16x16xf32> to vector<2x16xf32>
    %254 = vector.shape_cast %253 : vector<2x16xf32> to vector<2x16x1xf32>
    %255 = vector.broadcast %254 : vector<2x16x1xf32> to vector<2x16x16xf32>
    %256 = arith.subf %252, %255 : vector<2x16x16xf32>
    %257 = math.exp %256 : vector<2x16x16xf32>
    %cst_190 = arith.constant dense<0.000000e+00> : vector<2x16xf32>
    %258 = vector.multi_reduction <add>, %257, %cst_190 [2] : vector<2x16x16xf32> to vector<2x16xf32>
    %259 = vector.shape_cast %258 : vector<2x16xf32> to vector<2x16x1xf32>
    %260 = tpu.reciprocal %259 {approx = true} : vector<2x16x1xf32> -> vector<2x16x1xf32>
    %261 = vector.broadcast %260 : vector<2x16x1xf32> to vector<2x16x16xf32>
    %262 = arith.mulf %257, %261 : vector<2x16x16xf32>
    "tpu.trace_start"() <{level = 10 : i32, message = "bqk,bkd->bqd"}> : () -> ()
    %cst_191 = arith.constant dense<0.000000e+00> : vector<2x16x32xf32>
    %263 = tpu.matmul %262, %251, %cst_191 {dimension_numbers = #tpu.dot_dimension_numbers<[2], [1], [1], [2], [0, 0, 0, 1, 1, 2], [0], [0]>} : vector<2x16x16xf32>, vector<2x16x32xf32>, vector<2x16x32xf32> -> vector<2x16x32xf32>
    "tpu.trace_stop"() : () -> ()
    %264 = vector.shape_cast %263 : vector<2x16x32xf32> to vector<32x32xf32>
    %c0_192 = arith.constant 0 : index
    %c0_193 = arith.constant 0 : index
    %c0_194 = arith.constant 0 : index
    %265 = vector.load %arg11[%c0_192, %c0_193, %c0_194] : memref<4x32x128xf32, #tpu.memory_space<vmem>>, vector<1x32x128xf32>
    %266 = vector.shape_cast %265 : vector<1x32x128xf32> to vector<32x128xf32>
    %cst_195 = arith.constant dense<0.000000e+00> : vector<32x128xf32>
    %267 = tpu.matmul %264, %266, %cst_195 {dimension_numbers = #tpu.dot_dimension_numbers<[1], [0], [0], [1], [0, 0, 1, 1], [], []>} : vector<32x32xf32>, vector<32x128xf32>, vector<32x128xf32> -> vector<32x128xf32>
    %c0_196 = arith.constant 0 : index
    %c1_197 = arith.constant 1 : index
    %c0_198 = arith.constant 0 : index
    %c0_199 = arith.constant 0 : index
    %268 = vector.load %arg9[%c0_196, %c1_197, %c0_198, %c0_199] : memref<3x4x128x32xf32, #tpu.memory_space<vmem>>, vector<1x1x128x32xf32>
    %269 = vector.shape_cast %268 : vector<1x1x128x32xf32> to vector<128x32xf32>
    %cst_200 = arith.constant dense<0.000000e+00> : vector<32x32xf32>
    %270 = tpu.matmul %227, %269, %cst_200 {dimension_numbers = #tpu.dot_dimension_numbers<[1], [0], [0], [1], [0, 0, 1, 1], [], []>} : vector<32x128xf32>, vector<128x32xf32>, vector<32x32xf32> -> vector<32x32xf32>
    %c0_201 = arith.constant 0 : index
    %c1_202 = arith.constant 1 : index
    %c0_203 = arith.constant 0 : index
    %c0_204 = arith.constant 0 : index
    %271 = vector.load %arg10[%c0_201, %c1_202, %c0_203, %c0_204] : memref<3x4x1x32xf32, #tpu.memory_space<vmem>>, vector<1x1x1x32xf32>
    %272 = vector.shape_cast %271 : vector<1x1x1x32xf32> to vector<1x32xf32>
    %273 = vector.broadcast %272 : vector<1x32xf32> to vector<32x32xf32>
    %274 = arith.addf %270, %273 : vector<32x32xf32>
    %c1_205 = arith.constant 1 : index
    %c1_206 = arith.constant 1 : index
    %c0_207 = arith.constant 0 : index
    %c0_208 = arith.constant 0 : index
    %275 = vector.load %arg9[%c1_205, %c1_206, %c0_207, %c0_208] : memref<3x4x128x32xf32, #tpu.memory_space<vmem>>, vector<1x1x128x32xf32>
    %276 = vector.shape_cast %275 : vector<1x1x128x32xf32> to vector<128x32xf32>
    %cst_209 = arith.constant dense<0.000000e+00> : vector<32x32xf32>
    %277 = tpu.matmul %14, %276, %cst_209 {dimension_numbers = #tpu.dot_dimension_numbers<[1], [0], [0], [1], [0, 0, 1, 1], [], []>} : vector<32x128xf32>, vector<128x32xf32>, vector<32x32xf32> -> vector<32x32xf32>
    %c1_210 = arith.constant 1 : index
    %c1_211 = arith.constant 1 : index
    %c0_212 = arith.constant 0 : index
    %c0_213 = arith.constant 0 : index
    %278 = vector.load %arg10[%c1_210, %c1_211, %c0_212, %c0_213] : memref<3x4x1x32xf32, #tpu.memory_space<vmem>>, vector<1x1x1x32xf32>
    %279 = vector.shape_cast %278 : vector<1x1x1x32xf32> to vector<1x32xf32>
    %280 = vector.broadcast %279 : vector<1x32xf32> to vector<32x32xf32>
    %281 = arith.addf %277, %280 : vector<32x32xf32>
    %c2_214 = arith.constant 2 : index
    %c1_215 = arith.constant 1 : index
    %c0_216 = arith.constant 0 : index
    %c0_217 = arith.constant 0 : index
    %282 = vector.load %arg9[%c2_214, %c1_215, %c0_216, %c0_217] : memref<3x4x128x32xf32, #tpu.memory_space<vmem>>, vector<1x1x128x32xf32>
    %283 = vector.shape_cast %282 : vector<1x1x128x32xf32> to vector<128x32xf32>
    %cst_218 = arith.constant dense<0.000000e+00> : vector<32x32xf32>
    %284 = tpu.matmul %14, %283, %cst_218 {dimension_numbers = #tpu.dot_dimension_numbers<[1], [0], [0], [1], [0, 0, 1, 1], [], []>} : vector<32x128xf32>, vector<128x32xf32>, vector<32x32xf32> -> vector<32x32xf32>
    %c2_219 = arith.constant 2 : index
    %c1_220 = arith.constant 1 : index
    %c0_221 = arith.constant 0 : index
    %c0_222 = arith.constant 0 : index
    %285 = vector.load %arg10[%c2_219, %c1_220, %c0_221, %c0_222] : memref<3x4x1x32xf32, #tpu.memory_space<vmem>>, vector<1x1x1x32xf32>
    %286 = vector.shape_cast %285 : vector<1x1x1x32xf32> to vector<1x32xf32>
    %287 = vector.broadcast %286 : vector<1x32xf32> to vector<32x32xf32>
    %288 = arith.addf %284, %287 : vector<32x32xf32>
    %289 = vector.shape_cast %274 : vector<32x32xf32> to vector<2x16x32xf32>
    %290 = vector.shape_cast %281 : vector<32x32xf32> to vector<2x16x32xf32>
    %291 = vector.shape_cast %288 : vector<32x32xf32> to vector<2x16x32xf32>
    "tpu.trace_start"() <{level = 10 : i32, message = "bqd,bkd->bqk"}> : () -> ()
    %cst_223 = arith.constant dense<0.000000e+00> : vector<2x16x16xf32>
    %292 = tpu.matmul %289, %290, %cst_223 {dimension_numbers = #tpu.dot_dimension_numbers<[2], [2], [1], [1], [0, 0, 0, 1, 1, 1], [0], [0]>} : vector<2x16x32xf32>, vector<2x16x32xf32>, vector<2x16x16xf32> -> vector<2x16x16xf32>
    "tpu.trace_stop"() : () -> ()
    %cst_224 = arith.constant dense<0xFF800000> : vector<2x16xf32>
    %293 = vector.multi_reduction <maximumf>, %292, %cst_224 [2] : vector<2x16x16xf32> to vector<2x16xf32>
    %294 = vector.shape_cast %293 : vector<2x16xf32> to vector<2x16x1xf32>
    %295 = vector.broadcast %294 : vector<2x16x1xf32> to vector<2x16x16xf32>
    %296 = arith.subf %292, %295 : vector<2x16x16xf32>
    %297 = math.exp %296 : vector<2x16x16xf32>
    %cst_225 = arith.constant dense<0.000000e+00> : vector<2x16xf32>
    %298 = vector.multi_reduction <add>, %297, %cst_225 [2] : vector<2x16x16xf32> to vector<2x16xf32>
    %299 = vector.shape_cast %298 : vector<2x16xf32> to vector<2x16x1xf32>
    %300 = tpu.reciprocal %299 {approx = true} : vector<2x16x1xf32> -> vector<2x16x1xf32>
    %301 = vector.broadcast %300 : vector<2x16x1xf32> to vector<2x16x16xf32>
    %302 = arith.mulf %297, %301 : vector<2x16x16xf32>
    "tpu.trace_start"() <{level = 10 : i32, message = "bqk,bkd->bqd"}> : () -> ()
    %cst_226 = arith.constant dense<0.000000e+00> : vector<2x16x32xf32>
    %303 = tpu.matmul %302, %291, %cst_226 {dimension_numbers = #tpu.dot_dimension_numbers<[2], [1], [1], [2], [0, 0, 0, 1, 1, 2], [0], [0]>} : vector<2x16x16xf32>, vector<2x16x32xf32>, vector<2x16x32xf32> -> vector<2x16x32xf32>
    "tpu.trace_stop"() : () -> ()
    %304 = vector.shape_cast %303 : vector<2x16x32xf32> to vector<32x32xf32>
    %c1_227 = arith.constant 1 : index
    %c0_228 = arith.constant 0 : index
    %c0_229 = arith.constant 0 : index
    %305 = vector.load %arg11[%c1_227, %c0_228, %c0_229] : memref<4x32x128xf32, #tpu.memory_space<vmem>>, vector<1x32x128xf32>
    %306 = vector.shape_cast %305 : vector<1x32x128xf32> to vector<32x128xf32>
    %cst_230 = arith.constant dense<0.000000e+00> : vector<32x128xf32>
    %307 = tpu.matmul %304, %306, %cst_230 {dimension_numbers = #tpu.dot_dimension_numbers<[1], [0], [0], [1], [0, 0, 1, 1], [], []>} : vector<32x32xf32>, vector<32x128xf32>, vector<32x128xf32> -> vector<32x128xf32>
    %308 = arith.addf %267, %307 : vector<32x128xf32>
    %c0_231 = arith.constant 0 : index
    %c2_232 = arith.constant 2 : index
    %c0_233 = arith.constant 0 : index
    %c0_234 = arith.constant 0 : index
    %309 = vector.load %arg9[%c0_231, %c2_232, %c0_233, %c0_234] : memref<3x4x128x32xf32, #tpu.memory_space<vmem>>, vector<1x1x128x32xf32>
    %310 = vector.shape_cast %309 : vector<1x1x128x32xf32> to vector<128x32xf32>
    %cst_235 = arith.constant dense<0.000000e+00> : vector<32x32xf32>
    %311 = tpu.matmul %227, %310, %cst_235 {dimension_numbers = #tpu.dot_dimension_numbers<[1], [0], [0], [1], [0, 0, 1, 1], [], []>} : vector<32x128xf32>, vector<128x32xf32>, vector<32x32xf32> -> vector<32x32xf32>
    %c0_236 = arith.constant 0 : index
    %c2_237 = arith.constant 2 : index
    %c0_238 = arith.constant 0 : index
    %c0_239 = arith.constant 0 : index
    %312 = vector.load %arg10[%c0_236, %c2_237, %c0_238, %c0_239] : memref<3x4x1x32xf32, #tpu.memory_space<vmem>>, vector<1x1x1x32xf32>
    %313 = vector.shape_cast %312 : vector<1x1x1x32xf32> to vector<1x32xf32>
    %314 = vector.broadcast %313 : vector<1x32xf32> to vector<32x32xf32>
    %315 = arith.addf %311, %314 : vector<32x32xf32>
    %c1_240 = arith.constant 1 : index
    %c2_241 = arith.constant 2 : index
    %c0_242 = arith.constant 0 : index
    %c0_243 = arith.constant 0 : index
    %316 = vector.load %arg9[%c1_240, %c2_241, %c0_242, %c0_243] : memref<3x4x128x32xf32, #tpu.memory_space<vmem>>, vector<1x1x128x32xf32>
    %317 = vector.shape_cast %316 : vector<1x1x128x32xf32> to vector<128x32xf32>
    %cst_244 = arith.constant dense<0.000000e+00> : vector<32x32xf32>
    %318 = tpu.matmul %14, %317, %cst_244 {dimension_numbers = #tpu.dot_dimension_numbers<[1], [0], [0], [1], [0, 0, 1, 1], [], []>} : vector<32x128xf32>, vector<128x32xf32>, vector<32x32xf32> -> vector<32x32xf32>
    %c1_245 = arith.constant 1 : index
    %c2_246 = arith.constant 2 : index
    %c0_247 = arith.constant 0 : index
    %c0_248 = arith.constant 0 : index
    %319 = vector.load %arg10[%c1_245, %c2_246, %c0_247, %c0_248] : memref<3x4x1x32xf32, #tpu.memory_space<vmem>>, vector<1x1x1x32xf32>
    %320 = vector.shape_cast %319 : vector<1x1x1x32xf32> to vector<1x32xf32>
    %321 = vector.broadcast %320 : vector<1x32xf32> to vector<32x32xf32>
    %322 = arith.addf %318, %321 : vector<32x32xf32>
    %c2_249 = arith.constant 2 : index
    %c2_250 = arith.constant 2 : index
    %c0_251 = arith.constant 0 : index
    %c0_252 = arith.constant 0 : index
    %323 = vector.load %arg9[%c2_249, %c2_250, %c0_251, %c0_252] : memref<3x4x128x32xf32, #tpu.memory_space<vmem>>, vector<1x1x128x32xf32>
    %324 = vector.shape_cast %323 : vector<1x1x128x32xf32> to vector<128x32xf32>
    %cst_253 = arith.constant dense<0.000000e+00> : vector<32x32xf32>
    %325 = tpu.matmul %14, %324, %cst_253 {dimension_numbers = #tpu.dot_dimension_numbers<[1], [0], [0], [1], [0, 0, 1, 1], [], []>} : vector<32x128xf32>, vector<128x32xf32>, vector<32x32xf32> -> vector<32x32xf32>
    %c2_254 = arith.constant 2 : index
    %c2_255 = arith.constant 2 : index
    %c0_256 = arith.constant 0 : index
    %c0_257 = arith.constant 0 : index
    %326 = vector.load %arg10[%c2_254, %c2_255, %c0_256, %c0_257] : memref<3x4x1x32xf32, #tpu.memory_space<vmem>>, vector<1x1x1x32xf32>
    %327 = vector.shape_cast %326 : vector<1x1x1x32xf32> to vector<1x32xf32>
    %328 = vector.broadcast %327 : vector<1x32xf32> to vector<32x32xf32>
    %329 = arith.addf %325, %328 : vector<32x32xf32>
    %330 = vector.shape_cast %315 : vector<32x32xf32> to vector<2x16x32xf32>
    %331 = vector.shape_cast %322 : vector<32x32xf32> to vector<2x16x32xf32>
    %332 = vector.shape_cast %329 : vector<32x32xf32> to vector<2x16x32xf32>
    "tpu.trace_start"() <{level = 10 : i32, message = "bqd,bkd->bqk"}> : () -> ()
    %cst_258 = arith.constant dense<0.000000e+00> : vector<2x16x16xf32>
    %333 = tpu.matmul %330, %331, %cst_258 {dimension_numbers = #tpu.dot_dimension_numbers<[2], [2], [1], [1], [0, 0, 0, 1, 1, 1], [0], [0]>} : vector<2x16x32xf32>, vector<2x16x32xf32>, vector<2x16x16xf32> -> vector<2x16x16xf32>
    "tpu.trace_stop"() : () -> ()
    %cst_259 = arith.constant dense<0xFF800000> : vector<2x16xf32>
    %334 = vector.multi_reduction <maximumf>, %333, %cst_259 [2] : vector<2x16x16xf32> to vector<2x16xf32>
    %335 = vector.shape_cast %334 : vector<2x16xf32> to vector<2x16x1xf32>
    %336 = vector.broadcast %335 : vector<2x16x1xf32> to vector<2x16x16xf32>
    %337 = arith.subf %333, %336 : vector<2x16x16xf32>
    %338 = math.exp %337 : vector<2x16x16xf32>
    %cst_260 = arith.constant dense<0.000000e+00> : vector<2x16xf32>
    %339 = vector.multi_reduction <add>, %338, %cst_260 [2] : vector<2x16x16xf32> to vector<2x16xf32>
    %340 = vector.shape_cast %339 : vector<2x16xf32> to vector<2x16x1xf32>
    %341 = tpu.reciprocal %340 {approx = true} : vector<2x16x1xf32> -> vector<2x16x1xf32>
    %342 = vector.broadcast %341 : vector<2x16x1xf32> to vector<2x16x16xf32>
    %343 = arith.mulf %338, %342 : vector<2x16x16xf32>
    "tpu.trace_start"() <{level = 10 : i32, message = "bqk,bkd->bqd"}> : () -> ()
    %cst_261 = arith.constant dense<0.000000e+00> : vector<2x16x32xf32>
    %344 = tpu.matmul %343, %332, %cst_261 {dimension_numbers = #tpu.dot_dimension_numbers<[2], [1], [1], [2], [0, 0, 0, 1, 1, 2], [0], [0]>} : vector<2x16x16xf32>, vector<2x16x32xf32>, vector<2x16x32xf32> -> vector<2x16x32xf32>
    "tpu.trace_stop"() : () -> ()
    %345 = vector.shape_cast %344 : vector<2x16x32xf32> to vector<32x32xf32>
    %c2_262 = arith.constant 2 : index
    %c0_263 = arith.constant 0 : index
    %c0_264 = arith.constant 0 : index
    %346 = vector.load %arg11[%c2_262, %c0_263, %c0_264] : memref<4x32x128xf32, #tpu.memory_space<vmem>>, vector<1x32x128xf32>
    %347 = vector.shape_cast %346 : vector<1x32x128xf32> to vector<32x128xf32>
    %cst_265 = arith.constant dense<0.000000e+00> : vector<32x128xf32>
    %348 = tpu.matmul %345, %347, %cst_265 {dimension_numbers = #tpu.dot_dimension_numbers<[1], [0], [0], [1], [0, 0, 1, 1], [], []>} : vector<32x32xf32>, vector<32x128xf32>, vector<32x128xf32> -> vector<32x128xf32>
    %349 = arith.addf %308, %348 : vector<32x128xf32>
    %c0_266 = arith.constant 0 : index
    %c3_267 = arith.constant 3 : index
    %c0_268 = arith.constant 0 : index
    %c0_269 = arith.constant 0 : index
    %350 = vector.load %arg9[%c0_266, %c3_267, %c0_268, %c0_269] : memref<3x4x128x32xf32, #tpu.memory_space<vmem>>, vector<1x1x128x32xf32>
    %351 = vector.shape_cast %350 : vector<1x1x128x32xf32> to vector<128x32xf32>
    %cst_270 = arith.constant dense<0.000000e+00> : vector<32x32xf32>
    %352 = tpu.matmul %227, %351, %cst_270 {dimension_numbers = #tpu.dot_dimension_numbers<[1], [0], [0], [1], [0, 0, 1, 1], [], []>} : vector<32x128xf32>, vector<128x32xf32>, vector<32x32xf32> -> vector<32x32xf32>
    %c0_271 = arith.constant 0 : index
    %c3_272 = arith.constant 3 : index
    %c0_273 = arith.constant 0 : index
    %c0_274 = arith.constant 0 : index
    %353 = vector.load %arg10[%c0_271, %c3_272, %c0_273, %c0_274] : memref<3x4x1x32xf32, #tpu.memory_space<vmem>>, vector<1x1x1x32xf32>
    %354 = vector.shape_cast %353 : vector<1x1x1x32xf32> to vector<1x32xf32>
    %355 = vector.broadcast %354 : vector<1x32xf32> to vector<32x32xf32>
    %356 = arith.addf %352, %355 : vector<32x32xf32>
    %c1_275 = arith.constant 1 : index
    %c3_276 = arith.constant 3 : index
    %c0_277 = arith.constant 0 : index
    %c0_278 = arith.constant 0 : index
    %357 = vector.load %arg9[%c1_275, %c3_276, %c0_277, %c0_278] : memref<3x4x128x32xf32, #tpu.memory_space<vmem>>, vector<1x1x128x32xf32>
    %358 = vector.shape_cast %357 : vector<1x1x128x32xf32> to vector<128x32xf32>
    %cst_279 = arith.constant dense<0.000000e+00> : vector<32x32xf32>
    %359 = tpu.matmul %14, %358, %cst_279 {dimension_numbers = #tpu.dot_dimension_numbers<[1], [0], [0], [1], [0, 0, 1, 1], [], []>} : vector<32x128xf32>, vector<128x32xf32>, vector<32x32xf32> -> vector<32x32xf32>
    %c1_280 = arith.constant 1 : index
    %c3_281 = arith.constant 3 : index
    %c0_282 = arith.constant 0 : index
    %c0_283 = arith.constant 0 : index
    %360 = vector.load %arg10[%c1_280, %c3_281, %c0_282, %c0_283] : memref<3x4x1x32xf32, #tpu.memory_space<vmem>>, vector<1x1x1x32xf32>
    %361 = vector.shape_cast %360 : vector<1x1x1x32xf32> to vector<1x32xf32>
    %362 = vector.broadcast %361 : vector<1x32xf32> to vector<32x32xf32>
    %363 = arith.addf %359, %362 : vector<32x32xf32>
    %c2_284 = arith.constant 2 : index
    %c3_285 = arith.constant 3 : index
    %c0_286 = arith.constant 0 : index
    %c0_287 = arith.constant 0 : index
    %364 = vector.load %arg9[%c2_284, %c3_285, %c0_286, %c0_287] : memref<3x4x128x32xf32, #tpu.memory_space<vmem>>, vector<1x1x128x32xf32>
    %365 = vector.shape_cast %364 : vector<1x1x128x32xf32> to vector<128x32xf32>
    %cst_288 = arith.constant dense<0.000000e+00> : vector<32x32xf32>
    %366 = tpu.matmul %14, %365, %cst_288 {dimension_numbers = #tpu.dot_dimension_numbers<[1], [0], [0], [1], [0, 0, 1, 1], [], []>} : vector<32x128xf32>, vector<128x32xf32>, vector<32x32xf32> -> vector<32x32xf32>
    %c2_289 = arith.constant 2 : index
    %c3_290 = arith.constant 3 : index
    %c0_291 = arith.constant 0 : index
    %c0_292 = arith.constant 0 : index
    %367 = vector.load %arg10[%c2_289, %c3_290, %c0_291, %c0_292] : memref<3x4x1x32xf32, #tpu.memory_space<vmem>>, vector<1x1x1x32xf32>
    %368 = vector.shape_cast %367 : vector<1x1x1x32xf32> to vector<1x32xf32>
    %369 = vector.broadcast %368 : vector<1x32xf32> to vector<32x32xf32>
    %370 = arith.addf %366, %369 : vector<32x32xf32>
    %371 = vector.shape_cast %356 : vector<32x32xf32> to vector<2x16x32xf32>
    %372 = vector.shape_cast %363 : vector<32x32xf32> to vector<2x16x32xf32>
    %373 = vector.shape_cast %370 : vector<32x32xf32> to vector<2x16x32xf32>
    "tpu.trace_start"() <{level = 10 : i32, message = "bqd,bkd->bqk"}> : () -> ()
    %cst_293 = arith.constant dense<0.000000e+00> : vector<2x16x16xf32>
    %374 = tpu.matmul %371, %372, %cst_293 {dimension_numbers = #tpu.dot_dimension_numbers<[2], [2], [1], [1], [0, 0, 0, 1, 1, 1], [0], [0]>} : vector<2x16x32xf32>, vector<2x16x32xf32>, vector<2x16x16xf32> -> vector<2x16x16xf32>
    "tpu.trace_stop"() : () -> ()
    %cst_294 = arith.constant dense<0xFF800000> : vector<2x16xf32>
    %375 = vector.multi_reduction <maximumf>, %374, %cst_294 [2] : vector<2x16x16xf32> to vector<2x16xf32>
    %376 = vector.shape_cast %375 : vector<2x16xf32> to vector<2x16x1xf32>
    %377 = vector.broadcast %376 : vector<2x16x1xf32> to vector<2x16x16xf32>
    %378 = arith.subf %374, %377 : vector<2x16x16xf32>
    %379 = math.exp %378 : vector<2x16x16xf32>
    %cst_295 = arith.constant dense<0.000000e+00> : vector<2x16xf32>
    %380 = vector.multi_reduction <add>, %379, %cst_295 [2] : vector<2x16x16xf32> to vector<2x16xf32>
    %381 = vector.shape_cast %380 : vector<2x16xf32> to vector<2x16x1xf32>
    %382 = tpu.reciprocal %381 {approx = true} : vector<2x16x1xf32> -> vector<2x16x1xf32>
    %383 = vector.broadcast %382 : vector<2x16x1xf32> to vector<2x16x16xf32>
    %384 = arith.mulf %379, %383 : vector<2x16x16xf32>
    "tpu.trace_start"() <{level = 10 : i32, message = "bqk,bkd->bqd"}> : () -> ()
    %cst_296 = arith.constant dense<0.000000e+00> : vector<2x16x32xf32>
    %385 = tpu.matmul %384, %373, %cst_296 {dimension_numbers = #tpu.dot_dimension_numbers<[2], [1], [1], [2], [0, 0, 0, 1, 1, 2], [0], [0]>} : vector<2x16x16xf32>, vector<2x16x32xf32>, vector<2x16x32xf32> -> vector<2x16x32xf32>
    "tpu.trace_stop"() : () -> ()
    %386 = vector.shape_cast %385 : vector<2x16x32xf32> to vector<32x32xf32>
    %c3_297 = arith.constant 3 : index
    %c0_298 = arith.constant 0 : index
    %c0_299 = arith.constant 0 : index
    %387 = vector.load %arg11[%c3_297, %c0_298, %c0_299] : memref<4x32x128xf32, #tpu.memory_space<vmem>>, vector<1x32x128xf32>
    %388 = vector.shape_cast %387 : vector<1x32x128xf32> to vector<32x128xf32>
    %cst_300 = arith.constant dense<0.000000e+00> : vector<32x128xf32>
    %389 = tpu.matmul %386, %388, %cst_300 {dimension_numbers = #tpu.dot_dimension_numbers<[1], [0], [0], [1], [0, 0, 1, 1], [], []>} : vector<32x32xf32>, vector<32x128xf32>, vector<32x128xf32> -> vector<32x128xf32>
    %390 = arith.addf %349, %389 : vector<32x128xf32>
    %c0_301 = arith.constant 0 : index
    %c0_302 = arith.constant 0 : index
    %391 = vector.load %arg12[%c0_301, %c0_302] : memref<1x128xf32, #tpu.memory_space<vmem>>, vector<1x128xf32>
    %392 = vector.broadcast %391 : vector<1x128xf32> to vector<32x128xf32>
    %393 = arith.addf %390, %392 : vector<32x128xf32>
    %cst_303 = arith.constant dense<0.000000e+00> : vector<32xf32>
    %394 = vector.multi_reduction <add>, %393, %cst_303 [1] : vector<32x128xf32> to vector<32xf32>
    %395 = vector.shape_cast %394 : vector<32xf32> to vector<32x1xf32>
    %cst_304 = arith.constant 1.280000e+02 : f32
    %396 = vector.broadcast %cst_304 : f32 to vector<32x1xf32>
    %397 = arith.divf %395, %396 : vector<32x1xf32>
    %398 = arith.mulf %393, %393 : vector<32x128xf32>
    %cst_305 = arith.constant dense<0.000000e+00> : vector<32xf32>
    %399 = vector.multi_reduction <add>, %398, %cst_305 [1] : vector<32x128xf32> to vector<32xf32>
    %400 = vector.shape_cast %399 : vector<32xf32> to vector<32x1xf32>
    %cst_306 = arith.constant 1.280000e+02 : f32
    %401 = vector.broadcast %cst_306 : f32 to vector<32x1xf32>
    %402 = arith.divf %400, %401 : vector<32x1xf32>
    %403 = arith.mulf %397, %397 : vector<32x1xf32>
    %404 = arith.subf %402, %403 : vector<32x1xf32>
    %c1_307 = arith.constant 1 : index
    %c0_308 = arith.constant 0 : index
    %c0_309 = arith.constant 0 : index
    %405 = vector.load %arg17[%c1_307, %c0_308, %c0_309] : memref<3x1x128xf32, #tpu.memory_space<vmem>>, vector<1x1x128xf32>
    %406 = vector.shape_cast %405 : vector<1x1x128xf32> to vector<1x128xf32>
    %407 = vector.broadcast %397 : vector<32x1xf32> to vector<32x128xf32>
    %408 = arith.subf %393, %407 : vector<32x128xf32>
    %cst_310 = arith.constant 9.99999974E-6 : f32
    %409 = vector.broadcast %cst_310 : f32 to vector<32x1xf32>
    %410 = arith.addf %404, %409 : vector<32x1xf32>
    %411 = math.rsqrt %410 : vector<32x1xf32>
    %412 = vector.broadcast %411 : vector<32x1xf32> to vector<32x128xf32>
    %413 = arith.mulf %408, %412 : vector<32x128xf32>
    %414 = vector.broadcast %406 : vector<1x128xf32> to vector<32x128xf32>
    %415 = arith.mulf %414, %413 : vector<32x128xf32>
    %c1_311 = arith.constant 1 : index
    %c0_312 = arith.constant 0 : index
    %c0_313 = arith.constant 0 : index
    %416 = vector.load %arg18[%c1_311, %c0_312, %c0_313] : memref<3x1x128xf32, #tpu.memory_space<vmem>>, vector<1x1x128xf32>
    %417 = vector.shape_cast %416 : vector<1x1x128xf32> to vector<1x128xf32>
    %418 = vector.broadcast %417 : vector<1x128xf32> to vector<32x128xf32>
    %419 = arith.addf %415, %418 : vector<32x128xf32>
    %c0_314 = arith.constant 0 : index
    %c0_315 = arith.constant 0 : index
    %420 = vector.load %arg13[%c0_314, %c0_315] : memref<128x256xf32, #tpu.memory_space<vmem>>, vector<128x256xf32>
    %cst_316 = arith.constant dense<0.000000e+00> : vector<32x256xf32>
    %421 = tpu.matmul %419, %420, %cst_316 {dimension_numbers = #tpu.dot_dimension_numbers<[1], [0], [0], [1], [0, 0, 1, 1], [], []>} : vector<32x128xf32>, vector<128x256xf32>, vector<32x256xf32> -> vector<32x256xf32>
    %c0_317 = arith.constant 0 : index
    %c0_318 = arith.constant 0 : index
    %422 = vector.load %arg14[%c0_317, %c0_318] : memref<1x256xf32, #tpu.memory_space<vmem>>, vector<1x256xf32>
    %423 = vector.broadcast %422 : vector<1x256xf32> to vector<32x256xf32>
    %424 = arith.addf %421, %423 : vector<32x256xf32>
    %cst_319 = arith.constant 0.000000e+00 : f32
    %425 = vector.broadcast %cst_319 : f32 to vector<32x256xf32>
    %426 = arith.maximumf %424, %425 : vector<32x256xf32>
    %c0_320 = arith.constant 0 : index
    %c0_321 = arith.constant 0 : index
    %427 = vector.load %arg15[%c0_320, %c0_321] : memref<256x128xf32, #tpu.memory_space<vmem>>, vector<256x128xf32>
    %cst_322 = arith.constant dense<0.000000e+00> : vector<32x128xf32>
    %428 = tpu.matmul %426, %427, %cst_322 {dimension_numbers = #tpu.dot_dimension_numbers<[1], [0], [0], [1], [0, 0, 1, 1], [], []>} : vector<32x256xf32>, vector<256x128xf32>, vector<32x128xf32> -> vector<32x128xf32>
    %c0_323 = arith.constant 0 : index
    %c0_324 = arith.constant 0 : index
    %429 = vector.load %arg16[%c0_323, %c0_324] : memref<1x128xf32, #tpu.memory_space<vmem>>, vector<1x128xf32>
    %430 = vector.broadcast %429 : vector<1x128xf32> to vector<32x128xf32>
    %431 = arith.addf %428, %430 : vector<32x128xf32>
    %432 = arith.addf %431, %227 : vector<32x128xf32>
    %cst_325 = arith.constant dense<0.000000e+00> : vector<32xf32>
    %433 = vector.multi_reduction <add>, %432, %cst_325 [1] : vector<32x128xf32> to vector<32xf32>
    %434 = vector.shape_cast %433 : vector<32xf32> to vector<32x1xf32>
    %cst_326 = arith.constant 1.280000e+02 : f32
    %435 = vector.broadcast %cst_326 : f32 to vector<32x1xf32>
    %436 = arith.divf %434, %435 : vector<32x1xf32>
    %437 = arith.mulf %432, %432 : vector<32x128xf32>
    %cst_327 = arith.constant dense<0.000000e+00> : vector<32xf32>
    %438 = vector.multi_reduction <add>, %437, %cst_327 [1] : vector<32x128xf32> to vector<32xf32>
    %439 = vector.shape_cast %438 : vector<32xf32> to vector<32x1xf32>
    %cst_328 = arith.constant 1.280000e+02 : f32
    %440 = vector.broadcast %cst_328 : f32 to vector<32x1xf32>
    %441 = arith.divf %439, %440 : vector<32x1xf32>
    %442 = arith.mulf %436, %436 : vector<32x1xf32>
    %443 = arith.subf %441, %442 : vector<32x1xf32>
    %c2_329 = arith.constant 2 : index
    %c0_330 = arith.constant 0 : index
    %c0_331 = arith.constant 0 : index
    %444 = vector.load %arg17[%c2_329, %c0_330, %c0_331] : memref<3x1x128xf32, #tpu.memory_space<vmem>>, vector<1x1x128xf32>
    %445 = vector.shape_cast %444 : vector<1x1x128xf32> to vector<1x128xf32>
    %446 = vector.broadcast %436 : vector<32x1xf32> to vector<32x128xf32>
    %447 = arith.subf %432, %446 : vector<32x128xf32>
    %cst_332 = arith.constant 9.99999974E-6 : f32
    %448 = vector.broadcast %cst_332 : f32 to vector<32x1xf32>
    %449 = arith.addf %443, %448 : vector<32x1xf32>
    %450 = math.rsqrt %449 : vector<32x1xf32>
    %451 = vector.broadcast %450 : vector<32x1xf32> to vector<32x128xf32>
    %452 = arith.mulf %447, %451 : vector<32x128xf32>
    %453 = vector.broadcast %445 : vector<1x128xf32> to vector<32x128xf32>
    %454 = arith.mulf %453, %452 : vector<32x128xf32>
    %c2_333 = arith.constant 2 : index
    %c0_334 = arith.constant 0 : index
    %c0_335 = arith.constant 0 : index
    %455 = vector.load %arg18[%c2_333, %c0_334, %c0_335] : memref<3x1x128xf32, #tpu.memory_space<vmem>>, vector<1x1x128xf32>
    %456 = vector.shape_cast %455 : vector<1x1x128xf32> to vector<1x128xf32>
    %457 = vector.broadcast %456 : vector<1x128xf32> to vector<32x128xf32>
    %458 = arith.addf %454, %457 : vector<32x128xf32>
    %c0_336 = arith.constant 0 : index
    %c0_337 = arith.constant 0 : index
    %459 = vector.load %arg19[%c0_336, %c0_337] : memref<32x128xf32, #tpu.memory_space<vmem>>, vector<32x128xf32>
    tpu.vector_store %arg19[%c0_336, %c0_337], %458 {strides = array<i32>} : memref<32x128xf32, #tpu.memory_space<vmem>>, vector<32x128xf32>,
    return
  }
  func.func @transform_0(%arg0: i32) -> (i32, i32) {
    %c0_i32 = arith.constant 0 : i32
    %c0_i32_0 = arith.constant 0 : i32
    return %arg0, %c0_i32 : i32, i32
  }
  func.func @transform_1(%arg0: i32) -> (i32, i32) {
    %c0_i32 = arith.constant 0 : i32
    %c0_i32_0 = arith.constant 0 : i32
    return %arg0, %c0_i32 : i32, i32
  }
  func.func @transform_2(%arg0: i32) -> (i32, i32) {
    %c0_i32 = arith.constant 0 : i32
    %c0_i32_0 = arith.constant 0 : i32
    %c0_i32_1 = arith.constant 0 : i32
    return %c0_i32, %c0_i32_0 : i32, i32
  }
  func.func @transform_3(%arg0: i32) -> (i32, i32) {
    %c0_i32 = arith.constant 0 : i32
    %c0_i32_0 = arith.constant 0 : i32
    %c0_i32_1 = arith.constant 0 : i32
    return %c0_i32, %c0_i32_0 : i32, i32
  }
  func.func @transform_4(%arg0: i32) -> (i32, i32, i32, i32) {
    %c0_i32 = arith.constant 0 : i32
    %c0_i32_0 = arith.constant 0 : i32
    %c0_i32_1 = arith.constant 0 : i32
    %c0_i32_2 = arith.constant 0 : i32
    %c0_i32_3 = arith.constant 0 : i32
    return %c0_i32, %c0_i32_0, %c0_i32_1, %c0_i32_2 : i32, i32, i32, i32
  }
  func.func @transform_5(%arg0: i32) -> (i32, i32, i32, i32) {
    %c0_i32 = arith.constant 0 : i32
    %c0_i32_0 = arith.constant 0 : i32
    %c0_i32_1 = arith.constant 0 : i32
    %c0_i32_2 = arith.constant 0 : i32
    %c0_i32_3 = arith.constant 0 : i32
    return %c0_i32, %c0_i32_0, %c0_i32_1, %c0_i32_2 : i32, i32, i32, i32
  }
  func.func @transform_6(%arg0: i32) -> (i32, i32, i32) {
    %c0_i32 = arith.constant 0 : i32
    %c0_i32_0 = arith.constant 0 : i32
    %c0_i32_1 = arith.constant 0 : i32
    %c0_i32_2 = arith.constant 0 : i32
    return %c0_i32, %c0_i32_0, %c0_i32_1 : i32, i32, i32
  }
  func.func @transform_7(%arg0: i32) -> (i32, i32) {
    %c0_i32 = arith.constant 0 : i32
    %c0_i32_0 = arith.constant 0 : i32
    %c0_i32_1 = arith.constant 0 : i32
    return %c0_i32, %c0_i32_0 : i32, i32
  }
  func.func @transform_8(%arg0: i32) -> (i32, i32, i32, i32) {
    %c0_i32 = arith.constant 0 : i32
    %c0_i32_0 = arith.constant 0 : i32
    %c0_i32_1 = arith.constant 0 : i32
    %c0_i32_2 = arith.constant 0 : i32
    %c0_i32_3 = arith.constant 0 : i32
    return %c0_i32, %c0_i32_0, %c0_i32_1, %c0_i32_2 : i32, i32, i32, i32
  }
  func.func @transform_9(%arg0: i32) -> (i32, i32, i32, i32) {
    %c0_i32 = arith.constant 0 : i32
    %c0_i32_0 = arith.constant 0 : i32
    %c0_i32_1 = arith.constant 0 : i32
    %c0_i32_2 = arith.constant 0 : i32
    %c0_i32_3 = arith.constant 0 : i32
    return %c0_i32, %c0_i32_0, %c0_i32_1, %c0_i32_2 : i32, i32, i32, i32
  }
  func.func @transform_10(%arg0: i32) -> (i32, i32, i32) {
    %c0_i32 = arith.constant 0 : i32
    %c0_i32_0 = arith.constant 0 : i32
    %c0_i32_1 = arith.constant 0 : i32
    %c0_i32_2 = arith.constant 0 : i32
    return %c0_i32, %c0_i32_0, %c0_i32_1 : i32, i32, i32
  }
  func.func @transform_11(%arg0: i32) -> (i32, i32) {
    %c0_i32 = arith.constant 0 : i32
    %c0_i32_0 = arith.constant 0 : i32
    %c0_i32_1 = arith.constant 0 : i32
    return %c0_i32, %c0_i32_0 : i32, i32
  }
  func.func @transform_12(%arg0: i32) -> (i32, i32) {
    %c0_i32 = arith.constant 0 : i32
    %c0_i32_0 = arith.constant 0 : i32
    %c0_i32_1 = arith.constant 0 : i32
    return %c0_i32, %c0_i32_0 : i32, i32
  }
  func.func @transform_13(%arg0: i32) -> (i32, i32) {
    %c0_i32 = arith.constant 0 : i32
    %c0_i32_0 = arith.constant 0 : i32
    %c0_i32_1 = arith.constant 0 : i32
    return %c0_i32, %c0_i32_0 : i32, i32
  }
  func.func @transform_14(%arg0: i32) -> (i32, i32) {
    %c0_i32 = arith.constant 0 : i32
    %c0_i32_0 = arith.constant 0 : i32
    %c0_i32_1 = arith.constant 0 : i32
    return %c0_i32, %c0_i32_0 : i32, i32
  }
  func.func @transform_15(%arg0: i32) -> (i32, i32) {
    %c0_i32 = arith.constant 0 : i32
    %c0_i32_0 = arith.constant 0 : i32
    %c0_i32_1 = arith.constant 0 : i32
    return %c0_i32, %c0_i32_0 : i32, i32
  }
  func.func @transform_16(%arg0: i32) -> (i32, i32, i32) {
    %c0_i32 = arith.constant 0 : i32
    %c0_i32_0 = arith.constant 0 : i32
    %c0_i32_1 = arith.constant 0 : i32
    %c0_i32_2 = arith.constant 0 : i32
    return %c0_i32, %c0_i32_0, %c0_i32_1 : i32, i32, i32
  }
  func.func @transform_17(%arg0: i32) -> (i32, i32, i32) {
    %c0_i32 = arith.constant 0 : i32
    %c0_i32_0 = arith.constant 0 : i32
    %c0_i32_1 = arith.constant 0 : i32
    %c0_i32_2 = arith.constant 0 : i32
    return %c0_i32, %c0_i32_0, %c0_i32_1 : i32, i32, i32
  }
  func.func @transform_18(%arg0: i32) -> (i32, i32) {
    %c0_i32 = arith.constant 0 : i32
    %c0_i32_0 = arith.constant 0 : i32
    return %arg0, %c0_i32 : i32, i32
  }
}

</mosaic_0001>

<llo_original>
// kernel: tpu_custom_call.1
$region0: #{tpu_custom_call.1}
  #allocation0 [shape = 'u32[]', space=smem, size = 0x4, offset = 0x4, fixed_abs, tag = 'smem constant byte address 0x4 - core index']
  #allocation1 [shape = 'u32[144,128]{1,0:T(1,128)}', space=vmem, size = 0x12000, scoped, tag = 'internal scratch']
  %s0 = inlined_call_operand.vmem [shape: s32[32,1], index: 0, kind: input, shape index: {}]
  %s1 = inlined_call_operand.vmem [shape: f32[32,128], index: 1, kind: input, shape index: {}]
  %s2 = inlined_call_operand.vmem [shape: f32[34,128], index: 2, kind: input, shape index: {}]
  %s3 = inlined_call_operand.vmem [shape: f32[16,128], index: 3, kind: input, shape index: {}]
  %s4 = inlined_call_operand.vmem [shape: f32[3,4,128,32], index: 4, kind: input, shape index: {}]
  %s5 = inlined_call_operand.vmem [shape: f32[3,4,1,32], index: 5, kind: input, shape index: {}]
  %s6 = inlined_call_operand.vmem [shape: f32[4,32,128], index: 6, kind: input, shape index: {}]
  %s7 = inlined_call_operand.vmem [shape: f32[1,128], index: 7, kind: input, shape index: {}]
  %s8 = inlined_call_operand.vmem [shape: f32[3,4,128,32], index: 8, kind: input, shape index: {}]
  %s9 = inlined_call_operand.vmem [shape: f32[3,4,1,32], index: 9, kind: input, shape index: {}]
  %s10 = inlined_call_operand.vmem [shape: f32[4,32,128], index: 10, kind: input, shape index: {}]
  %s11 = inlined_call_operand.vmem [shape: f32[1,128], index: 11, kind: input, shape index: {}]
  %s12 = inlined_call_operand.vmem [shape: f32[128,256], index: 12, kind: input, shape index: {}]
  %s13 = inlined_call_operand.vmem [shape: f32[1,256], index: 13, kind: input, shape index: {}]
  %s14 = inlined_call_operand.vmem [shape: f32[256,128], index: 14, kind: input, shape index: {}]
  %s15 = inlined_call_operand.vmem [shape: f32[1,128], index: 15, kind: input, shape index: {}]
  %s16 = inlined_call_operand.vmem [shape: f32[3,1,128], index: 16, kind: input, shape index: {}]
  %s17 = inlined_call_operand.vmem [shape: f32[3,1,128], index: 17, kind: input, shape index: {}]
  %s18 = inlined_call_operand.hbm [shape: f32[32,128], index: 18, kind: output, shape index: {}]
  %s19 = sld [smem:[#allocation0]]
  $region82: #{tpu_custom_call.1} parent=0
    _
  %s21 = ssub.s32 1, %s19
  %s22 = scalar_select 0, %s21, %s19
  $region1: #{tpu_custom_call.1} parent=0
    #allocation2 [shape = 'u8[16384]{0}', space=vmem, size = 0x4000, scoped, tag = 'output window, operand 0, single buffered']
    #allocation3 [shape = 's32[1]{0}', space=sflag, size = 0x4, scoped, tag = 'scoped memory for tpu_custom_call.1']
    %23 = vsyncpa [#allocation3], 0
    // Predicated region
    $region2: #{tpu_custom_call.1} parent=1 // pred_check
      _
    $region3: #{tpu_custom_call.1} parent=1 // pred_check_branch
      %25 = sbr.rel (0) target = $region5
    $region4: #{tpu_custom_call.1} parent=1 // pred_region
      _
    $region5: #{tpu_custom_call.1} parent=1 // pred_fallthru
      _
    // Predicated region
    $region6: #{tpu_custom_call.1} parent=1 // pred_check
      _
    $region7: #{tpu_custom_call.1} parent=1 // pred_check_branch
      %27 = sbr.rel (0) target = $region9
    $region8: #{tpu_custom_call.1} parent=1 // pred_region
      _
    $region9: #{tpu_custom_call.1} parent=1 // pred_fallthru
      _
    // Predicated region
    $region10: #{tpu_custom_call.1} parent=1 // pred_check
      _
    $region11: #{tpu_custom_call.1} parent=1 // pred_check_branch
      %29 = sbr.rel (0) target = $region13
    $region12: #{tpu_custom_call.1} parent=1 // pred_region
      _
    $region13: #{tpu_custom_call.1} parent=1 // pred_fallthru
      _
    // Predicated region
    $region14: #{tpu_custom_call.1} parent=1 // pred_check
      _
    $region15: #{tpu_custom_call.1} parent=1 // pred_check_branch
      %31 = sbr.rel (0) target = $region17
    $region16: #{tpu_custom_call.1} parent=1 // pred_region
      _
    $region17: #{tpu_custom_call.1} parent=1 // pred_fallthru
      _
    // Predicated region
    $region18: #{tpu_custom_call.1} parent=1 // pred_check
      _
    $region19: #{tpu_custom_call.1} parent=1 // pred_check_branch
      %33 = sbr.rel (0) target = $region21
    $region20: #{tpu_custom_call.1} parent=1 // pred_region
      _
    $region21: #{tpu_custom_call.1} parent=1 // pred_fallthru
      _
    // Predicated region
    $region22: #{tpu_custom_call.1} parent=1 // pred_check
      _
    $region23: #{tpu_custom_call.1} parent=1 // pred_check_branch
      %35 = sbr.rel (0) target = $region25
    $region24: #{tpu_custom_call.1} parent=1 // pred_region
      _
    $region25: #{tpu_custom_call.1} parent=1 // pred_fallthru
      _
    // Predicated region
    $region26: #{tpu_custom_call.1} parent=1 // pred_check
      _
    $region27: #{tpu_custom_call.1} parent=1 // pred_check_branch
      %37 = sbr.rel (0) target = $region29
    $region28: #{tpu_custom_call.1} parent=1 // pred_region
      _
    $region29: #{tpu_custom_call.1} parent=1 // pred_fallthru
      _
    // Predicated region
    $region30: #{tpu_custom_call.1} parent=1 // pred_check
      _
    $region31: #{tpu_custom_call.1} parent=1 // pred_check_branch
      %39 = sbr.rel (0) target = $region33
    $region32: #{tpu_custom_call.1} parent=1 // pred_region
      _
    $region33: #{tpu_custom_call.1} parent=1 // pred_fallthru
      _
    // Predicated region
    $region34: #{tpu_custom_call.1} parent=1 // pred_check
      _
    $region35: #{tpu_custom_call.1} parent=1 // pred_check_branch
      %41 = sbr.rel (0) target = $region37
    $region36: #{tpu_custom_call.1} parent=1 // pred_region
      _
    $region37: #{tpu_custom_call.1} parent=1 // pred_fallthru
      _
    // Predicated region
    $region38: #{tpu_custom_call.1} parent=1 // pred_check
      _
    $region39: #{tpu_custom_call.1} parent=1 // pred_check_branch
      %43 = sbr.rel (0) target = $region41
    $region40: #{tpu_custom_call.1} parent=1 // pred_region
      _
    $region41: #{tpu_custom_call.1} parent=1 // pred_fallthru
      _
    // Predicated region
    $region42: #{tpu_custom_call.1} parent=1 // pred_check
      _
    $region43: #{tpu_custom_call.1} parent=1 // pred_check_branch
      %45 = sbr.rel (0) target = $region45
    $region44: #{tpu_custom_call.1} parent=1 // pred_region
      _
    $region45: #{tpu_custom_call.1} parent=1 // pred_fallthru
      _
    // Predicated region
    $region46: #{tpu_custom_call.1} parent=1 // pred_check
      _
    $region47: #{tpu_custom_call.1} parent=1 // pred_check_branch
      %47 = sbr.rel (0) target = $region49
    $region48: #{tpu_custom_call.1} parent=1 // pred_region
      _
    $region49: #{tpu_custom_call.1} parent=1 // pred_fallthru
      _
    // Predicated region
    $region50: #{tpu_custom_call.1} parent=1 // pred_check
      _
    $region51: #{tpu_custom_call.1} parent=1 // pred_check_branch
      %49 = sbr.rel (0) target = $region53
    $region52: #{tpu_custom_call.1} parent=1 // pred_region
      _
    $region53: #{tpu_custom_call.1} parent=1 // pred_fallthru
      _
    // Predicated region
    $region54: #{tpu_custom_call.1} parent=1 // pred_check
      _
    $region55: #{tpu_custom_call.1} parent=1 // pred_check_branch
      %51 = sbr.rel (0) target = $region57
    $region56: #{tpu_custom_call.1} parent=1 // pred_region
      _
    $region57: #{tpu_custom_call.1} parent=1 // pred_fallthru
      _
    // Predicated region
    $region58: #{tpu_custom_call.1} parent=1 // pred_check
      _
    $region59: #{tpu_custom_call.1} parent=1 // pred_check_branch
      %53 = sbr.rel (0) target = $region61
    $region60: #{tpu_custom_call.1} parent=1 // pred_region
      _
    $region61: #{tpu_custom_call.1} parent=1 // pred_fallthru
      _
    // Predicated region
    $region62: #{tpu_custom_call.1} parent=1 // pred_check
      _
    $region63: #{tpu_custom_call.1} parent=1 // pred_check_branch
      %55 = sbr.rel (0) target = $region65
    $region64: #{tpu_custom_call.1} parent=1 // pred_region
      _
    $region65: #{tpu_custom_call.1} parent=1 // pred_fallthru
      _
    // Predicated region
    $region66: #{tpu_custom_call.1} parent=1 // pred_check
      _
    $region67: #{tpu_custom_call.1} parent=1 // pred_check_branch
      %57 = sbr.rel (0) target = $region69
    $region68: #{tpu_custom_call.1} parent=1 // pred_region
      _
    $region69: #{tpu_custom_call.1} parent=1 // pred_fallthru
      _
    // Predicated region
    $region70: #{tpu_custom_call.1} parent=1 // pred_check
      _
    $region71: #{tpu_custom_call.1} parent=1 // pred_check_branch
      %59 = sbr.rel (0) target = $region73
    $region72: #{tpu_custom_call.1} parent=1 // pred_region
      _
    $region73: #{tpu_custom_call.1} parent=1 // pred_fallthru
      _
    %v60 = vld [vmem:[%s0] sm:$0xff]
    %v61 = vld [vmem:[%s0 + $0x8] sm:$0xff]
    %v62 = vld [vmem:[%s0 + $0x10] sm:$0xff]
    %v63 = vld [vmem:[%s0 + $0x18] sm:$0xff]
    %v64 = vlaneseq
    %v65 = vand.u32 %v64, 127
    %66 = vset.pattern.permute.xlu0 0
    %67 = vperm.xlu0 %66, %v60
    %v68 = vpop.permute.xlu0 %67
    %69 = vset.pattern.permute.xlu0 0
    %70 = vperm.xlu0 %69, %v61
    %v71 = vpop.permute.xlu0 %70
    %72 = vset.pattern.permute.xlu0 0
    %73 = vperm.xlu0 %72, %v62
    %v74 = vpop.permute.xlu0 %73
    %75 = vset.pattern.permute.xlu0 0
    %76 = vperm.xlu0 %75, %v63
    %v77 = vpop.permute.xlu0 %76
    %vm78 = vcmp.eq.s32.totalorder %v65, %v68
    %vm79 = vcmp.eq.s32.totalorder %v65, %v71
    %vm80 = vcmp.eq.s32.totalorder %v65, %v74
    %vm81 = vcmp.eq.s32.totalorder %v65, %v77
    %v82 = vsel %vm78, 1, 0
    %v83 = vsel %vm79, 1, 0
    %v84 = vsel %vm80, 1, 0
    %v85 = vsel %vm81, 1, 0
    %v86 = vcvt.s32.f32 %v82
    %v87 = vcvt.s32.f32 %v83
    %v88 = vcvt.s32.f32 %v84
    %v89 = vcvt.s32.f32 %v85
    %v90 = vld [vmem:[%s2] sm:$0xff]
    %v91 = vld [vmem:[%s2 + $0x8] sm:$0xff]
    %v92 = vld [vmem:[%s2 + $0x10] sm:$0xff]
    %v93 = vld [vmem:[%s2 + $0x18] sm:$0xff]
    %v94 = vld [vmem:[%s2 + $0x20] sm:$0x3]
    %vm95 = vcmask 277504
    %v97 = vsel %vm95, %v86, 0
    %v100 = vsel %vm95, %v87, 0
    %v103 = vsel %vm95, %v88, 0
    %v106 = vsel %vm95, %v89, 0
    %vm108 = vcmask 1041408
    %v110 = vsel %vm108, %v94, 0
    %112 = vmatprep.subr.mxu0 0.0
    %113 = vmatpush1.msra.mxu0 %v90
    %114 = vmatprep.subr.mxu0 0.0
    %115 = vmatpush1.msra.mxu0 %v91
    %116 = vmatprep.subr.mxu0 0.0
    %117 = vmatpush1.msra.mxu0 %v92
    %118 = vmatprep.subr.mxu0 0.0
    %119 = vmatpush1.msra.mxu0 %v93
    %120 = vmatprep.subr.mxu0 0.0
    %121 = vmatpush1.msra.mxu0 %v110
    %122 = vmatprep.subr.mxu0 0.0
    %123 = vmatpush1.msra.mxu0 0.0
    %124 = vmatprep.subr.mxu0 0.0
    %125 = vmatpush1.msra.mxu0 0.0
    %126 = vmatprep.subr.mxu0 0.0
    %127 = vmatpush1.msra.mxu0 0.0
    %128 = vmatprep.subr.mxu0 0.0
    %129 = vmatpush1.msra.mxu0 0.0
    %130 = vmatprep.subr.mxu0 0.0
    %131 = vmatpush1.msra.mxu0 0.0
    %132 = vmatprep.subr.mxu0 0.0
    %133 = vmatpush1.msra.mxu0 0.0
    %134 = vmatprep.subr.mxu0 0.0
    %135 = vmatpush1.msra.mxu0 0.0
    %136 = vmatprep.subr.mxu0 0.0
    %137 = vmatpush1.msra.mxu0 0.0
    %138 = vmatprep.subr.mxu0 0.0
    %139 = vmatpush1.msra.mxu0 0.0
    %140 = vmatprep.subr.mxu0 0.0
    %141 = vmatpush1.msra.mxu0 0.0
    %142 = vmatprep.subr.mxu0 0.0
    %143 = vmatpush1.msra.mxu0 0.0
    %144 = vmatprep.subr.mxu0 0.0
    %145 = vmatpush1.msra.mxu0 0.0
    %146 = vmatprep.subr.mxu0 0.0
    %147 = vmatpush1.msra.mxu0 0.0
    %148 = vmatprep.subr.mxu0 0.0
    %149 = vmatpush1.msra.mxu0 0.0
    %150 = vmatprep.subr.mxu0 0.0
    %151 = vmatpush1.msra.mxu0 0.0
    %152 = vmatprep.subr.mxu0 0.0
    %153 = vmatpush1.msra.mxu0 0.0
    %154 = vmatprep.subr.mxu0 0.0
    %155 = vmatpush1.msra.mxu0 0.0
    %156 = vmatprep.subr.mxu0 0.0
    %157 = vmatpush1.msra.mxu0 0.0
    %158 = vmatprep.subr.mxu0 0.0
    %159 = vmatpush1.msra.mxu0 0.0
    %160 = vmatprep.subr.mxu0 0.0
    %161 = vmatpush1.msra.mxu0 0.0
    %162 = vmatprep.subr.mxu0 0.0
    %163 = vmatpush1.msra.mxu0 0.0
    %164 = vmatprep.subr.mxu0 0.0
    %165 = vmatpush1.msra.mxu0 0.0
    %166 = vmatprep.subr.mxu0 0.0
    %167 = vmatpush1.msra.mxu0 0.0
    %168 = vmatprep.subr.mxu0 0.0
    %169 = vmatpush1.msra.mxu0 0.0
    %170 = vmatprep.subr.mxu0 0.0
    %171 = vmatpush1.msra.mxu0 0.0
    %172 = vmatprep.subr.mxu0 0.0
    %173 = vmatpush1.msra.mxu0 0.0
    %174 = vmatprep.subr.mxu0 0.0
    %175 = vmatpush1.msra.mxu0 0.0
    %176 = vmatprep.mubr.f32.mxu0 0.0
    %177 = vmatmul.mubr.f32.gmra.mrb[0].mxu0 %v97
    %v178 = vpop.f32.mrb[0].mxu0
    %v179 = vadd.f32 0.0, %v178
    %v180 = vpop.f32.mrb[0].mxu0
    %181 = vmatprep.mubr.f32.mxu0 0.0
    %182 = vmatmul.mubr.f32.gmra.mrb[0].mxu0 %v100
    %v183 = vpop.f32.mrb[0].mxu0
    %v184 = vadd.f32 0.0, %v183
    %v185 = vpop.f32.mrb[0].mxu0
    %186 = vmatprep.mubr.f32.mxu0 0.0
    %187 = vmatmul.mubr.f32.gmra.mrb[0].mxu0 %v103
    %v188 = vpop.f32.mrb[0].mxu0
    %v189 = vadd.f32 0.0, %v188
    %v190 = vpop.f32.mrb[0].mxu0
    %191 = vmatprep.mubr.f32.mxu0 0.0
    %192 = vmatmul.mubr.f32.gmra.mrb[0].mxu0 %v106
    %v193 = vpop.f32.mrb[0].mxu0
    %v194 = vadd.f32 0.0, %v193
    %v195 = vpop.f32.mrb[0].mxu0
    %196 = vdwg.mxu0
    %v197 = vld [vmem:[%s3] sm:$0xff]
    %v198 = vld [vmem:[%s3 + $0x8] sm:$0xff]
    %v199 = vadd.f32 %v179, %v197
    %v200 = vadd.f32 %v184, %v198
    %v201 = vadd.f32 %v189, %v197
    %v202 = vadd.f32 %v194, %v198
    %v203 = vld [vmem:[%s1] sm:$0xff]
    %v204 = vld [vmem:[%s1 + $0x8] sm:$0xff]
    %v205 = vld [vmem:[%s1 + $0x10] sm:$0xff]
    %v206 = vld [vmem:[%s1 + $0x18] sm:$0xff]
    %v207 = vlaneseq
    %v208 = vshrl.u32 %v207, 7
    %v209 = vadd.s32 %v208, 8
    %vm210 = vcmp.ge.s32.totalorder %v208, %v65
    %vm211 = vcmp.ge.s32.totalorder %v209, %v65
    %v212 = vld [vmem:[%s4] sm:$0xff]
    %v213 = vld [vmem:[%s4 + $0x8] sm:$0xff]
    %v214 = vld [vmem:[%s4 + $0x10] sm:$0xff]
    %v215 = vld [vmem:[%s4 + $0x18] sm:$0xff]
    %v216 = vld [vmem:[%s4 + $0x20] sm:$0xff]
    %v217 = vld [vmem:[%s4 + $0x28] sm:$0xff]
    %v218 = vld [vmem:[%s4 + $0x30] sm:$0xff]
    %v219 = vld [vmem:[%s4 + $0x38] sm:$0xff]
    %v220 = vld [vmem:[%s4 + $0x40] sm:$0xff]
    %v221 = vld [vmem:[%s4 + $0x48] sm:$0xff]
    %v222 = vld [vmem:[%s4 + $0x50] sm:$0xff]
    %v223 = vld [vmem:[%s4 + $0x58] sm:$0xff]
    %v224 = vld [vmem:[%s4 + $0x60] sm:$0xff]
    %v225 = vld [vmem:[%s4 + $0x68] sm:$0xff]
    %v226 = vld [vmem:[%s4 + $0x70] sm:$0xff]
    %v227 = vld [vmem:[%s4 + $0x78] sm:$0xff]
    %v228 = vld [vmem:[%s5] sm:$0x1]
    %v230 = vlaneseq
    %v231 = vshrl.u32 %v230, 7
    %v232 = vsub.s32 0, %v231
    %v233 = vrot.slane %v228, %v232
    %235 = vmatprep.subr.mxu0 0.0
    %236 = vmatpush1.msra.mxu0 %v212
    %237 = vmatprep.subr.mxu0 0.0
    %238 = vmatpush1.msra.mxu0 %v213
    %239 = vmatprep.subr.mxu0 0.0
    %240 = vmatpush1.msra.mxu0 %v214
    %241 = vmatprep.subr.mxu0 0.0
    %242 = vmatpush1.msra.mxu0 %v215
    %243 = vmatprep.subr.mxu0 0.0
    %244 = vmatpush1.msra.mxu0 %v216
    %245 = vmatprep.subr.mxu0 0.0
    %246 = vmatpush1.msra.mxu0 %v217
    %247 = vmatprep.subr.mxu0 0.0
    %248 = vmatpush1.msra.mxu0 %v218
    %249 = vmatprep.subr.mxu0 0.0
    %250 = vmatpush1.msra.mxu0 %v219
    %251 = vmatprep.subr.mxu0 0.0
    %252 = vmatpush1.msra.mxu0 %v220
    %253 = vmatprep.subr.mxu0 0.0
    %254 = vmatpush1.msra.mxu0 %v221
    %255 = vmatprep.subr.mxu0 0.0
    %256 = vmatpush1.msra.mxu0 %v222
    %257 = vmatprep.subr.mxu0 0.0
    %258 = vmatpush1.msra.mxu0 %v223
    %259 = vmatprep.subr.mxu0 0.0
    %260 = vmatpush1.msra.mxu0 %v224
    %261 = vmatprep.subr.mxu0 0.0
    %262 = vmatpush1.msra.mxu0 %v225
    %263 = vmatprep.subr.mxu0 0.0
    %264 = vmatpush1.msra.mxu0 %v226
    %265 = vmatprep.subr.mxu0 0.0
    %266 = vmatpush1.msra.mxu0 %v227
    %267 = vmatprep.subr.mxu0 0.0
    %268 = vmatpush1.msra.mxu0 0.0
    %269 = vmatprep.subr.mxu0 0.0
    %270 = vmatpush1.msra.mxu0 0.0
    %271 = vmatprep.subr.mxu0 0.0
    %272 = vmatpush1.msra.mxu0 0.0
    %273 = vmatprep.subr.mxu0 0.0
    %274 = vmatpush1.msra.mxu0 0.0
    %275 = vmatprep.subr.mxu0 0.0
    %276 = vmatpush1.msra.mxu0 0.0
    %277 = vmatprep.subr.mxu0 0.0
    %278 = vmatpush1.msra.mxu0 0.0
    %279 = vmatprep.subr.mxu0 0.0
    %280 = vmatpush1.msra.mxu0 0.0
    %281 = vmatprep.subr.mxu0 0.0
    %282 = vmatpush1.msra.mxu0 0.0
    %283 = vmatprep.subr.mxu0 0.0
    %284 = vmatpush1.msra.mxu0 0.0
    %285 = vmatprep.subr.mxu0 0.0
    %286 = vmatpush1.msra.mxu0 0.0
    %287 = vmatprep.subr.mxu0 0.0
    %288 = vmatpush1.msra.mxu0 0.0
    %289 = vmatprep.subr.mxu0 0.0
    %290 = vmatpush1.msra.mxu0 0.0
    %291 = vmatprep.subr.mxu0 0.0
    %292 = vmatpush1.msra.mxu0 0.0
    %293 = vmatprep.subr.mxu0 0.0
    %294 = vmatpush1.msra.mxu0 0.0
    %295 = vmatprep.subr.mxu0 0.0
    %296 = vmatpush1.msra.mxu0 0.0
    %297 = vmatprep.subr.mxu0 0.0
    %298 = vmatpush1.msra.mxu0 0.0
    %299 = vmatprep.mubr.f32.mxu0 0.0
    %300 = vmatmul.mubr.f32.gmra.mrb[0].mxu0 %v199
    %v301 = vpop.f32.mrb[0].mxu0
    %v302 = vadd.f32 %v233, %v301
    %v303 = vpop.f32.mrb[0].mxu0
    %304 = vmatprep.mubr.f32.mxu0 0.0
    %305 = vmatmul.mubr.f32.gmra.mrb[0].mxu0 %v200
    %v306 = vpop.f32.mrb[0].mxu0
    %v307 = vadd.f32 %v233, %v306
    %v308 = vpop.f32.mrb[0].mxu0
    %309 = vmatprep.mubr.f32.mxu0 0.0
    %310 = vmatmul.mubr.f32.gmra.mrb[0].mxu0 %v201
    %v311 = vpop.f32.mrb[0].mxu0
    %v312 = vadd.f32 %v233, %v311
    %v313 = vpop.f32.mrb[0].mxu0
    %314 = vmatprep.mubr.f32.mxu0 0.0
    %315 = vmatmul.mubr.f32.gmra.mrb[0].mxu0 %v202
    %v316 = vpop.f32.mrb[0].mxu0
    %v317 = vadd.f32 %v233, %v316
    %v318 = vpop.f32.mrb[0].mxu0
    %319 = vdwg.mxu0
    %s320 = scalar_lea.vmem %s4, 512
    %v321 = vld [vmem:[%s320] sm:$0xff]
    %v322 = vld [vmem:[%s320 + $0x8] sm:$0xff]
    %v323 = vld [vmem:[%s320 + $0x10] sm:$0xff]
    %v324 = vld [vmem:[%s320 + $0x18] sm:$0xff]
    %v325 = vld [vmem:[%s320 + $0x20] sm:$0xff]
    %v326 = vld [vmem:[%s320 + $0x28] sm:$0xff]
    %v327 = vld [vmem:[%s320 + $0x30] sm:$0xff]
    %v328 = vld [vmem:[%s320 + $0x38] sm:$0xff]
    %v329 = vld [vmem:[%s320 + $0x40] sm:$0xff]
    %v330 = vld [vmem:[%s320 + $0x48] sm:$0xff]
    %v331 = vld [vmem:[%s320 + $0x50] sm:$0xff]
    %v332 = vld [vmem:[%s320 + $0x58] sm:$0xff]
    %v333 = vld [vmem:[%s320 + $0x60] sm:$0xff]
    %v334 = vld [vmem:[%s320 + $0x68] sm:$0xff]
    %v335 = vld [vmem:[%s320 + $0x70] sm:$0xff]
    %v336 = vld [vmem:[%s320 + $0x78] sm:$0xff]
    %s337 = scalar_lea.vmem %s5, 4
    %v338 = vld [vmem:[%s337] sm:$0x1]
    %v340 = vlaneseq
    %v341 = vshrl.u32 %v340, 7
    %v342 = vsub.s32 0, %v341
    %v343 = vrot.slane %v338, %v342
    %345 = vmatprep.subr.mxu0 0.0
    %346 = vmatpush1.msra.mxu0 %v321
    %347 = vmatprep.subr.mxu0 0.0
    %348 = vmatpush1.msra.mxu0 %v322
    %349 = vmatprep.subr.mxu0 0.0
    %350 = vmatpush1.msra.mxu0 %v323
    %351 = vmatprep.subr.mxu0 0.0
    %352 = vmatpush1.msra.mxu0 %v324
    %353 = vmatprep.subr.mxu0 0.0
    %354 = vmatpush1.msra.mxu0 %v325
    %355 = vmatprep.subr.mxu0 0.0
    %356 = vmatpush1.msra.mxu0 %v326
    %357 = vmatprep.subr.mxu0 0.0
    %358 = vmatpush1.msra.mxu0 %v327
    %359 = vmatprep.subr.mxu0 0.0
    %360 = vmatpush1.msra.mxu0 %v328
    %361 = vmatprep.subr.mxu0 0.0
    %362 = vmatpush1.msra.mxu0 %v329
    %363 = vmatprep.subr.mxu0 0.0
    %364 = vmatpush1.msra.mxu0 %v330
    %365 = vmatprep.subr.mxu0 0.0
    %366 = vmatpush1.msra.mxu0 %v331
    %367 = vmatprep.subr.mxu0 0.0
    %368 = vmatpush1.msra.mxu0 %v332
    %369 = vmatprep.subr.mxu0 0.0
    %370 = vmatpush1.msra.mxu0 %v333
    %371 = vmatprep.subr.mxu0 0.0
    %372 = vmatpush1.msra.mxu0 %v334
    %373 = vmatprep.subr.mxu0 0.0
    %374 = vmatpush1.msra.mxu0 %v335
    %375 = vmatprep.subr.mxu0 0.0
    %376 = vmatpush1.msra.mxu0 %v336
    %377 = vmatprep.subr.mxu0 0.0
    %378 = vmatpush1.msra.mxu0 0.0
    %379 = vmatprep.subr.mxu0 0.0
    %380 = vmatpush1.msra.mxu0 0.0
    %381 = vmatprep.subr.mxu0 0.0
    %382 = vmatpush1.msra.mxu0 0.0
    %383 = vmatprep.subr.mxu0 0.0
    %384 = vmatpush1.msra.mxu0 0.0
    %385 = vmatprep.subr.mxu0 0.0
    %386 = vmatpush1.msra.mxu0 0.0
    %387 = vmatprep.subr.mxu0 0.0
    %388 = vmatpush1.msra.mxu0 0.0
    %389 = vmatprep.subr.mxu0 0.0
    %390 = vmatpush1.msra.mxu0 0.0
    %391 = vmatprep.subr.mxu0 0.0
    %392 = vmatpush1.msra.mxu0 0.0
    %393 = vmatprep.subr.mxu0 0.0
    %394 = vmatpush1.msra.mxu0 0.0
    %395 = vmatprep.subr.mxu0 0.0
    %396 = vmatpush1.msra.mxu0 0.0
    %397 = vmatprep.subr.mxu0 0.0
    %398 = vmatpush1.msra.mxu0 0.0
    %399 = vmatprep.subr.mxu0 0.0
    %400 = vmatpush1.msra.mxu0 0.0
    %401 = vmatprep.subr.mxu0 0.0
    %402 = vmatpush1.msra.mxu0 0.0
    %403 = vmatprep.subr.mxu0 0.0
    %404 = vmatpush1.msra.mxu0 0.0
    %405 = vmatprep.subr.mxu0 0.0
    %406 = vmatpush1.msra.mxu0 0.0
    %407 = vmatprep.subr.mxu0 0.0
    %408 = vmatpush1.msra.mxu0 0.0
    %409 = vmatprep.mubr.f32.mxu0 0.0
    %410 = vmatmul.mubr.f32.gmra.mrb[0].mxu0 %v199
    %v411 = vpop.f32.mrb[0].mxu0
    %v412 = vadd.f32 %v343, %v411
    %v413 = vpop.f32.mrb[0].mxu0
    %414 = vmatprep.mubr.f32.mxu0 0.0
    %415 = vmatmul.mubr.f32.gmra.mrb[0].mxu0 %v200
    %v416 = vpop.f32.mrb[0].mxu0
    %v417 = vadd.f32 %v343, %v416
    %v418 = vpop.f32.mrb[0].mxu0
    %419 = vmatprep.mubr.f32.mxu0 0.0
    %420 = vmatmul.mubr.f32.gmra.mrb[0].mxu0 %v201
    %v421 = vpop.f32.mrb[0].mxu0
    %v422 = vadd.f32 %v343, %v421
    %v423 = vpop.f32.mrb[0].mxu0
    %424 = vmatprep.mubr.f32.mxu0 0.0
    %425 = vmatmul.mubr.f32.gmra.mrb[0].mxu0 %v202
    %v426 = vpop.f32.mrb[0].mxu0
    %v427 = vadd.f32 %v343, %v426
    %v428 = vpop.f32.mrb[0].mxu0
    %429 = vdwg.mxu0
    %s430 = scalar_lea.vmem %s4, 1024
    %v431 = vld [vmem:[%s430] sm:$0xff]
    %v432 = vld [vmem:[%s430 + $0x8] sm:$0xff]
    %v433 = vld [vmem:[%s430 + $0x10] sm:$0xff]
    %v434 = vld [vmem:[%s430 + $0x18] sm:$0xff]
    %v435 = vld [vmem:[%s430 + $0x20] sm:$0xff]
    %v436 = vld [vmem:[%s430 + $0x28] sm:$0xff]
    %v437 = vld [vmem:[%s430 + $0x30] sm:$0xff]
    %v438 = vld [vmem:[%s430 + $0x38] sm:$0xff]
    %v439 = vld [vmem:[%s430 + $0x40] sm:$0xff]
    %v440 = vld [vmem:[%s430 + $0x48] sm:$0xff]
    %v441 = vld [vmem:[%s430 + $0x50] sm:$0xff]
    %v442 = vld [vmem:[%s430 + $0x58] sm:$0xff]
    %v443 = vld [vmem:[%s430 + $0x60] sm:$0xff]
    %v444 = vld [vmem:[%s430 + $0x68] sm:$0xff]
    %v445 = vld [vmem:[%s430 + $0x70] sm:$0xff]
    %v446 = vld [vmem:[%s430 + $0x78] sm:$0xff]
    %s447 = scalar_lea.vmem %s5, 8
    %v448 = vld [vmem:[%s447] sm:$0x1]
    %v450 = vlaneseq
    %v451 = vshrl.u32 %v450, 7
    %v452 = vsub.s32 0, %v451
    %v453 = vrot.slane %v448, %v452
    %455 = vmatprep.subr.mxu0 0.0
    %456 = vmatpush1.msra.mxu0 %v431
    %457 = vmatprep.subr.mxu0 0.0
    %458 = vmatpush1.msra.mxu0 %v432
    %459 = vmatprep.subr.mxu0 0.0
    %460 = vmatpush1.msra.mxu0 %v433
    %461 = vmatprep.subr.mxu0 0.0
    %462 = vmatpush1.msra.mxu0 %v434
    %463 = vmatprep.subr.mxu0 0.0
    %464 = vmatpush1.msra.mxu0 %v435
    %465 = vmatprep.subr.mxu0 0.0
    %466 = vmatpush1.msra.mxu0 %v436
    %467 = vmatprep.subr.mxu0 0.0
    %468 = vmatpush1.msra.mxu0 %v437
    %469 = vmatprep.subr.mxu0 0.0
    %470 = vmatpush1.msra.mxu0 %v438
    %471 = vmatprep.subr.mxu0 0.0
    %472 = vmatpush1.msra.mxu0 %v439
    %473 = vmatprep.subr.mxu0 0.0
    %474 = vmatpush1.msra.mxu0 %v440
    %475 = vmatprep.subr.mxu0 0.0
    %476 = vmatpush1.msra.mxu0 %v441
    %477 = vmatprep.subr.mxu0 0.0
    %478 = vmatpush1.msra.mxu0 %v442
    %479 = vmatprep.subr.mxu0 0.0
    %480 = vmatpush1.msra.mxu0 %v443
    %481 = vmatprep.subr.mxu0 0.0
    %482 = vmatpush1.msra.mxu0 %v444
    %483 = vmatprep.subr.mxu0 0.0
    %484 = vmatpush1.msra.mxu0 %v445
    %485 = vmatprep.subr.mxu0 0.0
    %486 = vmatpush1.msra.mxu0 %v446
    %487 = vmatprep.subr.mxu0 0.0
    %488 = vmatpush1.msra.mxu0 0.0
    %489 = vmatprep.subr.mxu0 0.0
    %490 = vmatpush1.msra.mxu0 0.0
    %491 = vmatprep.subr.mxu0 0.0
    %492 = vmatpush1.msra.mxu0 0.0
    %493 = vmatprep.subr.mxu0 0.0
    %494 = vmatpush1.msra.mxu0 0.0
    %495 = vmatprep.subr.mxu0 0.0
    %496 = vmatpush1.msra.mxu0 0.0
    %497 = vmatprep.subr.mxu0 0.0
    %498 = vmatpush1.msra.mxu0 0.0
    %499 = vmatprep.subr.mxu0 0.0
    %500 = vmatpush1.msra.mxu0 0.0
    %501 = vmatprep.subr.mxu0 0.0
    %502 = vmatpush1.msra.mxu0 0.0
    %503 = vmatprep.subr.mxu0 0.0
    %504 = vmatpush1.msra.mxu0 0.0
    %505 = vmatprep.subr.mxu0 0.0
    %506 = vmatpush1.msra.mxu0 0.0
    %507 = vmatprep.subr.mxu0 0.0
    %508 = vmatpush1.msra.mxu0 0.0
    %509 = vmatprep.subr.mxu0 0.0
    %510 = vmatpush1.msra.mxu0 0.0
    %511 = vmatprep.subr.mxu0 0.0
    %512 = vmatpush1.msra.mxu0 0.0
    %513 = vmatprep.subr.mxu0 0.0
    %514 = vmatpush1.msra.mxu0 0.0
    %515 = vmatprep.subr.mxu0 0.0
    %516 = vmatpush1.msra.mxu0 0.0
    %517 = vmatprep.subr.mxu0 0.0
    %518 = vmatpush1.msra.mxu0 0.0
    %519 = vmatprep.mubr.f32.mxu0 0.0
    %520 = vmatmul.mubr.f32.gmra.mrb[0].mxu0 %v199
    %v521 = vpop.f32.mrb[0].mxu0
    %v522 = vadd.f32 %v453, %v521
    %v523 = vpop.f32.mrb[0].mxu0
    %524 = vmatprep.mubr.f32.mxu0 0.0
    %525 = vmatmul.mubr.f32.gmra.mrb[0].mxu0 %v200
    %v526 = vpop.f32.mrb[0].mxu0
    %v527 = vadd.f32 %v453, %v526
    %v528 = vpop.f32.mrb[0].mxu0
    %529 = vmatprep.mubr.f32.mxu0 0.0
    %530 = vmatmul.mubr.f32.gmra.mrb[0].mxu0 %v201
    %v531 = vpop.f32.mrb[0].mxu0
    %v532 = vadd.f32 %v453, %v531
    %v533 = vpop.f32.mrb[0].mxu0
    %534 = vmatprep.mubr.f32.mxu0 0.0
    %535 = vmatmul.mubr.f32.gmra.mrb[0].mxu0 %v202
    %v536 = vpop.f32.mrb[0].mxu0
    %v537 = vadd.f32 %v453, %v536
    %v538 = vpop.f32.mrb[0].mxu0
    %539 = vdwg.mxu0
    %vm540 = vcmask 261120
    %v542 = vsel %vm540, %v302, 0
    %v545 = vsel %vm540, %v307, 0
    %v548 = vsel %vm540, %v412, 0
    %v551 = vsel %vm540, %v417, 0
    %553 = vmatprep.subr.mxu0 0.0
    %554 = vmatpush1.xpose.msra.mxu0 %v548
    %555 = vmatprep.subr.mxu0 0.0
    %556 = vmatpush1.xpose.msra.mxu0 %v551
    %557 = vmatprep.subr.mxu0 0.0
    %558 = vmatpush1.xpose.msra.mxu0 0.0
    %559 = vmatprep.subr.mxu0 0.0
    %560 = vmatpush1.xpose.msra.mxu0 0.0
    %561 = vmatprep.subr.mxu0 0.0
    %562 = vmatpush1.xpose.msra.mxu0 0.0
    %563 = vmatprep.subr.mxu0 0.0
    %564 = vmatpush1.xpose.msra.mxu0 0.0
    %565 = vmatprep.subr.mxu0 0.0
    %566 = vmatpush1.xpose.msra.mxu0 0.0
    %567 = vmatprep.subr.mxu0 0.0
    %568 = vmatpush1.xpose.msra.mxu0 0.0
    %569 = vmatprep.subr.mxu0 0.0
    %570 = vmatpush1.xpose.msra.mxu0 0.0
    %571 = vmatprep.subr.mxu0 0.0
    %572 = vmatpush1.xpose.msra.mxu0 0.0
    %573 = vmatprep.subr.mxu0 0.0
    %574 = vmatpush1.xpose.msra.mxu0 0.0
    %575 = vmatprep.subr.mxu0 0.0
    %576 = vmatpush1.xpose.msra.mxu0 0.0
    %577 = vmatprep.subr.mxu0 0.0
    %578 = vmatpush1.xpose.msra.mxu0 0.0
    %579 = vmatprep.subr.mxu0 0.0
    %580 = vmatpush1.xpose.msra.mxu0 0.0
    %581 = vmatprep.subr.mxu0 0.0
    %582 = vmatpush1.xpose.msra.mxu0 0.0
    %583 = vmatprep.subr.mxu0 0.0
    %584 = vmatpush1.xpose.msra.mxu0 0.0
    %585 = vmatprep.subr.mxu0 0.0
    %586 = vmatpush1.xpose.msra.mxu0 0.0
    %587 = vmatprep.subr.mxu0 0.0
    %588 = vmatpush1.xpose.msra.mxu0 0.0
    %589 = vmatprep.subr.mxu0 0.0
    %590 = vmatpush1.xpose.msra.mxu0 0.0
    %591 = vmatprep.subr.mxu0 0.0
    %592 = vmatpush1.xpose.msra.mxu0 0.0
    %593 = vmatprep.subr.mxu0 0.0
    %594 = vmatpush1.xpose.msra.mxu0 0.0
    %595 = vmatprep.subr.mxu0 0.0
    %596 = vmatpush1.xpose.msra.mxu0 0.0
    %597 = vmatprep.subr.mxu0 0.0
    %598 = vmatpush1.xpose.msra.mxu0 0.0
    %599 = vmatprep.subr.mxu0 0.0
    %600 = vmatpush1.xpose.msra.mxu0 0.0
    %601 = vmatprep.subr.mxu0 0.0
    %602 = vmatpush1.xpose.msra.mxu0 0.0
    %603 = vmatprep.subr.mxu0 0.0
    %604 = vmatpush1.xpose.msra.mxu0 0.0
    %605 = vmatprep.subr.mxu0 0.0
    %606 = vmatpush1.xpose.msra.mxu0 0.0
    %607 = vmatprep.subr.mxu0 0.0
    %608 = vmatpush1.xpose.msra.mxu0 0.0
    %609 = vmatprep.subr.mxu0 0.0
    %610 = vmatpush1.xpose.msra.mxu0 0.0
    %611 = vmatprep.subr.mxu0 0.0
    %612 = vmatpush1.xpose.msra.mxu0 0.0
    %613 = vmatprep.subr.mxu0 0.0
    %614 = vmatpush1.xpose.msra.mxu0 0.0
    %615 = vmatprep.subr.mxu0 0.0
    %616 = vmatpush1.xpose.msra.mxu0 0.0
    %617 = vmatprep.mubr.f32.mxu0 0.0
    %618 = vmatmul.mubr.f32.gmra.mrb[0].mxu0 %v542
    %v619 = vpop.f32.mrb[0].mxu0
    %v620 = vadd.f32 0.0, %v619
    %v621 = vpop.f32.mrb[0].mxu0
    %622 = vmatprep.mubr.f32.mxu0 0.0
    %623 = vmatmul.mubr.f32.gmra.mrb[0].mxu0 %v545
    %v624 = vpop.f32.mrb[0].mxu0
    %v625 = vadd.f32 0.0, %v624
    %v626 = vpop.f32.mrb[0].mxu0
    %627 = vdwg.mxu0
    %v629 = vsel %vm540, %v312, 0
    %v632 = vsel %vm540, %v317, 0
    %v635 = vsel %vm540, %v422, 0
    %v638 = vsel %vm540, %v427, 0
    %640 = vmatprep.subr.mxu0 0.0
    %641 = vmatpush1.xpose.msra.mxu0 %v635
    %642 = vmatprep.subr.mxu0 0.0
    %643 = vmatpush1.xpose.msra.mxu0 %v638
    %644 = vmatprep.subr.mxu0 0.0
    %645 = vmatpush1.xpose.msra.mxu0 0.0
    %646 = vmatprep.subr.mxu0 0.0
    %647 = vmatpush1.xpose.msra.mxu0 0.0
    %648 = vmatprep.subr.mxu0 0.0
    %649 = vmatpush1.xpose.msra.mxu0 0.0
    %650 = vmatprep.subr.mxu0 0.0
    %651 = vmatpush1.xpose.msra.mxu0 0.0
    %652 = vmatprep.subr.mxu0 0.0
    %653 = vmatpush1.xpose.msra.mxu0 0.0
    %654 = vmatprep.subr.mxu0 0.0
    %655 = vmatpush1.xpose.msra.mxu0 0.0
    %656 = vmatprep.subr.mxu0 0.0
    %657 = vmatpush1.xpose.msra.mxu0 0.0
    %658 = vmatprep.subr.mxu0 0.0
    %659 = vmatpush1.xpose.msra.mxu0 0.0
    %660 = vmatprep.subr.mxu0 0.0
    %661 = vmatpush1.xpose.msra.mxu0 0.0
    %662 = vmatprep.subr.mxu0 0.0
    %663 = vmatpush1.xpose.msra.mxu0 0.0
    %664 = vmatprep.subr.mxu0 0.0
    %665 = vmatpush1.xpose.msra.mxu0 0.0
    %666 = vmatprep.subr.mxu0 0.0
    %667 = vmatpush1.xpose.msra.mxu0 0.0
    %668 = vmatprep.subr.mxu0 0.0
    %669 = vmatpush1.xpose.msra.mxu0 0.0
    %670 = vmatprep.subr.mxu0 0.0
    %671 = vmatpush1.xpose.msra.mxu0 0.0
    %672 = vmatprep.subr.mxu0 0.0
    %673 = vmatpush1.xpose.msra.mxu0 0.0
    %674 = vmatprep.subr.mxu0 0.0
    %675 = vmatpush1.xpose.msra.mxu0 0.0
    %676 = vmatprep.subr.mxu0 0.0
    %677 = vmatpush1.xpose.msra.mxu0 0.0
    %678 = vmatprep.subr.mxu0 0.0
    %679 = vmatpush1.xpose.msra.mxu0 0.0
    %680 = vmatprep.subr.mxu0 0.0
    %681 = vmatpush1.xpose.msra.mxu0 0.0
    %682 = vmatprep.subr.mxu0 0.0
    %683 = vmatpush1.xpose.msra.mxu0 0.0
    %684 = vmatprep.subr.mxu0 0.0
    %685 = vmatpush1.xpose.msra.mxu0 0.0
    %686 = vmatprep.subr.mxu0 0.0
    %687 = vmatpush1.xpose.msra.mxu0 0.0
    %688 = vmatprep.subr.mxu0 0.0
    %689 = vmatpush1.xpose.msra.mxu0 0.0
    %690 = vmatprep.subr.mxu0 0.0
    %691 = vmatpush1.xpose.msra.mxu0 0.0
    %692 = vmatprep.subr.mxu0 0.0
    %693 = vmatpush1.xpose.msra.mxu0 0.0
    %694 = vmatprep.subr.mxu0 0.0
    %695 = vmatpush1.xpose.msra.mxu0 0.0
    %696 = vmatprep.subr.mxu0 0.0
    %697 = vmatpush1.xpose.msra.mxu0 0.0
    %698 = vmatprep.subr.mxu0 0.0
    %699 = vmatpush1.xpose.msra.mxu0 0.0
    %700 = vmatprep.subr.mxu0 0.0
    %701 = vmatpush1.xpose.msra.mxu0 0.0
    %702 = vmatprep.subr.mxu0 0.0
    %703 = vmatpush1.xpose.msra.mxu0 0.0
    %704 = vmatprep.mubr.f32.mxu0 0.0
    %705 = vmatmul.mubr.f32.gmra.mrb[0].mxu0 %v629
    %v706 = vpop.f32.mrb[0].mxu0
    %v707 = vadd.f32 0.0, %v706
    %v708 = vpop.f32.mrb[0].mxu0
    %709 = vmatprep.mubr.f32.mxu0 0.0
    %710 = vmatmul.mubr.f32.gmra.mrb[0].mxu0 %v632
    %v711 = vpop.f32.mrb[0].mxu0
    %v712 = vadd.f32 0.0, %v711
    %v713 = vpop.f32.mrb[0].mxu0
    %714 = vdwg.mxu0
    %v715 = vsel %vm210, 1, 0
    %v716 = vsel %vm211, 1, 0
    %vm717 = vcmp.eq.s32.totalorder %v715, 1
    %vm718 = vcmp.eq.s32.totalorder %v716, 1
    %v719 = vsel %vm717, %v620, -1e+09
    %v720 = vsel %vm718, %v625, -1e+09
    %v721 = vsel %vm717, %v707, -1e+09
    %v722 = vsel %vm718, %v712, -1e+09
    %vm723 = vcmask 130048
    %v724 = vsel %vm723, %v719, -inf
    %725 = vmax.xlane.f32.xlu0 %v724
    %v726 = vpop.xlane.xlu0 %725
    %v727 = vsel %vm723, %v720, -inf
    %728 = vmax.xlane.f32.xlu0 %v727
    %v729 = vpop.xlane.xlu0 %728
    %v730 = vsel %vm723, %v721, -inf
    %731 = vmax.xlane.f32.xlu0 %v730
    %v732 = vpop.xlane.xlu0 %731
    %v733 = vsel %vm723, %v722, -inf
    %734 = vmax.xlane.f32.xlu0 %v733
    %v735 = vpop.xlane.xlu0 %734
    %v736 = vsub.f32 %v719, %v726
    %v737 = vsub.f32 %v720, %v729
    %v738 = vsub.f32 %v721, %v732
    %v739 = vsub.f32 %v722, %v735
    %v740 = vmul.f32 %v736, 1.442695
    %v741 = vpow.pop %v740
    %v742 = vmul.f32 %v737, 1.442695
    %v743 = vpow.pop %v742
    %v744 = vmul.f32 %v738, 1.442695
    %v745 = vpow.pop %v744
    %v746 = vmul.f32 %v739, 1.442695
    %v747 = vpow.pop %v746
    %v748 = vsel %vm723, %v741, 0.0
    %749 = vadd.xlane.f32.xlu0 %v748
    %v750 = vpop.xlane.xlu0 %749
    %v751 = vsel %vm723, %v743, 0.0
    %752 = vadd.xlane.f32.xlu0 %v751
    %v753 = vpop.xlane.xlu0 %752
    %v754 = vsel %vm723, %v745, 0.0
    %755 = vadd.xlane.f32.xlu0 %v754
    %v756 = vpop.xlane.xlu0 %755
    %v757 = vsel %vm723, %v747, 0.0
    %758 = vadd.xlane.f32.xlu0 %v757
    %v759 = vpop.xlane.xlu0 %758
    %v760 = vrcp.pop %v750
    %v761 = vrcp.pop %v753
    %v762 = vrcp.pop %v756
    %v763 = vrcp.pop %v759
    %v764 = vmul.f32 %v741, %v760
    %v765 = vmul.f32 %v743, %v761
    %v766 = vmul.f32 %v745, %v762
    %v767 = vmul.f32 %v747, %v763
    %v769 = vsel %vm723, %v764, 0
    %v772 = vsel %vm723, %v765, 0
    %774 = vmatprep.subr.mxu0 0.0
    %775 = vmatpush1.msra.mxu0 %v522
    %776 = vmatprep.subr.mxu0 0.0
    %777 = vmatpush1.msra.mxu0 %v527
    %778 = vmatprep.subr.mxu0 0.0
    %779 = vmatpush1.msra.mxu0 0.0
    %780 = vmatprep.subr.mxu0 0.0
    %781 = vmatpush1.msra.mxu0 0.0
    %782 = vmatprep.subr.mxu0 0.0
    %783 = vmatpush1.msra.mxu0 0.0
    %784 = vmatprep.subr.mxu0 0.0
    %785 = vmatpush1.msra.mxu0 0.0
    %786 = vmatprep.subr.mxu0 0.0
    %787 = vmatpush1.msra.mxu0 0.0
    %788 = vmatprep.subr.mxu0 0.0
    %789 = vmatpush1.msra.mxu0 0.0
    %790 = vmatprep.subr.mxu0 0.0
    %791 = vmatpush1.msra.mxu0 0.0
    %792 = vmatprep.subr.mxu0 0.0
    %793 = vmatpush1.msra.mxu0 0.0
    %794 = vmatprep.subr.mxu0 0.0
    %795 = vmatpush1.msra.mxu0 0.0
    %796 = vmatprep.subr.mxu0 0.0
    %797 = vmatpush1.msra.mxu0 0.0
    %798 = vmatprep.subr.mxu0 0.0
    %799 = vmatpush1.msra.mxu0 0.0
    %800 = vmatprep.subr.mxu0 0.0
    %801 = vmatpush1.msra.mxu0 0.0
    %802 = vmatprep.subr.mxu0 0.0
    %803 = vmatpush1.msra.mxu0 0.0
    %804 = vmatprep.subr.mxu0 0.0
    %805 = vmatpush1.msra.mxu0 0.0
    %806 = vmatprep.subr.mxu0 0.0
    %807 = vmatpush1.msra.mxu0 0.0
    %808 = vmatprep.subr.mxu0 0.0
    %809 = vmatpush1.msra.mxu0 0.0
    %810 = vmatprep.subr.mxu0 0.0
    %811 = vmatpush1.msra.mxu0 0.0
    %812 = vmatprep.subr.mxu0 0.0
    %813 = vmatpush1.msra.mxu0 0.0
    %814 = vmatprep.subr.mxu0 0.0
    %815 = vmatpush1.msra.mxu0 0.0
    %816 = vmatprep.subr.mxu0 0.0
    %817 = vmatpush1.msra.mxu0 0.0
    %818 = vmatprep.subr.mxu0 0.0
    %819 = vmatpush1.msra.mxu0 0.0
    %820 = vmatprep.subr.mxu0 0.0
    %821 = vmatpush1.msra.mxu0 0.0
    %822 = vmatprep.subr.mxu0 0.0
    %823 = vmatpush1.msra.mxu0 0.0
    %824 = vmatprep.subr.mxu0 0.0
    %825 = vmatpush1.msra.mxu0 0.0
    %826 = vmatprep.subr.mxu0 0.0
    %827 = vmatpush1.msra.mxu0 0.0
    %828 = vmatprep.subr.mxu0 0.0
    %829 = vmatpush1.msra.mxu0 0.0
    %830 = vmatprep.subr.mxu0 0.0
    %831 = vmatpush1.msra.mxu0 0.0
    %832 = vmatprep.subr.mxu0 0.0
    %833 = vmatpush1.msra.mxu0 0.0
    %834 = vmatprep.subr.mxu0 0.0
    %835 = vmatpush1.msra.mxu0 0.0
    %836 = vmatprep.subr.mxu0 0.0
    %837 = vmatpush1.msra.mxu0 0.0
    %838 = vmatprep.mubr.f32.mxu0 0.0
    %839 = vmatmul.mubr.f32.gmra.mrb[0].mxu0 %v769
    %v840 = vpop.f32.mrb[0].mxu0
    %v841 = vadd.f32 0.0, %v840
    %v842 = vpop.f32.mrb[0].mxu0
    %843 = vmatprep.mubr.f32.mxu0 0.0
    %844 = vmatmul.mubr.f32.gmra.mrb[0].mxu0 %v772
    %v845 = vpop.f32.mrb[0].mxu0
    %v846 = vadd.f32 0.0, %v845
    %v847 = vpop.f32.mrb[0].mxu0
    %848 = vdwg.mxu0
    %v850 = vsel %vm723, %v766, 0
    %v853 = vsel %vm723, %v767, 0
    %855 = vmatprep.subr.mxu0 0.0
    %856 = vmatpush1.msra.mxu0 %v532
    %857 = vmatprep.subr.mxu0 0.0
    %858 = vmatpush1.msra.mxu0 %v537
    %859 = vmatprep.subr.mxu0 0.0
    %860 = vmatpush1.msra.mxu0 0.0
    %861 = vmatprep.subr.mxu0 0.0
    %862 = vmatpush1.msra.mxu0 0.0
    %863 = vmatprep.subr.mxu0 0.0
    %864 = vmatpush1.msra.mxu0 0.0
    %865 = vmatprep.subr.mxu0 0.0
    %866 = vmatpush1.msra.mxu0 0.0
    %867 = vmatprep.subr.mxu0 0.0
    %868 = vmatpush1.msra.mxu0 0.0
    %869 = vmatprep.subr.mxu0 0.0
    %870 = vmatpush1.msra.mxu0 0.0
    %871 = vmatprep.subr.mxu0 0.0
    %872 = vmatpush1.msra.mxu0 0.0
    %873 = vmatprep.subr.mxu0 0.0
    %874 = vmatpush1.msra.mxu0 0.0
    %875 = vmatprep.subr.mxu0 0.0
    %876 = vmatpush1.msra.mxu0 0.0
    %877 = vmatprep.subr.mxu0 0.0
    %878 = vmatpush1.msra.mxu0 0.0
    %879 = vmatprep.subr.mxu0 0.0
    %880 = vmatpush1.msra.mxu0 0.0
    %881 = vmatprep.subr.mxu0 0.0
    %882 = vmatpush1.msra.mxu0 0.0
    %883 = vmatprep.subr.mxu0 0.0
    %884 = vmatpush1.msra.mxu0 0.0
    %885 = vmatprep.subr.mxu0 0.0
    %886 = vmatpush1.msra.mxu0 0.0
    %887 = vmatprep.subr.mxu0 0.0
    %888 = vmatpush1.msra.mxu0 0.0
    %889 = vmatprep.subr.mxu0 0.0
    %890 = vmatpush1.msra.mxu0 0.0
    %891 = vmatprep.subr.mxu0 0.0
    %892 = vmatpush1.msra.mxu0 0.0
    %893 = vmatprep.subr.mxu0 0.0
    %894 = vmatpush1.msra.mxu0 0.0
    %895 = vmatprep.subr.mxu0 0.0
    %896 = vmatpush1.msra.mxu0 0.0
    %897 = vmatprep.subr.mxu0 0.0
    %898 = vmatpush1.msra.mxu0 0.0
    %899 = vmatprep.subr.mxu0 0.0
    %900 = vmatpush1.msra.mxu0 0.0
    %901 = vmatprep.subr.mxu0 0.0
    %902 = vmatpush1.msra.mxu0 0.0
    %903 = vmatprep.subr.mxu0 0.0
    %904 = vmatpush1.msra.mxu0 0.0
    %905 = vmatprep.subr.mxu0 0.0
    %906 = vmatpush1.msra.mxu0 0.0
    %907 = vmatprep.subr.mxu0 0.0
    %908 = vmatpush1.msra.mxu0 0.0
    %909 = vmatprep.subr.mxu0 0.0
    %910 = vmatpush1.msra.mxu0 0.0
    %911 = vmatprep.subr.mxu0 0.0
    %912 = vmatpush1.msra.mxu0 0.0
    %913 = vmatprep.subr.mxu0 0.0
    %914 = vmatpush1.msra.mxu0 0.0
    %915 = vmatprep.subr.mxu0 0.0
    %916 = vmatpush1.msra.mxu0 0.0
    %917 = vmatprep.subr.mxu0 0.0
    %918 = vmatpush1.msra.mxu0 0.0
    %919 = vmatprep.mubr.f32.mxu0 0.0
    %920 = vmatmul.mubr.f32.gmra.mrb[0].mxu0 %v850
    %v921 = vpop.f32.mrb[0].mxu0
    %v922 = vadd.f32 0.0, %v921
    %v923 = vpop.f32.mrb[0].mxu0
    %924 = vmatprep.mubr.f32.mxu0 0.0
    %925 = vmatmul.mubr.f32.gmra.mrb[0].mxu0 %v853
    %v926 = vpop.f32.mrb[0].mxu0
    %v927 = vadd.f32 0.0, %v926
    %v928 = vpop.f32.mrb[0].mxu0
    %929 = vdwg.mxu0
    %v930 = vld [vmem:[%s6] sm:$0xff]
    %v931 = vld [vmem:[%s6 + $0x8] sm:$0xff]
    %v932 = vld [vmem:[%s6 + $0x10] sm:$0xff]
    %v933 = vld [vmem:[%s6 + $0x18] sm:$0xff]
    %s934 = scalar_lea.vmem %s4, 128
    %v935 = vld [vmem:[%s934] sm:$0xff]
    %v936 = vld [vmem:[%s934 + $0x8] sm:$0xff]
    %v937 = vld [vmem:[%s934 + $0x10] sm:$0xff]
    %v938 = vld [vmem:[%s934 + $0x18] sm:$0xff]
    %v939 = vld [vmem:[%s934 + $0x20] sm:$0xff]
    %v940 = vld [vmem:[%s934 + $0x28] sm:$0xff]
    %v941 = vld [vmem:[%s934 + $0x30] sm:$0xff]
    %v942 = vld [vmem:[%s934 + $0x38] sm:$0xff]
    %v943 = vld [vmem:[%s934 + $0x40] sm:$0xff]
    %v944 = vld [vmem:[%s934 + $0x48] sm:$0xff]
    %v945 = vld [vmem:[%s934 + $0x50] sm:$0xff]
    %v946 = vld [vmem:[%s934 + $0x58] sm:$0xff]
    %v947 = vld [vmem:[%s934 + $0x60] sm:$0xff]
    %v948 = vld [vmem:[%s934 + $0x68] sm:$0xff]
    %v949 = vld [vmem:[%s934 + $0x70] sm:$0xff]
    %v950 = vld [vmem:[%s934 + $0x78] sm:$0xff]
    %s951 = scalar_lea.vmem %s5, 1
    %v952 = vld [vmem:[%s951] sm:$0x1]
    %v954 = vlaneseq
    %v955 = vshrl.u32 %v954, 7
    %v956 = vsub.s32 0, %v955
    %v957 = vrot.slane %v952, %v956
    %959 = vmatprep.subr.mxu0 0.0
    %960 = vmatpush1.msra.mxu0 %v935
    %961 = vmatprep.subr.mxu0 0.0
    %962 = vmatpush1.msra.mxu0 %v936
    %963 = vmatprep.subr.mxu0 0.0
    %964 = vmatpush1.msra.mxu0 %v937
    %965 = vmatprep.subr.mxu0 0.0
    %966 = vmatpush1.msra.mxu0 %v938
    %967 = vmatprep.subr.mxu0 0.0
    %968 = vmatpush1.msra.mxu0 %v939
    %969 = vmatprep.subr.mxu0 0.0
    %970 = vmatpush1.msra.mxu0 %v940
    %971 = vmatprep.subr.mxu0 0.0
    %972 = vmatpush1.msra.mxu0 %v941
    %973 = vmatprep.subr.mxu0 0.0
    %974 = vmatpush1.msra.mxu0 %v942
    %975 = vmatprep.subr.mxu0 0.0
    %976 = vmatpush1.msra.mxu0 %v943
    %977 = vmatprep.subr.mxu0 0.0
    %978 = vmatpush1.msra.mxu0 %v944
    %979 = vmatprep.subr.mxu0 0.0
    %980 = vmatpush1.msra.mxu0 %v945
    %981 = vmatprep.subr.mxu0 0.0
    %982 = vmatpush1.msra.mxu0 %v946
    %983 = vmatprep.subr.mxu0 0.0
    %984 = vmatpush1.msra.mxu0 %v947
    %985 = vmatprep.subr.mxu0 0.0
    %986 = vmatpush1.msra.mxu0 %v948
    %987 = vmatprep.subr.mxu0 0.0
    %988 = vmatpush1.msra.mxu0 %v949
    %989 = vmatprep.subr.mxu0 0.0
    %990 = vmatpush1.msra.mxu0 %v950
    %991 = vmatprep.subr.mxu0 0.0
    %992 = vmatpush1.msra.mxu0 0.0
    %993 = vmatprep.subr.mxu0 0.0
    %994 = vmatpush1.msra.mxu0 0.0
    %995 = vmatprep.subr.mxu0 0.0
    %996 = vmatpush1.msra.mxu0 0.0
    %997 = vmatprep.subr.mxu0 0.0
    %998 = vmatpush1.msra.mxu0 0.0
    %999 = vmatprep.subr.mxu0 0.0
    %1000 = vmatpush1.msra.mxu0 0.0
    %1001 = vmatprep.subr.mxu0 0.0
    %1002 = vmatpush1.msra.mxu0 0.0
    %1003 = vmatprep.subr.mxu0 0.0
    %1004 = vmatpush1.msra.mxu0 0.0
    %1005 = vmatprep.subr.mxu0 0.0
    %1006 = vmatpush1.msra.mxu0 0.0
    %1007 = vmatprep.subr.mxu0 0.0
    %1008 = vmatpush1.msra.mxu0 0.0
    %1009 = vmatprep.subr.mxu0 0.0
    %1010 = vmatpush1.msra.mxu0 0.0
    %1011 = vmatprep.subr.mxu0 0.0
    %1012 = vmatpush1.msra.mxu0 0.0
    %1013 = vmatprep.subr.mxu0 0.0
    %1014 = vmatpush1.msra.mxu0 0.0
    %1015 = vmatprep.subr.mxu0 0.0
    %1016 = vmatpush1.msra.mxu0 0.0
    %1017 = vmatprep.subr.mxu0 0.0
    %1018 = vmatpush1.msra.mxu0 0.0
    %1019 = vmatprep.subr.mxu0 0.0
    %1020 = vmatpush1.msra.mxu0 0.0
    %1021 = vmatprep.subr.mxu0 0.0
    %1022 = vmatpush1.msra.mxu0 0.0
    %1023 = vmatprep.mubr.f32.mxu0 0.0
    %1024 = vmatmul.mubr.f32.gmra.mrb[0].mxu0 %v199
    %v1025 = vpop.f32.mrb[0].mxu0
    %v1026 = vadd.f32 %v957, %v1025
    %v1027 = vpop.f32.mrb[0].mxu0
    %1028 = vmatprep.mubr.f32.mxu0 0.0
    %1029 = vmatmul.mubr.f32.gmra.mrb[0].mxu0 %v200
    %v1030 = vpop.f32.mrb[0].mxu0
    %v1031 = vadd.f32 %v957, %v1030
    %v1032 = vpop.f32.mrb[0].mxu0
    %1033 = vmatprep.mubr.f32.mxu0 0.0
    %1034 = vmatmul.mubr.f32.gmra.mrb[0].mxu0 %v201
    %v1035 = vpop.f32.mrb[0].mxu0
    %v1036 = vadd.f32 %v957, %v1035
    %v1037 = vpop.f32.mrb[0].mxu0
    %1038 = vmatprep.mubr.f32.mxu0 0.0
    %1039 = vmatmul.mubr.f32.gmra.mrb[0].mxu0 %v202
    %v1040 = vpop.f32.mrb[0].mxu0
    %v1041 = vadd.f32 %v957, %v1040
    %v1042 = vpop.f32.mrb[0].mxu0
    %1043 = vdwg.mxu0
    %s1044 = scalar_lea.vmem %s4, 640
    %v1045 = vld [vmem:[%s1044] sm:$0xff]
    %v1046 = vld [vmem:[%s1044 + $0x8] sm:$0xff]
    %v1047 = vld [vmem:[%s1044 + $0x10] sm:$0xff]
    %v1048 = vld [vmem:[%s1044 + $0x18] sm:$0xff]
    %v1049 = vld [vmem:[%s1044 + $0x20] sm:$0xff]
    %v1050 = vld [vmem:[%s1044 + $0x28] sm:$0xff]
    %v1051 = vld [vmem:[%s1044 + $0x30] sm:$0xff]
    %v1052 = vld [vmem:[%s1044 + $0x38] sm:$0xff]
    %v1053 = vld [vmem:[%s1044 + $0x40] sm:$0xff]
    %v1054 = vld [vmem:[%s1044 + $0x48] sm:$0xff]
    %v1055 = vld [vmem:[%s1044 + $0x50] sm:$0xff]
    %v1056 = vld [vmem:[%s1044 + $0x58] sm:$0xff]
    %v1057 = vld [vmem:[%s1044 + $0x60] sm:$0xff]
    %v1058 = vld [vmem:[%s1044 + $0x68] sm:$0xff]
    %v1059 = vld [vmem:[%s1044 + $0x70] sm:$0xff]
    %v1060 = vld [vmem:[%s1044 + $0x78] sm:$0xff]
    %s1061 = scalar_lea.vmem %s5, 5
    %v1062 = vld [vmem:[%s1061] sm:$0x1]
    %v1064 = vlaneseq
    %v1065 = vshrl.u32 %v1064, 7
    %v1066 = vsub.s32 0, %v1065
    %v1067 = vrot.slane %v1062, %v1066
    %1069 = vmatprep.subr.mxu0 0.0
    %1070 = vmatpush1.msra.mxu0 %v1045
    %1071 = vmatprep.subr.mxu0 0.0
    %1072 = vmatpush1.msra.mxu0 %v1046
    %1073 = vmatprep.subr.mxu0 0.0
    %1074 = vmatpush1.msra.mxu0 %v1047
    %1075 = vmatprep.subr.mxu0 0.0
    %1076 = vmatpush1.msra.mxu0 %v1048
    %1077 = vmatprep.subr.mxu0 0.0
    %1078 = vmatpush1.msra.mxu0 %v1049
    %1079 = vmatprep.subr.mxu0 0.0
    %1080 = vmatpush1.msra.mxu0 %v1050
    %1081 = vmatprep.subr.mxu0 0.0
    %1082 = vmatpush1.msra.mxu0 %v1051
    %1083 = vmatprep.subr.mxu0 0.0
    %1084 = vmatpush1.msra.mxu0 %v1052
    %1085 = vmatprep.subr.mxu0 0.0
    %1086 = vmatpush1.msra.mxu0 %v1053
    %1087 = vmatprep.subr.mxu0 0.0
    %1088 = vmatpush1.msra.mxu0 %v1054
    %1089 = vmatprep.subr.mxu0 0.0
    %1090 = vmatpush1.msra.mxu0 %v1055
    %1091 = vmatprep.subr.mxu0 0.0
    %1092 = vmatpush1.msra.mxu0 %v1056
    %1093 = vmatprep.subr.mxu0 0.0
    %1094 = vmatpush1.msra.mxu0 %v1057
    %1095 = vmatprep.subr.mxu0 0.0
    %1096 = vmatpush1.msra.mxu0 %v1058
    %1097 = vmatprep.subr.mxu0 0.0
    %1098 = vmatpush1.msra.mxu0 %v1059
    %1099 = vmatprep.subr.mxu0 0.0
    %1100 = vmatpush1.msra.mxu0 %v1060
    %1101 = vmatprep.subr.mxu0 0.0
    %1102 = vmatpush1.msra.mxu0 0.0
    %1103 = vmatprep.subr.mxu0 0.0
    %1104 = vmatpush1.msra.mxu0 0.0
    %1105 = vmatprep.subr.mxu0 0.0
    %1106 = vmatpush1.msra.mxu0 0.0
    %1107 = vmatprep.subr.mxu0 0.0
    %1108 = vmatpush1.msra.mxu0 0.0
    %1109 = vmatprep.subr.mxu0 0.0
    %1110 = vmatpush1.msra.mxu0 0.0
    %1111 = vmatprep.subr.mxu0 0.0
    %1112 = vmatpush1.msra.mxu0 0.0
    %1113 = vmatprep.subr.mxu0 0.0
    %1114 = vmatpush1.msra.mxu0 0.0
    %1115 = vmatprep.subr.mxu0 0.0
    %1116 = vmatpush1.msra.mxu0 0.0
    %1117 = vmatprep.subr.mxu0 0.0
    %1118 = vmatpush1.msra.mxu0 0.0
    %1119 = vmatprep.subr.mxu0 0.0
    %1120 = vmatpush1.msra.mxu0 0.0
    %1121 = vmatprep.subr.mxu0 0.0
    %1122 = vmatpush1.msra.mxu0 0.0
    %1123 = vmatprep.subr.mxu0 0.0
    %1124 = vmatpush1.msra.mxu0 0.0
    %1125 = vmatprep.subr.mxu0 0.0
    %1126 = vmatpush1.msra.mxu0 0.0
    %1127 = vmatprep.subr.mxu0 0.0
    %1128 = vmatpush1.msra.mxu0 0.0
    %1129 = vmatprep.subr.mxu0 0.0
    %1130 = vmatpush1.msra.mxu0 0.0
    %1131 = vmatprep.subr.mxu0 0.0
    %1132 = vmatpush1.msra.mxu0 0.0
    %1133 = vmatprep.mubr.f32.mxu0 0.0
    %1134 = vmatmul.mubr.f32.gmra.mrb[0].mxu0 %v199
    %v1135 = vpop.f32.mrb[0].mxu0
    %v1136 = vadd.f32 %v1067, %v1135
    %v1137 = vpop.f32.mrb[0].mxu0
    %1138 = vmatprep.mubr.f32.mxu0 0.0
    %1139 = vmatmul.mubr.f32.gmra.mrb[0].mxu0 %v200
    %v1140 = vpop.f32.mrb[0].mxu0
    %v1141 = vadd.f32 %v1067, %v1140
    %v1142 = vpop.f32.mrb[0].mxu0
    %1143 = vmatprep.mubr.f32.mxu0 0.0
    %1144 = vmatmul.mubr.f32.gmra.mrb[0].mxu0 %v201
    %v1145 = vpop.f32.mrb[0].mxu0
    %v1146 = vadd.f32 %v1067, %v1145
    %v1147 = vpop.f32.mrb[0].mxu0
    %1148 = vmatprep.mubr.f32.mxu0 0.0
    %1149 = vmatmul.mubr.f32.gmra.mrb[0].mxu0 %v202
    %v1150 = vpop.f32.mrb[0].mxu0
    %v1151 = vadd.f32 %v1067, %v1150
    %v1152 = vpop.f32.mrb[0].mxu0
    %1153 = vdwg.mxu0
    %s1154 = scalar_lea.vmem %s4, 1152
    %v1155 = vld [vmem:[%s1154] sm:$0xff]
    %v1156 = vld [vmem:[%s1154 + $0x8] sm:$0xff]
    %v1157 = vld [vmem:[%s1154 + $0x10] sm:$0xff]
    %v1158 = vld [vmem:[%s1154 + $0x18] sm:$0xff]
    %v1159 = vld [vmem:[%s1154 + $0x20] sm:$0xff]
    %v1160 = vld [vmem:[%s1154 + $0x28] sm:$0xff]
    %v1161 = vld [vmem:[%s1154 + $0x30] sm:$0xff]
    %v1162 = vld [vmem:[%s1154 + $0x38] sm:$0xff]
    %v1163 = vld [vmem:[%s1154 + $0x40] sm:$0xff]
    %v1164 = vld [vmem:[%s1154 + $0x48] sm:$0xff]
    %v1165 = vld [vmem:[%s1154 + $0x50] sm:$0xff]
    %v1166 = vld [vmem:[%s1154 + $0x58] sm:$0xff]
    %v1167 = vld [vmem:[%s1154 + $0x60] sm:$0xff]
    %v1168 = vld [vmem:[%s1154 + $0x68] sm:$0xff]
    %v1169 = vld [vmem:[%s1154 + $0x70] sm:$0xff]
    %v1170 = vld [vmem:[%s1154 + $0x78] sm:$0xff]
    %s1171 = scalar_lea.vmem %s5, 9
    %v1172 = vld [vmem:[%s1171] sm:$0x1]
    %v1174 = vlaneseq
    %v1175 = vshrl.u32 %v1174, 7
    %v1176 = vsub.s32 0, %v1175
    %v1177 = vrot.slane %v1172, %v1176
    %1179 = vmatprep.subr.mxu0 0.0
    %1180 = vmatpush1.msra.mxu0 %v1155
    %1181 = vmatprep.subr.mxu0 0.0
    %1182 = vmatpush1.msra.mxu0 %v1156
    %1183 = vmatprep.subr.mxu0 0.0
    %1184 = vmatpush1.msra.mxu0 %v1157
    %1185 = vmatprep.subr.mxu0 0.0
    %1186 = vmatpush1.msra.mxu0 %v1158
    %1187 = vmatprep.subr.mxu0 0.0
    %1188 = vmatpush1.msra.mxu0 %v1159
    %1189 = vmatprep.subr.mxu0 0.0
    %1190 = vmatpush1.msra.mxu0 %v1160
    %1191 = vmatprep.subr.mxu0 0.0
    %1192 = vmatpush1.msra.mxu0 %v1161
    %1193 = vmatprep.subr.mxu0 0.0
    %1194 = vmatpush1.msra.mxu0 %v1162
    %1195 = vmatprep.subr.mxu0 0.0
    %1196 = vmatpush1.msra.mxu0 %v1163
    %1197 = vmatprep.subr.mxu0 0.0
    %1198 = vmatpush1.msra.mxu0 %v1164
    %1199 = vmatprep.subr.mxu0 0.0
    %1200 = vmatpush1.msra.mxu0 %v1165
    %1201 = vmatprep.subr.mxu0 0.0
    %1202 = vmatpush1.msra.mxu0 %v1166
    %1203 = vmatprep.subr.mxu0 0.0
    %1204 = vmatpush1.msra.mxu0 %v1167
    %1205 = vmatprep.subr.mxu0 0.0
    %1206 = vmatpush1.msra.mxu0 %v1168
    %1207 = vmatprep.subr.mxu0 0.0
    %1208 = vmatpush1.msra.mxu0 %v1169
    %1209 = vmatprep.subr.mxu0 0.0
    %1210 = vmatpush1.msra.mxu0 %v1170
    %1211 = vmatprep.subr.mxu0 0.0
    %1212 = vmatpush1.msra.mxu0 0.0
    %1213 = vmatprep.subr.mxu0 0.0
    %1214 = vmatpush1.msra.mxu0 0.0
    %1215 = vmatprep.subr.mxu0 0.0
    %1216 = vmatpush1.msra.mxu0 0.0
    %1217 = vmatprep.subr.mxu0 0.0
    %1218 = vmatpush1.msra.mxu0 0.0
    %1219 = vmatprep.subr.mxu0 0.0
    %1220 = vmatpush1.msra.mxu0 0.0
    %1221 = vmatprep.subr.mxu0 0.0
    %1222 = vmatpush1.msra.mxu0 0.0
    %1223 = vmatprep.subr.mxu0 0.0
    %1224 = vmatpush1.msra.mxu0 0.0
    %1225 = vmatprep.subr.mxu0 0.0
    %1226 = vmatpush1.msra.mxu0 0.0
    %1227 = vmatprep.subr.mxu0 0.0
    %1228 = vmatpush1.msra.mxu0 0.0
    %1229 = vmatprep.subr.mxu0 0.0
    %1230 = vmatpush1.msra.mxu0 0.0
    %1231 = vmatprep.subr.mxu0 0.0
    %1232 = vmatpush1.msra.mxu0 0.0
    %1233 = vmatprep.subr.mxu0 0.0
    %1234 = vmatpush1.msra.mxu0 0.0
    %1235 = vmatprep.subr.mxu0 0.0
    %1236 = vmatpush1.msra.mxu0 0.0
    %1237 = vmatprep.subr.mxu0 0.0
    %1238 = vmatpush1.msra.mxu0 0.0
    %1239 = vmatprep.subr.mxu0 0.0
    %1240 = vmatpush1.msra.mxu0 0.0
    %1241 = vmatprep.subr.mxu0 0.0
    %1242 = vmatpush1.msra.mxu0 0.0
    %1243 = vmatprep.mubr.f32.mxu0 0.0
    %1244 = vmatmul.mubr.f32.gmra.mrb[0].mxu0 %v199
    %v1245 = vpop.f32.mrb[0].mxu0
    %v1246 = vadd.f32 %v1177, %v1245
    %v1247 = vpop.f32.mrb[0].mxu0
    %1248 = vmatprep.mubr.f32.mxu0 0.0
    %1249 = vmatmul.mubr.f32.gmra.mrb[0].mxu0 %v200
    %v1250 = vpop.f32.mrb[0].mxu0
    %v1251 = vadd.f32 %v1177, %v1250
    %v1252 = vpop.f32.mrb[0].mxu0
    %1253 = vmatprep.mubr.f32.mxu0 0.0
    %1254 = vmatmul.mubr.f32.gmra.mrb[0].mxu0 %v201
    %v1255 = vpop.f32.mrb[0].mxu0
    %v1256 = vadd.f32 %v1177, %v1255
    %v1257 = vpop.f32.mrb[0].mxu0
    %1258 = vmatprep.mubr.f32.mxu0 0.0
    %1259 = vmatmul.mubr.f32.gmra.mrb[0].mxu0 %v202
    %v1260 = vpop.f32.mrb[0].mxu0
    %v1261 = vadd.f32 %v1177, %v1260
    %v1262 = vpop.f32.mrb[0].mxu0
    %1263 = vdwg.mxu0
    %v1265 = vsel %vm540, %v1026, 0
    %v1268 = vsel %vm540, %v1031, 0
    %v1271 = vsel %vm540, %v1136, 0
    %v1274 = vsel %vm540, %v1141, 0
    %1276 = vmatprep.subr.mxu0 0.0
    %1277 = vmatpush1.xpose.msra.mxu0 %v1271
    %1278 = vmatprep.subr.mxu0 0.0
    %1279 = vmatpush1.xpose.msra.mxu0 %v1274
    %1280 = vmatprep.subr.mxu0 0.0
    %1281 = vmatpush1.xpose.msra.mxu0 0.0
    %1282 = vmatprep.subr.mxu0 0.0
    %1283 = vmatpush1.xpose.msra.mxu0 0.0
    %1284 = vmatprep.subr.mxu0 0.0
    %1285 = vmatpush1.xpose.msra.mxu0 0.0
    %1286 = vmatprep.subr.mxu0 0.0
    %1287 = vmatpush1.xpose.msra.mxu0 0.0
    %1288 = vmatprep.subr.mxu0 0.0
    %1289 = vmatpush1.xpose.msra.mxu0 0.0
    %1290 = vmatprep.subr.mxu0 0.0
    %1291 = vmatpush1.xpose.msra.mxu0 0.0
    %1292 = vmatprep.subr.mxu0 0.0
    %1293 = vmatpush1.xpose.msra.mxu0 0.0
    %1294 = vmatprep.subr.mxu0 0.0
    %1295 = vmatpush1.xpose.msra.mxu0 0.0
    %1296 = vmatprep.subr.mxu0 0.0
    %1297 = vmatpush1.xpose.msra.mxu0 0.0
    %1298 = vmatprep.subr.mxu0 0.0
    %1299 = vmatpush1.xpose.msra.mxu0 0.0
    %1300 = vmatprep.subr.mxu0 0.0
    %1301 = vmatpush1.xpose.msra.mxu0 0.0
    %1302 = vmatprep.subr.mxu0 0.0
    %1303 = vmatpush1.xpose.msra.mxu0 0.0
    %1304 = vmatprep.subr.mxu0 0.0
    %1305 = vmatpush1.xpose.msra.mxu0 0.0
    %1306 = vmatprep.subr.mxu0 0.0
    %1307 = vmatpush1.xpose.msra.mxu0 0.0
    %1308 = vmatprep.subr.mxu0 0.0
    %1309 = vmatpush1.xpose.msra.mxu0 0.0
    %1310 = vmatprep.subr.mxu0 0.0
    %1311 = vmatpush1.xpose.msra.mxu0 0.0
    %1312 = vmatprep.subr.mxu0 0.0
    %1313 = vmatpush1.xpose.msra.mxu0 0.0
    %1314 = vmatprep.subr.mxu0 0.0
    %1315 = vmatpush1.xpose.msra.mxu0 0.0
    %1316 = vmatprep.subr.mxu0 0.0
    %1317 = vmatpush1.xpose.msra.mxu0 0.0
    %1318 = vmatprep.subr.mxu0 0.0
    %1319 = vmatpush1.xpose.msra.mxu0 0.0
    %1320 = vmatprep.subr.mxu0 0.0
    %1321 = vmatpush1.xpose.msra.mxu0 0.0
    %1322 = vmatprep.subr.mxu0 0.0
    %1323 = vmatpush1.xpose.msra.mxu0 0.0
    %1324 = vmatprep.subr.mxu0 0.0
    %1325 = vmatpush1.xpose.msra.mxu0 0.0
    %1326 = vmatprep.subr.mxu0 0.0
    %1327 = vmatpush1.xpose.msra.mxu0 0.0
    %1328 = vmatprep.subr.mxu0 0.0
    %1329 = vmatpush1.xpose.msra.mxu0 0.0
    %1330 = vmatprep.subr.mxu0 0.0
    %1331 = vmatpush1.xpose.msra.mxu0 0.0
    %1332 = vmatprep.subr.mxu0 0.0
    %1333 = vmatpush1.xpose.msra.mxu0 0.0
    %1334 = vmatprep.subr.mxu0 0.0
    %1335 = vmatpush1.xpose.msra.mxu0 0.0
    %1336 = vmatprep.subr.mxu0 0.0
    %1337 = vmatpush1.xpose.msra.mxu0 0.0
    %1338 = vmatprep.subr.mxu0 0.0
    %1339 = vmatpush1.xpose.msra.mxu0 0.0
    %1340 = vmatprep.mubr.f32.mxu0 0.0
    %1341 = vmatmul.mubr.f32.gmra.mrb[0].mxu0 %v1265
    %v1342 = vpop.f32.mrb[0].mxu0
    %v1343 = vadd.f32 0.0, %v1342
    %v1344 = vpop.f32.mrb[0].mxu0
    %1345 = vmatprep.mubr.f32.mxu0 0.0
    %1346 = vmatmul.mubr.f32.gmra.mrb[0].mxu0 %v1268
    %v1347 = vpop.f32.mrb[0].mxu0
    %v1348 = vadd.f32 0.0, %v1347
    %v1349 = vpop.f32.mrb[0].mxu0
    %1350 = vdwg.mxu0
    %v1352 = vsel %vm540, %v1036, 0
    %v1355 = vsel %vm540, %v1041, 0
    %v1358 = vsel %vm540, %v1146, 0
    %v1361 = vsel %vm540, %v1151, 0
    %1363 = vmatprep.subr.mxu0 0.0
    %1364 = vmatpush1.xpose.msra.mxu0 %v1358
    %1365 = vmatprep.subr.mxu0 0.0
    %1366 = vmatpush1.xpose.msra.mxu0 %v1361
    %1367 = vmatprep.subr.mxu0 0.0
    %1368 = vmatpush1.xpose.msra.mxu0 0.0
    %1369 = vmatprep.subr.mxu0 0.0
    %1370 = vmatpush1.xpose.msra.mxu0 0.0
    %1371 = vmatprep.subr.mxu0 0.0
    %1372 = vmatpush1.xpose.msra.mxu0 0.0
    %1373 = vmatprep.subr.mxu0 0.0
    %1374 = vmatpush1.xpose.msra.mxu0 0.0
    %1375 = vmatprep.subr.mxu0 0.0
    %1376 = vmatpush1.xpose.msra.mxu0 0.0
    %1377 = vmatprep.subr.mxu0 0.0
    %1378 = vmatpush1.xpose.msra.mxu0 0.0
    %1379 = vmatprep.subr.mxu0 0.0
    %1380 = vmatpush1.xpose.msra.mxu0 0.0
    %1381 = vmatprep.subr.mxu0 0.0
    %1382 = vmatpush1.xpose.msra.mxu0 0.0
    %1383 = vmatprep.subr.mxu0 0.0
    %1384 = vmatpush1.xpose.msra.mxu0 0.0
    %1385 = vmatprep.subr.mxu0 0.0
    %1386 = vmatpush1.xpose.msra.mxu0 0.0
    %1387 = vmatprep.subr.mxu0 0.0
    %1388 = vmatpush1.xpose.msra.mxu0 0.0
    %1389 = vmatprep.subr.mxu0 0.0
    %1390 = vmatpush1.xpose.msra.mxu0 0.0
    %1391 = vmatprep.subr.mxu0 0.0
    %1392 = vmatpush1.xpose.msra.mxu0 0.0
    %1393 = vmatprep.subr.mxu0 0.0
    %1394 = vmatpush1.xpose.msra.mxu0 0.0
    %1395 = vmatprep.subr.mxu0 0.0
    %1396 = vmatpush1.xpose.msra.mxu0 0.0
    %1397 = vmatprep.subr.mxu0 0.0
    %1398 = vmatpush1.xpose.msra.mxu0 0.0
    %1399 = vmatprep.subr.mxu0 0.0
    %1400 = vmatpush1.xpose.msra.mxu0 0.0
    %1401 = vmatprep.subr.mxu0 0.0
    %1402 = vmatpush1.xpose.msra.mxu0 0.0
    %1403 = vmatprep.subr.mxu0 0.0
    %1404 = vmatpush1.xpose.msra.mxu0 0.0
    %1405 = vmatprep.subr.mxu0 0.0
    %1406 = vmatpush1.xpose.msra.mxu0 0.0
    %1407 = vmatprep.subr.mxu0 0.0
    %1408 = vmatpush1.xpose.msra.mxu0 0.0
    %1409 = vmatprep.subr.mxu0 0.0
    %1410 = vmatpush1.xpose.msra.mxu0 0.0
    %1411 = vmatprep.subr.mxu0 0.0
    %1412 = vmatpush1.xpose.msra.mxu0 0.0
    %1413 = vmatprep.subr.mxu0 0.0
    %1414 = vmatpush1.xpose.msra.mxu0 0.0
    %1415 = vmatprep.subr.mxu0 0.0
    %1416 = vmatpush1.xpose.msra.mxu0 0.0
    %1417 = vmatprep.subr.mxu0 0.0
    %1418 = vmatpush1.xpose.msra.mxu0 0.0
    %1419 = vmatprep.subr.mxu0 0.0
    %1420 = vmatpush1.xpose.msra.mxu0 0.0
    %1421 = vmatprep.subr.mxu0 0.0
    %1422 = vmatpush1.xpose.msra.mxu0 0.0
    %1423 = vmatprep.subr.mxu0 0.0
    %1424 = vmatpush1.xpose.msra.mxu0 0.0
    %1425 = vmatprep.subr.mxu0 0.0
    %1426 = vmatpush1.xpose.msra.mxu0 0.0
    %1427 = vmatprep.mubr.f32.mxu0 0.0
    %1428 = vmatmul.mubr.f32.gmra.mrb[0].mxu0 %v1352
    %v1429 = vpop.f32.mrb[0].mxu0
    %v1430 = vadd.f32 0.0, %v1429
    %v1431 = vpop.f32.mrb[0].mxu0
    %1432 = vmatprep.mubr.f32.mxu0 0.0
    %1433 = vmatmul.mubr.f32.gmra.mrb[0].mxu0 %v1355
    %v1434 = vpop.f32.mrb[0].mxu0
    %v1435 = vadd.f32 0.0, %v1434
    %v1436 = vpop.f32.mrb[0].mxu0
    %1437 = vdwg.mxu0
    %v1438 = vsel %vm717, %v1343, -1e+09
    %v1439 = vsel %vm718, %v1348, -1e+09
    %v1440 = vsel %vm717, %v1430, -1e+09
    %v1441 = vsel %vm718, %v1435, -1e+09
    %v1442 = vsel %vm723, %v1438, -inf
    %1443 = vmax.xlane.f32.xlu0 %v1442
    %v1444 = vpop.xlane.xlu0 %1443
    %v1445 = vsel %vm723, %v1439, -inf
    %1446 = vmax.xlane.f32.xlu0 %v1445
    %v1447 = vpop.xlane.xlu0 %1446
    %v1448 = vsel %vm723, %v1440, -inf
    %1449 = vmax.xlane.f32.xlu0 %v1448
    %v1450 = vpop.xlane.xlu0 %1449
    %v1451 = vsel %vm723, %v1441, -inf
    %1452 = vmax.xlane.f32.xlu0 %v1451
    %v1453 = vpop.xlane.xlu0 %1452
    %v1454 = vsub.f32 %v1438, %v1444
    %v1455 = vsub.f32 %v1439, %v1447
    %v1456 = vsub.f32 %v1440, %v1450
    %v1457 = vsub.f32 %v1441, %v1453
    %v1458 = vmul.f32 %v1454, 1.442695
    %v1459 = vpow.pop %v1458
    %v1460 = vmul.f32 %v1455, 1.442695
    %v1461 = vpow.pop %v1460
    %v1462 = vmul.f32 %v1456, 1.442695
    %v1463 = vpow.pop %v1462
    %v1464 = vmul.f32 %v1457, 1.442695
    %v1465 = vpow.pop %v1464
    %v1466 = vsel %vm723, %v1459, 0.0
    %1467 = vadd.xlane.f32.xlu0 %v1466
    %v1468 = vpop.xlane.xlu0 %1467
    %v1469 = vsel %vm723, %v1461, 0.0
    %1470 = vadd.xlane.f32.xlu0 %v1469
    %v1471 = vpop.xlane.xlu0 %1470
    %v1472 = vsel %vm723, %v1463, 0.0
    %1473 = vadd.xlane.f32.xlu0 %v1472
    %v1474 = vpop.xlane.xlu0 %1473
    %v1475 = vsel %vm723, %v1465, 0.0
    %1476 = vadd.xlane.f32.xlu0 %v1475
    %v1477 = vpop.xlane.xlu0 %1476
    %v1478 = vrcp.pop %v1468
    %v1479 = vrcp.pop %v1471
    %v1480 = vrcp.pop %v1474
    %v1481 = vrcp.pop %v1477
    %v1482 = vmul.f32 %v1459, %v1478
    %v1483 = vmul.f32 %v1461, %v1479
    %v1484 = vmul.f32 %v1463, %v1480
    %v1485 = vmul.f32 %v1465, %v1481
    %v1487 = vsel %vm723, %v1482, 0
    %v1490 = vsel %vm723, %v1483, 0
    %1492 = vmatprep.subr.mxu0 0.0
    %1493 = vmatpush1.msra.mxu0 %v1246
    %1494 = vmatprep.subr.mxu0 0.0
    %1495 = vmatpush1.msra.mxu0 %v1251
    %1496 = vmatprep.subr.mxu0 0.0
    %1497 = vmatpush1.msra.mxu0 0.0
    %1498 = vmatprep.subr.mxu0 0.0
    %1499 = vmatpush1.msra.mxu0 0.0
    %1500 = vmatprep.subr.mxu0 0.0
    %1501 = vmatpush1.msra.mxu0 0.0
    %1502 = vmatprep.subr.mxu0 0.0
    %1503 = vmatpush1.msra.mxu0 0.0
    %1504 = vmatprep.subr.mxu0 0.0
    %1505 = vmatpush1.msra.mxu0 0.0
    %1506 = vmatprep.subr.mxu0 0.0
    %1507 = vmatpush1.msra.mxu0 0.0
    %1508 = vmatprep.subr.mxu0 0.0
    %1509 = vmatpush1.msra.mxu0 0.0
    %1510 = vmatprep.subr.mxu0 0.0
    %1511 = vmatpush1.msra.mxu0 0.0
    %1512 = vmatprep.subr.mxu0 0.0
    %1513 = vmatpush1.msra.mxu0 0.0
    %1514 = vmatprep.subr.mxu0 0.0
    %1515 = vmatpush1.msra.mxu0 0.0
    %1516 = vmatprep.subr.mxu0 0.0
    %1517 = vmatpush1.msra.mxu0 0.0
    %1518 = vmatprep.subr.mxu0 0.0
    %1519 = vmatpush1.msra.mxu0 0.0
    %1520 = vmatprep.subr.mxu0 0.0
    %1521 = vmatpush1.msra.mxu0 0.0
    %1522 = vmatprep.subr.mxu0 0.0
    %1523 = vmatpush1.msra.mxu0 0.0
    %1524 = vmatprep.subr.mxu0 0.0
    %1525 = vmatpush1.msra.mxu0 0.0
    %1526 = vmatprep.subr.mxu0 0.0
    %1527 = vmatpush1.msra.mxu0 0.0
    %1528 = vmatprep.subr.mxu0 0.0
    %1529 = vmatpush1.msra.mxu0 0.0
    %1530 = vmatprep.subr.mxu0 0.0
    %1531 = vmatpush1.msra.mxu0 0.0
    %1532 = vmatprep.subr.mxu0 0.0
    %1533 = vmatpush1.msra.mxu0 0.0
    %1534 = vmatprep.subr.mxu0 0.0
    %1535 = vmatpush1.msra.mxu0 0.0
    %1536 = vmatprep.subr.mxu0 0.0
    %1537 = vmatpush1.msra.mxu0 0.0
    %1538 = vmatprep.subr.mxu0 0.0
    %1539 = vmatpush1.msra.mxu0 0.0
    %1540 = vmatprep.subr.mxu0 0.0
    %1541 = vmatpush1.msra.mxu0 0.0
    %1542 = vmatprep.subr.mxu0 0.0
    %1543 = vmatpush1.msra.mxu0 0.0
    %1544 = vmatprep.subr.mxu0 0.0
    %1545 = vmatpush1.msra.mxu0 0.0
    %1546 = vmatprep.subr.mxu0 0.0
    %1547 = vmatpush1.msra.mxu0 0.0
    %1548 = vmatprep.subr.mxu0 0.0
    %1549 = vmatpush1.msra.mxu0 0.0
    %1550 = vmatprep.subr.mxu0 0.0
    %1551 = vmatpush1.msra.mxu0 0.0
    %1552 = vmatprep.subr.mxu0 0.0
    %1553 = vmatpush1.msra.mxu0 0.0
    %1554 = vmatprep.subr.mxu0 0.0
    %1555 = vmatpush1.msra.mxu0 0.0
    %1556 = vmatprep.mubr.f32.mxu0 0.0
    %1557 = vmatmul.mubr.f32.gmra.mrb[0].mxu0 %v1487
    %v1558 = vpop.f32.mrb[0].mxu0
    %v1559 = vadd.f32 0.0, %v1558
    %v1560 = vpop.f32.mrb[0].mxu0
    %1561 = vmatprep.mubr.f32.mxu0 0.0
    %1562 = vmatmul.mubr.f32.gmra.mrb[0].mxu0 %v1490
    %v1563 = vpop.f32.mrb[0].mxu0
    %v1564 = vadd.f32 0.0, %v1563
    %v1565 = vpop.f32.mrb[0].mxu0
    %1566 = vdwg.mxu0
    %v1568 = vsel %vm723, %v1484, 0
    %v1571 = vsel %vm723, %v1485, 0
    %1573 = vmatprep.subr.mxu0 0.0
    %1574 = vmatpush1.msra.mxu0 %v1256
    %1575 = vmatprep.subr.mxu0 0.0
    %1576 = vmatpush1.msra.mxu0 %v1261
    %1577 = vmatprep.subr.mxu0 0.0
    %1578 = vmatpush1.msra.mxu0 0.0
    %1579 = vmatprep.subr.mxu0 0.0
    %1580 = vmatpush1.msra.mxu0 0.0
    %1581 = vmatprep.subr.mxu0 0.0
    %1582 = vmatpush1.msra.mxu0 0.0
    %1583 = vmatprep.subr.mxu0 0.0
    %1584 = vmatpush1.msra.mxu0 0.0
    %1585 = vmatprep.subr.mxu0 0.0
    %1586 = vmatpush1.msra.mxu0 0.0
    %1587 = vmatprep.subr.mxu0 0.0
    %1588 = vmatpush1.msra.mxu0 0.0
    %1589 = vmatprep.subr.mxu0 0.0
    %1590 = vmatpush1.msra.mxu0 0.0
    %1591 = vmatprep.subr.mxu0 0.0
    %1592 = vmatpush1.msra.mxu0 0.0
    %1593 = vmatprep.subr.mxu0 0.0
    %1594 = vmatpush1.msra.mxu0 0.0
    %1595 = vmatprep.subr.mxu0 0.0
    %1596 = vmatpush1.msra.mxu0 0.0
    %1597 = vmatprep.subr.mxu0 0.0
    %1598 = vmatpush1.msra.mxu0 0.0
    %1599 = vmatprep.subr.mxu0 0.0
    %1600 = vmatpush1.msra.mxu0 0.0
    %1601 = vmatprep.subr.mxu0 0.0
    %1602 = vmatpush1.msra.mxu0 0.0
    %1603 = vmatprep.subr.mxu0 0.0
    %1604 = vmatpush1.msra.mxu0 0.0
    %1605 = vmatprep.subr.mxu0 0.0
    %1606 = vmatpush1.msra.mxu0 0.0
    %1607 = vmatprep.subr.mxu0 0.0
    %1608 = vmatpush1.msra.mxu0 0.0
    %1609 = vmatprep.subr.mxu0 0.0
    %1610 = vmatpush1.msra.mxu0 0.0
    %1611 = vmatprep.subr.mxu0 0.0
    %1612 = vmatpush1.msra.mxu0 0.0
    %1613 = vmatprep.subr.mxu0 0.0
    %1614 = vmatpush1.msra.mxu0 0.0
    %1615 = vmatprep.subr.mxu0 0.0
    %1616 = vmatpush1.msra.mxu0 0.0
    %1617 = vmatprep.subr.mxu0 0.0
    %1618 = vmatpush1.msra.mxu0 0.0
    %1619 = vmatprep.subr.mxu0 0.0
    %1620 = vmatpush1.msra.mxu0 0.0
    %1621 = vmatprep.subr.mxu0 0.0
    %1622 = vmatpush1.msra.mxu0 0.0
    %1623 = vmatprep.subr.mxu0 0.0
    %1624 = vmatpush1.msra.mxu0 0.0
    %1625 = vmatprep.subr.mxu0 0.0
    %1626 = vmatpush1.msra.mxu0 0.0
    %1627 = vmatprep.subr.mxu0 0.0
    %1628 = vmatpush1.msra.mxu0 0.0
    %1629 = vmatprep.subr.mxu0 0.0
    %1630 = vmatpush1.msra.mxu0 0.0
    %1631 = vmatprep.subr.mxu0 0.0
    %1632 = vmatpush1.msra.mxu0 0.0
    %1633 = vmatprep.subr.mxu0 0.0
    %1634 = vmatpush1.msra.mxu0 0.0
    %1635 = vmatprep.subr.mxu0 0.0
    %1636 = vmatpush1.msra.mxu0 0.0
    %1637 = vmatprep.mubr.f32.mxu0 0.0
    %1638 = vmatmul.mubr.f32.gmra.mrb[0].mxu0 %v1568
    %v1639 = vpop.f32.mrb[0].mxu0
    %v1640 = vadd.f32 0.0, %v1639
    %v1641 = vpop.f32.mrb[0].mxu0
    %1642 = vmatprep.mubr.f32.mxu0 0.0
    %1643 = vmatmul.mubr.f32.gmra.mrb[0].mxu0 %v1571
    %v1644 = vpop.f32.mrb[0].mxu0
    %v1645 = vadd.f32 0.0, %v1644
    %v1646 = vpop.f32.mrb[0].mxu0
    %1647 = vdwg.mxu0
    %s1648 = scalar_lea.vmem %s6, 32
    %v1649 = vld [vmem:[%s1648] sm:$0xff]
    %v1650 = vld [vmem:[%s1648 + $0x8] sm:$0xff]
    %v1651 = vld [vmem:[%s1648 + $0x10] sm:$0xff]
    %v1652 = vld [vmem:[%s1648 + $0x18] sm:$0xff]
    %v1654 = vsel %vm540, %v1559, 0
    %v1657 = vsel %vm540, %v1564, 0
    %v1660 = vsel %vm540, %v1640, 0
    %v1663 = vsel %vm540, %v1645, 0
    %1665 = vmatprep.subr.mxu0 0.0
    %1666 = vmatpush1.msra.mxu0 %v1649
    %1667 = vmatprep.subr.mxu0 0.0
    %1668 = vmatpush1.msra.mxu0 %v1650
    %1669 = vmatprep.subr.mxu0 0.0
    %1670 = vmatpush1.msra.mxu0 %v1651
    %1671 = vmatprep.subr.mxu0 0.0
    %1672 = vmatpush1.msra.mxu0 %v1652
    %1673 = vmatprep.subr.mxu0 0.0
    %1674 = vmatpush1.msra.mxu0 0.0
    %1675 = vmatprep.subr.mxu0 0.0
    %1676 = vmatpush1.msra.mxu0 0.0
    %1677 = vmatprep.subr.mxu0 0.0
    %1678 = vmatpush1.msra.mxu0 0.0
    %1679 = vmatprep.subr.mxu0 0.0
    %1680 = vmatpush1.msra.mxu0 0.0
    %1681 = vmatprep.subr.mxu0 0.0
    %1682 = vmatpush1.msra.mxu0 0.0
    %1683 = vmatprep.subr.mxu0 0.0
    %1684 = vmatpush1.msra.mxu0 0.0
    %1685 = vmatprep.subr.mxu0 0.0
    %1686 = vmatpush1.msra.mxu0 0.0
    %1687 = vmatprep.subr.mxu0 0.0
    %1688 = vmatpush1.msra.mxu0 0.0
    %1689 = vmatprep.subr.mxu0 0.0
    %1690 = vmatpush1.msra.mxu0 0.0
    %1691 = vmatprep.subr.mxu0 0.0
    %1692 = vmatpush1.msra.mxu0 0.0
    %1693 = vmatprep.subr.mxu0 0.0
    %1694 = vmatpush1.msra.mxu0 0.0
    %1695 = vmatprep.subr.mxu0 0.0
    %1696 = vmatpush1.msra.mxu0 0.0
    %1697 = vmatprep.subr.mxu0 0.0
    %1698 = vmatpush1.msra.mxu0 0.0
    %1699 = vmatprep.subr.mxu0 0.0
    %1700 = vmatpush1.msra.mxu0 0.0
    %1701 = vmatprep.subr.mxu0 0.0
    %1702 = vmatpush1.msra.mxu0 0.0
    %1703 = vmatprep.subr.mxu0 0.0
    %1704 = vmatpush1.msra.mxu0 0.0
    %1705 = vmatprep.subr.mxu0 0.0
    %1706 = vmatpush1.msra.mxu0 0.0
    %1707 = vmatprep.subr.mxu0 0.0
    %1708 = vmatpush1.msra.mxu0 0.0
    %1709 = vmatprep.subr.mxu0 0.0
    %1710 = vmatpush1.msra.mxu0 0.0
    %1711 = vmatprep.subr.mxu0 0.0
    %1712 = vmatpush1.msra.mxu0 0.0
    %1713 = vmatprep.subr.mxu0 0.0
    %1714 = vmatpush1.msra.mxu0 0.0
    %1715 = vmatprep.subr.mxu0 0.0
    %1716 = vmatpush1.msra.mxu0 0.0
    %1717 = vmatprep.subr.mxu0 0.0
    %1718 = vmatpush1.msra.mxu0 0.0
    %1719 = vmatprep.subr.mxu0 0.0
    %1720 = vmatpush1.msra.mxu0 0.0
    %1721 = vmatprep.subr.mxu0 0.0
    %1722 = vmatpush1.msra.mxu0 0.0
    %1723 = vmatprep.subr.mxu0 0.0
    %1724 = vmatpush1.msra.mxu0 0.0
    %1725 = vmatprep.subr.mxu0 0.0
    %1726 = vmatpush1.msra.mxu0 0.0
    %1727 = vmatprep.subr.mxu0 0.0
    %1728 = vmatpush1.msra.mxu0 0.0
    %1729 = vmatprep.mubr.f32.mxu0 0.0
    %1730 = vmatmul.mubr.f32.gmra.mrb[0].mxu0 %v1654
    %v1731 = vpop.f32.mrb[0].mxu0
    %v1732 = vadd.f32 0.0, %v1731
    %v1733 = vpop.f32.mrb[0].mxu0
    %1734 = vmatprep.mubr.f32.mxu0 0.0
    %1735 = vmatmul.mubr.f32.gmra.mrb[0].mxu0 %v1657
    %v1736 = vpop.f32.mrb[0].mxu0
    %v1737 = vadd.f32 0.0, %v1736
    %v1738 = vpop.f32.mrb[0].mxu0
    %1739 = vmatprep.mubr.f32.mxu0 0.0
    %1740 = vmatmul.mubr.f32.gmra.mrb[0].mxu0 %v1660
    %v1741 = vpop.f32.mrb[0].mxu0
    %v1742 = vadd.f32 0.0, %v1741
    %v1743 = vpop.f32.mrb[0].mxu0
    %1744 = vmatprep.mubr.f32.mxu0 0.0
    %1745 = vmatmul.mubr.f32.gmra.mrb[0].mxu0 %v1663
    %v1746 = vpop.f32.mrb[0].mxu0
    %v1747 = vadd.f32 0.0, %v1746
    %v1748 = vpop.f32.mrb[0].mxu0
    %1749 = vdwg.mxu0
    %v1751 = vsel %vm540, %v841, 0
    %v1754 = vsel %vm540, %v846, 0
    %v1757 = vsel %vm540, %v922, 0
    %v1760 = vsel %vm540, %v927, 0
    %1762 = vmatprep.subr.mxu0 0.0
    %1763 = vmatpush1.msra.mxu0 %v930
    %1764 = vmatprep.subr.mxu0 0.0
    %1765 = vmatpush1.msra.mxu0 %v931
    %1766 = vmatprep.subr.mxu0 0.0
    %1767 = vmatpush1.msra.mxu0 %v932
    %1768 = vmatprep.subr.mxu0 0.0
    %1769 = vmatpush1.msra.mxu0 %v933
    %1770 = vmatprep.subr.mxu0 0.0
    %1771 = vmatpush1.msra.mxu0 0.0
    %1772 = vmatprep.subr.mxu0 0.0
    %1773 = vmatpush1.msra.mxu0 0.0
    %1774 = vmatprep.subr.mxu0 0.0
    %1775 = vmatpush1.msra.mxu0 0.0
    %1776 = vmatprep.subr.mxu0 0.0
    %1777 = vmatpush1.msra.mxu0 0.0
    %1778 = vmatprep.subr.mxu0 0.0
    %1779 = vmatpush1.msra.mxu0 0.0
    %1780 = vmatprep.subr.mxu0 0.0
    %1781 = vmatpush1.msra.mxu0 0.0
    %1782 = vmatprep.subr.mxu0 0.0
    %1783 = vmatpush1.msra.mxu0 0.0
    %1784 = vmatprep.subr.mxu0 0.0
    %1785 = vmatpush1.msra.mxu0 0.0
    %1786 = vmatprep.subr.mxu0 0.0
    %1787 = vmatpush1.msra.mxu0 0.0
    %1788 = vmatprep.subr.mxu0 0.0
    %1789 = vmatpush1.msra.mxu0 0.0
    %1790 = vmatprep.subr.mxu0 0.0
    %1791 = vmatpush1.msra.mxu0 0.0
    %1792 = vmatprep.subr.mxu0 0.0
    %1793 = vmatpush1.msra.mxu0 0.0
    %1794 = vmatprep.subr.mxu0 0.0
    %1795 = vmatpush1.msra.mxu0 0.0
    %1796 = vmatprep.subr.mxu0 0.0
    %1797 = vmatpush1.msra.mxu0 0.0
    %1798 = vmatprep.subr.mxu0 0.0
    %1799 = vmatpush1.msra.mxu0 0.0
    %1800 = vmatprep.subr.mxu0 0.0
    %1801 = vmatpush1.msra.mxu0 0.0
    %1802 = vmatprep.subr.mxu0 0.0
    %1803 = vmatpush1.msra.mxu0 0.0
    %1804 = vmatprep.subr.mxu0 0.0
    %1805 = vmatpush1.msra.mxu0 0.0
    %1806 = vmatprep.subr.mxu0 0.0
    %1807 = vmatpush1.msra.mxu0 0.0
    %1808 = vmatprep.subr.mxu0 0.0
    %1809 = vmatpush1.msra.mxu0 0.0
    %1810 = vmatprep.subr.mxu0 0.0
    %1811 = vmatpush1.msra.mxu0 0.0
    %1812 = vmatprep.subr.mxu0 0.0
    %1813 = vmatpush1.msra.mxu0 0.0
    %1814 = vmatprep.subr.mxu0 0.0
    %1815 = vmatpush1.msra.mxu0 0.0
    %1816 = vmatprep.subr.mxu0 0.0
    %1817 = vmatpush1.msra.mxu0 0.0
    %1818 = vmatprep.subr.mxu0 0.0
    %1819 = vmatpush1.msra.mxu0 0.0
    %1820 = vmatprep.subr.mxu0 0.0
    %1821 = vmatpush1.msra.mxu0 0.0
    %1822 = vmatprep.subr.mxu0 0.0
    %1823 = vmatpush1.msra.mxu0 0.0
    %1824 = vmatprep.subr.mxu0 0.0
    %1825 = vmatpush1.msra.mxu0 0.0
    %1826 = vmatprep.mubr.f32.mxu0 0.0
    %1827 = vmatmul.mubr.f32.gmra.mrb[0].mxu0 %v1751
    %v1828 = vpop.f32.mrb[0].mxu0
    %v1829 = vadd.f32 %v1732, %v1828
    %v1830 = vpop.f32.mrb[0].mxu0
    %1831 = vmatprep.mubr.f32.mxu0 0.0
    %1832 = vmatmul.mubr.f32.gmra.mrb[0].mxu0 %v1754
    %v1833 = vpop.f32.mrb[0].mxu0
    %v1834 = vadd.f32 %v1737, %v1833
    %v1835 = vpop.f32.mrb[0].mxu0
    %1836 = vmatprep.mubr.f32.mxu0 0.0
    %1837 = vmatmul.mubr.f32.gmra.mrb[0].mxu0 %v1757
    %v1838 = vpop.f32.mrb[0].mxu0
    %v1839 = vadd.f32 %v1742, %v1838
    %v1840 = vpop.f32.mrb[0].mxu0
    %1841 = vmatprep.mubr.f32.mxu0 0.0
    %1842 = vmatmul.mubr.f32.gmra.mrb[0].mxu0 %v1760
    %v1843 = vpop.f32.mrb[0].mxu0
    %v1844 = vadd.f32 %v1747, %v1843
    %v1845 = vpop.f32.mrb[0].mxu0
    %1846 = vdwg.mxu0
    %s1847 = scalar_lea.vmem %s4, 256
    %v1848 = vld [vmem:[%s1847] sm:$0xff]
    %v1849 = vld [vmem:[%s1847 + $0x8] sm:$0xff]
    %v1850 = vld [vmem:[%s1847 + $0x10] sm:$0xff]
    %v1851 = vld [vmem:[%s1847 + $0x18] sm:$0xff]
    %v1852 = vld [vmem:[%s1847 + $0x20] sm:$0xff]
    %v1853 = vld [vmem:[%s1847 + $0x28] sm:$0xff]
    %v1854 = vld [vmem:[%s1847 + $0x30] sm:$0xff]
    %v1855 = vld [vmem:[%s1847 + $0x38] sm:$0xff]
    %v1856 = vld [vmem:[%s1847 + $0x40] sm:$0xff]
    %v1857 = vld [vmem:[%s1847 + $0x48] sm:$0xff]
    %v1858 = vld [vmem:[%s1847 + $0x50] sm:$0xff]
    %v1859 = vld [vmem:[%s1847 + $0x58] sm:$0xff]
    %v1860 = vld [vmem:[%s1847 + $0x60] sm:$0xff]
    %v1861 = vld [vmem:[%s1847 + $0x68] sm:$0xff]
    %v1862 = vld [vmem:[%s1847 + $0x70] sm:$0xff]
    %v1863 = vld [vmem:[%s1847 + $0x78] sm:$0xff]
    %s1864 = scalar_lea.vmem %s5, 2
    %v1865 = vld [vmem:[%s1864] sm:$0x1]
    %v1867 = vlaneseq
    %v1868 = vshrl.u32 %v1867, 7
    %v1869 = vsub.s32 0, %v1868
    %v1870 = vrot.slane %v1865, %v1869
    %1872 = vmatprep.subr.mxu0 0.0
    %1873 = vmatpush1.msra.mxu0 %v1848
    %1874 = vmatprep.subr.mxu0 0.0
    %1875 = vmatpush1.msra.mxu0 %v1849
    %1876 = vmatprep.subr.mxu0 0.0
    %1877 = vmatpush1.msra.mxu0 %v1850
    %1878 = vmatprep.subr.mxu0 0.0
    %1879 = vmatpush1.msra.mxu0 %v1851
    %1880 = vmatprep.subr.mxu0 0.0
    %1881 = vmatpush1.msra.mxu0 %v1852
    %1882 = vmatprep.subr.mxu0 0.0
    %1883 = vmatpush1.msra.mxu0 %v1853
    %1884 = vmatprep.subr.mxu0 0.0
    %1885 = vmatpush1.msra.mxu0 %v1854
    %1886 = vmatprep.subr.mxu0 0.0
    %1887 = vmatpush1.msra.mxu0 %v1855
    %1888 = vmatprep.subr.mxu0 0.0
    %1889 = vmatpush1.msra.mxu0 %v1856
    %1890 = vmatprep.subr.mxu0 0.0
    %1891 = vmatpush1.msra.mxu0 %v1857
    %1892 = vmatprep.subr.mxu0 0.0
    %1893 = vmatpush1.msra.mxu0 %v1858
    %1894 = vmatprep.subr.mxu0 0.0
    %1895 = vmatpush1.msra.mxu0 %v1859
    %1896 = vmatprep.subr.mxu0 0.0
    %1897 = vmatpush1.msra.mxu0 %v1860
    %1898 = vmatprep.subr.mxu0 0.0
    %1899 = vmatpush1.msra.mxu0 %v1861
    %1900 = vmatprep.subr.mxu0 0.0
    %1901 = vmatpush1.msra.mxu0 %v1862
    %1902 = vmatprep.subr.mxu0 0.0
    %1903 = vmatpush1.msra.mxu0 %v1863
    %1904 = vmatprep.subr.mxu0 0.0
    %1905 = vmatpush1.msra.mxu0 0.0
    %1906 = vmatprep.subr.mxu0 0.0
    %1907 = vmatpush1.msra.mxu0 0.0
    %1908 = vmatprep.subr.mxu0 0.0
    %1909 = vmatpush1.msra.mxu0 0.0
    %1910 = vmatprep.subr.mxu0 0.0
    %1911 = vmatpush1.msra.mxu0 0.0
    %1912 = vmatprep.subr.mxu0 0.0
    %1913 = vmatpush1.msra.mxu0 0.0
    %1914 = vmatprep.subr.mxu0 0.0
    %1915 = vmatpush1.msra.mxu0 0.0
    %1916 = vmatprep.subr.mxu0 0.0
    %1917 = vmatpush1.msra.mxu0 0.0
    %1918 = vmatprep.subr.mxu0 0.0
    %1919 = vmatpush1.msra.mxu0 0.0
    %1920 = vmatprep.subr.mxu0 0.0
    %1921 = vmatpush1.msra.mxu0 0.0
    %1922 = vmatprep.subr.mxu0 0.0
    %1923 = vmatpush1.msra.mxu0 0.0
    %1924 = vmatprep.subr.mxu0 0.0
    %1925 = vmatpush1.msra.mxu0 0.0
    %1926 = vmatprep.subr.mxu0 0.0
    %1927 = vmatpush1.msra.mxu0 0.0
    %1928 = vmatprep.subr.mxu0 0.0
    %1929 = vmatpush1.msra.mxu0 0.0
    %1930 = vmatprep.subr.mxu0 0.0
    %1931 = vmatpush1.msra.mxu0 0.0
    %1932 = vmatprep.subr.mxu0 0.0
    %1933 = vmatpush1.msra.mxu0 0.0
    %1934 = vmatprep.subr.mxu0 0.0
    %1935 = vmatpush1.msra.mxu0 0.0
    %1936 = vmatprep.mubr.f32.mxu0 0.0
    %1937 = vmatmul.mubr.f32.gmra.mrb[0].mxu0 %v199
    %v1938 = vpop.f32.mrb[0].mxu0
    %v1939 = vadd.f32 %v1870, %v1938
    %v1940 = vpop.f32.mrb[0].mxu0
    %1941 = vmatprep.mubr.f32.mxu0 0.0
    %1942 = vmatmul.mubr.f32.gmra.mrb[0].mxu0 %v200
    %v1943 = vpop.f32.mrb[0].mxu0
    %v1944 = vadd.f32 %v1870, %v1943
    %v1945 = vpop.f32.mrb[0].mxu0
    %1946 = vmatprep.mubr.f32.mxu0 0.0
    %1947 = vmatmul.mubr.f32.gmra.mrb[0].mxu0 %v201
    %v1948 = vpop.f32.mrb[0].mxu0
    %v1949 = vadd.f32 %v1870, %v1948
    %v1950 = vpop.f32.mrb[0].mxu0
    %1951 = vmatprep.mubr.f32.mxu0 0.0
    %1952 = vmatmul.mubr.f32.gmra.mrb[0].mxu0 %v202
    %v1953 = vpop.f32.mrb[0].mxu0
    %v1954 = vadd.f32 %v1870, %v1953
    %v1955 = vpop.f32.mrb[0].mxu0
    %1956 = vdwg.mxu0
    %s1957 = scalar_lea.vmem %s4, 768
    %v1958 = vld [vmem:[%s1957] sm:$0xff]
    %v1959 = vld [vmem:[%s1957 + $0x8] sm:$0xff]
    %v1960 = vld [vmem:[%s1957 + $0x10] sm:$0xff]
    %v1961 = vld [vmem:[%s1957 + $0x18] sm:$0xff]
    %v1962 = vld [vmem:[%s1957 + $0x20] sm:$0xff]
    %v1963 = vld [vmem:[%s1957 + $0x28] sm:$0xff]
    %v1964 = vld [vmem:[%s1957 + $0x30] sm:$0xff]
    %v1965 = vld [vmem:[%s1957 + $0x38] sm:$0xff]
    %v1966 = vld [vmem:[%s1957 + $0x40] sm:$0xff]
    %v1967 = vld [vmem:[%s1957 + $0x48] sm:$0xff]
    %v1968 = vld [vmem:[%s1957 + $0x50] sm:$0xff]
    %v1969 = vld [vmem:[%s1957 + $0x58] sm:$0xff]
    %v1970 = vld [vmem:[%s1957 + $0x60] sm:$0xff]
    %v1971 = vld [vmem:[%s1957 + $0x68] sm:$0xff]
    %v1972 = vld [vmem:[%s1957 + $0x70] sm:$0xff]
    %v1973 = vld [vmem:[%s1957 + $0x78] sm:$0xff]
    %s1974 = scalar_lea.vmem %s5, 6
    %v1975 = vld [vmem:[%s1974] sm:$0x1]
    %v1977 = vlaneseq
    %v1978 = vshrl.u32 %v1977, 7
    %v1979 = vsub.s32 0, %v1978
    %v1980 = vrot.slane %v1975, %v1979
    %1982 = vmatprep.subr.mxu0 0.0
    %1983 = vmatpush1.msra.mxu0 %v1958
    %1984 = vmatprep.subr.mxu0 0.0
    %1985 = vmatpush1.msra.mxu0 %v1959
    %1986 = vmatprep.subr.mxu0 0.0
    %1987 = vmatpush1.msra.mxu0 %v1960
    %1988 = vmatprep.subr.mxu0 0.0
    %1989 = vmatpush1.msra.mxu0 %v1961
    %1990 = vmatprep.subr.mxu0 0.0
    %1991 = vmatpush1.msra.mxu0 %v1962
    %1992 = vmatprep.subr.mxu0 0.0
    %1993 = vmatpush1.msra.mxu0 %v1963
    %1994 = vmatprep.subr.mxu0 0.0
    %1995 = vmatpush1.msra.mxu0 %v1964
    %1996 = vmatprep.subr.mxu0 0.0
    %1997 = vmatpush1.msra.mxu0 %v1965
    %1998 = vmatprep.subr.mxu0 0.0
    %1999 = vmatpush1.msra.mxu0 %v1966
    %2000 = vmatprep.subr.mxu0 0.0
    %2001 = vmatpush1.msra.mxu0 %v1967
    %2002 = vmatprep.subr.mxu0 0.0
    %2003 = vmatpush1.msra.mxu0 %v1968
    %2004 = vmatprep.subr.mxu0 0.0
    %2005 = vmatpush1.msra.mxu0 %v1969
    %2006 = vmatprep.subr.mxu0 0.0
    %2007 = vmatpush1.msra.mxu0 %v1970
    %2008 = vmatprep.subr.mxu0 0.0
    %2009 = vmatpush1.msra.mxu0 %v1971
    %2010 = vmatprep.subr.mxu0 0.0
    %2011 = vmatpush1.msra.mxu0 %v1972
    %2012 = vmatprep.subr.mxu0 0.0
    %2013 = vmatpush1.msra.mxu0 %v1973
    %2014 = vmatprep.subr.mxu0 0.0
    %2015 = vmatpush1.msra.mxu0 0.0
    %2016 = vmatprep.subr.mxu0 0.0
    %2017 = vmatpush1.msra.mxu0 0.0
    %2018 = vmatprep.subr.mxu0 0.0
    %2019 = vmatpush1.msra.mxu0 0.0
    %2020 = vmatprep.subr.mxu0 0.0
    %2021 = vmatpush1.msra.mxu0 0.0
    %2022 = vmatprep.subr.mxu0 0.0
    %2023 = vmatpush1.msra.mxu0 0.0
    %2024 = vmatprep.subr.mxu0 0.0
    %2025 = vmatpush1.msra.mxu0 0.0
    %2026 = vmatprep.subr.mxu0 0.0
    %2027 = vmatpush1.msra.mxu0 0.0
    %2028 = vmatprep.subr.mxu0 0.0
    %2029 = vmatpush1.msra.mxu0 0.0
    %2030 = vmatprep.subr.mxu0 0.0
    %2031 = vmatpush1.msra.mxu0 0.0
    %2032 = vmatprep.subr.mxu0 0.0
    %2033 = vmatpush1.msra.mxu0 0.0
    %2034 = vmatprep.subr.mxu0 0.0
    %2035 = vmatpush1.msra.mxu0 0.0
    %2036 = vmatprep.subr.mxu0 0.0
    %2037 = vmatpush1.msra.mxu0 0.0
    %2038 = vmatprep.subr.mxu0 0.0
    %2039 = vmatpush1.msra.mxu0 0.0
    %2040 = vmatprep.subr.mxu0 0.0
    %2041 = vmatpush1.msra.mxu0 0.0
    %2042 = vmatprep.subr.mxu0 0.0
    %2043 = vmatpush1.msra.mxu0 0.0
    %2044 = vmatprep.subr.mxu0 0.0
    %2045 = vmatpush1.msra.mxu0 0.0
    %2046 = vmatprep.mubr.f32.mxu0 0.0
    %2047 = vmatmul.mubr.f32.gmra.mrb[0].mxu0 %v199
    %v2048 = vpop.f32.mrb[0].mxu0
    %v2049 = vadd.f32 %v1980, %v2048
    %v2050 = vpop.f32.mrb[0].mxu0
    %2051 = vmatprep.mubr.f32.mxu0 0.0
    %2052 = vmatmul.mubr.f32.gmra.mrb[0].mxu0 %v200
    %v2053 = vpop.f32.mrb[0].mxu0
    %v2054 = vadd.f32 %v1980, %v2053
    %v2055 = vpop.f32.mrb[0].mxu0
    %2056 = vmatprep.mubr.f32.mxu0 0.0
    %2057 = vmatmul.mubr.f32.gmra.mrb[0].mxu0 %v201
    %v2058 = vpop.f32.mrb[0].mxu0
    %v2059 = vadd.f32 %v1980, %v2058
    %v2060 = vpop.f32.mrb[0].mxu0
    %2061 = vmatprep.mubr.f32.mxu0 0.0
    %2062 = vmatmul.mubr.f32.gmra.mrb[0].mxu0 %v202
    %v2063 = vpop.f32.mrb[0].mxu0
    %v2064 = vadd.f32 %v1980, %v2063
    %v2065 = vpop.f32.mrb[0].mxu0
    %2066 = vdwg.mxu0
    %s2067 = scalar_lea.vmem %s4, 1280
    %v2068 = vld [vmem:[%s2067] sm:$0xff]
    %v2069 = vld [vmem:[%s2067 + $0x8] sm:$0xff]
    %v2070 = vld [vmem:[%s2067 + $0x10] sm:$0xff]
    %v2071 = vld [vmem:[%s2067 + $0x18] sm:$0xff]
    %v2072 = vld [vmem:[%s2067 + $0x20] sm:$0xff]
    %v2073 = vld [vmem:[%s2067 + $0x28] sm:$0xff]
    %v2074 = vld [vmem:[%s2067 + $0x30] sm:$0xff]
    %v2075 = vld [vmem:[%s2067 + $0x38] sm:$0xff]
    %v2076 = vld [vmem:[%s2067 + $0x40] sm:$0xff]
    %v2077 = vld [vmem:[%s2067 + $0x48] sm:$0xff]
    %v2078 = vld [vmem:[%s2067 + $0x50] sm:$0xff]
    %v2079 = vld [vmem:[%s2067 + $0x58] sm:$0xff]
    %v2080 = vld [vmem:[%s2067 + $0x60] sm:$0xff]
    %v2081 = vld [vmem:[%s2067 + $0x68] sm:$0xff]
    %v2082 = vld [vmem:[%s2067 + $0x70] sm:$0xff]
    %v2083 = vld [vmem:[%s2067 + $0x78] sm:$0xff]
    %s2084 = scalar_lea.vmem %s5, 10
    %v2085 = vld [vmem:[%s2084] sm:$0x1]
    %v2087 = vlaneseq
    %v2088 = vshrl.u32 %v2087, 7
    %v2089 = vsub.s32 0, %v2088
    %v2090 = vrot.slane %v2085, %v2089
    %2092 = vmatprep.subr.mxu0 0.0
    %2093 = vmatpush1.msra.mxu0 %v2068
    %2094 = vmatprep.subr.mxu0 0.0
    %2095 = vmatpush1.msra.mxu0 %v2069
    %2096 = vmatprep.subr.mxu0 0.0
    %2097 = vmatpush1.msra.mxu0 %v2070
    %2098 = vmatprep.subr.mxu0 0.0
    %2099 = vmatpush1.msra.mxu0 %v2071
    %2100 = vmatprep.subr.mxu0 0.0
    %2101 = vmatpush1.msra.mxu0 %v2072
    %2102 = vmatprep.subr.mxu0 0.0
    %2103 = vmatpush1.msra.mxu0 %v2073
    %2104 = vmatprep.subr.mxu0 0.0
    %2105 = vmatpush1.msra.mxu0 %v2074
    %2106 = vmatprep.subr.mxu0 0.0
    %2107 = vmatpush1.msra.mxu0 %v2075
    %2108 = vmatprep.subr.mxu0 0.0
    %2109 = vmatpush1.msra.mxu0 %v2076
    %2110 = vmatprep.subr.mxu0 0.0
    %2111 = vmatpush1.msra.mxu0 %v2077
    %2112 = vmatprep.subr.mxu0 0.0
    %2113 = vmatpush1.msra.mxu0 %v2078
    %2114 = vmatprep.subr.mxu0 0.0
    %2115 = vmatpush1.msra.mxu0 %v2079
    %2116 = vmatprep.subr.mxu0 0.0
    %2117 = vmatpush1.msra.mxu0 %v2080
    %2118 = vmatprep.subr.mxu0 0.0
    %2119 = vmatpush1.msra.mxu0 %v2081
    %2120 = vmatprep.subr.mxu0 0.0
    %2121 = vmatpush1.msra.mxu0 %v2082
    %2122 = vmatprep.subr.mxu0 0.0
    %2123 = vmatpush1.msra.mxu0 %v2083
    %2124 = vmatprep.subr.mxu0 0.0
    %2125 = vmatpush1.msra.mxu0 0.0
    %2126 = vmatprep.subr.mxu0 0.0
    %2127 = vmatpush1.msra.mxu0 0.0
    %2128 = vmatprep.subr.mxu0 0.0
    %2129 = vmatpush1.msra.mxu0 0.0
    %2130 = vmatprep.subr.mxu0 0.0
    %2131 = vmatpush1.msra.mxu0 0.0
    %2132 = vmatprep.subr.mxu0 0.0
    %2133 = vmatpush1.msra.mxu0 0.0
    %2134 = vmatprep.subr.mxu0 0.0
    %2135 = vmatpush1.msra.mxu0 0.0
    %2136 = vmatprep.subr.mxu0 0.0
    %2137 = vmatpush1.msra.mxu0 0.0
    %2138 = vmatprep.subr.mxu0 0.0
    %2139 = vmatpush1.msra.mxu0 0.0
    %2140 = vmatprep.subr.mxu0 0.0
    %2141 = vmatpush1.msra.mxu0 0.0
    %2142 = vmatprep.subr.mxu0 0.0
    %2143 = vmatpush1.msra.mxu0 0.0
    %2144 = vmatprep.subr.mxu0 0.0
    %2145 = vmatpush1.msra.mxu0 0.0
    %2146 = vmatprep.subr.mxu0 0.0
    %2147 = vmatpush1.msra.mxu0 0.0
    %2148 = vmatprep.subr.mxu0 0.0
    %2149 = vmatpush1.msra.mxu0 0.0
    %2150 = vmatprep.subr.mxu0 0.0
    %2151 = vmatpush1.msra.mxu0 0.0
    %2152 = vmatprep.subr.mxu0 0.0
    %2153 = vmatpush1.msra.mxu0 0.0
    %2154 = vmatprep.subr.mxu0 0.0
    %2155 = vmatpush1.msra.mxu0 0.0
    %2156 = vmatprep.mubr.f32.mxu0 0.0
    %2157 = vmatmul.mubr.f32.gmra.mrb[0].mxu0 %v199
    %v2158 = vpop.f32.mrb[0].mxu0
    %v2159 = vadd.f32 %v2090, %v2158
    %v2160 = vpop.f32.mrb[0].mxu0
    %2161 = vmatprep.mubr.f32.mxu0 0.0
    %2162 = vmatmul.mubr.f32.gmra.mrb[0].mxu0 %v200
    %v2163 = vpop.f32.mrb[0].mxu0
    %v2164 = vadd.f32 %v2090, %v2163
    %v2165 = vpop.f32.mrb[0].mxu0
    %2166 = vmatprep.mubr.f32.mxu0 0.0
    %2167 = vmatmul.mubr.f32.gmra.mrb[0].mxu0 %v201
    %v2168 = vpop.f32.mrb[0].mxu0
    %v2169 = vadd.f32 %v2090, %v2168
    %v2170 = vpop.f32.mrb[0].mxu0
    %2171 = vmatprep.mubr.f32.mxu0 0.0
    %2172 = vmatmul.mubr.f32.gmra.mrb[0].mxu0 %v202
    %v2173 = vpop.f32.mrb[0].mxu0
    %v2174 = vadd.f32 %v2090, %v2173
    %v2175 = vpop.f32.mrb[0].mxu0
    %2176 = vdwg.mxu0
    %v2178 = vsel %vm540, %v1939, 0
    %v2181 = vsel %vm540, %v1944, 0
    %v2184 = vsel %vm540, %v2049, 0
    %v2187 = vsel %vm540, %v2054, 0
    %2189 = vmatprep.subr.mxu0 0.0
    %2190 = vmatpush1.xpose.msra.mxu0 %v2184
    %2191 = vmatprep.subr.mxu0 0.0
    %2192 = vmatpush1.xpose.msra.mxu0 %v2187
    %2193 = vmatprep.subr.mxu0 0.0
    %2194 = vmatpush1.xpose.msra.mxu0 0.0
    %2195 = vmatprep.subr.mxu0 0.0
    %2196 = vmatpush1.xpose.msra.mxu0 0.0
    %2197 = vmatprep.subr.mxu0 0.0
    %2198 = vmatpush1.xpose.msra.mxu0 0.0
    %2199 = vmatprep.subr.mxu0 0.0
    %2200 = vmatpush1.xpose.msra.mxu0 0.0
    %2201 = vmatprep.subr.mxu0 0.0
    %2202 = vmatpush1.xpose.msra.mxu0 0.0
    %2203 = vmatprep.subr.mxu0 0.0
    %2204 = vmatpush1.xpose.msra.mxu0 0.0
    %2205 = vmatprep.subr.mxu0 0.0
    %2206 = vmatpush1.xpose.msra.mxu0 0.0
    %2207 = vmatprep.subr.mxu0 0.0
    %2208 = vmatpush1.xpose.msra.mxu0 0.0
    %2209 = vmatprep.subr.mxu0 0.0
    %2210 = vmatpush1.xpose.msra.mxu0 0.0
    %2211 = vmatprep.subr.mxu0 0.0
    %2212 = vmatpush1.xpose.msra.mxu0 0.0
    %2213 = vmatprep.subr.mxu0 0.0
    %2214 = vmatpush1.xpose.msra.mxu0 0.0
    %2215 = vmatprep.subr.mxu0 0.0
    %2216 = vmatpush1.xpose.msra.mxu0 0.0
    %2217 = vmatprep.subr.mxu0 0.0
    %2218 = vmatpush1.xpose.msra.mxu0 0.0
    %2219 = vmatprep.subr.mxu0 0.0
    %2220 = vmatpush1.xpose.msra.mxu0 0.0
    %2221 = vmatprep.subr.mxu0 0.0
    %2222 = vmatpush1.xpose.msra.mxu0 0.0
    %2223 = vmatprep.subr.mxu0 0.0
    %2224 = vmatpush1.xpose.msra.mxu0 0.0
    %2225 = vmatprep.subr.mxu0 0.0
    %2226 = vmatpush1.xpose.msra.mxu0 0.0
    %2227 = vmatprep.subr.mxu0 0.0
    %2228 = vmatpush1.xpose.msra.mxu0 0.0
    %2229 = vmatprep.subr.mxu0 0.0
    %2230 = vmatpush1.xpose.msra.mxu0 0.0
    %2231 = vmatprep.subr.mxu0 0.0
    %2232 = vmatpush1.xpose.msra.mxu0 0.0
    %2233 = vmatprep.subr.mxu0 0.0
    %2234 = vmatpush1.xpose.msra.mxu0 0.0
    %2235 = vmatprep.subr.mxu0 0.0
    %2236 = vmatpush1.xpose.msra.mxu0 0.0
    %2237 = vmatprep.subr.mxu0 0.0
    %2238 = vmatpush1.xpose.msra.mxu0 0.0
    %2239 = vmatprep.subr.mxu0 0.0
    %2240 = vmatpush1.xpose.msra.mxu0 0.0
    %2241 = vmatprep.subr.mxu0 0.0
    %2242 = vmatpush1.xpose.msra.mxu0 0.0
    %2243 = vmatprep.subr.mxu0 0.0
    %2244 = vmatpush1.xpose.msra.mxu0 0.0
    %2245 = vmatprep.subr.mxu0 0.0
    %2246 = vmatpush1.xpose.msra.mxu0 0.0
    %2247 = vmatprep.subr.mxu0 0.0
    %2248 = vmatpush1.xpose.msra.mxu0 0.0
    %2249 = vmatprep.subr.mxu0 0.0
    %2250 = vmatpush1.xpose.msra.mxu0 0.0
    %2251 = vmatprep.subr.mxu0 0.0
    %2252 = vmatpush1.xpose.msra.mxu0 0.0
    %2253 = vmatprep.mubr.f32.mxu0 0.0
    %2254 = vmatmul.mubr.f32.gmra.mrb[0].mxu0 %v2178
    %v2255 = vpop.f32.mrb[0].mxu0
    %v2256 = vadd.f32 0.0, %v2255
    %v2257 = vpop.f32.mrb[0].mxu0
    %2258 = vmatprep.mubr.f32.mxu0 0.0
    %2259 = vmatmul.mubr.f32.gmra.mrb[0].mxu0 %v2181
    %v2260 = vpop.f32.mrb[0].mxu0
    %v2261 = vadd.f32 0.0, %v2260
    %v2262 = vpop.f32.mrb[0].mxu0
    %2263 = vdwg.mxu0
    %v2265 = vsel %vm540, %v1949, 0
    %v2268 = vsel %vm540, %v1954, 0
    %v2271 = vsel %vm540, %v2059, 0
    %v2274 = vsel %vm540, %v2064, 0
    %2276 = vmatprep.subr.mxu0 0.0
    %2277 = vmatpush1.xpose.msra.mxu0 %v2271
    %2278 = vmatprep.subr.mxu0 0.0
    %2279 = vmatpush1.xpose.msra.mxu0 %v2274
    %2280 = vmatprep.subr.mxu0 0.0
    %2281 = vmatpush1.xpose.msra.mxu0 0.0
    %2282 = vmatprep.subr.mxu0 0.0
    %2283 = vmatpush1.xpose.msra.mxu0 0.0
    %2284 = vmatprep.subr.mxu0 0.0
    %2285 = vmatpush1.xpose.msra.mxu0 0.0
    %2286 = vmatprep.subr.mxu0 0.0
    %2287 = vmatpush1.xpose.msra.mxu0 0.0
    %2288 = vmatprep.subr.mxu0 0.0
    %2289 = vmatpush1.xpose.msra.mxu0 0.0
    %2290 = vmatprep.subr.mxu0 0.0
    %2291 = vmatpush1.xpose.msra.mxu0 0.0
    %2292 = vmatprep.subr.mxu0 0.0
    %2293 = vmatpush1.xpose.msra.mxu0 0.0
    %2294 = vmatprep.subr.mxu0 0.0
    %2295 = vmatpush1.xpose.msra.mxu0 0.0
    %2296 = vmatprep.subr.mxu0 0.0
    %2297 = vmatpush1.xpose.msra.mxu0 0.0
    %2298 = vmatprep.subr.mxu0 0.0
    %2299 = vmatpush1.xpose.msra.mxu0 0.0
    %2300 = vmatprep.subr.mxu0 0.0
    %2301 = vmatpush1.xpose.msra.mxu0 0.0
    %2302 = vmatprep.subr.mxu0 0.0
    %2303 = vmatpush1.xpose.msra.mxu0 0.0
    %2304 = vmatprep.subr.mxu0 0.0
    %2305 = vmatpush1.xpose.msra.mxu0 0.0
    %2306 = vmatprep.subr.mxu0 0.0
    %2307 = vmatpush1.xpose.msra.mxu0 0.0
    %2308 = vmatprep.subr.mxu0 0.0
    %2309 = vmatpush1.xpose.msra.mxu0 0.0
    %2310 = vmatprep.subr.mxu0 0.0
    %2311 = vmatpush1.xpose.msra.mxu0 0.0
    %2312 = vmatprep.subr.mxu0 0.0
    %2313 = vmatpush1.xpose.msra.mxu0 0.0
    %2314 = vmatprep.subr.mxu0 0.0
    %2315 = vmatpush1.xpose.msra.mxu0 0.0
    %2316 = vmatprep.subr.mxu0 0.0
    %2317 = vmatpush1.xpose.msra.mxu0 0.0
    %2318 = vmatprep.subr.mxu0 0.0
    %2319 = vmatpush1.xpose.msra.mxu0 0.0
    %2320 = vmatprep.subr.mxu0 0.0
    %2321 = vmatpush1.xpose.msra.mxu0 0.0
    %2322 = vmatprep.subr.mxu0 0.0
    %2323 = vmatpush1.xpose.msra.mxu0 0.0
    %2324 = vmatprep.subr.mxu0 0.0
    %2325 = vmatpush1.xpose.msra.mxu0 0.0
    %2326 = vmatprep.subr.mxu0 0.0
    %2327 = vmatpush1.xpose.msra.mxu0 0.0
    %2328 = vmatprep.subr.mxu0 0.0
    %2329 = vmatpush1.xpose.msra.mxu0 0.0
    %2330 = vmatprep.subr.mxu0 0.0
    %2331 = vmatpush1.xpose.msra.mxu0 0.0
    %2332 = vmatprep.subr.mxu0 0.0
    %2333 = vmatpush1.xpose.msra.mxu0 0.0
    %2334 = vmatprep.subr.mxu0 0.0
    %2335 = vmatpush1.xpose.msra.mxu0 0.0
    %2336 = vmatprep.subr.mxu0 0.0
    %2337 = vmatpush1.xpose.msra.mxu0 0.0
    %2338 = vmatprep.subr.mxu0 0.0
    %2339 = vmatpush1.xpose.msra.mxu0 0.0
    %2340 = vmatprep.mubr.f32.mxu0 0.0
    %2341 = vmatmul.mubr.f32.gmra.mrb[0].mxu0 %v2265
    %v2342 = vpop.f32.mrb[0].mxu0
    %v2343 = vadd.f32 0.0, %v2342
    %v2344 = vpop.f32.mrb[0].mxu0
    %2345 = vmatprep.mubr.f32.mxu0 0.0
    %2346 = vmatmul.mubr.f32.gmra.mrb[0].mxu0 %v2268
    %v2347 = vpop.f32.mrb[0].mxu0
    %v2348 = vadd.f32 0.0, %v2347
    %v2349 = vpop.f32.mrb[0].mxu0
    %2350 = vdwg.mxu0
    %v2351 = vsel %vm717, %v2256, -1e+09
    %v2352 = vsel %vm718, %v2261, -1e+09
    %v2353 = vsel %vm717, %v2343, -1e+09
    %v2354 = vsel %vm718, %v2348, -1e+09
    %v2355 = vsel %vm723, %v2351, -inf
    %2356 = vmax.xlane.f32.xlu0 %v2355
    %v2357 = vpop.xlane.xlu0 %2356
    %v2358 = vsel %vm723, %v2352, -inf
    %2359 = vmax.xlane.f32.xlu0 %v2358
    %v2360 = vpop.xlane.xlu0 %2359
    %v2361 = vsel %vm723, %v2353, -inf
    %2362 = vmax.xlane.f32.xlu0 %v2361
    %v2363 = vpop.xlane.xlu0 %2362
    %v2364 = vsel %vm723, %v2354, -inf
    %2365 = vmax.xlane.f32.xlu0 %v2364
    %v2366 = vpop.xlane.xlu0 %2365
    %v2367 = vsub.f32 %v2351, %v2357
    %v2368 = vsub.f32 %v2352, %v2360
    %v2369 = vsub.f32 %v2353, %v2363
    %v2370 = vsub.f32 %v2354, %v2366
    %v2371 = vmul.f32 %v2367, 1.442695
    %v2372 = vpow.pop %v2371
    %v2373 = vmul.f32 %v2368, 1.442695
    %v2374 = vpow.pop %v2373
    %v2375 = vmul.f32 %v2369, 1.442695
    %v2376 = vpow.pop %v2375
    %v2377 = vmul.f32 %v2370, 1.442695
    %v2378 = vpow.pop %v2377
    %v2379 = vsel %vm723, %v2372, 0.0
    %2380 = vadd.xlane.f32.xlu0 %v2379
    %v2381 = vpop.xlane.xlu0 %2380
    %v2382 = vsel %vm723, %v2374, 0.0
    %2383 = vadd.xlane.f32.xlu0 %v2382
    %v2384 = vpop.xlane.xlu0 %2383
    %v2385 = vsel %vm723, %v2376, 0.0
    %2386 = vadd.xlane.f32.xlu0 %v2385
    %v2387 = vpop.xlane.xlu0 %2386
    %v2388 = vsel %vm723, %v2378, 0.0
    %2389 = vadd.xlane.f32.xlu0 %v2388
    %v2390 = vpop.xlane.xlu0 %2389
    %v2391 = vrcp.pop %v2381
    %v2392 = vrcp.pop %v2384
    %v2393 = vrcp.pop %v2387
    %v2394 = vrcp.pop %v2390
    %v2395 = vmul.f32 %v2372, %v2391
    %v2396 = vmul.f32 %v2374, %v2392
    %v2397 = vmul.f32 %v2376, %v2393
    %v2398 = vmul.f32 %v2378, %v2394
    %v2400 = vsel %vm723, %v2395, 0
    %v2403 = vsel %vm723, %v2396, 0
    %2405 = vmatprep.subr.mxu0 0.0
    %2406 = vmatpush1.msra.mxu0 %v2159
    %2407 = vmatprep.subr.mxu0 0.0
    %2408 = vmatpush1.msra.mxu0 %v2164
    %2409 = vmatprep.subr.mxu0 0.0
    %2410 = vmatpush1.msra.mxu0 0.0
    %2411 = vmatprep.subr.mxu0 0.0
    %2412 = vmatpush1.msra.mxu0 0.0
    %2413 = vmatprep.subr.mxu0 0.0
    %2414 = vmatpush1.msra.mxu0 0.0
    %2415 = vmatprep.subr.mxu0 0.0
    %2416 = vmatpush1.msra.mxu0 0.0
    %2417 = vmatprep.subr.mxu0 0.0
    %2418 = vmatpush1.msra.mxu0 0.0
    %2419 = vmatprep.subr.mxu0 0.0
    %2420 = vmatpush1.msra.mxu0 0.0
    %2421 = vmatprep.subr.mxu0 0.0
    %2422 = vmatpush1.msra.mxu0 0.0
    %2423 = vmatprep.subr.mxu0 0.0
    %2424 = vmatpush1.msra.mxu0 0.0
    %2425 = vmatprep.subr.mxu0 0.0
    %2426 = vmatpush1.msra.mxu0 0.0
    %2427 = vmatprep.subr.mxu0 0.0
    %2428 = vmatpush1.msra.mxu0 0.0
    %2429 = vmatprep.subr.mxu0 0.0
    %2430 = vmatpush1.msra.mxu0 0.0
    %2431 = vmatprep.subr.mxu0 0.0
    %2432 = vmatpush1.msra.mxu0 0.0
    %2433 = vmatprep.subr.mxu0 0.0
    %2434 = vmatpush1.msra.mxu0 0.0
    %2435 = vmatprep.subr.mxu0 0.0
    %2436 = vmatpush1.msra.mxu0 0.0
    %2437 = vmatprep.subr.mxu0 0.0
    %2438 = vmatpush1.msra.mxu0 0.0
    %2439 = vmatprep.subr.mxu0 0.0
    %2440 = vmatpush1.msra.mxu0 0.0
    %2441 = vmatprep.subr.mxu0 0.0
    %2442 = vmatpush1.msra.mxu0 0.0
    %2443 = vmatprep.subr.mxu0 0.0
    %2444 = vmatpush1.msra.mxu0 0.0
    %2445 = vmatprep.subr.mxu0 0.0
    %2446 = vmatpush1.msra.mxu0 0.0
    %2447 = vmatprep.subr.mxu0 0.0
    %2448 = vmatpush1.msra.mxu0 0.0
    %2449 = vmatprep.subr.mxu0 0.0
    %2450 = vmatpush1.msra.mxu0 0.0
    %2451 = vmatprep.subr.mxu0 0.0
    %2452 = vmatpush1.msra.mxu0 0.0
    %2453 = vmatprep.subr.mxu0 0.0
    %2454 = vmatpush1.msra.mxu0 0.0
    %2455 = vmatprep.subr.mxu0 0.0
    %2456 = vmatpush1.msra.mxu0 0.0
    %2457 = vmatprep.subr.mxu0 0.0
    %2458 = vmatpush1.msra.mxu0 0.0
    %2459 = vmatprep.subr.mxu0 0.0
    %2460 = vmatpush1.msra.mxu0 0.0
    %2461 = vmatprep.subr.mxu0 0.0
    %2462 = vmatpush1.msra.mxu0 0.0
    %2463 = vmatprep.subr.mxu0 0.0
    %2464 = vmatpush1.msra.mxu0 0.0
    %2465 = vmatprep.subr.mxu0 0.0
    %2466 = vmatpush1.msra.mxu0 0.0
    %2467 = vmatprep.subr.mxu0 0.0
    %2468 = vmatpush1.msra.mxu0 0.0
    %2469 = vmatprep.mubr.f32.mxu0 0.0
    %2470 = vmatmul.mubr.f32.gmra.mrb[0].mxu0 %v2400
    %v2471 = vpop.f32.mrb[0].mxu0
    %v2472 = vadd.f32 0.0, %v2471
    %v2473 = vpop.f32.mrb[0].mxu0
    %2474 = vmatprep.mubr.f32.mxu0 0.0
    %2475 = vmatmul.mubr.f32.gmra.mrb[0].mxu0 %v2403
    %v2476 = vpop.f32.mrb[0].mxu0
    %v2477 = vadd.f32 0.0, %v2476
    %v2478 = vpop.f32.mrb[0].mxu0
    %2479 = vdwg.mxu0
    %v2481 = vsel %vm723, %v2397, 0
    %v2484 = vsel %vm723, %v2398, 0
    %2486 = vmatprep.subr.mxu0 0.0
    %2487 = vmatpush1.msra.mxu0 %v2169
    %2488 = vmatprep.subr.mxu0 0.0
    %2489 = vmatpush1.msra.mxu0 %v2174
    %2490 = vmatprep.subr.mxu0 0.0
    %2491 = vmatpush1.msra.mxu0 0.0
    %2492 = vmatprep.subr.mxu0 0.0
    %2493 = vmatpush1.msra.mxu0 0.0
    %2494 = vmatprep.subr.mxu0 0.0
    %2495 = vmatpush1.msra.mxu0 0.0
    %2496 = vmatprep.subr.mxu0 0.0
    %2497 = vmatpush1.msra.mxu0 0.0
    %2498 = vmatprep.subr.mxu0 0.0
    %2499 = vmatpush1.msra.mxu0 0.0
    %2500 = vmatprep.subr.mxu0 0.0
    %2501 = vmatpush1.msra.mxu0 0.0
    %2502 = vmatprep.subr.mxu0 0.0
    %2503 = vmatpush1.msra.mxu0 0.0
    %2504 = vmatprep.subr.mxu0 0.0
    %2505 = vmatpush1.msra.mxu0 0.0
    %2506 = vmatprep.subr.mxu0 0.0
    %2507 = vmatpush1.msra.mxu0 0.0
    %2508 = vmatprep.subr.mxu0 0.0
    %2509 = vmatpush1.msra.mxu0 0.0
    %2510 = vmatprep.subr.mxu0 0.0
    %2511 = vmatpush1.msra.mxu0 0.0
    %2512 = vmatprep.subr.mxu0 0.0
    %2513 = vmatpush1.msra.mxu0 0.0
    %2514 = vmatprep.subr.mxu0 0.0
    %2515 = vmatpush1.msra.mxu0 0.0
    %2516 = vmatprep.subr.mxu0 0.0
    %2517 = vmatpush1.msra.mxu0 0.0
    %2518 = vmatprep.subr.mxu0 0.0
    %2519 = vmatpush1.msra.mxu0 0.0
    %2520 = vmatprep.subr.mxu0 0.0
    %2521 = vmatpush1.msra.mxu0 0.0
    %2522 = vmatprep.subr.mxu0 0.0
    %2523 = vmatpush1.msra.mxu0 0.0
    %2524 = vmatprep.subr.mxu0 0.0
    %2525 = vmatpush1.msra.mxu0 0.0
    %2526 = vmatprep.subr.mxu0 0.0
    %2527 = vmatpush1.msra.mxu0 0.0
    %2528 = vmatprep.subr.mxu0 0.0
    %2529 = vmatpush1.msra.mxu0 0.0
    %2530 = vmatprep.subr.mxu0 0.0
    %2531 = vmatpush1.msra.mxu0 0.0
    %2532 = vmatprep.subr.mxu0 0.0
    %2533 = vmatpush1.msra.mxu0 0.0
    %2534 = vmatprep.subr.mxu0 0.0
    %2535 = vmatpush1.msra.mxu0 0.0
    %2536 = vmatprep.subr.mxu0 0.0
    %2537 = vmatpush1.msra.mxu0 0.0
    %2538 = vmatprep.subr.mxu0 0.0
    %2539 = vmatpush1.msra.mxu0 0.0
    %2540 = vmatprep.subr.mxu0 0.0
    %2541 = vmatpush1.msra.mxu0 0.0
    %2542 = vmatprep.subr.mxu0 0.0
    %2543 = vmatpush1.msra.mxu0 0.0
    %2544 = vmatprep.subr.mxu0 0.0
    %2545 = vmatpush1.msra.mxu0 0.0
    %2546 = vmatprep.subr.mxu0 0.0
    %2547 = vmatpush1.msra.mxu0 0.0
    %2548 = vmatprep.subr.mxu0 0.0
    %2549 = vmatpush1.msra.mxu0 0.0
    %2550 = vmatprep.mubr.f32.mxu0 0.0
    %2551 = vmatmul.mubr.f32.gmra.mrb[0].mxu0 %v2481
    %v2552 = vpop.f32.mrb[0].mxu0
    %v2553 = vadd.f32 0.0, %v2552
    %v2554 = vpop.f32.mrb[0].mxu0
    %2555 = vmatprep.mubr.f32.mxu0 0.0
    %2556 = vmatmul.mubr.f32.gmra.mrb[0].mxu0 %v2484
    %v2557 = vpop.f32.mrb[0].mxu0
    %v2558 = vadd.f32 0.0, %v2557
    %v2559 = vpop.f32.mrb[0].mxu0
    %2560 = vdwg.mxu0
    %s2561 = scalar_lea.vmem %s6, 64
    %v2562 = vld [vmem:[%s2561] sm:$0xff]
    %v2563 = vld [vmem:[%s2561 + $0x8] sm:$0xff]
    %v2564 = vld [vmem:[%s2561 + $0x10] sm:$0xff]
    %v2565 = vld [vmem:[%s2561 + $0x18] sm:$0xff]
    %v2567 = vsel %vm540, %v2472, 0
    %v2570 = vsel %vm540, %v2477, 0
    %v2573 = vsel %vm540, %v2553, 0
    %v2576 = vsel %vm540, %v2558, 0
    %2578 = vmatprep.subr.mxu0 0.0
    %2579 = vmatpush1.msra.mxu0 %v2562
    %2580 = vmatprep.subr.mxu0 0.0
    %2581 = vmatpush1.msra.mxu0 %v2563
    %2582 = vmatprep.subr.mxu0 0.0
    %2583 = vmatpush1.msra.mxu0 %v2564
    %2584 = vmatprep.subr.mxu0 0.0
    %2585 = vmatpush1.msra.mxu0 %v2565
    %2586 = vmatprep.subr.mxu0 0.0
    %2587 = vmatpush1.msra.mxu0 0.0
    %2588 = vmatprep.subr.mxu0 0.0
    %2589 = vmatpush1.msra.mxu0 0.0
    %2590 = vmatprep.subr.mxu0 0.0
    %2591 = vmatpush1.msra.mxu0 0.0
    %2592 = vmatprep.subr.mxu0 0.0
    %2593 = vmatpush1.msra.mxu0 0.0
    %2594 = vmatprep.subr.mxu0 0.0
    %2595 = vmatpush1.msra.mxu0 0.0
    %2596 = vmatprep.subr.mxu0 0.0
    %2597 = vmatpush1.msra.mxu0 0.0
    %2598 = vmatprep.subr.mxu0 0.0
    %2599 = vmatpush1.msra.mxu0 0.0
    %2600 = vmatprep.subr.mxu0 0.0
    %2601 = vmatpush1.msra.mxu0 0.0
    %2602 = vmatprep.subr.mxu0 0.0
    %2603 = vmatpush1.msra.mxu0 0.0
    %2604 = vmatprep.subr.mxu0 0.0
    %2605 = vmatpush1.msra.mxu0 0.0
    %2606 = vmatprep.subr.mxu0 0.0
    %2607 = vmatpush1.msra.mxu0 0.0
    %2608 = vmatprep.subr.mxu0 0.0
    %2609 = vmatpush1.msra.mxu0 0.0
    %2610 = vmatprep.subr.mxu0 0.0
    %2611 = vmatpush1.msra.mxu0 0.0
    %2612 = vmatprep.subr.mxu0 0.0
    %2613 = vmatpush1.msra.mxu0 0.0
    %2614 = vmatprep.subr.mxu0 0.0
    %2615 = vmatpush1.msra.mxu0 0.0
    %2616 = vmatprep.subr.mxu0 0.0
    %2617 = vmatpush1.msra.mxu0 0.0
    %2618 = vmatprep.subr.mxu0 0.0
    %2619 = vmatpush1.msra.mxu0 0.0
    %2620 = vmatprep.subr.mxu0 0.0
    %2621 = vmatpush1.msra.mxu0 0.0
    %2622 = vmatprep.subr.mxu0 0.0
    %2623 = vmatpush1.msra.mxu0 0.0
    %2624 = vmatprep.subr.mxu0 0.0
    %2625 = vmatpush1.msra.mxu0 0.0
    %2626 = vmatprep.subr.mxu0 0.0
    %2627 = vmatpush1.msra.mxu0 0.0
    %2628 = vmatprep.subr.mxu0 0.0
    %2629 = vmatpush1.msra.mxu0 0.0
    %2630 = vmatprep.subr.mxu0 0.0
    %2631 = vmatpush1.msra.mxu0 0.0
    %2632 = vmatprep.subr.mxu0 0.0
    %2633 = vmatpush1.msra.mxu0 0.0
    %2634 = vmatprep.subr.mxu0 0.0
    %2635 = vmatpush1.msra.mxu0 0.0
    %2636 = vmatprep.subr.mxu0 0.0
    %2637 = vmatpush1.msra.mxu0 0.0
    %2638 = vmatprep.subr.mxu0 0.0
    %2639 = vmatpush1.msra.mxu0 0.0
    %2640 = vmatprep.subr.mxu0 0.0
    %2641 = vmatpush1.msra.mxu0 0.0
    %2642 = vmatprep.mubr.f32.mxu0 0.0
    %2643 = vmatmul.mubr.f32.gmra.mrb[0].mxu0 %v2567
    %v2644 = vpop.f32.mrb[0].mxu0
    %v2645 = vadd.f32 0.0, %v2644
    %v2646 = vpop.f32.mrb[0].mxu0
    %2647 = vmatprep.mubr.f32.mxu0 0.0
    %2648 = vmatmul.mubr.f32.gmra.mrb[0].mxu0 %v2570
    %v2649 = vpop.f32.mrb[0].mxu0
    %v2650 = vadd.f32 0.0, %v2649
    %v2651 = vpop.f32.mrb[0].mxu0
    %2652 = vmatprep.mubr.f32.mxu0 0.0
    %2653 = vmatmul.mubr.f32.gmra.mrb[0].mxu0 %v2573
    %v2654 = vpop.f32.mrb[0].mxu0
    %v2655 = vadd.f32 0.0, %v2654
    %v2656 = vpop.f32.mrb[0].mxu0
    %2657 = vmatprep.mubr.f32.mxu0 0.0
    %2658 = vmatmul.mubr.f32.gmra.mrb[0].mxu0 %v2576
    %v2659 = vpop.f32.mrb[0].mxu0
    %v2660 = vadd.f32 0.0, %v2659
    %v2661 = vpop.f32.mrb[0].mxu0
    %2662 = vdwg.mxu0
    %v2663 = vadd.f32 %v1829, %v2645
    %v2664 = vadd.f32 %v1834, %v2650
    %v2665 = vadd.f32 %v1839, %v2655
    %v2666 = vadd.f32 %v1844, %v2660
    %s2667 = scalar_lea.vmem %s4, 384
    %v2668 = vld [vmem:[%s2667] sm:$0xff]
    %v2669 = vld [vmem:[%s2667 + $0x8] sm:$0xff]
    %v2670 = vld [vmem:[%s2667 + $0x10] sm:$0xff]
    %v2671 = vld [vmem:[%s2667 + $0x18] sm:$0xff]
    %v2672 = vld [vmem:[%s2667 + $0x20] sm:$0xff]
    %v2673 = vld [vmem:[%s2667 + $0x28] sm:$0xff]
    %v2674 = vld [vmem:[%s2667 + $0x30] sm:$0xff]
    %v2675 = vld [vmem:[%s2667 + $0x38] sm:$0xff]
    %v2676 = vld [vmem:[%s2667 + $0x40] sm:$0xff]
    %v2677 = vld [vmem:[%s2667 + $0x48] sm:$0xff]
    %v2678 = vld [vmem:[%s2667 + $0x50] sm:$0xff]
    %v2679 = vld [vmem:[%s2667 + $0x58] sm:$0xff]
    %v2680 = vld [vmem:[%s2667 + $0x60] sm:$0xff]
    %v2681 = vld [vmem:[%s2667 + $0x68] sm:$0xff]
    %v2682 = vld [vmem:[%s2667 + $0x70] sm:$0xff]
    %v2683 = vld [vmem:[%s2667 + $0x78] sm:$0xff]
    %s2684 = scalar_lea.vmem %s5, 3
    %v2685 = vld [vmem:[%s2684] sm:$0x1]
    %v2687 = vlaneseq
    %v2688 = vshrl.u32 %v2687, 7
    %v2689 = vsub.s32 0, %v2688
    %v2690 = vrot.slane %v2685, %v2689
    %2692 = vmatprep.subr.mxu0 0.0
    %2693 = vmatpush1.msra.mxu0 %v2668
    %2694 = vmatprep.subr.mxu0 0.0
    %2695 = vmatpush1.msra.mxu0 %v2669
    %2696 = vmatprep.subr.mxu0 0.0
    %2697 = vmatpush1.msra.mxu0 %v2670
    %2698 = vmatprep.subr.mxu0 0.0
    %2699 = vmatpush1.msra.mxu0 %v2671
    %2700 = vmatprep.subr.mxu0 0.0
    %2701 = vmatpush1.msra.mxu0 %v2672
    %2702 = vmatprep.subr.mxu0 0.0
    %2703 = vmatpush1.msra.mxu0 %v2673
    %2704 = vmatprep.subr.mxu0 0.0
    %2705 = vmatpush1.msra.mxu0 %v2674
    %2706 = vmatprep.subr.mxu0 0.0
    %2707 = vmatpush1.msra.mxu0 %v2675
    %2708 = vmatprep.subr.mxu0 0.0
    %2709 = vmatpush1.msra.mxu0 %v2676
    %2710 = vmatprep.subr.mxu0 0.0
    %2711 = vmatpush1.msra.mxu0 %v2677
    %2712 = vmatprep.subr.mxu0 0.0
    %2713 = vmatpush1.msra.mxu0 %v2678
    %2714 = vmatprep.subr.mxu0 0.0
    %2715 = vmatpush1.msra.mxu0 %v2679
    %2716 = vmatprep.subr.mxu0 0.0
    %2717 = vmatpush1.msra.mxu0 %v2680
    %2718 = vmatprep.subr.mxu0 0.0
    %2719 = vmatpush1.msra.mxu0 %v2681
    %2720 = vmatprep.subr.mxu0 0.0
    %2721 = vmatpush1.msra.mxu0 %v2682
    %2722 = vmatprep.subr.mxu0 0.0
    %2723 = vmatpush1.msra.mxu0 %v2683
    %2724 = vmatprep.subr.mxu0 0.0
    %2725 = vmatpush1.msra.mxu0 0.0
    %2726 = vmatprep.subr.mxu0 0.0
    %2727 = vmatpush1.msra.mxu0 0.0
    %2728 = vmatprep.subr.mxu0 0.0
    %2729 = vmatpush1.msra.mxu0 0.0
    %2730 = vmatprep.subr.mxu0 0.0
    %2731 = vmatpush1.msra.mxu0 0.0
    %2732 = vmatprep.subr.mxu0 0.0
    %2733 = vmatpush1.msra.mxu0 0.0
    %2734 = vmatprep.subr.mxu0 0.0
    %2735 = vmatpush1.msra.mxu0 0.0
    %2736 = vmatprep.subr.mxu0 0.0
    %2737 = vmatpush1.msra.mxu0 0.0
    %2738 = vmatprep.subr.mxu0 0.0
    %2739 = vmatpush1.msra.mxu0 0.0
    %2740 = vmatprep.subr.mxu0 0.0
    %2741 = vmatpush1.msra.mxu0 0.0
    %2742 = vmatprep.subr.mxu0 0.0
    %2743 = vmatpush1.msra.mxu0 0.0
    %2744 = vmatprep.subr.mxu0 0.0
    %2745 = vmatpush1.msra.mxu0 0.0
    %2746 = vmatprep.subr.mxu0 0.0
    %2747 = vmatpush1.msra.mxu0 0.0
    %2748 = vmatprep.subr.mxu0 0.0
    %2749 = vmatpush1.msra.mxu0 0.0
    %2750 = vmatprep.subr.mxu0 0.0
    %2751 = vmatpush1.msra.mxu0 0.0
    %2752 = vmatprep.subr.mxu0 0.0
    %2753 = vmatpush1.msra.mxu0 0.0
    %2754 = vmatprep.subr.mxu0 0.0
    %2755 = vmatpush1.msra.mxu0 0.0
    %2756 = vmatprep.mubr.f32.mxu0 0.0
    %2757 = vmatmul.mubr.f32.gmra.mrb[0].mxu0 %v199
    %v2758 = vpop.f32.mrb[0].mxu0
    %v2759 = vadd.f32 %v2690, %v2758
    %v2760 = vpop.f32.mrb[0].mxu0
    %2761 = vmatprep.mubr.f32.mxu0 0.0
    %2762 = vmatmul.mubr.f32.gmra.mrb[0].mxu0 %v200
    %v2763 = vpop.f32.mrb[0].mxu0
    %v2764 = vadd.f32 %v2690, %v2763
    %v2765 = vpop.f32.mrb[0].mxu0
    %2766 = vmatprep.mubr.f32.mxu0 0.0
    %2767 = vmatmul.mubr.f32.gmra.mrb[0].mxu0 %v201
    %v2768 = vpop.f32.mrb[0].mxu0
    %v2769 = vadd.f32 %v2690, %v2768
    %v2770 = vpop.f32.mrb[0].mxu0
    %2771 = vmatprep.mubr.f32.mxu0 0.0
    %2772 = vmatmul.mubr.f32.gmra.mrb[0].mxu0 %v202
    %v2773 = vpop.f32.mrb[0].mxu0
    %v2774 = vadd.f32 %v2690, %v2773
    %v2775 = vpop.f32.mrb[0].mxu0
    %2776 = vdwg.mxu0
    %s2777 = scalar_lea.vmem %s4, 896
    %v2778 = vld [vmem:[%s2777] sm:$0xff]
    %v2779 = vld [vmem:[%s2777 + $0x8] sm:$0xff]
    %v2780 = vld [vmem:[%s2777 + $0x10] sm:$0xff]
    %v2781 = vld [vmem:[%s2777 + $0x18] sm:$0xff]
    %v2782 = vld [vmem:[%s2777 + $0x20] sm:$0xff]
    %v2783 = vld [vmem:[%s2777 + $0x28] sm:$0xff]
    %v2784 = vld [vmem:[%s2777 + $0x30] sm:$0xff]
    %v2785 = vld [vmem:[%s2777 + $0x38] sm:$0xff]
    %v2786 = vld [vmem:[%s2777 + $0x40] sm:$0xff]
    %v2787 = vld [vmem:[%s2777 + $0x48] sm:$0xff]
    %v2788 = vld [vmem:[%s2777 + $0x50] sm:$0xff]
    %v2789 = vld [vmem:[%s2777 + $0x58] sm:$0xff]
    %v2790 = vld [vmem:[%s2777 + $0x60] sm:$0xff]
    %v2791 = vld [vmem:[%s2777 + $0x68] sm:$0xff]
    %v2792 = vld [vmem:[%s2777 + $0x70] sm:$0xff]
    %v2793 = vld [vmem:[%s2777 + $0x78] sm:$0xff]
    %s2794 = scalar_lea.vmem %s5, 7
    %v2795 = vld [vmem:[%s2794] sm:$0x1]
    %v2797 = vlaneseq
    %v2798 = vshrl.u32 %v2797, 7
    %v2799 = vsub.s32 0, %v2798
    %v2800 = vrot.slane %v2795, %v2799
    %2802 = vmatprep.subr.mxu0 0.0
    %2803 = vmatpush1.msra.mxu0 %v2778
    %2804 = vmatprep.subr.mxu0 0.0
    %2805 = vmatpush1.msra.mxu0 %v2779
    %2806 = vmatprep.subr.mxu0 0.0
    %2807 = vmatpush1.msra.mxu0 %v2780
    %2808 = vmatprep.subr.mxu0 0.0
    %2809 = vmatpush1.msra.mxu0 %v2781
    %2810 = vmatprep.subr.mxu0 0.0
    %2811 = vmatpush1.msra.mxu0 %v2782
    %2812 = vmatprep.subr.mxu0 0.0
    %2813 = vmatpush1.msra.mxu0 %v2783
    %2814 = vmatprep.subr.mxu0 0.0
    %2815 = vmatpush1.msra.mxu0 %v2784
    %2816 = vmatprep.subr.mxu0 0.0
    %2817 = vmatpush1.msra.mxu0 %v2785
    %2818 = vmatprep.subr.mxu0 0.0
    %2819 = vmatpush1.msra.mxu0 %v2786
    %2820 = vmatprep.subr.mxu0 0.0
    %2821 = vmatpush1.msra.mxu0 %v2787
    %2822 = vmatprep.subr.mxu0 0.0
    %2823 = vmatpush1.msra.mxu0 %v2788
    %2824 = vmatprep.subr.mxu0 0.0
    %2825 = vmatpush1.msra.mxu0 %v2789
    %2826 = vmatprep.subr.mxu0 0.0
    %2827 = vmatpush1.msra.mxu0 %v2790
    %2828 = vmatprep.subr.mxu0 0.0
    %2829 = vmatpush1.msra.mxu0 %v2791
    %2830 = vmatprep.subr.mxu0 0.0
    %2831 = vmatpush1.msra.mxu0 %v2792
    %2832 = vmatprep.subr.mxu0 0.0
    %2833 = vmatpush1.msra.mxu0 %v2793
    %2834 = vmatprep.subr.mxu0 0.0
    %2835 = vmatpush1.msra.mxu0 0.0
    %2836 = vmatprep.subr.mxu0 0.0
    %2837 = vmatpush1.msra.mxu0 0.0
    %2838 = vmatprep.subr.mxu0 0.0
    %2839 = vmatpush1.msra.mxu0 0.0
    %2840 = vmatprep.subr.mxu0 0.0
    %2841 = vmatpush1.msra.mxu0 0.0
    %2842 = vmatprep.subr.mxu0 0.0
    %2843 = vmatpush1.msra.mxu0 0.0
    %2844 = vmatprep.subr.mxu0 0.0
    %2845 = vmatpush1.msra.mxu0 0.0
    %2846 = vmatprep.subr.mxu0 0.0
    %2847 = vmatpush1.msra.mxu0 0.0
    %2848 = vmatprep.subr.mxu0 0.0
    %2849 = vmatpush1.msra.mxu0 0.0
    %2850 = vmatprep.subr.mxu0 0.0
    %2851 = vmatpush1.msra.mxu0 0.0
    %2852 = vmatprep.subr.mxu0 0.0
    %2853 = vmatpush1.msra.mxu0 0.0
    %2854 = vmatprep.subr.mxu0 0.0
    %2855 = vmatpush1.msra.mxu0 0.0
    %2856 = vmatprep.subr.mxu0 0.0
    %2857 = vmatpush1.msra.mxu0 0.0
    %2858 = vmatprep.subr.mxu0 0.0
    %2859 = vmatpush1.msra.mxu0 0.0
    %2860 = vmatprep.subr.mxu0 0.0
    %2861 = vmatpush1.msra.mxu0 0.0
    %2862 = vmatprep.subr.mxu0 0.0
    %2863 = vmatpush1.msra.mxu0 0.0
    %2864 = vmatprep.subr.mxu0 0.0
    %2865 = vmatpush1.msra.mxu0 0.0
    %2866 = vmatprep.mubr.f32.mxu0 0.0
    %2867 = vmatmul.mubr.f32.gmra.mrb[0].mxu0 %v199
    %v2868 = vpop.f32.mrb[0].mxu0
    %v2869 = vadd.f32 %v2800, %v2868
    %v2870 = vpop.f32.mrb[0].mxu0
    %2871 = vmatprep.mubr.f32.mxu0 0.0
    %2872 = vmatmul.mubr.f32.gmra.mrb[0].mxu0 %v200
    %v2873 = vpop.f32.mrb[0].mxu0
    %v2874 = vadd.f32 %v2800, %v2873
    %v2875 = vpop.f32.mrb[0].mxu0
    %2876 = vmatprep.mubr.f32.mxu0 0.0
    %2877 = vmatmul.mubr.f32.gmra.mrb[0].mxu0 %v201
    %v2878 = vpop.f32.mrb[0].mxu0
    %v2879 = vadd.f32 %v2800, %v2878
    %v2880 = vpop.f32.mrb[0].mxu0
    %2881 = vmatprep.mubr.f32.mxu0 0.0
    %2882 = vmatmul.mubr.f32.gmra.mrb[0].mxu0 %v202
    %v2883 = vpop.f32.mrb[0].mxu0
    %v2884 = vadd.f32 %v2800, %v2883
    %v2885 = vpop.f32.mrb[0].mxu0
    %2886 = vdwg.mxu0
    %s2887 = scalar_lea.vmem %s4, 1408
    %v2888 = vld [vmem:[%s2887] sm:$0xff]
    %v2889 = vld [vmem:[%s2887 + $0x8] sm:$0xff]
    %v2890 = vld [vmem:[%s2887 + $0x10] sm:$0xff]
    %v2891 = vld [vmem:[%s2887 + $0x18] sm:$0xff]
    %v2892 = vld [vmem:[%s2887 + $0x20] sm:$0xff]
    %v2893 = vld [vmem:[%s2887 + $0x28] sm:$0xff]
    %v2894 = vld [vmem:[%s2887 + $0x30] sm:$0xff]
    %v2895 = vld [vmem:[%s2887 + $0x38] sm:$0xff]
    %v2896 = vld [vmem:[%s2887 + $0x40] sm:$0xff]
    %v2897 = vld [vmem:[%s2887 + $0x48] sm:$0xff]
    %v2898 = vld [vmem:[%s2887 + $0x50] sm:$0xff]
    %v2899 = vld [vmem:[%s2887 + $0x58] sm:$0xff]
    %v2900 = vld [vmem:[%s2887 + $0x60] sm:$0xff]
    %v2901 = vld [vmem:[%s2887 + $0x68] sm:$0xff]
    %v2902 = vld [vmem:[%s2887 + $0x70] sm:$0xff]
    %v2903 = vld [vmem:[%s2887 + $0x78] sm:$0xff]
    %s2904 = scalar_lea.vmem %s5, 11
    %v2905 = vld [vmem:[%s2904] sm:$0x1]
    %v2907 = vlaneseq
    %v2908 = vshrl.u32 %v2907, 7
    %v2909 = vsub.s32 0, %v2908
    %v2910 = vrot.slane %v2905, %v2909
    %2912 = vmatprep.subr.mxu0 0.0
    %2913 = vmatpush1.msra.mxu0 %v2888
    %2914 = vmatprep.subr.mxu0 0.0
    %2915 = vmatpush1.msra.mxu0 %v2889
    %2916 = vmatprep.subr.mxu0 0.0
    %2917 = vmatpush1.msra.mxu0 %v2890
    %2918 = vmatprep.subr.mxu0 0.0
    %2919 = vmatpush1.msra.mxu0 %v2891
    %2920 = vmatprep.subr.mxu0 0.0
    %2921 = vmatpush1.msra.mxu0 %v2892
    %2922 = vmatprep.subr.mxu0 0.0
    %2923 = vmatpush1.msra.mxu0 %v2893
    %2924 = vmatprep.subr.mxu0 0.0
    %2925 = vmatpush1.msra.mxu0 %v2894
    %2926 = vmatprep.subr.mxu0 0.0
    %2927 = vmatpush1.msra.mxu0 %v2895
    %2928 = vmatprep.subr.mxu0 0.0
    %2929 = vmatpush1.msra.mxu0 %v2896
    %2930 = vmatprep.subr.mxu0 0.0
    %2931 = vmatpush1.msra.mxu0 %v2897
    %2932 = vmatprep.subr.mxu0 0.0
    %2933 = vmatpush1.msra.mxu0 %v2898
    %2934 = vmatprep.subr.mxu0 0.0
    %2935 = vmatpush1.msra.mxu0 %v2899
    %2936 = vmatprep.subr.mxu0 0.0
    %2937 = vmatpush1.msra.mxu0 %v2900
    %2938 = vmatprep.subr.mxu0 0.0
    %2939 = vmatpush1.msra.mxu0 %v2901
    %2940 = vmatprep.subr.mxu0 0.0
    %2941 = vmatpush1.msra.mxu0 %v2902
    %2942 = vmatprep.subr.mxu0 0.0
    %2943 = vmatpush1.msra.mxu0 %v2903
    %2944 = vmatprep.subr.mxu0 0.0
    %2945 = vmatpush1.msra.mxu0 0.0
    %2946 = vmatprep.subr.mxu0 0.0
    %2947 = vmatpush1.msra.mxu0 0.0
    %2948 = vmatprep.subr.mxu0 0.0
    %2949 = vmatpush1.msra.mxu0 0.0
    %2950 = vmatprep.subr.mxu0 0.0
    %2951 = vmatpush1.msra.mxu0 0.0
    %2952 = vmatprep.subr.mxu0 0.0
    %2953 = vmatpush1.msra.mxu0 0.0
    %2954 = vmatprep.subr.mxu0 0.0
    %2955 = vmatpush1.msra.mxu0 0.0
    %2956 = vmatprep.subr.mxu0 0.0
    %2957 = vmatpush1.msra.mxu0 0.0
    %2958 = vmatprep.subr.mxu0 0.0
    %2959 = vmatpush1.msra.mxu0 0.0
    %2960 = vmatprep.subr.mxu0 0.0
    %2961 = vmatpush1.msra.mxu0 0.0
    %2962 = vmatprep.subr.mxu0 0.0
    %2963 = vmatpush1.msra.mxu0 0.0
    %2964 = vmatprep.subr.mxu0 0.0
    %2965 = vmatpush1.msra.mxu0 0.0
    %2966 = vmatprep.subr.mxu0 0.0
    %2967 = vmatpush1.msra.mxu0 0.0
    %2968 = vmatprep.subr.mxu0 0.0
    %2969 = vmatpush1.msra.mxu0 0.0
    %2970 = vmatprep.subr.mxu0 0.0
    %2971 = vmatpush1.msra.mxu0 0.0
    %2972 = vmatprep.subr.mxu0 0.0
    %2973 = vmatpush1.msra.mxu0 0.0
    %2974 = vmatprep.subr.mxu0 0.0
    %2975 = vmatpush1.msra.mxu0 0.0
    %2976 = vmatprep.mubr.f32.mxu0 0.0
    %2977 = vmatmul.mubr.f32.gmra.mrb[0].mxu0 %v199
    %v2978 = vpop.f32.mrb[0].mxu0
    %v2979 = vadd.f32 %v2910, %v2978
    %v2980 = vpop.f32.mrb[0].mxu0
    %2981 = vmatprep.mubr.f32.mxu0 0.0
    %2982 = vmatmul.mubr.f32.gmra.mrb[0].mxu0 %v200
    %v2983 = vpop.f32.mrb[0].mxu0
    %v2984 = vadd.f32 %v2910, %v2983
    %v2985 = vpop.f32.mrb[0].mxu0
    %2986 = vmatprep.mubr.f32.mxu0 0.0
    %2987 = vmatmul.mubr.f32.gmra.mrb[0].mxu0 %v201
    %v2988 = vpop.f32.mrb[0].mxu0
    %v2989 = vadd.f32 %v2910, %v2988
    %v2990 = vpop.f32.mrb[0].mxu0
    %2991 = vmatprep.mubr.f32.mxu0 0.0
    %2992 = vmatmul.mubr.f32.gmra.mrb[0].mxu0 %v202
    %v2993 = vpop.f32.mrb[0].mxu0
    %v2994 = vadd.f32 %v2910, %v2993
    %v2995 = vpop.f32.mrb[0].mxu0
    %2996 = vdwg.mxu0
    %v2998 = vsel %vm540, %v2759, 0
    %v3001 = vsel %vm540, %v2764, 0
    %v3004 = vsel %vm540, %v2869, 0
    %v3007 = vsel %vm540, %v2874, 0
    %3009 = vmatprep.subr.mxu0 0.0
    %3010 = vmatpush1.xpose.msra.mxu0 %v3004
    %3011 = vmatprep.subr.mxu0 0.0
    %3012 = vmatpush1.xpose.msra.mxu0 %v3007
    %3013 = vmatprep.subr.mxu0 0.0
    %3014 = vmatpush1.xpose.msra.mxu0 0.0
    %3015 = vmatprep.subr.mxu0 0.0
    %3016 = vmatpush1.xpose.msra.mxu0 0.0
    %3017 = vmatprep.subr.mxu0 0.0
    %3018 = vmatpush1.xpose.msra.mxu0 0.0
    %3019 = vmatprep.subr.mxu0 0.0
    %3020 = vmatpush1.xpose.msra.mxu0 0.0
    %3021 = vmatprep.subr.mxu0 0.0
    %3022 = vmatpush1.xpose.msra.mxu0 0.0
    %3023 = vmatprep.subr.mxu0 0.0
    %3024 = vmatpush1.xpose.msra.mxu0 0.0
    %3025 = vmatprep.subr.mxu0 0.0
    %3026 = vmatpush1.xpose.msra.mxu0 0.0
    %3027 = vmatprep.subr.mxu0 0.0
    %3028 = vmatpush1.xpose.msra.mxu0 0.0
    %3029 = vmatprep.subr.mxu0 0.0
    %3030 = vmatpush1.xpose.msra.mxu0 0.0
    %3031 = vmatprep.subr.mxu0 0.0
    %3032 = vmatpush1.xpose.msra.mxu0 0.0
    %3033 = vmatprep.subr.mxu0 0.0
    %3034 = vmatpush1.xpose.msra.mxu0 0.0
    %3035 = vmatprep.subr.mxu0 0.0
    %3036 = vmatpush1.xpose.msra.mxu0 0.0
    %3037 = vmatprep.subr.mxu0 0.0
    %3038 = vmatpush1.xpose.msra.mxu0 0.0
    %3039 = vmatprep.subr.mxu0 0.0
    %3040 = vmatpush1.xpose.msra.mxu0 0.0
    %3041 = vmatprep.subr.mxu0 0.0
    %3042 = vmatpush1.xpose.msra.mxu0 0.0
    %3043 = vmatprep.subr.mxu0 0.0
    %3044 = vmatpush1.xpose.msra.mxu0 0.0
    %3045 = vmatprep.subr.mxu0 0.0
    %3046 = vmatpush1.xpose.msra.mxu0 0.0
    %3047 = vmatprep.subr.mxu0 0.0
    %3048 = vmatpush1.xpose.msra.mxu0 0.0
    %3049 = vmatprep.subr.mxu0 0.0
    %3050 = vmatpush1.xpose.msra.mxu0 0.0
    %3051 = vmatprep.subr.mxu0 0.0
    %3052 = vmatpush1.xpose.msra.mxu0 0.0
    %3053 = vmatprep.subr.mxu0 0.0
    %3054 = vmatpush1.xpose.msra.mxu0 0.0
    %3055 = vmatprep.subr.mxu0 0.0
    %3056 = vmatpush1.xpose.msra.mxu0 0.0
    %3057 = vmatprep.subr.mxu0 0.0
    %3058 = vmatpush1.xpose.msra.mxu0 0.0
    %3059 = vmatprep.subr.mxu0 0.0
    %3060 = vmatpush1.xpose.msra.mxu0 0.0
    %3061 = vmatprep.subr.mxu0 0.0
    %3062 = vmatpush1.xpose.msra.mxu0 0.0
    %3063 = vmatprep.subr.mxu0 0.0
    %3064 = vmatpush1.xpose.msra.mxu0 0.0
    %3065 = vmatprep.subr.mxu0 0.0
    %3066 = vmatpush1.xpose.msra.mxu0 0.0
    %3067 = vmatprep.subr.mxu0 0.0
    %3068 = vmatpush1.xpose.msra.mxu0 0.0
    %3069 = vmatprep.subr.mxu0 0.0
    %3070 = vmatpush1.xpose.msra.mxu0 0.0
    %3071 = vmatprep.subr.mxu0 0.0
    %3072 = vmatpush1.xpose.msra.mxu0 0.0
    %3073 = vmatprep.mubr.f32.mxu0 0.0
    %3074 = vmatmul.mubr.f32.gmra.mrb[0].mxu0 %v2998
    %v3075 = vpop.f32.mrb[0].mxu0
    %v3076 = vadd.f32 0.0, %v3075
    %v3077 = vpop.f32.mrb[0].mxu0
    %3078 = vmatprep.mubr.f32.mxu0 0.0
    %3079 = vmatmul.mubr.f32.gmra.mrb[0].mxu0 %v3001
    %v3080 = vpop.f32.mrb[0].mxu0
    %v3081 = vadd.f32 0.0, %v3080
    %v3082 = vpop.f32.mrb[0].mxu0
    %3083 = vdwg.mxu0
    %v3085 = vsel %vm540, %v2769, 0
    %v3088 = vsel %vm540, %v2774, 0
    %v3091 = vsel %vm540, %v2879, 0
    %v3094 = vsel %vm540, %v2884, 0
    %3096 = vmatprep.subr.mxu0 0.0
    %3097 = vmatpush1.xpose.msra.mxu0 %v3091
    %3098 = vmatprep.subr.mxu0 0.0
    %3099 = vmatpush1.xpose.msra.mxu0 %v3094
    %3100 = vmatprep.subr.mxu0 0.0
    %3101 = vmatpush1.xpose.msra.mxu0 0.0
    %3102 = vmatprep.subr.mxu0 0.0
    %3103 = vmatpush1.xpose.msra.mxu0 0.0
    %3104 = vmatprep.subr.mxu0 0.0
    %3105 = vmatpush1.xpose.msra.mxu0 0.0
    %3106 = vmatprep.subr.mxu0 0.0
    %3107 = vmatpush1.xpose.msra.mxu0 0.0
    %3108 = vmatprep.subr.mxu0 0.0
    %3109 = vmatpush1.xpose.msra.mxu0 0.0
    %3110 = vmatprep.subr.mxu0 0.0
    %3111 = vmatpush1.xpose.msra.mxu0 0.0
    %3112 = vmatprep.subr.mxu0 0.0
    %3113 = vmatpush1.xpose.msra.mxu0 0.0
    %3114 = vmatprep.subr.mxu0 0.0
    %3115 = vmatpush1.xpose.msra.mxu0 0.0
    %3116 = vmatprep.subr.mxu0 0.0
    %3117 = vmatpush1.xpose.msra.mxu0 0.0
    %3118 = vmatprep.subr.mxu0 0.0
    %3119 = vmatpush1.xpose.msra.mxu0 0.0
    %3120 = vmatprep.subr.mxu0 0.0
    %3121 = vmatpush1.xpose.msra.mxu0 0.0
    %3122 = vmatprep.subr.mxu0 0.0
    %3123 = vmatpush1.xpose.msra.mxu0 0.0
    %3124 = vmatprep.subr.mxu0 0.0
    %3125 = vmatpush1.xpose.msra.mxu0 0.0
    %3126 = vmatprep.subr.mxu0 0.0
    %3127 = vmatpush1.xpose.msra.mxu0 0.0
    %3128 = vmatprep.subr.mxu0 0.0
    %3129 = vmatpush1.xpose.msra.mxu0 0.0
    %3130 = vmatprep.subr.mxu0 0.0
    %3131 = vmatpush1.xpose.msra.mxu0 0.0
    %3132 = vmatprep.subr.mxu0 0.0
    %3133 = vmatpush1.xpose.msra.mxu0 0.0
    %3134 = vmatprep.subr.mxu0 0.0
    %3135 = vmatpush1.xpose.msra.mxu0 0.0
    %3136 = vmatprep.subr.mxu0 0.0
    %3137 = vmatpush1.xpose.msra.mxu0 0.0
    %3138 = vmatprep.subr.mxu0 0.0
    %3139 = vmatpush1.xpose.msra.mxu0 0.0
    %3140 = vmatprep.subr.mxu0 0.0
    %3141 = vmatpush1.xpose.msra.mxu0 0.0
    %3142 = vmatprep.subr.mxu0 0.0
    %3143 = vmatpush1.xpose.msra.mxu0 0.0
    %3144 = vmatprep.subr.mxu0 0.0
    %3145 = vmatpush1.xpose.msra.mxu0 0.0
    %3146 = vmatprep.subr.mxu0 0.0
    %3147 = vmatpush1.xpose.msra.mxu0 0.0
    %3148 = vmatprep.subr.mxu0 0.0
    %3149 = vmatpush1.xpose.msra.mxu0 0.0
    %3150 = vmatprep.subr.mxu0 0.0
    %3151 = vmatpush1.xpose.msra.mxu0 0.0
    %3152 = vmatprep.subr.mxu0 0.0
    %3153 = vmatpush1.xpose.msra.mxu0 0.0
    %3154 = vmatprep.subr.mxu0 0.0
    %3155 = vmatpush1.xpose.msra.mxu0 0.0
    %3156 = vmatprep.subr.mxu0 0.0
    %3157 = vmatpush1.xpose.msra.mxu0 0.0
    %3158 = vmatprep.subr.mxu0 0.0
    %3159 = vmatpush1.xpose.msra.mxu0 0.0
    %3160 = vmatprep.mubr.f32.mxu0 0.0
    %3161 = vmatmul.mubr.f32.gmra.mrb[0].mxu0 %v3085
    %v3162 = vpop.f32.mrb[0].mxu0
    %v3163 = vadd.f32 0.0, %v3162
    %v3164 = vpop.f32.mrb[0].mxu0
    %3165 = vmatprep.mubr.f32.mxu0 0.0
    %3166 = vmatmul.mubr.f32.gmra.mrb[0].mxu0 %v3088
    %v3167 = vpop.f32.mrb[0].mxu0
    %v3168 = vadd.f32 0.0, %v3167
    %v3169 = vpop.f32.mrb[0].mxu0
    %3170 = vdwg.mxu0
    %v3171 = vsel %vm717, %v3076, -1e+09
    %v3172 = vsel %vm718, %v3081, -1e+09
    %v3173 = vsel %vm717, %v3163, -1e+09
    %v3174 = vsel %vm718, %v3168, -1e+09
    %v3175 = vsel %vm723, %v3171, -inf
    %3176 = vmax.xlane.f32.xlu0 %v3175
    %v3177 = vpop.xlane.xlu0 %3176
    %v3178 = vsel %vm723, %v3172, -inf
    %3179 = vmax.xlane.f32.xlu0 %v3178
    %v3180 = vpop.xlane.xlu0 %3179
    %v3181 = vsel %vm723, %v3173, -inf
    %3182 = vmax.xlane.f32.xlu0 %v3181
    %v3183 = vpop.xlane.xlu0 %3182
    %v3184 = vsel %vm723, %v3174, -inf
    %3185 = vmax.xlane.f32.xlu0 %v3184
    %v3186 = vpop.xlane.xlu0 %3185
    %v3187 = vsub.f32 %v3171, %v3177
    %v3188 = vsub.f32 %v3172, %v3180
    %v3189 = vsub.f32 %v3173, %v3183
    %v3190 = vsub.f32 %v3174, %v3186
    %v3191 = vmul.f32 %v3187, 1.442695
    %v3192 = vpow.pop %v3191
    %v3193 = vmul.f32 %v3188, 1.442695
    %v3194 = vpow.pop %v3193
    %v3195 = vmul.f32 %v3189, 1.442695
    %v3196 = vpow.pop %v3195
    %v3197 = vmul.f32 %v3190, 1.442695
    %v3198 = vpow.pop %v3197
    %v3199 = vsel %vm723, %v3192, 0.0
    %3200 = vadd.xlane.f32.xlu0 %v3199
    %v3201 = vpop.xlane.xlu0 %3200
    %v3202 = vsel %vm723, %v3194, 0.0
    %3203 = vadd.xlane.f32.xlu0 %v3202
    %v3204 = vpop.xlane.xlu0 %3203
    %v3205 = vsel %vm723, %v3196, 0.0
    %3206 = vadd.xlane.f32.xlu0 %v3205
    %v3207 = vpop.xlane.xlu0 %3206
    %v3208 = vsel %vm723, %v3198, 0.0
    %3209 = vadd.xlane.f32.xlu0 %v3208
    %v3210 = vpop.xlane.xlu0 %3209
    %v3211 = vrcp.pop %v3201
    %v3212 = vrcp.pop %v3204
    %v3213 = vrcp.pop %v3207
    %v3214 = vrcp.pop %v3210
    %v3215 = vmul.f32 %v3192, %v3211
    %v3216 = vmul.f32 %v3194, %v3212
    %v3217 = vmul.f32 %v3196, %v3213
    %v3218 = vmul.f32 %v3198, %v3214
    %v3220 = vsel %vm723, %v3215, 0
    %v3223 = vsel %vm723, %v3216, 0
    %3225 = vmatprep.subr.mxu0 0.0
    %3226 = vmatpush1.msra.mxu0 %v2979
    %3227 = vmatprep.subr.mxu0 0.0
    %3228 = vmatpush1.msra.mxu0 %v2984
    %3229 = vmatprep.subr.mxu0 0.0
    %3230 = vmatpush1.msra.mxu0 0.0
    %3231 = vmatprep.subr.mxu0 0.0
    %3232 = vmatpush1.msra.mxu0 0.0
    %3233 = vmatprep.subr.mxu0 0.0
    %3234 = vmatpush1.msra.mxu0 0.0
    %3235 = vmatprep.subr.mxu0 0.0
    %3236 = vmatpush1.msra.mxu0 0.0
    %3237 = vmatprep.subr.mxu0 0.0
    %3238 = vmatpush1.msra.mxu0 0.0
    %3239 = vmatprep.subr.mxu0 0.0
    %3240 = vmatpush1.msra.mxu0 0.0
    %3241 = vmatprep.subr.mxu0 0.0
    %3242 = vmatpush1.msra.mxu0 0.0
    %3243 = vmatprep.subr.mxu0 0.0
    %3244 = vmatpush1.msra.mxu0 0.0
    %3245 = vmatprep.subr.mxu0 0.0
    %3246 = vmatpush1.msra.mxu0 0.0
    %3247 = vmatprep.subr.mxu0 0.0
    %3248 = vmatpush1.msra.mxu0 0.0
    %3249 = vmatprep.subr.mxu0 0.0
    %3250 = vmatpush1.msra.mxu0 0.0
    %3251 = vmatprep.subr.mxu0 0.0
    %3252 = vmatpush1.msra.mxu0 0.0
    %3253 = vmatprep.subr.mxu0 0.0
    %3254 = vmatpush1.msra.mxu0 0.0
    %3255 = vmatprep.subr.mxu0 0.0
    %3256 = vmatpush1.msra.mxu0 0.0
    %3257 = vmatprep.subr.mxu0 0.0
    %3258 = vmatpush1.msra.mxu0 0.0
    %3259 = vmatprep.subr.mxu0 0.0
    %3260 = vmatpush1.msra.mxu0 0.0
    %3261 = vmatprep.subr.mxu0 0.0
    %3262 = vmatpush1.msra.mxu0 0.0
    %3263 = vmatprep.subr.mxu0 0.0
    %3264 = vmatpush1.msra.mxu0 0.0
    %3265 = vmatprep.subr.mxu0 0.0
    %3266 = vmatpush1.msra.mxu0 0.0
    %3267 = vmatprep.subr.mxu0 0.0
    %3268 = vmatpush1.msra.mxu0 0.0
    %3269 = vmatprep.subr.mxu0 0.0
    %3270 = vmatpush1.msra.mxu0 0.0
    %3271 = vmatprep.subr.mxu0 0.0
    %3272 = vmatpush1.msra.mxu0 0.0
    %3273 = vmatprep.subr.mxu0 0.0
    %3274 = vmatpush1.msra.mxu0 0.0
    %3275 = vmatprep.subr.mxu0 0.0
    %3276 = vmatpush1.msra.mxu0 0.0
    %3277 = vmatprep.subr.mxu0 0.0
    %3278 = vmatpush1.msra.mxu0 0.0
    %3279 = vmatprep.subr.mxu0 0.0
    %3280 = vmatpush1.msra.mxu0 0.0
    %3281 = vmatprep.subr.mxu0 0.0
    %3282 = vmatpush1.msra.mxu0 0.0
    %3283 = vmatprep.subr.mxu0 0.0
    %3284 = vmatpush1.msra.mxu0 0.0
    %3285 = vmatprep.subr.mxu0 0.0
    %3286 = vmatpush1.msra.mxu0 0.0
    %3287 = vmatprep.subr.mxu0 0.0
    %3288 = vmatpush1.msra.mxu0 0.0
    %3289 = vmatprep.mubr.f32.mxu0 0.0
    %3290 = vmatmul.mubr.f32.gmra.mrb[0].mxu0 %v3220
    %v3291 = vpop.f32.mrb[0].mxu0
    %v3292 = vadd.f32 0.0, %v3291
    %v3293 = vpop.f32.mrb[0].mxu0
    %3294 = vmatprep.mubr.f32.mxu0 0.0
    %3295 = vmatmul.mubr.f32.gmra.mrb[0].mxu0 %v3223
    %v3296 = vpop.f32.mrb[0].mxu0
    %v3297 = vadd.f32 0.0, %v3296
    %v3298 = vpop.f32.mrb[0].mxu0
    %3299 = vdwg.mxu0
    %v3301 = vsel %vm723, %v3217, 0
    %v3304 = vsel %vm723, %v3218, 0
    %3306 = vmatprep.subr.mxu0 0.0
    %3307 = vmatpush1.msra.mxu0 %v2989
    %3308 = vmatprep.subr.mxu0 0.0
    %3309 = vmatpush1.msra.mxu0 %v2994
    %3310 = vmatprep.subr.mxu0 0.0
    %3311 = vmatpush1.msra.mxu0 0.0
    %3312 = vmatprep.subr.mxu0 0.0
    %3313 = vmatpush1.msra.mxu0 0.0
    %3314 = vmatprep.subr.mxu0 0.0
    %3315 = vmatpush1.msra.mxu0 0.0
    %3316 = vmatprep.subr.mxu0 0.0
    %3317 = vmatpush1.msra.mxu0 0.0
    %3318 = vmatprep.subr.mxu0 0.0
    %3319 = vmatpush1.msra.mxu0 0.0
    %3320 = vmatprep.subr.mxu0 0.0
    %3321 = vmatpush1.msra.mxu0 0.0
    %3322 = vmatprep.subr.mxu0 0.0
    %3323 = vmatpush1.msra.mxu0 0.0
    %3324 = vmatprep.subr.mxu0 0.0
    %3325 = vmatpush1.msra.mxu0 0.0
    %3326 = vmatprep.subr.mxu0 0.0
    %3327 = vmatpush1.msra.mxu0 0.0
    %3328 = vmatprep.subr.mxu0 0.0
    %3329 = vmatpush1.msra.mxu0 0.0
    %3330 = vmatprep.subr.mxu0 0.0
    %3331 = vmatpush1.msra.mxu0 0.0
    %3332 = vmatprep.subr.mxu0 0.0
    %3333 = vmatpush1.msra.mxu0 0.0
    %3334 = vmatprep.subr.mxu0 0.0
    %3335 = vmatpush1.msra.mxu0 0.0
    %3336 = vmatprep.subr.mxu0 0.0
    %3337 = vmatpush1.msra.mxu0 0.0
    %3338 = vmatprep.subr.mxu0 0.0
    %3339 = vmatpush1.msra.mxu0 0.0
    %3340 = vmatprep.subr.mxu0 0.0
    %3341 = vmatpush1.msra.mxu0 0.0
    %3342 = vmatprep.subr.mxu0 0.0
    %3343 = vmatpush1.msra.mxu0 0.0
    %3344 = vmatprep.subr.mxu0 0.0
    %3345 = vmatpush1.msra.mxu0 0.0
    %3346 = vmatprep.subr.mxu0 0.0
    %3347 = vmatpush1.msra.mxu0 0.0
    %3348 = vmatprep.subr.mxu0 0.0
    %3349 = vmatpush1.msra.mxu0 0.0
    %3350 = vmatprep.subr.mxu0 0.0
    %3351 = vmatpush1.msra.mxu0 0.0
    %3352 = vmatprep.subr.mxu0 0.0
    %3353 = vmatpush1.msra.mxu0 0.0
    %3354 = vmatprep.subr.mxu0 0.0
    %3355 = vmatpush1.msra.mxu0 0.0
    %3356 = vmatprep.subr.mxu0 0.0
    %3357 = vmatpush1.msra.mxu0 0.0
    %3358 = vmatprep.subr.mxu0 0.0
    %3359 = vmatpush1.msra.mxu0 0.0
    %3360 = vmatprep.subr.mxu0 0.0
    %3361 = vmatpush1.msra.mxu0 0.0
    %3362 = vmatprep.subr.mxu0 0.0
    %3363 = vmatpush1.msra.mxu0 0.0
    %3364 = vmatprep.subr.mxu0 0.0
    %3365 = vmatpush1.msra.mxu0 0.0
    %3366 = vmatprep.subr.mxu0 0.0
    %3367 = vmatpush1.msra.mxu0 0.0
    %3368 = vmatprep.subr.mxu0 0.0
    %3369 = vmatpush1.msra.mxu0 0.0
    %3370 = vmatprep.mubr.f32.mxu0 0.0
    %3371 = vmatmul.mubr.f32.gmra.mrb[0].mxu0 %v3301
    %v3372 = vpop.f32.mrb[0].mxu0
    %v3373 = vadd.f32 0.0, %v3372
    %v3374 = vpop.f32.mrb[0].mxu0
    %3375 = vmatprep.mubr.f32.mxu0 0.0
    %3376 = vmatmul.mubr.f32.gmra.mrb[0].mxu0 %v3304
    %v3377 = vpop.f32.mrb[0].mxu0
    %v3378 = vadd.f32 0.0, %v3377
    %v3379 = vpop.f32.mrb[0].mxu0
    %3380 = vdwg.mxu0
    %s3381 = scalar_lea.vmem %s6, 96
    %v3382 = vld [vmem:[%s3381] sm:$0xff]
    %v3383 = vld [vmem:[%s3381 + $0x8] sm:$0xff]
    %v3384 = vld [vmem:[%s3381 + $0x10] sm:$0xff]
    %v3385 = vld [vmem:[%s3381 + $0x18] sm:$0xff]
    %v3387 = vsel %vm540, %v3292, 0
    %v3390 = vsel %vm540, %v3297, 0
    %v3393 = vsel %vm540, %v3373, 0
    %v3396 = vsel %vm540, %v3378, 0
    %3398 = vmatprep.subr.mxu0 0.0
    %3399 = vmatpush1.msra.mxu0 %v3382
    %3400 = vmatprep.subr.mxu0 0.0
    %3401 = vmatpush1.msra.mxu0 %v3383
    %3402 = vmatprep.subr.mxu0 0.0
    %3403 = vmatpush1.msra.mxu0 %v3384
    %3404 = vmatprep.subr.mxu0 0.0
    %3405 = vmatpush1.msra.mxu0 %v3385
    %3406 = vmatprep.subr.mxu0 0.0
    %3407 = vmatpush1.msra.mxu0 0.0
    %3408 = vmatprep.subr.mxu0 0.0
    %3409 = vmatpush1.msra.mxu0 0.0
    %3410 = vmatprep.subr.mxu0 0.0
    %3411 = vmatpush1.msra.mxu0 0.0
    %3412 = vmatprep.subr.mxu0 0.0
    %3413 = vmatpush1.msra.mxu0 0.0
    %3414 = vmatprep.subr.mxu0 0.0
    %3415 = vmatpush1.msra.mxu0 0.0
    %3416 = vmatprep.subr.mxu0 0.0
    %3417 = vmatpush1.msra.mxu0 0.0
    %3418 = vmatprep.subr.mxu0 0.0
    %3419 = vmatpush1.msra.mxu0 0.0
    %3420 = vmatprep.subr.mxu0 0.0
    %3421 = vmatpush1.msra.mxu0 0.0
    %3422 = vmatprep.subr.mxu0 0.0
    %3423 = vmatpush1.msra.mxu0 0.0
    %3424 = vmatprep.subr.mxu0 0.0
    %3425 = vmatpush1.msra.mxu0 0.0
    %3426 = vmatprep.subr.mxu0 0.0
    %3427 = vmatpush1.msra.mxu0 0.0
    %3428 = vmatprep.subr.mxu0 0.0
    %3429 = vmatpush1.msra.mxu0 0.0
    %3430 = vmatprep.subr.mxu0 0.0
    %3431 = vmatpush1.msra.mxu0 0.0
    %3432 = vmatprep.subr.mxu0 0.0
    %3433 = vmatpush1.msra.mxu0 0.0
    %3434 = vmatprep.subr.mxu0 0.0
    %3435 = vmatpush1.msra.mxu0 0.0
    %3436 = vmatprep.subr.mxu0 0.0
    %3437 = vmatpush1.msra.mxu0 0.0
    %3438 = vmatprep.subr.mxu0 0.0
    %3439 = vmatpush1.msra.mxu0 0.0
    %3440 = vmatprep.subr.mxu0 0.0
    %3441 = vmatpush1.msra.mxu0 0.0
    %3442 = vmatprep.subr.mxu0 0.0
    %3443 = vmatpush1.msra.mxu0 0.0
    %3444 = vmatprep.subr.mxu0 0.0
    %3445 = vmatpush1.msra.mxu0 0.0
    %3446 = vmatprep.subr.mxu0 0.0
    %3447 = vmatpush1.msra.mxu0 0.0
    %3448 = vmatprep.subr.mxu0 0.0
    %3449 = vmatpush1.msra.mxu0 0.0
    %3450 = vmatprep.subr.mxu0 0.0
    %3451 = vmatpush1.msra.mxu0 0.0
    %3452 = vmatprep.subr.mxu0 0.0
    %3453 = vmatpush1.msra.mxu0 0.0
    %3454 = vmatprep.subr.mxu0 0.0
    %3455 = vmatpush1.msra.mxu0 0.0
    %3456 = vmatprep.subr.mxu0 0.0
    %3457 = vmatpush1.msra.mxu0 0.0
    %3458 = vmatprep.subr.mxu0 0.0
    %3459 = vmatpush1.msra.mxu0 0.0
    %3460 = vmatprep.subr.mxu0 0.0
    %3461 = vmatpush1.msra.mxu0 0.0
    %3462 = vmatprep.mubr.f32.mxu0 0.0
    %3463 = vmatmul.mubr.f32.gmra.mrb[0].mxu0 %v3387
    %v3464 = vpop.f32.mrb[0].mxu0
    %v3465 = vadd.f32 0.0, %v3464
    %v3466 = vpop.f32.mrb[0].mxu0
    %3467 = vmatprep.mubr.f32.mxu0 0.0
    %3468 = vmatmul.mubr.f32.gmra.mrb[0].mxu0 %v3390
    %v3469 = vpop.f32.mrb[0].mxu0
    %v3470 = vadd.f32 0.0, %v3469
    %v3471 = vpop.f32.mrb[0].mxu0
    %3472 = vmatprep.mubr.f32.mxu0 0.0
    %3473 = vmatmul.mubr.f32.gmra.mrb[0].mxu0 %v3393
    %v3474 = vpop.f32.mrb[0].mxu0
    %v3475 = vadd.f32 0.0, %v3474
    %v3476 = vpop.f32.mrb[0].mxu0
    %3477 = vmatprep.mubr.f32.mxu0 0.0
    %3478 = vmatmul.mubr.f32.gmra.mrb[0].mxu0 %v3396
    %v3479 = vpop.f32.mrb[0].mxu0
    %v3480 = vadd.f32 0.0, %v3479
    %v3481 = vpop.f32.mrb[0].mxu0
    %3482 = vdwg.mxu0
    %v3483 = vadd.f32 %v2663, %v3465
    %v3484 = vadd.f32 %v2664, %v3470
    %v3485 = vadd.f32 %v2665, %v3475
    %v3486 = vadd.f32 %v2666, %v3480
    %v3487 = vld [vmem:[%s7] sm:$0x1]
    %v3489 = vlaneseq
    %v3490 = vshrl.u32 %v3489, 7
    %v3491 = vsub.s32 0, %v3490
    %v3492 = vrot.slane %v3487, %v3491
    %v3494 = vadd.f32 %v3483, %v3492
    %v3495 = vadd.f32 %v3484, %v3492
    %v3496 = vadd.f32 %v3485, %v3492
    %v3497 = vadd.f32 %v3486, %v3492
    %v3498 = vadd.f32 %v3494, %v199
    %v3499 = vadd.f32 %v3495, %v200
    %v3500 = vadd.f32 %v3496, %v201
    %v3501 = vadd.f32 %v3497, %v202
    %3502 = vadd.xlane.f32.xlu0 %v3498
    %v3503 = vpop.xlane.xlu0 %3502
    %3504 = vadd.xlane.f32.xlu0 %v3499
    %v3505 = vpop.xlane.xlu0 %3504
    %3506 = vadd.xlane.f32.xlu0 %v3500
    %v3507 = vpop.xlane.xlu0 %3506
    %3508 = vadd.xlane.f32.xlu0 %v3501
    %v3509 = vpop.xlane.xlu0 %3508
    %v3510 = vrcp.pop 128.0
    %v3511 = vmul.f32 %v3503, %v3510
    %v3512 = vmul.f32 %v3505, %v3510
    %v3513 = vmul.f32 %v3507, %v3510
    %v3514 = vmul.f32 %v3509, %v3510
    %v3515 = vmul.f32 %v3498, %v3498
    %v3516 = vmul.f32 %v3499, %v3499
    %v3517 = vmul.f32 %v3500, %v3500
    %v3518 = vmul.f32 %v3501, %v3501
    %3519 = vadd.xlane.f32.xlu0 %v3515
    %v3520 = vpop.xlane.xlu0 %3519
    %3521 = vadd.xlane.f32.xlu0 %v3516
    %v3522 = vpop.xlane.xlu0 %3521
    %3523 = vadd.xlane.f32.xlu0 %v3517
    %v3524 = vpop.xlane.xlu0 %3523
    %3525 = vadd.xlane.f32.xlu0 %v3518
    %v3526 = vpop.xlane.xlu0 %3525
    %v3527 = vmul.f32 %v3520, %v3510
    %v3528 = vmul.f32 %v3522, %v3510
    %v3529 = vmul.f32 %v3524, %v3510
    %v3530 = vmul.f32 %v3526, %v3510
    %v3531 = vmul.f32 %v3511, %v3511
    %v3532 = vmul.f32 %v3512, %v3512
    %v3533 = vmul.f32 %v3513, %v3513
    %v3534 = vmul.f32 %v3514, %v3514
    %v3535 = vsub.f32 %v3527, %v3531
    %v3536 = vsub.f32 %v3528, %v3532
    %v3537 = vsub.f32 %v3529, %v3533
    %v3538 = vsub.f32 %v3530, %v3534
    %v3539 = vld [vmem:[%s16] sm:$0x1]
    %v3540 = vsub.f32 %v3498, %v3511
    %v3541 = vsub.f32 %v3499, %v3512
    %v3542 = vsub.f32 %v3500, %v3513
    %v3543 = vsub.f32 %v3501, %v3514
    %v3544 = vadd.f32 %v3535, 1e-05
    %v3545 = vadd.f32 %v3536, 1e-05
    %v3546 = vadd.f32 %v3537, 1e-05
    %v3547 = vadd.f32 %v3538, 1e-05
    %v3548 = vrsqrt.pop %v3544
    %v3549 = vrsqrt.pop %v3545
    %v3550 = vrsqrt.pop %v3546
    %v3551 = vrsqrt.pop %v3547
    %v3552 = vmul.f32 %v3540, %v3548
    %v3553 = vmul.f32 %v3541, %v3549
    %v3554 = vmul.f32 %v3542, %v3550
    %v3555 = vmul.f32 %v3543, %v3551
    %v3557 = vlaneseq
    %v3558 = vshrl.u32 %v3557, 7
    %v3559 = vsub.s32 0, %v3558
    %v3560 = vrot.slane %v3539, %v3559
    %v3562 = vmul.f32 %v3560, %v3552
    %v3563 = vmul.f32 %v3560, %v3553
    %v3564 = vmul.f32 %v3560, %v3554
    %v3565 = vmul.f32 %v3560, %v3555
    %v3566 = vld [vmem:[%s17] sm:$0x1]
    %v3568 = vlaneseq
    %v3569 = vshrl.u32 %v3568, 7
    %v3570 = vsub.s32 0, %v3569
    %v3571 = vrot.slane %v3566, %v3570
    %v3573 = vadd.f32 %v3562, %v3571
    %v3574 = vadd.f32 %v3563, %v3571
    %v3575 = vadd.f32 %v3564, %v3571
    %v3576 = vadd.f32 %v3565, %v3571
    %v3577 = vld [vmem:[%s8] sm:$0xff]
    %v3578 = vld [vmem:[%s8 + $0x8] sm:$0xff]
    %v3579 = vld [vmem:[%s8 + $0x10] sm:$0xff]
    %v3580 = vld [vmem:[%s8 + $0x18] sm:$0xff]
    %v3581 = vld [vmem:[%s8 + $0x20] sm:$0xff]
    %v3582 = vld [vmem:[%s8 + $0x28] sm:$0xff]
    %v3583 = vld [vmem:[%s8 + $0x30] sm:$0xff]
    %v3584 = vld [vmem:[%s8 + $0x38] sm:$0xff]
    %v3585 = vld [vmem:[%s8 + $0x40] sm:$0xff]
    %v3586 = vld [vmem:[%s8 + $0x48] sm:$0xff]
    %v3587 = vld [vmem:[%s8 + $0x50] sm:$0xff]
    %v3588 = vld [vmem:[%s8 + $0x58] sm:$0xff]
    %v3589 = vld [vmem:[%s8 + $0x60] sm:$0xff]
    %v3590 = vld [vmem:[%s8 + $0x68] sm:$0xff]
    %v3591 = vld [vmem:[%s8 + $0x70] sm:$0xff]
    %v3592 = vld [vmem:[%s8 + $0x78] sm:$0xff]
    %v3593 = vld [vmem:[%s9] sm:$0x1]
    %v3595 = vlaneseq
    %v3596 = vshrl.u32 %v3595, 7
    %v3597 = vsub.s32 0, %v3596
    %v3598 = vrot.slane %v3593, %v3597
    %3600 = vmatprep.subr.mxu0 0.0
    %3601 = vmatpush1.msra.mxu0 %v3577
    %3602 = vmatprep.subr.mxu0 0.0
    %3603 = vmatpush1.msra.mxu0 %v3578
    %3604 = vmatprep.subr.mxu0 0.0
    %3605 = vmatpush1.msra.mxu0 %v3579
    %3606 = vmatprep.subr.mxu0 0.0
    %3607 = vmatpush1.msra.mxu0 %v3580
    %3608 = vmatprep.subr.mxu0 0.0
    %3609 = vmatpush1.msra.mxu0 %v3581
    %3610 = vmatprep.subr.mxu0 0.0
    %3611 = vmatpush1.msra.mxu0 %v3582
    %3612 = vmatprep.subr.mxu0 0.0
    %3613 = vmatpush1.msra.mxu0 %v3583
    %3614 = vmatprep.subr.mxu0 0.0
    %3615 = vmatpush1.msra.mxu0 %v3584
    %3616 = vmatprep.subr.mxu0 0.0
    %3617 = vmatpush1.msra.mxu0 %v3585
    %3618 = vmatprep.subr.mxu0 0.0
    %3619 = vmatpush1.msra.mxu0 %v3586
    %3620 = vmatprep.subr.mxu0 0.0
    %3621 = vmatpush1.msra.mxu0 %v3587
    %3622 = vmatprep.subr.mxu0 0.0
    %3623 = vmatpush1.msra.mxu0 %v3588
    %3624 = vmatprep.subr.mxu0 0.0
    %3625 = vmatpush1.msra.mxu0 %v3589
    %3626 = vmatprep.subr.mxu0 0.0
    %3627 = vmatpush1.msra.mxu0 %v3590
    %3628 = vmatprep.subr.mxu0 0.0
    %3629 = vmatpush1.msra.mxu0 %v3591
    %3630 = vmatprep.subr.mxu0 0.0
    %3631 = vmatpush1.msra.mxu0 %v3592
    %3632 = vmatprep.subr.mxu0 0.0
    %3633 = vmatpush1.msra.mxu0 0.0
    %3634 = vmatprep.subr.mxu0 0.0
    %3635 = vmatpush1.msra.mxu0 0.0
    %3636 = vmatprep.subr.mxu0 0.0
    %3637 = vmatpush1.msra.mxu0 0.0
    %3638 = vmatprep.subr.mxu0 0.0
    %3639 = vmatpush1.msra.mxu0 0.0
    %3640 = vmatprep.subr.mxu0 0.0
    %3641 = vmatpush1.msra.mxu0 0.0
    %3642 = vmatprep.subr.mxu0 0.0
    %3643 = vmatpush1.msra.mxu0 0.0
    %3644 = vmatprep.subr.mxu0 0.0
    %3645 = vmatpush1.msra.mxu0 0.0
    %3646 = vmatprep.subr.mxu0 0.0
    %3647 = vmatpush1.msra.mxu0 0.0
    %3648 = vmatprep.subr.mxu0 0.0
    %3649 = vmatpush1.msra.mxu0 0.0
    %3650 = vmatprep.subr.mxu0 0.0
    %3651 = vmatpush1.msra.mxu0 0.0
    %3652 = vmatprep.subr.mxu0 0.0
    %3653 = vmatpush1.msra.mxu0 0.0
    %3654 = vmatprep.subr.mxu0 0.0
    %3655 = vmatpush1.msra.mxu0 0.0
    %3656 = vmatprep.subr.mxu0 0.0
    %3657 = vmatpush1.msra.mxu0 0.0
    %3658 = vmatprep.subr.mxu0 0.0
    %3659 = vmatpush1.msra.mxu0 0.0
    %3660 = vmatprep.subr.mxu0 0.0
    %3661 = vmatpush1.msra.mxu0 0.0
    %3662 = vmatprep.subr.mxu0 0.0
    %3663 = vmatpush1.msra.mxu0 0.0
    %3664 = vmatprep.mubr.f32.mxu0 0.0
    %3665 = vmatmul.mubr.f32.gmra.mrb[0].mxu0 %v3573
    %v3666 = vpop.f32.mrb[0].mxu0
    %v3667 = vadd.f32 %v3598, %v3666
    %v3668 = vpop.f32.mrb[0].mxu0
    %3669 = vmatprep.mubr.f32.mxu0 0.0
    %3670 = vmatmul.mubr.f32.gmra.mrb[0].mxu0 %v3574
    %v3671 = vpop.f32.mrb[0].mxu0
    %v3672 = vadd.f32 %v3598, %v3671
    %v3673 = vpop.f32.mrb[0].mxu0
    %3674 = vmatprep.mubr.f32.mxu0 0.0
    %3675 = vmatmul.mubr.f32.gmra.mrb[0].mxu0 %v3575
    %v3676 = vpop.f32.mrb[0].mxu0
    %v3677 = vadd.f32 %v3598, %v3676
    %v3678 = vpop.f32.mrb[0].mxu0
    %3679 = vmatprep.mubr.f32.mxu0 0.0
    %3680 = vmatmul.mubr.f32.gmra.mrb[0].mxu0 %v3576
    %v3681 = vpop.f32.mrb[0].mxu0
    %v3682 = vadd.f32 %v3598, %v3681
    %v3683 = vpop.f32.mrb[0].mxu0
    %3684 = vdwg.mxu0
    %s3685 = scalar_lea.vmem %s8, 512
    %v3686 = vld [vmem:[%s3685] sm:$0xff]
    %v3687 = vld [vmem:[%s3685 + $0x8] sm:$0xff]
    %v3688 = vld [vmem:[%s3685 + $0x10] sm:$0xff]
    %v3689 = vld [vmem:[%s3685 + $0x18] sm:$0xff]
    %v3690 = vld [vmem:[%s3685 + $0x20] sm:$0xff]
    %v3691 = vld [vmem:[%s3685 + $0x28] sm:$0xff]
    %v3692 = vld [vmem:[%s3685 + $0x30] sm:$0xff]
    %v3693 = vld [vmem:[%s3685 + $0x38] sm:$0xff]
    %v3694 = vld [vmem:[%s3685 + $0x40] sm:$0xff]
    %v3695 = vld [vmem:[%s3685 + $0x48] sm:$0xff]
    %v3696 = vld [vmem:[%s3685 + $0x50] sm:$0xff]
    %v3697 = vld [vmem:[%s3685 + $0x58] sm:$0xff]
    %v3698 = vld [vmem:[%s3685 + $0x60] sm:$0xff]
    %v3699 = vld [vmem:[%s3685 + $0x68] sm:$0xff]
    %v3700 = vld [vmem:[%s3685 + $0x70] sm:$0xff]
    %v3701 = vld [vmem:[%s3685 + $0x78] sm:$0xff]
    %s3702 = scalar_lea.vmem %s9, 4
    %v3703 = vld [vmem:[%s3702] sm:$0x1]
    %v3705 = vlaneseq
    %v3706 = vshrl.u32 %v3705, 7
    %v3707 = vsub.s32 0, %v3706
    %v3708 = vrot.slane %v3703, %v3707
    %3710 = vmatprep.subr.mxu0 0.0
    %3711 = vmatpush1.msra.mxu0 %v3686
    %3712 = vmatprep.subr.mxu0 0.0
    %3713 = vmatpush1.msra.mxu0 %v3687
    %3714 = vmatprep.subr.mxu0 0.0
    %3715 = vmatpush1.msra.mxu0 %v3688
    %3716 = vmatprep.subr.mxu0 0.0
    %3717 = vmatpush1.msra.mxu0 %v3689
    %3718 = vmatprep.subr.mxu0 0.0
    %3719 = vmatpush1.msra.mxu0 %v3690
    %3720 = vmatprep.subr.mxu0 0.0
    %3721 = vmatpush1.msra.mxu0 %v3691
    %3722 = vmatprep.subr.mxu0 0.0
    %3723 = vmatpush1.msra.mxu0 %v3692
    %3724 = vmatprep.subr.mxu0 0.0
    %3725 = vmatpush1.msra.mxu0 %v3693
    %3726 = vmatprep.subr.mxu0 0.0
    %3727 = vmatpush1.msra.mxu0 %v3694
    %3728 = vmatprep.subr.mxu0 0.0
    %3729 = vmatpush1.msra.mxu0 %v3695
    %3730 = vmatprep.subr.mxu0 0.0
    %3731 = vmatpush1.msra.mxu0 %v3696
    %3732 = vmatprep.subr.mxu0 0.0
    %3733 = vmatpush1.msra.mxu0 %v3697
    %3734 = vmatprep.subr.mxu0 0.0
    %3735 = vmatpush1.msra.mxu0 %v3698
    %3736 = vmatprep.subr.mxu0 0.0
    %3737 = vmatpush1.msra.mxu0 %v3699
    %3738 = vmatprep.subr.mxu0 0.0
    %3739 = vmatpush1.msra.mxu0 %v3700
    %3740 = vmatprep.subr.mxu0 0.0
    %3741 = vmatpush1.msra.mxu0 %v3701
    %3742 = vmatprep.subr.mxu0 0.0
    %3743 = vmatpush1.msra.mxu0 0.0
    %3744 = vmatprep.subr.mxu0 0.0
    %3745 = vmatpush1.msra.mxu0 0.0
    %3746 = vmatprep.subr.mxu0 0.0
    %3747 = vmatpush1.msra.mxu0 0.0
    %3748 = vmatprep.subr.mxu0 0.0
    %3749 = vmatpush1.msra.mxu0 0.0
    %3750 = vmatprep.subr.mxu0 0.0
    %3751 = vmatpush1.msra.mxu0 0.0
    %3752 = vmatprep.subr.mxu0 0.0
    %3753 = vmatpush1.msra.mxu0 0.0
    %3754 = vmatprep.subr.mxu0 0.0
    %3755 = vmatpush1.msra.mxu0 0.0
    %3756 = vmatprep.subr.mxu0 0.0
    %3757 = vmatpush1.msra.mxu0 0.0
    %3758 = vmatprep.subr.mxu0 0.0
    %3759 = vmatpush1.msra.mxu0 0.0
    %3760 = vmatprep.subr.mxu0 0.0
    %3761 = vmatpush1.msra.mxu0 0.0
    %3762 = vmatprep.subr.mxu0 0.0
    %3763 = vmatpush1.msra.mxu0 0.0
    %3764 = vmatprep.subr.mxu0 0.0
    %3765 = vmatpush1.msra.mxu0 0.0
    %3766 = vmatprep.subr.mxu0 0.0
    %3767 = vmatpush1.msra.mxu0 0.0
    %3768 = vmatprep.subr.mxu0 0.0
    %3769 = vmatpush1.msra.mxu0 0.0
    %3770 = vmatprep.subr.mxu0 0.0
    %3771 = vmatpush1.msra.mxu0 0.0
    %3772 = vmatprep.subr.mxu0 0.0
    %3773 = vmatpush1.msra.mxu0 0.0
    %3774 = vmatprep.mubr.f32.mxu0 0.0
    %3775 = vmatmul.mubr.f32.gmra.mrb[0].mxu0 %v203
    %v3776 = vpop.f32.mrb[0].mxu0
    %v3777 = vadd.f32 %v3708, %v3776
    %v3778 = vpop.f32.mrb[0].mxu0
    %3779 = vmatprep.mubr.f32.mxu0 0.0
    %3780 = vmatmul.mubr.f32.gmra.mrb[0].mxu0 %v204
    %v3781 = vpop.f32.mrb[0].mxu0
    %v3782 = vadd.f32 %v3708, %v3781
    %v3783 = vpop.f32.mrb[0].mxu0
    %3784 = vmatprep.mubr.f32.mxu0 0.0
    %3785 = vmatmul.mubr.f32.gmra.mrb[0].mxu0 %v205
    %v3786 = vpop.f32.mrb[0].mxu0
    %v3787 = vadd.f32 %v3708, %v3786
    %v3788 = vpop.f32.mrb[0].mxu0
    %3789 = vmatprep.mubr.f32.mxu0 0.0
    %3790 = vmatmul.mubr.f32.gmra.mrb[0].mxu0 %v206
    %v3791 = vpop.f32.mrb[0].mxu0
    %v3792 = vadd.f32 %v3708, %v3791
    %v3793 = vpop.f32.mrb[0].mxu0
    %3794 = vdwg.mxu0
    %s3795 = scalar_lea.vmem %s8, 1024
    %v3796 = vld [vmem:[%s3795] sm:$0xff]
    %v3797 = vld [vmem:[%s3795 + $0x8] sm:$0xff]
    %v3798 = vld [vmem:[%s3795 + $0x10] sm:$0xff]
    %v3799 = vld [vmem:[%s3795 + $0x18] sm:$0xff]
    %v3800 = vld [vmem:[%s3795 + $0x20] sm:$0xff]
    %v3801 = vld [vmem:[%s3795 + $0x28] sm:$0xff]
    %v3802 = vld [vmem:[%s3795 + $0x30] sm:$0xff]
    %v3803 = vld [vmem:[%s3795 + $0x38] sm:$0xff]
    %v3804 = vld [vmem:[%s3795 + $0x40] sm:$0xff]
    %v3805 = vld [vmem:[%s3795 + $0x48] sm:$0xff]
    %v3806 = vld [vmem:[%s3795 + $0x50] sm:$0xff]
    %v3807 = vld [vmem:[%s3795 + $0x58] sm:$0xff]
    %v3808 = vld [vmem:[%s3795 + $0x60] sm:$0xff]
    %v3809 = vld [vmem:[%s3795 + $0x68] sm:$0xff]
    %v3810 = vld [vmem:[%s3795 + $0x70] sm:$0xff]
    %v3811 = vld [vmem:[%s3795 + $0x78] sm:$0xff]
    %s3812 = scalar_lea.vmem %s9, 8
    %v3813 = vld [vmem:[%s3812] sm:$0x1]
    %v3815 = vlaneseq
    %v3816 = vshrl.u32 %v3815, 7
    %v3817 = vsub.s32 0, %v3816
    %v3818 = vrot.slane %v3813, %v3817
    %3820 = vmatprep.subr.mxu0 0.0
    %3821 = vmatpush1.msra.mxu0 %v3796
    %3822 = vmatprep.subr.mxu0 0.0
    %3823 = vmatpush1.msra.mxu0 %v3797
    %3824 = vmatprep.subr.mxu0 0.0
    %3825 = vmatpush1.msra.mxu0 %v3798
    %3826 = vmatprep.subr.mxu0 0.0
    %3827 = vmatpush1.msra.mxu0 %v3799
    %3828 = vmatprep.subr.mxu0 0.0
    %3829 = vmatpush1.msra.mxu0 %v3800
    %3830 = vmatprep.subr.mxu0 0.0
    %3831 = vmatpush1.msra.mxu0 %v3801
    %3832 = vmatprep.subr.mxu0 0.0
    %3833 = vmatpush1.msra.mxu0 %v3802
    %3834 = vmatprep.subr.mxu0 0.0
    %3835 = vmatpush1.msra.mxu0 %v3803
    %3836 = vmatprep.subr.mxu0 0.0
    %3837 = vmatpush1.msra.mxu0 %v3804
    %3838 = vmatprep.subr.mxu0 0.0
    %3839 = vmatpush1.msra.mxu0 %v3805
    %3840 = vmatprep.subr.mxu0 0.0
    %3841 = vmatpush1.msra.mxu0 %v3806
    %3842 = vmatprep.subr.mxu0 0.0
    %3843 = vmatpush1.msra.mxu0 %v3807
    %3844 = vmatprep.subr.mxu0 0.0
    %3845 = vmatpush1.msra.mxu0 %v3808
    %3846 = vmatprep.subr.mxu0 0.0
    %3847 = vmatpush1.msra.mxu0 %v3809
    %3848 = vmatprep.subr.mxu0 0.0
    %3849 = vmatpush1.msra.mxu0 %v3810
    %3850 = vmatprep.subr.mxu0 0.0
    %3851 = vmatpush1.msra.mxu0 %v3811
    %3852 = vmatprep.subr.mxu0 0.0
    %3853 = vmatpush1.msra.mxu0 0.0
    %3854 = vmatprep.subr.mxu0 0.0
    %3855 = vmatpush1.msra.mxu0 0.0
    %3856 = vmatprep.subr.mxu0 0.0
    %3857 = vmatpush1.msra.mxu0 0.0
    %3858 = vmatprep.subr.mxu0 0.0
    %3859 = vmatpush1.msra.mxu0 0.0
    %3860 = vmatprep.subr.mxu0 0.0
    %3861 = vmatpush1.msra.mxu0 0.0
    %3862 = vmatprep.subr.mxu0 0.0
    %3863 = vmatpush1.msra.mxu0 0.0
    %3864 = vmatprep.subr.mxu0 0.0
    %3865 = vmatpush1.msra.mxu0 0.0
    %3866 = vmatprep.subr.mxu0 0.0
    %3867 = vmatpush1.msra.mxu0 0.0
    %3868 = vmatprep.subr.mxu0 0.0
    %3869 = vmatpush1.msra.mxu0 0.0
    %3870 = vmatprep.subr.mxu0 0.0
    %3871 = vmatpush1.msra.mxu0 0.0
    %3872 = vmatprep.subr.mxu0 0.0
    %3873 = vmatpush1.msra.mxu0 0.0
    %3874 = vmatprep.subr.mxu0 0.0
    %3875 = vmatpush1.msra.mxu0 0.0
    %3876 = vmatprep.subr.mxu0 0.0
    %3877 = vmatpush1.msra.mxu0 0.0
    %3878 = vmatprep.subr.mxu0 0.0
    %3879 = vmatpush1.msra.mxu0 0.0
    %3880 = vmatprep.subr.mxu0 0.0
    %3881 = vmatpush1.msra.mxu0 0.0
    %3882 = vmatprep.subr.mxu0 0.0
    %3883 = vmatpush1.msra.mxu0 0.0
    %3884 = vmatprep.mubr.f32.mxu0 0.0
    %3885 = vmatmul.mubr.f32.gmra.mrb[0].mxu0 %v203
    %v3886 = vpop.f32.mrb[0].mxu0
    %v3887 = vadd.f32 %v3818, %v3886
    %v3888 = vpop.f32.mrb[0].mxu0
    %3889 = vmatprep.mubr.f32.mxu0 0.0
    %3890 = vmatmul.mubr.f32.gmra.mrb[0].mxu0 %v204
    %v3891 = vpop.f32.mrb[0].mxu0
    %v3892 = vadd.f32 %v3818, %v3891
    %v3893 = vpop.f32.mrb[0].mxu0
    %3894 = vmatprep.mubr.f32.mxu0 0.0
    %3895 = vmatmul.mubr.f32.gmra.mrb[0].mxu0 %v205
    %v3896 = vpop.f32.mrb[0].mxu0
    %v3897 = vadd.f32 %v3818, %v3896
    %v3898 = vpop.f32.mrb[0].mxu0
    %3899 = vmatprep.mubr.f32.mxu0 0.0
    %3900 = vmatmul.mubr.f32.gmra.mrb[0].mxu0 %v206
    %v3901 = vpop.f32.mrb[0].mxu0
    %v3902 = vadd.f32 %v3818, %v3901
    %v3903 = vpop.f32.mrb[0].mxu0
    %3904 = vdwg.mxu0
    %v3906 = vsel %vm540, %v3667, 0
    %v3909 = vsel %vm540, %v3672, 0
    %v3912 = vsel %vm540, %v3777, 0
    %v3915 = vsel %vm540, %v3782, 0
    %3917 = vmatprep.subr.mxu0 0.0
    %3918 = vmatpush1.xpose.msra.mxu0 %v3912
    %3919 = vmatprep.subr.mxu0 0.0
    %3920 = vmatpush1.xpose.msra.mxu0 %v3915
    %3921 = vmatprep.subr.mxu0 0.0
    %3922 = vmatpush1.xpose.msra.mxu0 0.0
    %3923 = vmatprep.subr.mxu0 0.0
    %3924 = vmatpush1.xpose.msra.mxu0 0.0
    %3925 = vmatprep.subr.mxu0 0.0
    %3926 = vmatpush1.xpose.msra.mxu0 0.0
    %3927 = vmatprep.subr.mxu0 0.0
    %3928 = vmatpush1.xpose.msra.mxu0 0.0
    %3929 = vmatprep.subr.mxu0 0.0
    %3930 = vmatpush1.xpose.msra.mxu0 0.0
    %3931 = vmatprep.subr.mxu0 0.0
    %3932 = vmatpush1.xpose.msra.mxu0 0.0
    %3933 = vmatprep.subr.mxu0 0.0
    %3934 = vmatpush1.xpose.msra.mxu0 0.0
    %3935 = vmatprep.subr.mxu0 0.0
    %3936 = vmatpush1.xpose.msra.mxu0 0.0
    %3937 = vmatprep.subr.mxu0 0.0
    %3938 = vmatpush1.xpose.msra.mxu0 0.0
    %3939 = vmatprep.subr.mxu0 0.0
    %3940 = vmatpush1.xpose.msra.mxu0 0.0
    %3941 = vmatprep.subr.mxu0 0.0
    %3942 = vmatpush1.xpose.msra.mxu0 0.0
    %3943 = vmatprep.subr.mxu0 0.0
    %3944 = vmatpush1.xpose.msra.mxu0 0.0
    %3945 = vmatprep.subr.mxu0 0.0
    %3946 = vmatpush1.xpose.msra.mxu0 0.0
    %3947 = vmatprep.subr.mxu0 0.0
    %3948 = vmatpush1.xpose.msra.mxu0 0.0
    %3949 = vmatprep.subr.mxu0 0.0
    %3950 = vmatpush1.xpose.msra.mxu0 0.0
    %3951 = vmatprep.subr.mxu0 0.0
    %3952 = vmatpush1.xpose.msra.mxu0 0.0
    %3953 = vmatprep.subr.mxu0 0.0
    %3954 = vmatpush1.xpose.msra.mxu0 0.0
    %3955 = vmatprep.subr.mxu0 0.0
    %3956 = vmatpush1.xpose.msra.mxu0 0.0
    %3957 = vmatprep.subr.mxu0 0.0
    %3958 = vmatpush1.xpose.msra.mxu0 0.0
    %3959 = vmatprep.subr.mxu0 0.0
    %3960 = vmatpush1.xpose.msra.mxu0 0.0
    %3961 = vmatprep.subr.mxu0 0.0
    %3962 = vmatpush1.xpose.msra.mxu0 0.0
    %3963 = vmatprep.subr.mxu0 0.0
    %3964 = vmatpush1.xpose.msra.mxu0 0.0
    %3965 = vmatprep.subr.mxu0 0.0
    %3966 = vmatpush1.xpose.msra.mxu0 0.0
    %3967 = vmatprep.subr.mxu0 0.0
    %3968 = vmatpush1.xpose.msra.mxu0 0.0
    %3969 = vmatprep.subr.mxu0 0.0
    %3970 = vmatpush1.xpose.msra.mxu0 0.0
    %3971 = vmatprep.subr.mxu0 0.0
    %3972 = vmatpush1.xpose.msra.mxu0 0.0
    %3973 = vmatprep.subr.mxu0 0.0
    %3974 = vmatpush1.xpose.msra.mxu0 0.0
    %3975 = vmatprep.subr.mxu0 0.0
    %3976 = vmatpush1.xpose.msra.mxu0 0.0
    %3977 = vmatprep.subr.mxu0 0.0
    %3978 = vmatpush1.xpose.msra.mxu0 0.0
    %3979 = vmatprep.subr.mxu0 0.0
    %3980 = vmatpush1.xpose.msra.mxu0 0.0
    %3981 = vmatprep.mubr.f32.mxu0 0.0
    %3982 = vmatmul.mubr.f32.gmra.mrb[0].mxu0 %v3906
    %v3983 = vpop.f32.mrb[0].mxu0
    %v3984 = vadd.f32 0.0, %v3983
    %v3985 = vpop.f32.mrb[0].mxu0
    %3986 = vmatprep.mubr.f32.mxu0 0.0
    %3987 = vmatmul.mubr.f32.gmra.mrb[0].mxu0 %v3909
    %v3988 = vpop.f32.mrb[0].mxu0
    %v3989 = vadd.f32 0.0, %v3988
    %v3990 = vpop.f32.mrb[0].mxu0
    %3991 = vdwg.mxu0
    %v3993 = vsel %vm540, %v3677, 0
    %v3996 = vsel %vm540, %v3682, 0
    %v3999 = vsel %vm540, %v3787, 0
    %v4002 = vsel %vm540, %v3792, 0
    %4004 = vmatprep.subr.mxu0 0.0
    %4005 = vmatpush1.xpose.msra.mxu0 %v3999
    %4006 = vmatprep.subr.mxu0 0.0
    %4007 = vmatpush1.xpose.msra.mxu0 %v4002
    %4008 = vmatprep.subr.mxu0 0.0
    %4009 = vmatpush1.xpose.msra.mxu0 0.0
    %4010 = vmatprep.subr.mxu0 0.0
    %4011 = vmatpush1.xpose.msra.mxu0 0.0
    %4012 = vmatprep.subr.mxu0 0.0
    %4013 = vmatpush1.xpose.msra.mxu0 0.0
    %4014 = vmatprep.subr.mxu0 0.0
    %4015 = vmatpush1.xpose.msra.mxu0 0.0
    %4016 = vmatprep.subr.mxu0 0.0
    %4017 = vmatpush1.xpose.msra.mxu0 0.0
    %4018 = vmatprep.subr.mxu0 0.0
    %4019 = vmatpush1.xpose.msra.mxu0 0.0
    %4020 = vmatprep.subr.mxu0 0.0
    %4021 = vmatpush1.xpose.msra.mxu0 0.0
    %4022 = vmatprep.subr.mxu0 0.0
    %4023 = vmatpush1.xpose.msra.mxu0 0.0
    %4024 = vmatprep.subr.mxu0 0.0
    %4025 = vmatpush1.xpose.msra.mxu0 0.0
    %4026 = vmatprep.subr.mxu0 0.0
    %4027 = vmatpush1.xpose.msra.mxu0 0.0
    %4028 = vmatprep.subr.mxu0 0.0
    %4029 = vmatpush1.xpose.msra.mxu0 0.0
    %4030 = vmatprep.subr.mxu0 0.0
    %4031 = vmatpush1.xpose.msra.mxu0 0.0
    %4032 = vmatprep.subr.mxu0 0.0
    %4033 = vmatpush1.xpose.msra.mxu0 0.0
    %4034 = vmatprep.subr.mxu0 0.0
    %4035 = vmatpush1.xpose.msra.mxu0 0.0
    %4036 = vmatprep.subr.mxu0 0.0
    %4037 = vmatpush1.xpose.msra.mxu0 0.0
    %4038 = vmatprep.subr.mxu0 0.0
    %4039 = vmatpush1.xpose.msra.mxu0 0.0
    %4040 = vmatprep.subr.mxu0 0.0
    %4041 = vmatpush1.xpose.msra.mxu0 0.0
    %4042 = vmatprep.subr.mxu0 0.0
    %4043 = vmatpush1.xpose.msra.mxu0 0.0
    %4044 = vmatprep.subr.mxu0 0.0
    %4045 = vmatpush1.xpose.msra.mxu0 0.0
    %4046 = vmatprep.subr.mxu0 0.0
    %4047 = vmatpush1.xpose.msra.mxu0 0.0
    %4048 = vmatprep.subr.mxu0 0.0
    %4049 = vmatpush1.xpose.msra.mxu0 0.0
    %4050 = vmatprep.subr.mxu0 0.0
    %4051 = vmatpush1.xpose.msra.mxu0 0.0
    %4052 = vmatprep.subr.mxu0 0.0
    %4053 = vmatpush1.xpose.msra.mxu0 0.0
    %4054 = vmatprep.subr.mxu0 0.0
    %4055 = vmatpush1.xpose.msra.mxu0 0.0
    %4056 = vmatprep.subr.mxu0 0.0
    %4057 = vmatpush1.xpose.msra.mxu0 0.0
    %4058 = vmatprep.subr.mxu0 0.0
    %4059 = vmatpush1.xpose.msra.mxu0 0.0
    %4060 = vmatprep.subr.mxu0 0.0
    %4061 = vmatpush1.xpose.msra.mxu0 0.0
    %4062 = vmatprep.subr.mxu0 0.0
    %4063 = vmatpush1.xpose.msra.mxu0 0.0
    %4064 = vmatprep.subr.mxu0 0.0
    %4065 = vmatpush1.xpose.msra.mxu0 0.0
    %4066 = vmatprep.subr.mxu0 0.0
    %4067 = vmatpush1.xpose.msra.mxu0 0.0
    %4068 = vmatprep.mubr.f32.mxu0 0.0
    %4069 = vmatmul.mubr.f32.gmra.mrb[0].mxu0 %v3993
    %v4070 = vpop.f32.mrb[0].mxu0
    %v4071 = vadd.f32 0.0, %v4070
    %v4072 = vpop.f32.mrb[0].mxu0
    %4073 = vmatprep.mubr.f32.mxu0 0.0
    %4074 = vmatmul.mubr.f32.gmra.mrb[0].mxu0 %v3996
    %v4075 = vpop.f32.mrb[0].mxu0
    %v4076 = vadd.f32 0.0, %v4075
    %v4077 = vpop.f32.mrb[0].mxu0
    %4078 = vdwg.mxu0
    %v4079 = vsel %vm723, %v3984, -inf
    %4080 = vmax.xlane.f32.xlu0 %v4079
    %v4081 = vpop.xlane.xlu0 %4080
    %v4082 = vsel %vm723, %v3989, -inf
    %4083 = vmax.xlane.f32.xlu0 %v4082
    %v4084 = vpop.xlane.xlu0 %4083
    %v4085 = vsel %vm723, %v4071, -inf
    %4086 = vmax.xlane.f32.xlu0 %v4085
    %v4087 = vpop.xlane.xlu0 %4086
    %v4088 = vsel %vm723, %v4076, -inf
    %4089 = vmax.xlane.f32.xlu0 %v4088
    %v4090 = vpop.xlane.xlu0 %4089
    %v4091 = vsub.f32 %v3984, %v4081
    %v4092 = vsub.f32 %v3989, %v4084
    %v4093 = vsub.f32 %v4071, %v4087
    %v4094 = vsub.f32 %v4076, %v4090
    %v4095 = vmul.f32 %v4091, 1.442695
    %v4096 = vpow.pop %v4095
    %v4097 = vmul.f32 %v4092, 1.442695
    %v4098 = vpow.pop %v4097
    %v4099 = vmul.f32 %v4093, 1.442695
    %v4100 = vpow.pop %v4099
    %v4101 = vmul.f32 %v4094, 1.442695
    %v4102 = vpow.pop %v4101
    %v4103 = vsel %vm723, %v4096, 0.0
    %4104 = vadd.xlane.f32.xlu0 %v4103
    %v4105 = vpop.xlane.xlu0 %4104
    %v4106 = vsel %vm723, %v4098, 0.0
    %4107 = vadd.xlane.f32.xlu0 %v4106
    %v4108 = vpop.xlane.xlu0 %4107
    %v4109 = vsel %vm723, %v4100, 0.0
    %4110 = vadd.xlane.f32.xlu0 %v4109
    %v4111 = vpop.xlane.xlu0 %4110
    %v4112 = vsel %vm723, %v4102, 0.0
    %4113 = vadd.xlane.f32.xlu0 %v4112
    %v4114 = vpop.xlane.xlu0 %4113
    %v4115 = vrcp.pop %v4105
    %v4116 = vrcp.pop %v4108
    %v4117 = vrcp.pop %v4111
    %v4118 = vrcp.pop %v4114
    %v4119 = vmul.f32 %v4096, %v4115
    %v4120 = vmul.f32 %v4098, %v4116
    %v4121 = vmul.f32 %v4100, %v4117
    %v4122 = vmul.f32 %v4102, %v4118
    %v4124 = vsel %vm723, %v4119, 0
    %v4127 = vsel %vm723, %v4120, 0
    %4129 = vmatprep.subr.mxu0 0.0
    %4130 = vmatpush1.msra.mxu0 %v3887
    %4131 = vmatprep.subr.mxu0 0.0
    %4132 = vmatpush1.msra.mxu0 %v3892
    %4133 = vmatprep.subr.mxu0 0.0
    %4134 = vmatpush1.msra.mxu0 0.0
    %4135 = vmatprep.subr.mxu0 0.0
    %4136 = vmatpush1.msra.mxu0 0.0
    %4137 = vmatprep.subr.mxu0 0.0
    %4138 = vmatpush1.msra.mxu0 0.0
    %4139 = vmatprep.subr.mxu0 0.0
    %4140 = vmatpush1.msra.mxu0 0.0
    %4141 = vmatprep.subr.mxu0 0.0
    %4142 = vmatpush1.msra.mxu0 0.0
    %4143 = vmatprep.subr.mxu0 0.0
    %4144 = vmatpush1.msra.mxu0 0.0
    %4145 = vmatprep.subr.mxu0 0.0
    %4146 = vmatpush1.msra.mxu0 0.0
    %4147 = vmatprep.subr.mxu0 0.0
    %4148 = vmatpush1.msra.mxu0 0.0
    %4149 = vmatprep.subr.mxu0 0.0
    %4150 = vmatpush1.msra.mxu0 0.0
    %4151 = vmatprep.subr.mxu0 0.0
    %4152 = vmatpush1.msra.mxu0 0.0
    %4153 = vmatprep.subr.mxu0 0.0
    %4154 = vmatpush1.msra.mxu0 0.0
    %4155 = vmatprep.subr.mxu0 0.0
    %4156 = vmatpush1.msra.mxu0 0.0
    %4157 = vmatprep.subr.mxu0 0.0
    %4158 = vmatpush1.msra.mxu0 0.0
    %4159 = vmatprep.subr.mxu0 0.0
    %4160 = vmatpush1.msra.mxu0 0.0
    %4161 = vmatprep.subr.mxu0 0.0
    %4162 = vmatpush1.msra.mxu0 0.0
    %4163 = vmatprep.subr.mxu0 0.0
    %4164 = vmatpush1.msra.mxu0 0.0
    %4165 = vmatprep.subr.mxu0 0.0
    %4166 = vmatpush1.msra.mxu0 0.0
    %4167 = vmatprep.subr.mxu0 0.0
    %4168 = vmatpush1.msra.mxu0 0.0
    %4169 = vmatprep.subr.mxu0 0.0
    %4170 = vmatpush1.msra.mxu0 0.0
    %4171 = vmatprep.subr.mxu0 0.0
    %4172 = vmatpush1.msra.mxu0 0.0
    %4173 = vmatprep.subr.mxu0 0.0
    %4174 = vmatpush1.msra.mxu0 0.0
    %4175 = vmatprep.subr.mxu0 0.0
    %4176 = vmatpush1.msra.mxu0 0.0
    %4177 = vmatprep.subr.mxu0 0.0
    %4178 = vmatpush1.msra.mxu0 0.0
    %4179 = vmatprep.subr.mxu0 0.0
    %4180 = vmatpush1.msra.mxu0 0.0
    %4181 = vmatprep.subr.mxu0 0.0
    %4182 = vmatpush1.msra.mxu0 0.0
    %4183 = vmatprep.subr.mxu0 0.0
    %4184 = vmatpush1.msra.mxu0 0.0
    %4185 = vmatprep.subr.mxu0 0.0
    %4186 = vmatpush1.msra.mxu0 0.0
    %4187 = vmatprep.subr.mxu0 0.0
    %4188 = vmatpush1.msra.mxu0 0.0
    %4189 = vmatprep.subr.mxu0 0.0
    %4190 = vmatpush1.msra.mxu0 0.0
    %4191 = vmatprep.subr.mxu0 0.0
    %4192 = vmatpush1.msra.mxu0 0.0
    %4193 = vmatprep.mubr.f32.mxu0 0.0
    %4194 = vmatmul.mubr.f32.gmra.mrb[0].mxu0 %v4124
    %v4195 = vpop.f32.mrb[0].mxu0
    %v4196 = vadd.f32 0.0, %v4195
    %v4197 = vpop.f32.mrb[0].mxu0
    %4198 = vmatprep.mubr.f32.mxu0 0.0
    %4199 = vmatmul.mubr.f32.gmra.mrb[0].mxu0 %v4127
    %v4200 = vpop.f32.mrb[0].mxu0
    %v4201 = vadd.f32 0.0, %v4200
    %v4202 = vpop.f32.mrb[0].mxu0
    %4203 = vdwg.mxu0
    %v4205 = vsel %vm723, %v4121, 0
    %v4208 = vsel %vm723, %v4122, 0
    %4210 = vmatprep.subr.mxu0 0.0
    %4211 = vmatpush1.msra.mxu0 %v3897
    %4212 = vmatprep.subr.mxu0 0.0
    %4213 = vmatpush1.msra.mxu0 %v3902
    %4214 = vmatprep.subr.mxu0 0.0
    %4215 = vmatpush1.msra.mxu0 0.0
    %4216 = vmatprep.subr.mxu0 0.0
    %4217 = vmatpush1.msra.mxu0 0.0
    %4218 = vmatprep.subr.mxu0 0.0
    %4219 = vmatpush1.msra.mxu0 0.0
    %4220 = vmatprep.subr.mxu0 0.0
    %4221 = vmatpush1.msra.mxu0 0.0
    %4222 = vmatprep.subr.mxu0 0.0
    %4223 = vmatpush1.msra.mxu0 0.0
    %4224 = vmatprep.subr.mxu0 0.0
    %4225 = vmatpush1.msra.mxu0 0.0
    %4226 = vmatprep.subr.mxu0 0.0
    %4227 = vmatpush1.msra.mxu0 0.0
    %4228 = vmatprep.subr.mxu0 0.0
    %4229 = vmatpush1.msra.mxu0 0.0
    %4230 = vmatprep.subr.mxu0 0.0
    %4231 = vmatpush1.msra.mxu0 0.0
    %4232 = vmatprep.subr.mxu0 0.0
    %4233 = vmatpush1.msra.mxu0 0.0
    %4234 = vmatprep.subr.mxu0 0.0
    %4235 = vmatpush1.msra.mxu0 0.0
    %4236 = vmatprep.subr.mxu0 0.0
    %4237 = vmatpush1.msra.mxu0 0.0
    %4238 = vmatprep.subr.mxu0 0.0
    %4239 = vmatpush1.msra.mxu0 0.0
    %4240 = vmatprep.subr.mxu0 0.0
    %4241 = vmatpush1.msra.mxu0 0.0
    %4242 = vmatprep.subr.mxu0 0.0
    %4243 = vmatpush1.msra.mxu0 0.0
    %4244 = vmatprep.subr.mxu0 0.0
    %4245 = vmatpush1.msra.mxu0 0.0
    %4246 = vmatprep.subr.mxu0 0.0
    %4247 = vmatpush1.msra.mxu0 0.0
    %4248 = vmatprep.subr.mxu0 0.0
    %4249 = vmatpush1.msra.mxu0 0.0
    %4250 = vmatprep.subr.mxu0 0.0
    %4251 = vmatpush1.msra.mxu0 0.0
    %4252 = vmatprep.subr.mxu0 0.0
    %4253 = vmatpush1.msra.mxu0 0.0
    %4254 = vmatprep.subr.mxu0 0.0
    %4255 = vmatpush1.msra.mxu0 0.0
    %4256 = vmatprep.subr.mxu0 0.0
    %4257 = vmatpush1.msra.mxu0 0.0
    %4258 = vmatprep.subr.mxu0 0.0
    %4259 = vmatpush1.msra.mxu0 0.0
    %4260 = vmatprep.subr.mxu0 0.0
    %4261 = vmatpush1.msra.mxu0 0.0
    %4262 = vmatprep.subr.mxu0 0.0
    %4263 = vmatpush1.msra.mxu0 0.0
    %4264 = vmatprep.subr.mxu0 0.0
    %4265 = vmatpush1.msra.mxu0 0.0
    %4266 = vmatprep.subr.mxu0 0.0
    %4267 = vmatpush1.msra.mxu0 0.0
    %4268 = vmatprep.subr.mxu0 0.0
    %4269 = vmatpush1.msra.mxu0 0.0
    %4270 = vmatprep.subr.mxu0 0.0
    %4271 = vmatpush1.msra.mxu0 0.0
    %4272 = vmatprep.subr.mxu0 0.0
    %4273 = vmatpush1.msra.mxu0 0.0
    %4274 = vmatprep.mubr.f32.mxu0 0.0
    %4275 = vmatmul.mubr.f32.gmra.mrb[0].mxu0 %v4205
    %v4276 = vpop.f32.mrb[0].mxu0
    %v4277 = vadd.f32 0.0, %v4276
    %v4278 = vpop.f32.mrb[0].mxu0
    %4279 = vmatprep.mubr.f32.mxu0 0.0
    %4280 = vmatmul.mubr.f32.gmra.mrb[0].mxu0 %v4208
    %v4281 = vpop.f32.mrb[0].mxu0
    %v4282 = vadd.f32 0.0, %v4281
    %v4283 = vpop.f32.mrb[0].mxu0
    %4284 = vdwg.mxu0
    %v4285 = vld [vmem:[%s10] sm:$0xff]
    %v4286 = vld [vmem:[%s10 + $0x8] sm:$0xff]
    %v4287 = vld [vmem:[%s10 + $0x10] sm:$0xff]
    %v4288 = vld [vmem:[%s10 + $0x18] sm:$0xff]
    %s4289 = scalar_lea.vmem %s8, 128
    %v4290 = vld [vmem:[%s4289] sm:$0xff]
    %v4291 = vld [vmem:[%s4289 + $0x8] sm:$0xff]
    %v4292 = vld [vmem:[%s4289 + $0x10] sm:$0xff]
    %v4293 = vld [vmem:[%s4289 + $0x18] sm:$0xff]
    %v4294 = vld [vmem:[%s4289 + $0x20] sm:$0xff]
    %v4295 = vld [vmem:[%s4289 + $0x28] sm:$0xff]
    %v4296 = vld [vmem:[%s4289 + $0x30] sm:$0xff]
    %v4297 = vld [vmem:[%s4289 + $0x38] sm:$0xff]
    %v4298 = vld [vmem:[%s4289 + $0x40] sm:$0xff]
    %v4299 = vld [vmem:[%s4289 + $0x48] sm:$0xff]
    %v4300 = vld [vmem:[%s4289 + $0x50] sm:$0xff]
    %v4301 = vld [vmem:[%s4289 + $0x58] sm:$0xff]
    %v4302 = vld [vmem:[%s4289 + $0x60] sm:$0xff]
    %v4303 = vld [vmem:[%s4289 + $0x68] sm:$0xff]
    %v4304 = vld [vmem:[%s4289 + $0x70] sm:$0xff]
    %v4305 = vld [vmem:[%s4289 + $0x78] sm:$0xff]
    %s4306 = scalar_lea.vmem %s9, 1
    %v4307 = vld [vmem:[%s4306] sm:$0x1]
    %v4309 = vlaneseq
    %v4310 = vshrl.u32 %v4309, 7
    %v4311 = vsub.s32 0, %v4310
    %v4312 = vrot.slane %v4307, %v4311
    %4314 = vmatprep.subr.mxu0 0.0
    %4315 = vmatpush1.msra.mxu0 %v4290
    %4316 = vmatprep.subr.mxu0 0.0
    %4317 = vmatpush1.msra.mxu0 %v4291
    %4318 = vmatprep.subr.mxu0 0.0
    %4319 = vmatpush1.msra.mxu0 %v4292
    %4320 = vmatprep.subr.mxu0 0.0
    %4321 = vmatpush1.msra.mxu0 %v4293
    %4322 = vmatprep.subr.mxu0 0.0
    %4323 = vmatpush1.msra.mxu0 %v4294
    %4324 = vmatprep.subr.mxu0 0.0
    %4325 = vmatpush1.msra.mxu0 %v4295
    %4326 = vmatprep.subr.mxu0 0.0
    %4327 = vmatpush1.msra.mxu0 %v4296
    %4328 = vmatprep.subr.mxu0 0.0
    %4329 = vmatpush1.msra.mxu0 %v4297
    %4330 = vmatprep.subr.mxu0 0.0
    %4331 = vmatpush1.msra.mxu0 %v4298
    %4332 = vmatprep.subr.mxu0 0.0
    %4333 = vmatpush1.msra.mxu0 %v4299
    %4334 = vmatprep.subr.mxu0 0.0
    %4335 = vmatpush1.msra.mxu0 %v4300
    %4336 = vmatprep.subr.mxu0 0.0
    %4337 = vmatpush1.msra.mxu0 %v4301
    %4338 = vmatprep.subr.mxu0 0.0
    %4339 = vmatpush1.msra.mxu0 %v4302
    %4340 = vmatprep.subr.mxu0 0.0
    %4341 = vmatpush1.msra.mxu0 %v4303
    %4342 = vmatprep.subr.mxu0 0.0
    %4343 = vmatpush1.msra.mxu0 %v4304
    %4344 = vmatprep.subr.mxu0 0.0
    %4345 = vmatpush1.msra.mxu0 %v4305
    %4346 = vmatprep.subr.mxu0 0.0
    %4347 = vmatpush1.msra.mxu0 0.0
    %4348 = vmatprep.subr.mxu0 0.0
    %4349 = vmatpush1.msra.mxu0 0.0
    %4350 = vmatprep.subr.mxu0 0.0
    %4351 = vmatpush1.msra.mxu0 0.0
    %4352 = vmatprep.subr.mxu0 0.0
    %4353 = vmatpush1.msra.mxu0 0.0
    %4354 = vmatprep.subr.mxu0 0.0
    %4355 = vmatpush1.msra.mxu0 0.0
    %4356 = vmatprep.subr.mxu0 0.0
    %4357 = vmatpush1.msra.mxu0 0.0
    %4358 = vmatprep.subr.mxu0 0.0
    %4359 = vmatpush1.msra.mxu0 0.0
    %4360 = vmatprep.subr.mxu0 0.0
    %4361 = vmatpush1.msra.mxu0 0.0
    %4362 = vmatprep.subr.mxu0 0.0
    %4363 = vmatpush1.msra.mxu0 0.0
    %4364 = vmatprep.subr.mxu0 0.0
    %4365 = vmatpush1.msra.mxu0 0.0
    %4366 = vmatprep.subr.mxu0 0.0
    %4367 = vmatpush1.msra.mxu0 0.0
    %4368 = vmatprep.subr.mxu0 0.0
    %4369 = vmatpush1.msra.mxu0 0.0
    %4370 = vmatprep.subr.mxu0 0.0
    %4371 = vmatpush1.msra.mxu0 0.0
    %4372 = vmatprep.subr.mxu0 0.0
    %4373 = vmatpush1.msra.mxu0 0.0
    %4374 = vmatprep.subr.mxu0 0.0
    %4375 = vmatpush1.msra.mxu0 0.0
    %4376 = vmatprep.subr.mxu0 0.0
    %4377 = vmatpush1.msra.mxu0 0.0
    %4378 = vmatprep.mubr.f32.mxu0 0.0
    %4379 = vmatmul.mubr.f32.gmra.mrb[0].mxu0 %v3573
    %v4380 = vpop.f32.mrb[0].mxu0
    %v4381 = vadd.f32 %v4312, %v4380
    %v4382 = vpop.f32.mrb[0].mxu0
    %4383 = vmatprep.mubr.f32.mxu0 0.0
    %4384 = vmatmul.mubr.f32.gmra.mrb[0].mxu0 %v3574
    %v4385 = vpop.f32.mrb[0].mxu0
    %v4386 = vadd.f32 %v4312, %v4385
    %v4387 = vpop.f32.mrb[0].mxu0
    %4388 = vmatprep.mubr.f32.mxu0 0.0
    %4389 = vmatmul.mubr.f32.gmra.mrb[0].mxu0 %v3575
    %v4390 = vpop.f32.mrb[0].mxu0
    %v4391 = vadd.f32 %v4312, %v4390
    %v4392 = vpop.f32.mrb[0].mxu0
    %4393 = vmatprep.mubr.f32.mxu0 0.0
    %4394 = vmatmul.mubr.f32.gmra.mrb[0].mxu0 %v3576
    %v4395 = vpop.f32.mrb[0].mxu0
    %v4396 = vadd.f32 %v4312, %v4395
    %v4397 = vpop.f32.mrb[0].mxu0
    %4398 = vdwg.mxu0
    %s4399 = scalar_lea.vmem %s8, 640
    %v4400 = vld [vmem:[%s4399] sm:$0xff]
    %v4401 = vld [vmem:[%s4399 + $0x8] sm:$0xff]
    %v4402 = vld [vmem:[%s4399 + $0x10] sm:$0xff]
    %v4403 = vld [vmem:[%s4399 + $0x18] sm:$0xff]
    %v4404 = vld [vmem:[%s4399 + $0x20] sm:$0xff]
    %v4405 = vld [vmem:[%s4399 + $0x28] sm:$0xff]
    %v4406 = vld [vmem:[%s4399 + $0x30] sm:$0xff]
    %v4407 = vld [vmem:[%s4399 + $0x38] sm:$0xff]
    %v4408 = vld [vmem:[%s4399 + $0x40] sm:$0xff]
    %v4409 = vld [vmem:[%s4399 + $0x48] sm:$0xff]
    %v4410 = vld [vmem:[%s4399 + $0x50] sm:$0xff]
    %v4411 = vld [vmem:[%s4399 + $0x58] sm:$0xff]
    %v4412 = vld [vmem:[%s4399 + $0x60] sm:$0xff]
    %v4413 = vld [vmem:[%s4399 + $0x68] sm:$0xff]
    %v4414 = vld [vmem:[%s4399 + $0x70] sm:$0xff]
    %v4415 = vld [vmem:[%s4399 + $0x78] sm:$0xff]
    %s4416 = scalar_lea.vmem %s9, 5
    %v4417 = vld [vmem:[%s4416] sm:$0x1]
    %v4419 = vlaneseq
    %v4420 = vshrl.u32 %v4419, 7
    %v4421 = vsub.s32 0, %v4420
    %v4422 = vrot.slane %v4417, %v4421
    %4424 = vmatprep.subr.mxu0 0.0
    %4425 = vmatpush1.msra.mxu0 %v4400
    %4426 = vmatprep.subr.mxu0 0.0
    %4427 = vmatpush1.msra.mxu0 %v4401
    %4428 = vmatprep.subr.mxu0 0.0
    %4429 = vmatpush1.msra.mxu0 %v4402
    %4430 = vmatprep.subr.mxu0 0.0
    %4431 = vmatpush1.msra.mxu0 %v4403
    %4432 = vmatprep.subr.mxu0 0.0
    %4433 = vmatpush1.msra.mxu0 %v4404
    %4434 = vmatprep.subr.mxu0 0.0
    %4435 = vmatpush1.msra.mxu0 %v4405
    %4436 = vmatprep.subr.mxu0 0.0
    %4437 = vmatpush1.msra.mxu0 %v4406
    %4438 = vmatprep.subr.mxu0 0.0
    %4439 = vmatpush1.msra.mxu0 %v4407
    %4440 = vmatprep.subr.mxu0 0.0
    %4441 = vmatpush1.msra.mxu0 %v4408
    %4442 = vmatprep.subr.mxu0 0.0
    %4443 = vmatpush1.msra.mxu0 %v4409
    %4444 = vmatprep.subr.mxu0 0.0
    %4445 = vmatpush1.msra.mxu0 %v4410
    %4446 = vmatprep.subr.mxu0 0.0
    %4447 = vmatpush1.msra.mxu0 %v4411
    %4448 = vmatprep.subr.mxu0 0.0
    %4449 = vmatpush1.msra.mxu0 %v4412
    %4450 = vmatprep.subr.mxu0 0.0
    %4451 = vmatpush1.msra.mxu0 %v4413
    %4452 = vmatprep.subr.mxu0 0.0
    %4453 = vmatpush1.msra.mxu0 %v4414
    %4454 = vmatprep.subr.mxu0 0.0
    %4455 = vmatpush1.msra.mxu0 %v4415
    %4456 = vmatprep.subr.mxu0 0.0
    %4457 = vmatpush1.msra.mxu0 0.0
    %4458 = vmatprep.subr.mxu0 0.0
    %4459 = vmatpush1.msra.mxu0 0.0
    %4460 = vmatprep.subr.mxu0 0.0
    %4461 = vmatpush1.msra.mxu0 0.0
    %4462 = vmatprep.subr.mxu0 0.0
    %4463 = vmatpush1.msra.mxu0 0.0
    %4464 = vmatprep.subr.mxu0 0.0
    %4465 = vmatpush1.msra.mxu0 0.0
    %4466 = vmatprep.subr.mxu0 0.0
    %4467 = vmatpush1.msra.mxu0 0.0
    %4468 = vmatprep.subr.mxu0 0.0
    %4469 = vmatpush1.msra.mxu0 0.0
    %4470 = vmatprep.subr.mxu0 0.0
    %4471 = vmatpush1.msra.mxu0 0.0
    %4472 = vmatprep.subr.mxu0 0.0
    %4473 = vmatpush1.msra.mxu0 0.0
    %4474 = vmatprep.subr.mxu0 0.0
    %4475 = vmatpush1.msra.mxu0 0.0
    %4476 = vmatprep.subr.mxu0 0.0
    %4477 = vmatpush1.msra.mxu0 0.0
    %4478 = vmatprep.subr.mxu0 0.0
    %4479 = vmatpush1.msra.mxu0 0.0
    %4480 = vmatprep.subr.mxu0 0.0
    %4481 = vmatpush1.msra.mxu0 0.0
    %4482 = vmatprep.subr.mxu0 0.0
    %4483 = vmatpush1.msra.mxu0 0.0
    %4484 = vmatprep.subr.mxu0 0.0
    %4485 = vmatpush1.msra.mxu0 0.0
    %4486 = vmatprep.subr.mxu0 0.0
    %4487 = vmatpush1.msra.mxu0 0.0
    %4488 = vmatprep.mubr.f32.mxu0 0.0
    %4489 = vmatmul.mubr.f32.gmra.mrb[0].mxu0 %v203
    %v4490 = vpop.f32.mrb[0].mxu0
    %v4491 = vadd.f32 %v4422, %v4490
    %v4492 = vpop.f32.mrb[0].mxu0
    %4493 = vmatprep.mubr.f32.mxu0 0.0
    %4494 = vmatmul.mubr.f32.gmra.mrb[0].mxu0 %v204
    %v4495 = vpop.f32.mrb[0].mxu0
    %v4496 = vadd.f32 %v4422, %v4495
    %v4497 = vpop.f32.mrb[0].mxu0
    %4498 = vmatprep.mubr.f32.mxu0 0.0
    %4499 = vmatmul.mubr.f32.gmra.mrb[0].mxu0 %v205
    %v4500 = vpop.f32.mrb[0].mxu0
    %v4501 = vadd.f32 %v4422, %v4500
    %v4502 = vpop.f32.mrb[0].mxu0
    %4503 = vmatprep.mubr.f32.mxu0 0.0
    %4504 = vmatmul.mubr.f32.gmra.mrb[0].mxu0 %v206
    %v4505 = vpop.f32.mrb[0].mxu0
    %v4506 = vadd.f32 %v4422, %v4505
    %v4507 = vpop.f32.mrb[0].mxu0
    %4508 = vdwg.mxu0
    %s4509 = scalar_lea.vmem %s8, 1152
    %v4510 = vld [vmem:[%s4509] sm:$0xff]
    %v4511 = vld [vmem:[%s4509 + $0x8] sm:$0xff]
    %v4512 = vld [vmem:[%s4509 + $0x10] sm:$0xff]
    %v4513 = vld [vmem:[%s4509 + $0x18] sm:$0xff]
    %v4514 = vld [vmem:[%s4509 + $0x20] sm:$0xff]
    %v4515 = vld [vmem:[%s4509 + $0x28] sm:$0xff]
    %v4516 = vld [vmem:[%s4509 + $0x30] sm:$0xff]
    %v4517 = vld [vmem:[%s4509 + $0x38] sm:$0xff]
    %v4518 = vld [vmem:[%s4509 + $0x40] sm:$0xff]
    %v4519 = vld [vmem:[%s4509 + $0x48] sm:$0xff]
    %v4520 = vld [vmem:[%s4509 + $0x50] sm:$0xff]
    %v4521 = vld [vmem:[%s4509 + $0x58] sm:$0xff]
    %v4522 = vld [vmem:[%s4509 + $0x60] sm:$0xff]
    %v4523 = vld [vmem:[%s4509 + $0x68] sm:$0xff]
    %v4524 = vld [vmem:[%s4509 + $0x70] sm:$0xff]
    %v4525 = vld [vmem:[%s4509 + $0x78] sm:$0xff]
    %s4526 = scalar_lea.vmem %s9, 9
    %v4527 = vld [vmem:[%s4526] sm:$0x1]
    %v4529 = vlaneseq
    %v4530 = vshrl.u32 %v4529, 7
    %v4531 = vsub.s32 0, %v4530
    %v4532 = vrot.slane %v4527, %v4531
    %4534 = vmatprep.subr.mxu0 0.0
    %4535 = vmatpush1.msra.mxu0 %v4510
    %4536 = vmatprep.subr.mxu0 0.0
    %4537 = vmatpush1.msra.mxu0 %v4511
    %4538 = vmatprep.subr.mxu0 0.0
    %4539 = vmatpush1.msra.mxu0 %v4512
    %4540 = vmatprep.subr.mxu0 0.0
    %4541 = vmatpush1.msra.mxu0 %v4513
    %4542 = vmatprep.subr.mxu0 0.0
    %4543 = vmatpush1.msra.mxu0 %v4514
    %4544 = vmatprep.subr.mxu0 0.0
    %4545 = vmatpush1.msra.mxu0 %v4515
    %4546 = vmatprep.subr.mxu0 0.0
    %4547 = vmatpush1.msra.mxu0 %v4516
    %4548 = vmatprep.subr.mxu0 0.0
    %4549 = vmatpush1.msra.mxu0 %v4517
    %4550 = vmatprep.subr.mxu0 0.0
    %4551 = vmatpush1.msra.mxu0 %v4518
    %4552 = vmatprep.subr.mxu0 0.0
    %4553 = vmatpush1.msra.mxu0 %v4519
    %4554 = vmatprep.subr.mxu0 0.0
    %4555 = vmatpush1.msra.mxu0 %v4520
    %4556 = vmatprep.subr.mxu0 0.0
    %4557 = vmatpush1.msra.mxu0 %v4521
    %4558 = vmatprep.subr.mxu0 0.0
    %4559 = vmatpush1.msra.mxu0 %v4522
    %4560 = vmatprep.subr.mxu0 0.0
    %4561 = vmatpush1.msra.mxu0 %v4523
    %4562 = vmatprep.subr.mxu0 0.0
    %4563 = vmatpush1.msra.mxu0 %v4524
    %4564 = vmatprep.subr.mxu0 0.0
    %4565 = vmatpush1.msra.mxu0 %v4525
    %4566 = vmatprep.subr.mxu0 0.0
    %4567 = vmatpush1.msra.mxu0 0.0
    %4568 = vmatprep.subr.mxu0 0.0
    %4569 = vmatpush1.msra.mxu0 0.0
    %4570 = vmatprep.subr.mxu0 0.0
    %4571 = vmatpush1.msra.mxu0 0.0
    %4572 = vmatprep.subr.mxu0 0.0
    %4573 = vmatpush1.msra.mxu0 0.0
    %4574 = vmatprep.subr.mxu0 0.0
    %4575 = vmatpush1.msra.mxu0 0.0
    %4576 = vmatprep.subr.mxu0 0.0
    %4577 = vmatpush1.msra.mxu0 0.0
    %4578 = vmatprep.subr.mxu0 0.0
    %4579 = vmatpush1.msra.mxu0 0.0
    %4580 = vmatprep.subr.mxu0 0.0
    %4581 = vmatpush1.msra.mxu0 0.0
    %4582 = vmatprep.subr.mxu0 0.0
    %4583 = vmatpush1.msra.mxu0 0.0
    %4584 = vmatprep.subr.mxu0 0.0
    %4585 = vmatpush1.msra.mxu0 0.0
    %4586 = vmatprep.subr.mxu0 0.0
    %4587 = vmatpush1.msra.mxu0 0.0
    %4588 = vmatprep.subr.mxu0 0.0
    %4589 = vmatpush1.msra.mxu0 0.0
    %4590 = vmatprep.subr.mxu0 0.0
    %4591 = vmatpush1.msra.mxu0 0.0
    %4592 = vmatprep.subr.mxu0 0.0
    %4593 = vmatpush1.msra.mxu0 0.0
    %4594 = vmatprep.subr.mxu0 0.0
    %4595 = vmatpush1.msra.mxu0 0.0
    %4596 = vmatprep.subr.mxu0 0.0
    %4597 = vmatpush1.msra.mxu0 0.0
    %4598 = vmatprep.mubr.f32.mxu0 0.0
    %4599 = vmatmul.mubr.f32.gmra.mrb[0].mxu0 %v203
    %v4600 = vpop.f32.mrb[0].mxu0
    %v4601 = vadd.f32 %v4532, %v4600
    %v4602 = vpop.f32.mrb[0].mxu0
    %4603 = vmatprep.mubr.f32.mxu0 0.0
    %4604 = vmatmul.mubr.f32.gmra.mrb[0].mxu0 %v204
    %v4605 = vpop.f32.mrb[0].mxu0
    %v4606 = vadd.f32 %v4532, %v4605
    %v4607 = vpop.f32.mrb[0].mxu0
    %4608 = vmatprep.mubr.f32.mxu0 0.0
    %4609 = vmatmul.mubr.f32.gmra.mrb[0].mxu0 %v205
    %v4610 = vpop.f32.mrb[0].mxu0
    %v4611 = vadd.f32 %v4532, %v4610
    %v4612 = vpop.f32.mrb[0].mxu0
    %4613 = vmatprep.mubr.f32.mxu0 0.0
    %4614 = vmatmul.mubr.f32.gmra.mrb[0].mxu0 %v206
    %v4615 = vpop.f32.mrb[0].mxu0
    %v4616 = vadd.f32 %v4532, %v4615
    %v4617 = vpop.f32.mrb[0].mxu0
    %4618 = vdwg.mxu0
    %v4620 = vsel %vm540, %v4381, 0
    %v4623 = vsel %vm540, %v4386, 0
    %v4626 = vsel %vm540, %v4491, 0
    %v4629 = vsel %vm540, %v4496, 0
    %4631 = vmatprep.subr.mxu0 0.0
    %4632 = vmatpush1.xpose.msra.mxu0 %v4626
    %4633 = vmatprep.subr.mxu0 0.0
    %4634 = vmatpush1.xpose.msra.mxu0 %v4629
    %4635 = vmatprep.subr.mxu0 0.0
    %4636 = vmatpush1.xpose.msra.mxu0 0.0
    %4637 = vmatprep.subr.mxu0 0.0
    %4638 = vmatpush1.xpose.msra.mxu0 0.0
    %4639 = vmatprep.subr.mxu0 0.0
    %4640 = vmatpush1.xpose.msra.mxu0 0.0
    %4641 = vmatprep.subr.mxu0 0.0
    %4642 = vmatpush1.xpose.msra.mxu0 0.0
    %4643 = vmatprep.subr.mxu0 0.0
    %4644 = vmatpush1.xpose.msra.mxu0 0.0
    %4645 = vmatprep.subr.mxu0 0.0
    %4646 = vmatpush1.xpose.msra.mxu0 0.0
    %4647 = vmatprep.subr.mxu0 0.0
    %4648 = vmatpush1.xpose.msra.mxu0 0.0
    %4649 = vmatprep.subr.mxu0 0.0
    %4650 = vmatpush1.xpose.msra.mxu0 0.0
    %4651 = vmatprep.subr.mxu0 0.0
    %4652 = vmatpush1.xpose.msra.mxu0 0.0
    %4653 = vmatprep.subr.mxu0 0.0
    %4654 = vmatpush1.xpose.msra.mxu0 0.0
    %4655 = vmatprep.subr.mxu0 0.0
    %4656 = vmatpush1.xpose.msra.mxu0 0.0
    %4657 = vmatprep.subr.mxu0 0.0
    %4658 = vmatpush1.xpose.msra.mxu0 0.0
    %4659 = vmatprep.subr.mxu0 0.0
    %4660 = vmatpush1.xpose.msra.mxu0 0.0
    %4661 = vmatprep.subr.mxu0 0.0
    %4662 = vmatpush1.xpose.msra.mxu0 0.0
    %4663 = vmatprep.subr.mxu0 0.0
    %4664 = vmatpush1.xpose.msra.mxu0 0.0
    %4665 = vmatprep.subr.mxu0 0.0
    %4666 = vmatpush1.xpose.msra.mxu0 0.0
    %4667 = vmatprep.subr.mxu0 0.0
    %4668 = vmatpush1.xpose.msra.mxu0 0.0
    %4669 = vmatprep.subr.mxu0 0.0
    %4670 = vmatpush1.xpose.msra.mxu0 0.0
    %4671 = vmatprep.subr.mxu0 0.0
    %4672 = vmatpush1.xpose.msra.mxu0 0.0
    %4673 = vmatprep.subr.mxu0 0.0
    %4674 = vmatpush1.xpose.msra.mxu0 0.0
    %4675 = vmatprep.subr.mxu0 0.0
    %4676 = vmatpush1.xpose.msra.mxu0 0.0
    %4677 = vmatprep.subr.mxu0 0.0
    %4678 = vmatpush1.xpose.msra.mxu0 0.0
    %4679 = vmatprep.subr.mxu0 0.0
    %4680 = vmatpush1.xpose.msra.mxu0 0.0
    %4681 = vmatprep.subr.mxu0 0.0
    %4682 = vmatpush1.xpose.msra.mxu0 0.0
    %4683 = vmatprep.subr.mxu0 0.0
    %4684 = vmatpush1.xpose.msra.mxu0 0.0
    %4685 = vmatprep.subr.mxu0 0.0
    %4686 = vmatpush1.xpose.msra.mxu0 0.0
    %4687 = vmatprep.subr.mxu0 0.0
    %4688 = vmatpush1.xpose.msra.mxu0 0.0
    %4689 = vmatprep.subr.mxu0 0.0
    %4690 = vmatpush1.xpose.msra.mxu0 0.0
    %4691 = vmatprep.subr.mxu0 0.0
    %4692 = vmatpush1.xpose.msra.mxu0 0.0
    %4693 = vmatprep.subr.mxu0 0.0
    %4694 = vmatpush1.xpose.msra.mxu0 0.0
    %4695 = vmatprep.mubr.f32.mxu0 0.0
    %4696 = vmatmul.mubr.f32.gmra.mrb[0].mxu0 %v4620
    %v4697 = vpop.f32.mrb[0].mxu0
    %v4698 = vadd.f32 0.0, %v4697
    %v4699 = vpop.f32.mrb[0].mxu0
    %4700 = vmatprep.mubr.f32.mxu0 0.0
    %4701 = vmatmul.mubr.f32.gmra.mrb[0].mxu0 %v4623
    %v4702 = vpop.f32.mrb[0].mxu0
    %v4703 = vadd.f32 0.0, %v4702
    %v4704 = vpop.f32.mrb[0].mxu0
    %4705 = vdwg.mxu0
    %v4707 = vsel %vm540, %v4391, 0
    %v4710 = vsel %vm540, %v4396, 0
    %v4713 = vsel %vm540, %v4501, 0
    %v4716 = vsel %vm540, %v4506, 0
    %4718 = vmatprep.subr.mxu0 0.0
    %4719 = vmatpush1.xpose.msra.mxu0 %v4713
    %4720 = vmatprep.subr.mxu0 0.0
    %4721 = vmatpush1.xpose.msra.mxu0 %v4716
    %4722 = vmatprep.subr.mxu0 0.0
    %4723 = vmatpush1.xpose.msra.mxu0 0.0
    %4724 = vmatprep.subr.mxu0 0.0
    %4725 = vmatpush1.xpose.msra.mxu0 0.0
    %4726 = vmatprep.subr.mxu0 0.0
    %4727 = vmatpush1.xpose.msra.mxu0 0.0
    %4728 = vmatprep.subr.mxu0 0.0
    %4729 = vmatpush1.xpose.msra.mxu0 0.0
    %4730 = vmatprep.subr.mxu0 0.0
    %4731 = vmatpush1.xpose.msra.mxu0 0.0
    %4732 = vmatprep.subr.mxu0 0.0
    %4733 = vmatpush1.xpose.msra.mxu0 0.0
    %4734 = vmatprep.subr.mxu0 0.0
    %4735 = vmatpush1.xpose.msra.mxu0 0.0
    %4736 = vmatprep.subr.mxu0 0.0
    %4737 = vmatpush1.xpose.msra.mxu0 0.0
    %4738 = vmatprep.subr.mxu0 0.0
    %4739 = vmatpush1.xpose.msra.mxu0 0.0
    %4740 = vmatprep.subr.mxu0 0.0
    %4741 = vmatpush1.xpose.msra.mxu0 0.0
    %4742 = vmatprep.subr.mxu0 0.0
    %4743 = vmatpush1.xpose.msra.mxu0 0.0
    %4744 = vmatprep.subr.mxu0 0.0
    %4745 = vmatpush1.xpose.msra.mxu0 0.0
    %4746 = vmatprep.subr.mxu0 0.0
    %4747 = vmatpush1.xpose.msra.mxu0 0.0
    %4748 = vmatprep.subr.mxu0 0.0
    %4749 = vmatpush1.xpose.msra.mxu0 0.0
    %4750 = vmatprep.subr.mxu0 0.0
    %4751 = vmatpush1.xpose.msra.mxu0 0.0
    %4752 = vmatprep.subr.mxu0 0.0
    %4753 = vmatpush1.xpose.msra.mxu0 0.0
    %4754 = vmatprep.subr.mxu0 0.0
    %4755 = vmatpush1.xpose.msra.mxu0 0.0
    %4756 = vmatprep.subr.mxu0 0.0
    %4757 = vmatpush1.xpose.msra.mxu0 0.0
    %4758 = vmatprep.subr.mxu0 0.0
    %4759 = vmatpush1.xpose.msra.mxu0 0.0
    %4760 = vmatprep.subr.mxu0 0.0
    %4761 = vmatpush1.xpose.msra.mxu0 0.0
    %4762 = vmatprep.subr.mxu0 0.0
    %4763 = vmatpush1.xpose.msra.mxu0 0.0
    %4764 = vmatprep.subr.mxu0 0.0
    %4765 = vmatpush1.xpose.msra.mxu0 0.0
    %4766 = vmatprep.subr.mxu0 0.0
    %4767 = vmatpush1.xpose.msra.mxu0 0.0
    %4768 = vmatprep.subr.mxu0 0.0
    %4769 = vmatpush1.xpose.msra.mxu0 0.0
    %4770 = vmatprep.subr.mxu0 0.0
    %4771 = vmatpush1.xpose.msra.mxu0 0.0
    %4772 = vmatprep.subr.mxu0 0.0
    %4773 = vmatpush1.xpose.msra.mxu0 0.0
    %4774 = vmatprep.subr.mxu0 0.0
    %4775 = vmatpush1.xpose.msra.mxu0 0.0
    %4776 = vmatprep.subr.mxu0 0.0
    %4777 = vmatpush1.xpose.msra.mxu0 0.0
    %4778 = vmatprep.subr.mxu0 0.0
    %4779 = vmatpush1.xpose.msra.mxu0 0.0
    %4780 = vmatprep.subr.mxu0 0.0
    %4781 = vmatpush1.xpose.msra.mxu0 0.0
    %4782 = vmatprep.mubr.f32.mxu0 0.0
    %4783 = vmatmul.mubr.f32.gmra.mrb[0].mxu0 %v4707
    %v4784 = vpop.f32.mrb[0].mxu0
    %v4785 = vadd.f32 0.0, %v4784
    %v4786 = vpop.f32.mrb[0].mxu0
    %4787 = vmatprep.mubr.f32.mxu0 0.0
    %4788 = vmatmul.mubr.f32.gmra.mrb[0].mxu0 %v4710
    %v4789 = vpop.f32.mrb[0].mxu0
    %v4790 = vadd.f32 0.0, %v4789
    %v4791 = vpop.f32.mrb[0].mxu0
    %4792 = vdwg.mxu0
    %v4793 = vsel %vm723, %v4698, -inf
    %4794 = vmax.xlane.f32.xlu0 %v4793
    %v4795 = vpop.xlane.xlu0 %4794
    %v4796 = vsel %vm723, %v4703, -inf
    %4797 = vmax.xlane.f32.xlu0 %v4796
    %v4798 = vpop.xlane.xlu0 %4797
    %v4799 = vsel %vm723, %v4785, -inf
    %4800 = vmax.xlane.f32.xlu0 %v4799
    %v4801 = vpop.xlane.xlu0 %4800
    %v4802 = vsel %vm723, %v4790, -inf
    %4803 = vmax.xlane.f32.xlu0 %v4802
    %v4804 = vpop.xlane.xlu0 %4803
    %v4805 = vsub.f32 %v4698, %v4795
    %v4806 = vsub.f32 %v4703, %v4798
    %v4807 = vsub.f32 %v4785, %v4801
    %v4808 = vsub.f32 %v4790, %v4804
    %v4809 = vmul.f32 %v4805, 1.442695
    %v4810 = vpow.pop %v4809
    %v4811 = vmul.f32 %v4806, 1.442695
    %v4812 = vpow.pop %v4811
    %v4813 = vmul.f32 %v4807, 1.442695
    %v4814 = vpow.pop %v4813
    %v4815 = vmul.f32 %v4808, 1.442695
    %v4816 = vpow.pop %v4815
    %v4817 = vsel %vm723, %v4810, 0.0
    %4818 = vadd.xlane.f32.xlu0 %v4817
    %v4819 = vpop.xlane.xlu0 %4818
    %v4820 = vsel %vm723, %v4812, 0.0
    %4821 = vadd.xlane.f32.xlu0 %v4820
    %v4822 = vpop.xlane.xlu0 %4821
    %v4823 = vsel %vm723, %v4814, 0.0
    %4824 = vadd.xlane.f32.xlu0 %v4823
    %v4825 = vpop.xlane.xlu0 %4824
    %v4826 = vsel %vm723, %v4816, 0.0
    %4827 = vadd.xlane.f32.xlu0 %v4826
    %v4828 = vpop.xlane.xlu0 %4827
    %v4829 = vrcp.pop %v4819
    %v4830 = vrcp.pop %v4822
    %v4831 = vrcp.pop %v4825
    %v4832 = vrcp.pop %v4828
    %v4833 = vmul.f32 %v4810, %v4829
    %v4834 = vmul.f32 %v4812, %v4830
    %v4835 = vmul.f32 %v4814, %v4831
    %v4836 = vmul.f32 %v4816, %v4832
    %v4838 = vsel %vm723, %v4833, 0
    %v4841 = vsel %vm723, %v4834, 0
    %4843 = vmatprep.subr.mxu0 0.0
    %4844 = vmatpush1.msra.mxu0 %v4601
    %4845 = vmatprep.subr.mxu0 0.0
    %4846 = vmatpush1.msra.mxu0 %v4606
    %4847 = vmatprep.subr.mxu0 0.0
    %4848 = vmatpush1.msra.mxu0 0.0
    %4849 = vmatprep.subr.mxu0 0.0
    %4850 = vmatpush1.msra.mxu0 0.0
    %4851 = vmatprep.subr.mxu0 0.0
    %4852 = vmatpush1.msra.mxu0 0.0
    %4853 = vmatprep.subr.mxu0 0.0
    %4854 = vmatpush1.msra.mxu0 0.0
    %4855 = vmatprep.subr.mxu0 0.0
    %4856 = vmatpush1.msra.mxu0 0.0
    %4857 = vmatprep.subr.mxu0 0.0
    %4858 = vmatpush1.msra.mxu0 0.0
    %4859 = vmatprep.subr.mxu0 0.0
    %4860 = vmatpush1.msra.mxu0 0.0
    %4861 = vmatprep.subr.mxu0 0.0
    %4862 = vmatpush1.msra.mxu0 0.0
    %4863 = vmatprep.subr.mxu0 0.0
    %4864 = vmatpush1.msra.mxu0 0.0
    %4865 = vmatprep.subr.mxu0 0.0
    %4866 = vmatpush1.msra.mxu0 0.0
    %4867 = vmatprep.subr.mxu0 0.0
    %4868 = vmatpush1.msra.mxu0 0.0
    %4869 = vmatprep.subr.mxu0 0.0
    %4870 = vmatpush1.msra.mxu0 0.0
    %4871 = vmatprep.subr.mxu0 0.0
    %4872 = vmatpush1.msra.mxu0 0.0
    %4873 = vmatprep.subr.mxu0 0.0
    %4874 = vmatpush1.msra.mxu0 0.0
    %4875 = vmatprep.subr.mxu0 0.0
    %4876 = vmatpush1.msra.mxu0 0.0
    %4877 = vmatprep.subr.mxu0 0.0
    %4878 = vmatpush1.msra.mxu0 0.0
    %4879 = vmatprep.subr.mxu0 0.0
    %4880 = vmatpush1.msra.mxu0 0.0
    %4881 = vmatprep.subr.mxu0 0.0
    %4882 = vmatpush1.msra.mxu0 0.0
    %4883 = vmatprep.subr.mxu0 0.0
    %4884 = vmatpush1.msra.mxu0 0.0
    %4885 = vmatprep.subr.mxu0 0.0
    %4886 = vmatpush1.msra.mxu0 0.0
    %4887 = vmatprep.subr.mxu0 0.0
    %4888 = vmatpush1.msra.mxu0 0.0
    %4889 = vmatprep.subr.mxu0 0.0
    %4890 = vmatpush1.msra.mxu0 0.0
    %4891 = vmatprep.subr.mxu0 0.0
    %4892 = vmatpush1.msra.mxu0 0.0
    %4893 = vmatprep.subr.mxu0 0.0
    %4894 = vmatpush1.msra.mxu0 0.0
    %4895 = vmatprep.subr.mxu0 0.0
    %4896 = vmatpush1.msra.mxu0 0.0
    %4897 = vmatprep.subr.mxu0 0.0
    %4898 = vmatpush1.msra.mxu0 0.0
    %4899 = vmatprep.subr.mxu0 0.0
    %4900 = vmatpush1.msra.mxu0 0.0
    %4901 = vmatprep.subr.mxu0 0.0
    %4902 = vmatpush1.msra.mxu0 0.0
    %4903 = vmatprep.subr.mxu0 0.0
    %4904 = vmatpush1.msra.mxu0 0.0
    %4905 = vmatprep.subr.mxu0 0.0
    %4906 = vmatpush1.msra.mxu0 0.0
    %4907 = vmatprep.mubr.f32.mxu0 0.0
    %4908 = vmatmul.mubr.f32.gmra.mrb[0].mxu0 %v4838
    %v4909 = vpop.f32.mrb[0].mxu0
    %v4910 = vadd.f32 0.0, %v4909
    %v4911 = vpop.f32.mrb[0].mxu0
    %4912 = vmatprep.mubr.f32.mxu0 0.0
    %4913 = vmatmul.mubr.f32.gmra.mrb[0].mxu0 %v4841
    %v4914 = vpop.f32.mrb[0].mxu0
    %v4915 = vadd.f32 0.0, %v4914
    %v4916 = vpop.f32.mrb[0].mxu0
    %4917 = vdwg.mxu0
    %v4919 = vsel %vm723, %v4835, 0
    %v4922 = vsel %vm723, %v4836, 0
    %4924 = vmatprep.subr.mxu0 0.0
    %4925 = vmatpush1.msra.mxu0 %v4611
    %4926 = vmatprep.subr.mxu0 0.0
    %4927 = vmatpush1.msra.mxu0 %v4616
    %4928 = vmatprep.subr.mxu0 0.0
    %4929 = vmatpush1.msra.mxu0 0.0
    %4930 = vmatprep.subr.mxu0 0.0
    %4931 = vmatpush1.msra.mxu0 0.0
    %4932 = vmatprep.subr.mxu0 0.0
    %4933 = vmatpush1.msra.mxu0 0.0
    %4934 = vmatprep.subr.mxu0 0.0
    %4935 = vmatpush1.msra.mxu0 0.0
    %4936 = vmatprep.subr.mxu0 0.0
    %4937 = vmatpush1.msra.mxu0 0.0
    %4938 = vmatprep.subr.mxu0 0.0
    %4939 = vmatpush1.msra.mxu0 0.0
    %4940 = vmatprep.subr.mxu0 0.0
    %4941 = vmatpush1.msra.mxu0 0.0
    %4942 = vmatprep.subr.mxu0 0.0
    %4943 = vmatpush1.msra.mxu0 0.0
    %4944 = vmatprep.subr.mxu0 0.0
    %4945 = vmatpush1.msra.mxu0 0.0
    %4946 = vmatprep.subr.mxu0 0.0
    %4947 = vmatpush1.msra.mxu0 0.0
    %4948 = vmatprep.subr.mxu0 0.0
    %4949 = vmatpush1.msra.mxu0 0.0
    %4950 = vmatprep.subr.mxu0 0.0
    %4951 = vmatpush1.msra.mxu0 0.0
    %4952 = vmatprep.subr.mxu0 0.0
    %4953 = vmatpush1.msra.mxu0 0.0
    %4954 = vmatprep.subr.mxu0 0.0
    %4955 = vmatpush1.msra.mxu0 0.0
    %4956 = vmatprep.subr.mxu0 0.0
    %4957 = vmatpush1.msra.mxu0 0.0
    %4958 = vmatprep.subr.mxu0 0.0
    %4959 = vmatpush1.msra.mxu0 0.0
    %4960 = vmatprep.subr.mxu0 0.0
    %4961 = vmatpush1.msra.mxu0 0.0
    %4962 = vmatprep.subr.mxu0 0.0
    %4963 = vmatpush1.msra.mxu0 0.0
    %4964 = vmatprep.subr.mxu0 0.0
    %4965 = vmatpush1.msra.mxu0 0.0
    %4966 = vmatprep.subr.mxu0 0.0
    %4967 = vmatpush1.msra.mxu0 0.0
    %4968 = vmatprep.subr.mxu0 0.0
    %4969 = vmatpush1.msra.mxu0 0.0
    %4970 = vmatprep.subr.mxu0 0.0
    %4971 = vmatpush1.msra.mxu0 0.0
    %4972 = vmatprep.subr.mxu0 0.0
    %4973 = vmatpush1.msra.mxu0 0.0
    %4974 = vmatprep.subr.mxu0 0.0
    %4975 = vmatpush1.msra.mxu0 0.0
    %4976 = vmatprep.subr.mxu0 0.0
    %4977 = vmatpush1.msra.mxu0 0.0
    %4978 = vmatprep.subr.mxu0 0.0
    %4979 = vmatpush1.msra.mxu0 0.0
    %4980 = vmatprep.subr.mxu0 0.0
    %4981 = vmatpush1.msra.mxu0 0.0
    %4982 = vmatprep.subr.mxu0 0.0
    %4983 = vmatpush1.msra.mxu0 0.0
    %4984 = vmatprep.subr.mxu0 0.0
    %4985 = vmatpush1.msra.mxu0 0.0
    %4986 = vmatprep.subr.mxu0 0.0
    %4987 = vmatpush1.msra.mxu0 0.0
    %4988 = vmatprep.mubr.f32.mxu0 0.0
    %4989 = vmatmul.mubr.f32.gmra.mrb[0].mxu0 %v4919
    %v4990 = vpop.f32.mrb[0].mxu0
    %v4991 = vadd.f32 0.0, %v4990
    %v4992 = vpop.f32.mrb[0].mxu0
    %4993 = vmatprep.mubr.f32.mxu0 0.0
    %4994 = vmatmul.mubr.f32.gmra.mrb[0].mxu0 %v4922
    %v4995 = vpop.f32.mrb[0].mxu0
    %v4996 = vadd.f32 0.0, %v4995
    %v4997 = vpop.f32.mrb[0].mxu0
    %4998 = vdwg.mxu0
    %s4999 = scalar_lea.vmem %s10, 32
    %v5000 = vld [vmem:[%s4999] sm:$0xff]
    %v5001 = vld [vmem:[%s4999 + $0x8] sm:$0xff]
    %v5002 = vld [vmem:[%s4999 + $0x10] sm:$0xff]
    %v5003 = vld [vmem:[%s4999 + $0x18] sm:$0xff]
    %v5005 = vsel %vm540, %v4910, 0
    %v5008 = vsel %vm540, %v4915, 0
    %v5011 = vsel %vm540, %v4991, 0
    %v5014 = vsel %vm540, %v4996, 0
    %5016 = vmatprep.subr.mxu0 0.0
    %5017 = vmatpush1.msra.mxu0 %v5000
    %5018 = vmatprep.subr.mxu0 0.0
    %5019 = vmatpush1.msra.mxu0 %v5001
    %5020 = vmatprep.subr.mxu0 0.0
    %5021 = vmatpush1.msra.mxu0 %v5002
    %5022 = vmatprep.subr.mxu0 0.0
    %5023 = vmatpush1.msra.mxu0 %v5003
    %5024 = vmatprep.subr.mxu0 0.0
    %5025 = vmatpush1.msra.mxu0 0.0
    %5026 = vmatprep.subr.mxu0 0.0
    %5027 = vmatpush1.msra.mxu0 0.0
    %5028 = vmatprep.subr.mxu0 0.0
    %5029 = vmatpush1.msra.mxu0 0.0
    %5030 = vmatprep.subr.mxu0 0.0
    %5031 = vmatpush1.msra.mxu0 0.0
    %5032 = vmatprep.subr.mxu0 0.0
    %5033 = vmatpush1.msra.mxu0 0.0
    %5034 = vmatprep.subr.mxu0 0.0
    %5035 = vmatpush1.msra.mxu0 0.0
    %5036 = vmatprep.subr.mxu0 0.0
    %5037 = vmatpush1.msra.mxu0 0.0
    %5038 = vmatprep.subr.mxu0 0.0
    %5039 = vmatpush1.msra.mxu0 0.0
    %5040 = vmatprep.subr.mxu0 0.0
    %5041 = vmatpush1.msra.mxu0 0.0
    %5042 = vmatprep.subr.mxu0 0.0
    %5043 = vmatpush1.msra.mxu0 0.0
    %5044 = vmatprep.subr.mxu0 0.0
    %5045 = vmatpush1.msra.mxu0 0.0
    %5046 = vmatprep.subr.mxu0 0.0
    %5047 = vmatpush1.msra.mxu0 0.0
    %5048 = vmatprep.subr.mxu0 0.0
    %5049 = vmatpush1.msra.mxu0 0.0
    %5050 = vmatprep.subr.mxu0 0.0
    %5051 = vmatpush1.msra.mxu0 0.0
    %5052 = vmatprep.subr.mxu0 0.0
    %5053 = vmatpush1.msra.mxu0 0.0
    %5054 = vmatprep.subr.mxu0 0.0
    %5055 = vmatpush1.msra.mxu0 0.0
    %5056 = vmatprep.subr.mxu0 0.0
    %5057 = vmatpush1.msra.mxu0 0.0
    %5058 = vmatprep.subr.mxu0 0.0
    %5059 = vmatpush1.msra.mxu0 0.0
    %5060 = vmatprep.subr.mxu0 0.0
    %5061 = vmatpush1.msra.mxu0 0.0
    %5062 = vmatprep.subr.mxu0 0.0
    %5063 = vmatpush1.msra.mxu0 0.0
    %5064 = vmatprep.subr.mxu0 0.0
    %5065 = vmatpush1.msra.mxu0 0.0
    %5066 = vmatprep.subr.mxu0 0.0
    %5067 = vmatpush1.msra.mxu0 0.0
    %5068 = vmatprep.subr.mxu0 0.0
    %5069 = vmatpush1.msra.mxu0 0.0
    %5070 = vmatprep.subr.mxu0 0.0
    %5071 = vmatpush1.msra.mxu0 0.0
    %5072 = vmatprep.subr.mxu0 0.0
    %5073 = vmatpush1.msra.mxu0 0.0
    %5074 = vmatprep.subr.mxu0 0.0
    %5075 = vmatpush1.msra.mxu0 0.0
    %5076 = vmatprep.subr.mxu0 0.0
    %5077 = vmatpush1.msra.mxu0 0.0
    %5078 = vmatprep.subr.mxu0 0.0
    %5079 = vmatpush1.msra.mxu0 0.0
    %5080 = vmatprep.mubr.f32.mxu0 0.0
    %5081 = vmatmul.mubr.f32.gmra.mrb[0].mxu0 %v5005
    %v5082 = vpop.f32.mrb[0].mxu0
    %v5083 = vadd.f32 0.0, %v5082
    %v5084 = vpop.f32.mrb[0].mxu0
    %5085 = vmatprep.mubr.f32.mxu0 0.0
    %5086 = vmatmul.mubr.f32.gmra.mrb[0].mxu0 %v5008
    %v5087 = vpop.f32.mrb[0].mxu0
    %v5088 = vadd.f32 0.0, %v5087
    %v5089 = vpop.f32.mrb[0].mxu0
    %5090 = vmatprep.mubr.f32.mxu0 0.0
    %5091 = vmatmul.mubr.f32.gmra.mrb[0].mxu0 %v5011
    %v5092 = vpop.f32.mrb[0].mxu0
    %v5093 = vadd.f32 0.0, %v5092
    %v5094 = vpop.f32.mrb[0].mxu0
    %5095 = vmatprep.mubr.f32.mxu0 0.0
    %5096 = vmatmul.mubr.f32.gmra.mrb[0].mxu0 %v5014
    %v5097 = vpop.f32.mrb[0].mxu0
    %v5098 = vadd.f32 0.0, %v5097
    %v5099 = vpop.f32.mrb[0].mxu0
    %5100 = vdwg.mxu0
    %v5102 = vsel %vm540, %v4196, 0
    %v5105 = vsel %vm540, %v4201, 0
    %v5108 = vsel %vm540, %v4277, 0
    %v5111 = vsel %vm540, %v4282, 0
    %5113 = vmatprep.subr.mxu0 0.0
    %5114 = vmatpush1.msra.mxu0 %v4285
    %5115 = vmatprep.subr.mxu0 0.0
    %5116 = vmatpush1.msra.mxu0 %v4286
    %5117 = vmatprep.subr.mxu0 0.0
    %5118 = vmatpush1.msra.mxu0 %v4287
    %5119 = vmatprep.subr.mxu0 0.0
    %5120 = vmatpush1.msra.mxu0 %v4288
    %5121 = vmatprep.subr.mxu0 0.0
    %5122 = vmatpush1.msra.mxu0 0.0
    %5123 = vmatprep.subr.mxu0 0.0
    %5124 = vmatpush1.msra.mxu0 0.0
    %5125 = vmatprep.subr.mxu0 0.0
    %5126 = vmatpush1.msra.mxu0 0.0
    %5127 = vmatprep.subr.mxu0 0.0
    %5128 = vmatpush1.msra.mxu0 0.0
    %5129 = vmatprep.subr.mxu0 0.0
    %5130 = vmatpush1.msra.mxu0 0.0
    %5131 = vmatprep.subr.mxu0 0.0
    %5132 = vmatpush1.msra.mxu0 0.0
    %5133 = vmatprep.subr.mxu0 0.0
    %5134 = vmatpush1.msra.mxu0 0.0
    %5135 = vmatprep.subr.mxu0 0.0
    %5136 = vmatpush1.msra.mxu0 0.0
    %5137 = vmatprep.subr.mxu0 0.0
    %5138 = vmatpush1.msra.mxu0 0.0
    %5139 = vmatprep.subr.mxu0 0.0
    %5140 = vmatpush1.msra.mxu0 0.0
    %5141 = vmatprep.subr.mxu0 0.0
    %5142 = vmatpush1.msra.mxu0 0.0
    %5143 = vmatprep.subr.mxu0 0.0
    %5144 = vmatpush1.msra.mxu0 0.0
    %5145 = vmatprep.subr.mxu0 0.0
    %5146 = vmatpush1.msra.mxu0 0.0
    %5147 = vmatprep.subr.mxu0 0.0
    %5148 = vmatpush1.msra.mxu0 0.0
    %5149 = vmatprep.subr.mxu0 0.0
    %5150 = vmatpush1.msra.mxu0 0.0
    %5151 = vmatprep.subr.mxu0 0.0
    %5152 = vmatpush1.msra.mxu0 0.0
    %5153 = vmatprep.subr.mxu0 0.0
    %5154 = vmatpush1.msra.mxu0 0.0
    %5155 = vmatprep.subr.mxu0 0.0
    %5156 = vmatpush1.msra.mxu0 0.0
    %5157 = vmatprep.subr.mxu0 0.0
    %5158 = vmatpush1.msra.mxu0 0.0
    %5159 = vmatprep.subr.mxu0 0.0
    %5160 = vmatpush1.msra.mxu0 0.0
    %5161 = vmatprep.subr.mxu0 0.0
    %5162 = vmatpush1.msra.mxu0 0.0
    %5163 = vmatprep.subr.mxu0 0.0
    %5164 = vmatpush1.msra.mxu0 0.0
    %5165 = vmatprep.subr.mxu0 0.0
    %5166 = vmatpush1.msra.mxu0 0.0
    %5167 = vmatprep.subr.mxu0 0.0
    %5168 = vmatpush1.msra.mxu0 0.0
    %5169 = vmatprep.subr.mxu0 0.0
    %5170 = vmatpush1.msra.mxu0 0.0
    %5171 = vmatprep.subr.mxu0 0.0
    %5172 = vmatpush1.msra.mxu0 0.0
    %5173 = vmatprep.subr.mxu0 0.0
    %5174 = vmatpush1.msra.mxu0 0.0
    %5175 = vmatprep.subr.mxu0 0.0
    %5176 = vmatpush1.msra.mxu0 0.0
    %5177 = vmatprep.mubr.f32.mxu0 0.0
    %5178 = vmatmul.mubr.f32.gmra.mrb[0].mxu0 %v5102
    %v5179 = vpop.f32.mrb[0].mxu0
    %v5180 = vadd.f32 %v5083, %v5179
    %v5181 = vpop.f32.mrb[0].mxu0
    %5182 = vmatprep.mubr.f32.mxu0 0.0
    %5183 = vmatmul.mubr.f32.gmra.mrb[0].mxu0 %v5105
    %v5184 = vpop.f32.mrb[0].mxu0
    %v5185 = vadd.f32 %v5088, %v5184
    %v5186 = vpop.f32.mrb[0].mxu0
    %5187 = vmatprep.mubr.f32.mxu0 0.0
    %5188 = vmatmul.mubr.f32.gmra.mrb[0].mxu0 %v5108
    %v5189 = vpop.f32.mrb[0].mxu0
    %v5190 = vadd.f32 %v5093, %v5189
    %v5191 = vpop.f32.mrb[0].mxu0
    %5192 = vmatprep.mubr.f32.mxu0 0.0
    %5193 = vmatmul.mubr.f32.gmra.mrb[0].mxu0 %v5111
    %v5194 = vpop.f32.mrb[0].mxu0
    %v5195 = vadd.f32 %v5098, %v5194
    %v5196 = vpop.f32.mrb[0].mxu0
    %5197 = vdwg.mxu0
    %s5198 = scalar_lea.vmem %s8, 256
    %v5199 = vld [vmem:[%s5198] sm:$0xff]
    %v5200 = vld [vmem:[%s5198 + $0x8] sm:$0xff]
    %v5201 = vld [vmem:[%s5198 + $0x10] sm:$0xff]
    %v5202 = vld [vmem:[%s5198 + $0x18] sm:$0xff]
    %v5203 = vld [vmem:[%s5198 + $0x20] sm:$0xff]
    %v5204 = vld [vmem:[%s5198 + $0x28] sm:$0xff]
    %v5205 = vld [vmem:[%s5198 + $0x30] sm:$0xff]
    %v5206 = vld [vmem:[%s5198 + $0x38] sm:$0xff]
    %v5207 = vld [vmem:[%s5198 + $0x40] sm:$0xff]
    %v5208 = vld [vmem:[%s5198 + $0x48] sm:$0xff]
    %v5209 = vld [vmem:[%s5198 + $0x50] sm:$0xff]
    %v5210 = vld [vmem:[%s5198 + $0x58] sm:$0xff]
    %v5211 = vld [vmem:[%s5198 + $0x60] sm:$0xff]
    %v5212 = vld [vmem:[%s5198 + $0x68] sm:$0xff]
    %v5213 = vld [vmem:[%s5198 + $0x70] sm:$0xff]
    %v5214 = vld [vmem:[%s5198 + $0x78] sm:$0xff]
    %s5215 = scalar_lea.vmem %s9, 2
    %v5216 = vld [vmem:[%s5215] sm:$0x1]
    %v5218 = vlaneseq
    %v5219 = vshrl.u32 %v5218, 7
    %v5220 = vsub.s32 0, %v5219
    %v5221 = vrot.slane %v5216, %v5220
    %5223 = vmatprep.subr.mxu0 0.0
    %5224 = vmatpush1.msra.mxu0 %v5199
    %5225 = vmatprep.subr.mxu0 0.0
    %5226 = vmatpush1.msra.mxu0 %v5200
    %5227 = vmatprep.subr.mxu0 0.0
    %5228 = vmatpush1.msra.mxu0 %v5201
    %5229 = vmatprep.subr.mxu0 0.0
    %5230 = vmatpush1.msra.mxu0 %v5202
    %5231 = vmatprep.subr.mxu0 0.0
    %5232 = vmatpush1.msra.mxu0 %v5203
    %5233 = vmatprep.subr.mxu0 0.0
    %5234 = vmatpush1.msra.mxu0 %v5204
    %5235 = vmatprep.subr.mxu0 0.0
    %5236 = vmatpush1.msra.mxu0 %v5205
    %5237 = vmatprep.subr.mxu0 0.0
    %5238 = vmatpush1.msra.mxu0 %v5206
    %5239 = vmatprep.subr.mxu0 0.0
    %5240 = vmatpush1.msra.mxu0 %v5207
    %5241 = vmatprep.subr.mxu0 0.0
    %5242 = vmatpush1.msra.mxu0 %v5208
    %5243 = vmatprep.subr.mxu0 0.0
    %5244 = vmatpush1.msra.mxu0 %v5209
    %5245 = vmatprep.subr.mxu0 0.0
    %5246 = vmatpush1.msra.mxu0 %v5210
    %5247 = vmatprep.subr.mxu0 0.0
    %5248 = vmatpush1.msra.mxu0 %v5211
    %5249 = vmatprep.subr.mxu0 0.0
    %5250 = vmatpush1.msra.mxu0 %v5212
    %5251 = vmatprep.subr.mxu0 0.0
    %5252 = vmatpush1.msra.mxu0 %v5213
    %5253 = vmatprep.subr.mxu0 0.0
    %5254 = vmatpush1.msra.mxu0 %v5214
    %5255 = vmatprep.subr.mxu0 0.0
    %5256 = vmatpush1.msra.mxu0 0.0
    %5257 = vmatprep.subr.mxu0 0.0
    %5258 = vmatpush1.msra.mxu0 0.0
    %5259 = vmatprep.subr.mxu0 0.0
    %5260 = vmatpush1.msra.mxu0 0.0
    %5261 = vmatprep.subr.mxu0 0.0
    %5262 = vmatpush1.msra.mxu0 0.0
    %5263 = vmatprep.subr.mxu0 0.0
    %5264 = vmatpush1.msra.mxu0 0.0
    %5265 = vmatprep.subr.mxu0 0.0
    %5266 = vmatpush1.msra.mxu0 0.0
    %5267 = vmatprep.subr.mxu0 0.0
    %5268 = vmatpush1.msra.mxu0 0.0
    %5269 = vmatprep.subr.mxu0 0.0
    %5270 = vmatpush1.msra.mxu0 0.0
    %5271 = vmatprep.subr.mxu0 0.0
    %5272 = vmatpush1.msra.mxu0 0.0
    %5273 = vmatprep.subr.mxu0 0.0
    %5274 = vmatpush1.msra.mxu0 0.0
    %5275 = vmatprep.subr.mxu0 0.0
    %5276 = vmatpush1.msra.mxu0 0.0
    %5277 = vmatprep.subr.mxu0 0.0
    %5278 = vmatpush1.msra.mxu0 0.0
    %5279 = vmatprep.subr.mxu0 0.0
    %5280 = vmatpush1.msra.mxu0 0.0
    %5281 = vmatprep.subr.mxu0 0.0
    %5282 = vmatpush1.msra.mxu0 0.0
    %5283 = vmatprep.subr.mxu0 0.0
    %5284 = vmatpush1.msra.mxu0 0.0
    %5285 = vmatprep.subr.mxu0 0.0
    %5286 = vmatpush1.msra.mxu0 0.0
    %5287 = vmatprep.mubr.f32.mxu0 0.0
    %5288 = vmatmul.mubr.f32.gmra.mrb[0].mxu0 %v3573
    %v5289 = vpop.f32.mrb[0].mxu0
    %v5290 = vadd.f32 %v5221, %v5289
    %v5291 = vpop.f32.mrb[0].mxu0
    %5292 = vmatprep.mubr.f32.mxu0 0.0
    %5293 = vmatmul.mubr.f32.gmra.mrb[0].mxu0 %v3574
    %v5294 = vpop.f32.mrb[0].mxu0
    %v5295 = vadd.f32 %v5221, %v5294
    %v5296 = vpop.f32.mrb[0].mxu0
    %5297 = vmatprep.mubr.f32.mxu0 0.0
    %5298 = vmatmul.mubr.f32.gmra.mrb[0].mxu0 %v3575
    %v5299 = vpop.f32.mrb[0].mxu0
    %v5300 = vadd.f32 %v5221, %v5299
    %v5301 = vpop.f32.mrb[0].mxu0
    %5302 = vmatprep.mubr.f32.mxu0 0.0
    %5303 = vmatmul.mubr.f32.gmra.mrb[0].mxu0 %v3576
    %v5304 = vpop.f32.mrb[0].mxu0
    %v5305 = vadd.f32 %v5221, %v5304
    %v5306 = vpop.f32.mrb[0].mxu0
    %5307 = vdwg.mxu0
    %s5308 = scalar_lea.vmem %s8, 768
    %v5309 = vld [vmem:[%s5308] sm:$0xff]
    %v5310 = vld [vmem:[%s5308 + $0x8] sm:$0xff]
    %v5311 = vld [vmem:[%s5308 + $0x10] sm:$0xff]
    %v5312 = vld [vmem:[%s5308 + $0x18] sm:$0xff]
    %v5313 = vld [vmem:[%s5308 + $0x20] sm:$0xff]
    %v5314 = vld [vmem:[%s5308 + $0x28] sm:$0xff]
    %v5315 = vld [vmem:[%s5308 + $0x30] sm:$0xff]
    %v5316 = vld [vmem:[%s5308 + $0x38] sm:$0xff]
    %v5317 = vld [vmem:[%s5308 + $0x40] sm:$0xff]
    %v5318 = vld [vmem:[%s5308 + $0x48] sm:$0xff]
    %v5319 = vld [vmem:[%s5308 + $0x50] sm:$0xff]
    %v5320 = vld [vmem:[%s5308 + $0x58] sm:$0xff]
    %v5321 = vld [vmem:[%s5308 + $0x60] sm:$0xff]
    %v5322 = vld [vmem:[%s5308 + $0x68] sm:$0xff]
    %v5323 = vld [vmem:[%s5308 + $0x70] sm:$0xff]
    %v5324 = vld [vmem:[%s5308 + $0x78] sm:$0xff]
    %s5325 = scalar_lea.vmem %s9, 6
    %v5326 = vld [vmem:[%s5325] sm:$0x1]
    %v5328 = vlaneseq
    %v5329 = vshrl.u32 %v5328, 7
    %v5330 = vsub.s32 0, %v5329
    %v5331 = vrot.slane %v5326, %v5330
    %5333 = vmatprep.subr.mxu0 0.0
    %5334 = vmatpush1.msra.mxu0 %v5309
    %5335 = vmatprep.subr.mxu0 0.0
    %5336 = vmatpush1.msra.mxu0 %v5310
    %5337 = vmatprep.subr.mxu0 0.0
    %5338 = vmatpush1.msra.mxu0 %v5311
    %5339 = vmatprep.subr.mxu0 0.0
    %5340 = vmatpush1.msra.mxu0 %v5312
    %5341 = vmatprep.subr.mxu0 0.0
    %5342 = vmatpush1.msra.mxu0 %v5313
    %5343 = vmatprep.subr.mxu0 0.0
    %5344 = vmatpush1.msra.mxu0 %v5314
    %5345 = vmatprep.subr.mxu0 0.0
    %5346 = vmatpush1.msra.mxu0 %v5315
    %5347 = vmatprep.subr.mxu0 0.0
    %5348 = vmatpush1.msra.mxu0 %v5316
    %5349 = vmatprep.subr.mxu0 0.0
    %5350 = vmatpush1.msra.mxu0 %v5317
    %5351 = vmatprep.subr.mxu0 0.0
    %5352 = vmatpush1.msra.mxu0 %v5318
    %5353 = vmatprep.subr.mxu0 0.0
    %5354 = vmatpush1.msra.mxu0 %v5319
    %5355 = vmatprep.subr.mxu0 0.0
    %5356 = vmatpush1.msra.mxu0 %v5320
    %5357 = vmatprep.subr.mxu0 0.0
    %5358 = vmatpush1.msra.mxu0 %v5321
    %5359 = vmatprep.subr.mxu0 0.0
    %5360 = vmatpush1.msra.mxu0 %v5322
    %5361 = vmatprep.subr.mxu0 0.0
    %5362 = vmatpush1.msra.mxu0 %v5323
    %5363 = vmatprep.subr.mxu0 0.0
    %5364 = vmatpush1.msra.mxu0 %v5324
    %5365 = vmatprep.subr.mxu0 0.0
    %5366 = vmatpush1.msra.mxu0 0.0
    %5367 = vmatprep.subr.mxu0 0.0
    %5368 = vmatpush1.msra.mxu0 0.0
    %5369 = vmatprep.subr.mxu0 0.0
    %5370 = vmatpush1.msra.mxu0 0.0
    %5371 = vmatprep.subr.mxu0 0.0
    %5372 = vmatpush1.msra.mxu0 0.0
    %5373 = vmatprep.subr.mxu0 0.0
    %5374 = vmatpush1.msra.mxu0 0.0
    %5375 = vmatprep.subr.mxu0 0.0
    %5376 = vmatpush1.msra.mxu0 0.0
    %5377 = vmatprep.subr.mxu0 0.0
    %5378 = vmatpush1.msra.mxu0 0.0
    %5379 = vmatprep.subr.mxu0 0.0
    %5380 = vmatpush1.msra.mxu0 0.0
    %5381 = vmatprep.subr.mxu0 0.0
    %5382 = vmatpush1.msra.mxu0 0.0
    %5383 = vmatprep.subr.mxu0 0.0
    %5384 = vmatpush1.msra.mxu0 0.0
    %5385 = vmatprep.subr.mxu0 0.0
    %5386 = vmatpush1.msra.mxu0 0.0
    %5387 = vmatprep.subr.mxu0 0.0
    %5388 = vmatpush1.msra.mxu0 0.0
    %5389 = vmatprep.subr.mxu0 0.0
    %5390 = vmatpush1.msra.mxu0 0.0
    %5391 = vmatprep.subr.mxu0 0.0
    %5392 = vmatpush1.msra.mxu0 0.0
    %5393 = vmatprep.subr.mxu0 0.0
    %5394 = vmatpush1.msra.mxu0 0.0
    %5395 = vmatprep.subr.mxu0 0.0
    %5396 = vmatpush1.msra.mxu0 0.0
    %5397 = vmatprep.mubr.f32.mxu0 0.0
    %5398 = vmatmul.mubr.f32.gmra.mrb[0].mxu0 %v203
    %v5399 = vpop.f32.mrb[0].mxu0
    %v5400 = vadd.f32 %v5331, %v5399
    %v5401 = vpop.f32.mrb[0].mxu0
    %5402 = vmatprep.mubr.f32.mxu0 0.0
    %5403 = vmatmul.mubr.f32.gmra.mrb[0].mxu0 %v204
    %v5404 = vpop.f32.mrb[0].mxu0
    %v5405 = vadd.f32 %v5331, %v5404
    %v5406 = vpop.f32.mrb[0].mxu0
    %5407 = vmatprep.mubr.f32.mxu0 0.0
    %5408 = vmatmul.mubr.f32.gmra.mrb[0].mxu0 %v205
    %v5409 = vpop.f32.mrb[0].mxu0
    %v5410 = vadd.f32 %v5331, %v5409
    %v5411 = vpop.f32.mrb[0].mxu0
    %5412 = vmatprep.mubr.f32.mxu0 0.0
    %5413 = vmatmul.mubr.f32.gmra.mrb[0].mxu0 %v206
    %v5414 = vpop.f32.mrb[0].mxu0
    %v5415 = vadd.f32 %v5331, %v5414
    %v5416 = vpop.f32.mrb[0].mxu0
    %5417 = vdwg.mxu0
    %s5418 = scalar_lea.vmem %s8, 1280
    %v5419 = vld [vmem:[%s5418] sm:$0xff]
    %v5420 = vld [vmem:[%s5418 + $0x8] sm:$0xff]
    %v5421 = vld [vmem:[%s5418 + $0x10] sm:$0xff]
    %v5422 = vld [vmem:[%s5418 + $0x18] sm:$0xff]
    %v5423 = vld [vmem:[%s5418 + $0x20] sm:$0xff]
    %v5424 = vld [vmem:[%s5418 + $0x28] sm:$0xff]
    %v5425 = vld [vmem:[%s5418 + $0x30] sm:$0xff]
    %v5426 = vld [vmem:[%s5418 + $0x38] sm:$0xff]
    %v5427 = vld [vmem:[%s5418 + $0x40] sm:$0xff]
    %v5428 = vld [vmem:[%s5418 + $0x48] sm:$0xff]
    %v5429 = vld [vmem:[%s5418 + $0x50] sm:$0xff]
    %v5430 = vld [vmem:[%s5418 + $0x58] sm:$0xff]
    %v5431 = vld [vmem:[%s5418 + $0x60] sm:$0xff]
    %v5432 = vld [vmem:[%s5418 + $0x68] sm:$0xff]
    %v5433 = vld [vmem:[%s5418 + $0x70] sm:$0xff]
    %v5434 = vld [vmem:[%s5418 + $0x78] sm:$0xff]
    %s5435 = scalar_lea.vmem %s9, 10
    %v5436 = vld [vmem:[%s5435] sm:$0x1]
    %v5438 = vlaneseq
    %v5439 = vshrl.u32 %v5438, 7
    %v5440 = vsub.s32 0, %v5439
    %v5441 = vrot.slane %v5436, %v5440
    %5443 = vmatprep.subr.mxu0 0.0
    %5444 = vmatpush1.msra.mxu0 %v5419
    %5445 = vmatprep.subr.mxu0 0.0
    %5446 = vmatpush1.msra.mxu0 %v5420
    %5447 = vmatprep.subr.mxu0 0.0
    %5448 = vmatpush1.msra.mxu0 %v5421
    %5449 = vmatprep.subr.mxu0 0.0
    %5450 = vmatpush1.msra.mxu0 %v5422
    %5451 = vmatprep.subr.mxu0 0.0
    %5452 = vmatpush1.msra.mxu0 %v5423
    %5453 = vmatprep.subr.mxu0 0.0
    %5454 = vmatpush1.msra.mxu0 %v5424
    %5455 = vmatprep.subr.mxu0 0.0
    %5456 = vmatpush1.msra.mxu0 %v5425
    %5457 = vmatprep.subr.mxu0 0.0
    %5458 = vmatpush1.msra.mxu0 %v5426
    %5459 = vmatprep.subr.mxu0 0.0
    %5460 = vmatpush1.msra.mxu0 %v5427
    %5461 = vmatprep.subr.mxu0 0.0
    %5462 = vmatpush1.msra.mxu0 %v5428
    %5463 = vmatprep.subr.mxu0 0.0
    %5464 = vmatpush1.msra.mxu0 %v5429
    %5465 = vmatprep.subr.mxu0 0.0
    %5466 = vmatpush1.msra.mxu0 %v5430
    %5467 = vmatprep.subr.mxu0 0.0
    %5468 = vmatpush1.msra.mxu0 %v5431
    %5469 = vmatprep.subr.mxu0 0.0
    %5470 = vmatpush1.msra.mxu0 %v5432
    %5471 = vmatprep.subr.mxu0 0.0
    %5472 = vmatpush1.msra.mxu0 %v5433
    %5473 = vmatprep.subr.mxu0 0.0
    %5474 = vmatpush1.msra.mxu0 %v5434
    %5475 = vmatprep.subr.mxu0 0.0
    %5476 = vmatpush1.msra.mxu0 0.0
    %5477 = vmatprep.subr.mxu0 0.0
    %5478 = vmatpush1.msra.mxu0 0.0
    %5479 = vmatprep.subr.mxu0 0.0
    %5480 = vmatpush1.msra.mxu0 0.0
    %5481 = vmatprep.subr.mxu0 0.0
    %5482 = vmatpush1.msra.mxu0 0.0
    %5483 = vmatprep.subr.mxu0 0.0
    %5484 = vmatpush1.msra.mxu0 0.0
    %5485 = vmatprep.subr.mxu0 0.0
    %5486 = vmatpush1.msra.mxu0 0.0
    %5487 = vmatprep.subr.mxu0 0.0
    %5488 = vmatpush1.msra.mxu0 0.0
    %5489 = vmatprep.subr.mxu0 0.0
    %5490 = vmatpush1.msra.mxu0 0.0
    %5491 = vmatprep.subr.mxu0 0.0
    %5492 = vmatpush1.msra.mxu0 0.0
    %5493 = vmatprep.subr.mxu0 0.0
    %5494 = vmatpush1.msra.mxu0 0.0
    %5495 = vmatprep.subr.mxu0 0.0
    %5496 = vmatpush1.msra.mxu0 0.0
    %5497 = vmatprep.subr.mxu0 0.0
    %5498 = vmatpush1.msra.mxu0 0.0
    %5499 = vmatprep.subr.mxu0 0.0
    %5500 = vmatpush1.msra.mxu0 0.0
    %5501 = vmatprep.subr.mxu0 0.0
    %5502 = vmatpush1.msra.mxu0 0.0
    %5503 = vmatprep.subr.mxu0 0.0
    %5504 = vmatpush1.msra.mxu0 0.0
    %5505 = vmatprep.subr.mxu0 0.0
    %5506 = vmatpush1.msra.mxu0 0.0
    %5507 = vmatprep.mubr.f32.mxu0 0.0
    %5508 = vmatmul.mubr.f32.gmra.mrb[0].mxu0 %v203
    %v5509 = vpop.f32.mrb[0].mxu0
    %v5510 = vadd.f32 %v5441, %v5509
    %v5511 = vpop.f32.mrb[0].mxu0
    %5512 = vmatprep.mubr.f32.mxu0 0.0
    %5513 = vmatmul.mubr.f32.gmra.mrb[0].mxu0 %v204
    %v5514 = vpop.f32.mrb[0].mxu0
    %v5515 = vadd.f32 %v5441, %v5514
    %v5516 = vpop.f32.mrb[0].mxu0
    %5517 = vmatprep.mubr.f32.mxu0 0.0
    %5518 = vmatmul.mubr.f32.gmra.mrb[0].mxu0 %v205
    %v5519 = vpop.f32.mrb[0].mxu0
    %v5520 = vadd.f32 %v5441, %v5519
    %v5521 = vpop.f32.mrb[0].mxu0
    %5522 = vmatprep.mubr.f32.mxu0 0.0
    %5523 = vmatmul.mubr.f32.gmra.mrb[0].mxu0 %v206
    %v5524 = vpop.f32.mrb[0].mxu0
    %v5525 = vadd.f32 %v5441, %v5524
    %v5526 = vpop.f32.mrb[0].mxu0
    %5527 = vdwg.mxu0
    %v5529 = vsel %vm540, %v5290, 0
    %v5532 = vsel %vm540, %v5295, 0
    %v5535 = vsel %vm540, %v5400, 0
    %v5538 = vsel %vm540, %v5405, 0
    %5540 = vmatprep.subr.mxu0 0.0
    %5541 = vmatpush1.xpose.msra.mxu0 %v5535
    %5542 = vmatprep.subr.mxu0 0.0
    %5543 = vmatpush1.xpose.msra.mxu0 %v5538
    %5544 = vmatprep.subr.mxu0 0.0
    %5545 = vmatpush1.xpose.msra.mxu0 0.0
    %5546 = vmatprep.subr.mxu0 0.0
    %5547 = vmatpush1.xpose.msra.mxu0 0.0
    %5548 = vmatprep.subr.mxu0 0.0
    %5549 = vmatpush1.xpose.msra.mxu0 0.0
    %5550 = vmatprep.subr.mxu0 0.0
    %5551 = vmatpush1.xpose.msra.mxu0 0.0
    %5552 = vmatprep.subr.mxu0 0.0
    %5553 = vmatpush1.xpose.msra.mxu0 0.0
    %5554 = vmatprep.subr.mxu0 0.0
    %5555 = vmatpush1.xpose.msra.mxu0 0.0
    %5556 = vmatprep.subr.mxu0 0.0
    %5557 = vmatpush1.xpose.msra.mxu0 0.0
    %5558 = vmatprep.subr.mxu0 0.0
    %5559 = vmatpush1.xpose.msra.mxu0 0.0
    %5560 = vmatprep.subr.mxu0 0.0
    %5561 = vmatpush1.xpose.msra.mxu0 0.0
    %5562 = vmatprep.subr.mxu0 0.0
    %5563 = vmatpush1.xpose.msra.mxu0 0.0
    %5564 = vmatprep.subr.mxu0 0.0
    %5565 = vmatpush1.xpose.msra.mxu0 0.0
    %5566 = vmatprep.subr.mxu0 0.0
    %5567 = vmatpush1.xpose.msra.mxu0 0.0
    %5568 = vmatprep.subr.mxu0 0.0
    %5569 = vmatpush1.xpose.msra.mxu0 0.0
    %5570 = vmatprep.subr.mxu0 0.0
    %5571 = vmatpush1.xpose.msra.mxu0 0.0
    %5572 = vmatprep.subr.mxu0 0.0
    %5573 = vmatpush1.xpose.msra.mxu0 0.0
    %5574 = vmatprep.subr.mxu0 0.0
    %5575 = vmatpush1.xpose.msra.mxu0 0.0
    %5576 = vmatprep.subr.mxu0 0.0
    %5577 = vmatpush1.xpose.msra.mxu0 0.0
    %5578 = vmatprep.subr.mxu0 0.0
    %5579 = vmatpush1.xpose.msra.mxu0 0.0
    %5580 = vmatprep.subr.mxu0 0.0
    %5581 = vmatpush1.xpose.msra.mxu0 0.0
    %5582 = vmatprep.subr.mxu0 0.0
    %5583 = vmatpush1.xpose.msra.mxu0 0.0
    %5584 = vmatprep.subr.mxu0 0.0
    %5585 = vmatpush1.xpose.msra.mxu0 0.0
    %5586 = vmatprep.subr.mxu0 0.0
    %5587 = vmatpush1.xpose.msra.mxu0 0.0
    %5588 = vmatprep.subr.mxu0 0.0
    %5589 = vmatpush1.xpose.msra.mxu0 0.0
    %5590 = vmatprep.subr.mxu0 0.0
    %5591 = vmatpush1.xpose.msra.mxu0 0.0
    %5592 = vmatprep.subr.mxu0 0.0
    %5593 = vmatpush1.xpose.msra.mxu0 0.0
    %5594 = vmatprep.subr.mxu0 0.0
    %5595 = vmatpush1.xpose.msra.mxu0 0.0
    %5596 = vmatprep.subr.mxu0 0.0
    %5597 = vmatpush1.xpose.msra.mxu0 0.0
    %5598 = vmatprep.subr.mxu0 0.0
    %5599 = vmatpush1.xpose.msra.mxu0 0.0
    %5600 = vmatprep.subr.mxu0 0.0
    %5601 = vmatpush1.xpose.msra.mxu0 0.0
    %5602 = vmatprep.subr.mxu0 0.0
    %5603 = vmatpush1.xpose.msra.mxu0 0.0
    %5604 = vmatprep.mubr.f32.mxu0 0.0
    %5605 = vmatmul.mubr.f32.gmra.mrb[0].mxu0 %v5529
    %v5606 = vpop.f32.mrb[0].mxu0
    %v5607 = vadd.f32 0.0, %v5606
    %v5608 = vpop.f32.mrb[0].mxu0
    %5609 = vmatprep.mubr.f32.mxu0 0.0
    %5610 = vmatmul.mubr.f32.gmra.mrb[0].mxu0 %v5532
    %v5611 = vpop.f32.mrb[0].mxu0
    %v5612 = vadd.f32 0.0, %v5611
    %v5613 = vpop.f32.mrb[0].mxu0
    %5614 = vdwg.mxu0
    %v5616 = vsel %vm540, %v5300, 0
    %v5619 = vsel %vm540, %v5305, 0
    %v5622 = vsel %vm540, %v5410, 0
    %v5625 = vsel %vm540, %v5415, 0
    %5627 = vmatprep.subr.mxu0 0.0
    %5628 = vmatpush1.xpose.msra.mxu0 %v5622
    %5629 = vmatprep.subr.mxu0 0.0
    %5630 = vmatpush1.xpose.msra.mxu0 %v5625
    %5631 = vmatprep.subr.mxu0 0.0
    %5632 = vmatpush1.xpose.msra.mxu0 0.0
    %5633 = vmatprep.subr.mxu0 0.0
    %5634 = vmatpush1.xpose.msra.mxu0 0.0
    %5635 = vmatprep.subr.mxu0 0.0
    %5636 = vmatpush1.xpose.msra.mxu0 0.0
    %5637 = vmatprep.subr.mxu0 0.0
    %5638 = vmatpush1.xpose.msra.mxu0 0.0
    %5639 = vmatprep.subr.mxu0 0.0
    %5640 = vmatpush1.xpose.msra.mxu0 0.0
    %5641 = vmatprep.subr.mxu0 0.0
    %5642 = vmatpush1.xpose.msra.mxu0 0.0
    %5643 = vmatprep.subr.mxu0 0.0
    %5644 = vmatpush1.xpose.msra.mxu0 0.0
    %5645 = vmatprep.subr.mxu0 0.0
    %5646 = vmatpush1.xpose.msra.mxu0 0.0
    %5647 = vmatprep.subr.mxu0 0.0
    %5648 = vmatpush1.xpose.msra.mxu0 0.0
    %5649 = vmatprep.subr.mxu0 0.0
    %5650 = vmatpush1.xpose.msra.mxu0 0.0
    %5651 = vmatprep.subr.mxu0 0.0
    %5652 = vmatpush1.xpose.msra.mxu0 0.0
    %5653 = vmatprep.subr.mxu0 0.0
    %5654 = vmatpush1.xpose.msra.mxu0 0.0
    %5655 = vmatprep.subr.mxu0 0.0
    %5656 = vmatpush1.xpose.msra.mxu0 0.0
    %5657 = vmatprep.subr.mxu0 0.0
    %5658 = vmatpush1.xpose.msra.mxu0 0.0
    %5659 = vmatprep.subr.mxu0 0.0
    %5660 = vmatpush1.xpose.msra.mxu0 0.0
    %5661 = vmatprep.subr.mxu0 0.0
    %5662 = vmatpush1.xpose.msra.mxu0 0.0
    %5663 = vmatprep.subr.mxu0 0.0
    %5664 = vmatpush1.xpose.msra.mxu0 0.0
    %5665 = vmatprep.subr.mxu0 0.0
    %5666 = vmatpush1.xpose.msra.mxu0 0.0
    %5667 = vmatprep.subr.mxu0 0.0
    %5668 = vmatpush1.xpose.msra.mxu0 0.0
    %5669 = vmatprep.subr.mxu0 0.0
    %5670 = vmatpush1.xpose.msra.mxu0 0.0
    %5671 = vmatprep.subr.mxu0 0.0
    %5672 = vmatpush1.xpose.msra.mxu0 0.0
    %5673 = vmatprep.subr.mxu0 0.0
    %5674 = vmatpush1.xpose.msra.mxu0 0.0
    %5675 = vmatprep.subr.mxu0 0.0
    %5676 = vmatpush1.xpose.msra.mxu0 0.0
    %5677 = vmatprep.subr.mxu0 0.0
    %5678 = vmatpush1.xpose.msra.mxu0 0.0
    %5679 = vmatprep.subr.mxu0 0.0
    %5680 = vmatpush1.xpose.msra.mxu0 0.0
    %5681 = vmatprep.subr.mxu0 0.0
    %5682 = vmatpush1.xpose.msra.mxu0 0.0
    %5683 = vmatprep.subr.mxu0 0.0
    %5684 = vmatpush1.xpose.msra.mxu0 0.0
    %5685 = vmatprep.subr.mxu0 0.0
    %5686 = vmatpush1.xpose.msra.mxu0 0.0
    %5687 = vmatprep.subr.mxu0 0.0
    %5688 = vmatpush1.xpose.msra.mxu0 0.0
    %5689 = vmatprep.subr.mxu0 0.0
    %5690 = vmatpush1.xpose.msra.mxu0 0.0
    %5691 = vmatprep.mubr.f32.mxu0 0.0
    %5692 = vmatmul.mubr.f32.gmra.mrb[0].mxu0 %v5616
    %v5693 = vpop.f32.mrb[0].mxu0
    %v5694 = vadd.f32 0.0, %v5693
    %v5695 = vpop.f32.mrb[0].mxu0
    %5696 = vmatprep.mubr.f32.mxu0 0.0
    %5697 = vmatmul.mubr.f32.gmra.mrb[0].mxu0 %v5619
    %v5698 = vpop.f32.mrb[0].mxu0
    %v5699 = vadd.f32 0.0, %v5698
    %v5700 = vpop.f32.mrb[0].mxu0
    %5701 = vdwg.mxu0
    %v5702 = vsel %vm723, %v5607, -inf
    %5703 = vmax.xlane.f32.xlu0 %v5702
    %v5704 = vpop.xlane.xlu0 %5703
    %v5705 = vsel %vm723, %v5612, -inf
    %5706 = vmax.xlane.f32.xlu0 %v5705
    %v5707 = vpop.xlane.xlu0 %5706
    %v5708 = vsel %vm723, %v5694, -inf
    %5709 = vmax.xlane.f32.xlu0 %v5708
    %v5710 = vpop.xlane.xlu0 %5709
    %v5711 = vsel %vm723, %v5699, -inf
    %5712 = vmax.xlane.f32.xlu0 %v5711
    %v5713 = vpop.xlane.xlu0 %5712
    %v5714 = vsub.f32 %v5607, %v5704
    %v5715 = vsub.f32 %v5612, %v5707
    %v5716 = vsub.f32 %v5694, %v5710
    %v5717 = vsub.f32 %v5699, %v5713
    %v5718 = vmul.f32 %v5714, 1.442695
    %v5719 = vpow.pop %v5718
    %v5720 = vmul.f32 %v5715, 1.442695
    %v5721 = vpow.pop %v5720
    %v5722 = vmul.f32 %v5716, 1.442695
    %v5723 = vpow.pop %v5722
    %v5724 = vmul.f32 %v5717, 1.442695
    %v5725 = vpow.pop %v5724
    %v5726 = vsel %vm723, %v5719, 0.0
    %5727 = vadd.xlane.f32.xlu0 %v5726
    %v5728 = vpop.xlane.xlu0 %5727
    %v5729 = vsel %vm723, %v5721, 0.0
    %5730 = vadd.xlane.f32.xlu0 %v5729
    %v5731 = vpop.xlane.xlu0 %5730
    %v5732 = vsel %vm723, %v5723, 0.0
    %5733 = vadd.xlane.f32.xlu0 %v5732
    %v5734 = vpop.xlane.xlu0 %5733
    %v5735 = vsel %vm723, %v5725, 0.0
    %5736 = vadd.xlane.f32.xlu0 %v5735
    %v5737 = vpop.xlane.xlu0 %5736
    %v5738 = vrcp.pop %v5728
    %v5739 = vrcp.pop %v5731
    %v5740 = vrcp.pop %v5734
    %v5741 = vrcp.pop %v5737
    %v5742 = vmul.f32 %v5719, %v5738
    %v5743 = vmul.f32 %v5721, %v5739
    %v5744 = vmul.f32 %v5723, %v5740
    %v5745 = vmul.f32 %v5725, %v5741
    %v5747 = vsel %vm723, %v5742, 0
    %v5750 = vsel %vm723, %v5743, 0
    %5752 = vmatprep.subr.mxu0 0.0
    %5753 = vmatpush1.msra.mxu0 %v5510
    %5754 = vmatprep.subr.mxu0 0.0
    %5755 = vmatpush1.msra.mxu0 %v5515
    %5756 = vmatprep.subr.mxu0 0.0
    %5757 = vmatpush1.msra.mxu0 0.0
    %5758 = vmatprep.subr.mxu0 0.0
    %5759 = vmatpush1.msra.mxu0 0.0
    %5760 = vmatprep.subr.mxu0 0.0
    %5761 = vmatpush1.msra.mxu0 0.0
    %5762 = vmatprep.subr.mxu0 0.0
    %5763 = vmatpush1.msra.mxu0 0.0
    %5764 = vmatprep.subr.mxu0 0.0
    %5765 = vmatpush1.msra.mxu0 0.0
    %5766 = vmatprep.subr.mxu0 0.0
    %5767 = vmatpush1.msra.mxu0 0.0
    %5768 = vmatprep.subr.mxu0 0.0
    %5769 = vmatpush1.msra.mxu0 0.0
    %5770 = vmatprep.subr.mxu0 0.0
    %5771 = vmatpush1.msra.mxu0 0.0
    %5772 = vmatprep.subr.mxu0 0.0
    %5773 = vmatpush1.msra.mxu0 0.0
    %5774 = vmatprep.subr.mxu0 0.0
    %5775 = vmatpush1.msra.mxu0 0.0
    %5776 = vmatprep.subr.mxu0 0.0
    %5777 = vmatpush1.msra.mxu0 0.0
    %5778 = vmatprep.subr.mxu0 0.0
    %5779 = vmatpush1.msra.mxu0 0.0
    %5780 = vmatprep.subr.mxu0 0.0
    %5781 = vmatpush1.msra.mxu0 0.0
    %5782 = vmatprep.subr.mxu0 0.0
    %5783 = vmatpush1.msra.mxu0 0.0
    %5784 = vmatprep.subr.mxu0 0.0
    %5785 = vmatpush1.msra.mxu0 0.0
    %5786 = vmatprep.subr.mxu0 0.0
    %5787 = vmatpush1.msra.mxu0 0.0
    %5788 = vmatprep.subr.mxu0 0.0
    %5789 = vmatpush1.msra.mxu0 0.0
    %5790 = vmatprep.subr.mxu0 0.0
    %5791 = vmatpush1.msra.mxu0 0.0
    %5792 = vmatprep.subr.mxu0 0.0
    %5793 = vmatpush1.msra.mxu0 0.0
    %5794 = vmatprep.subr.mxu0 0.0
    %5795 = vmatpush1.msra.mxu0 0.0
    %5796 = vmatprep.subr.mxu0 0.0
    %5797 = vmatpush1.msra.mxu0 0.0
    %5798 = vmatprep.subr.mxu0 0.0
    %5799 = vmatpush1.msra.mxu0 0.0
    %5800 = vmatprep.subr.mxu0 0.0
    %5801 = vmatpush1.msra.mxu0 0.0
    %5802 = vmatprep.subr.mxu0 0.0
    %5803 = vmatpush1.msra.mxu0 0.0
    %5804 = vmatprep.subr.mxu0 0.0
    %5805 = vmatpush1.msra.mxu0 0.0
    %5806 = vmatprep.subr.mxu0 0.0
    %5807 = vmatpush1.msra.mxu0 0.0
    %5808 = vmatprep.subr.mxu0 0.0
    %5809 = vmatpush1.msra.mxu0 0.0
    %5810 = vmatprep.subr.mxu0 0.0
    %5811 = vmatpush1.msra.mxu0 0.0
    %5812 = vmatprep.subr.mxu0 0.0
    %5813 = vmatpush1.msra.mxu0 0.0
    %5814 = vmatprep.subr.mxu0 0.0
    %5815 = vmatpush1.msra.mxu0 0.0
    %5816 = vmatprep.mubr.f32.mxu0 0.0
    %5817 = vmatmul.mubr.f32.gmra.mrb[0].mxu0 %v5747
    %v5818 = vpop.f32.mrb[0].mxu0
    %v5819 = vadd.f32 0.0, %v5818
    %v5820 = vpop.f32.mrb[0].mxu0
    %5821 = vmatprep.mubr.f32.mxu0 0.0
    %5822 = vmatmul.mubr.f32.gmra.mrb[0].mxu0 %v5750
    %v5823 = vpop.f32.mrb[0].mxu0
    %v5824 = vadd.f32 0.0, %v5823
    %v5825 = vpop.f32.mrb[0].mxu0
    %5826 = vdwg.mxu0
    %v5828 = vsel %vm723, %v5744, 0
    %v5831 = vsel %vm723, %v5745, 0
    %5833 = vmatprep.subr.mxu0 0.0
    %5834 = vmatpush1.msra.mxu0 %v5520
    %5835 = vmatprep.subr.mxu0 0.0
    %5836 = vmatpush1.msra.mxu0 %v5525
    %5837 = vmatprep.subr.mxu0 0.0
    %5838 = vmatpush1.msra.mxu0 0.0
    %5839 = vmatprep.subr.mxu0 0.0
    %5840 = vmatpush1.msra.mxu0 0.0
    %5841 = vmatprep.subr.mxu0 0.0
    %5842 = vmatpush1.msra.mxu0 0.0
    %5843 = vmatprep.subr.mxu0 0.0
    %5844 = vmatpush1.msra.mxu0 0.0
    %5845 = vmatprep.subr.mxu0 0.0
    %5846 = vmatpush1.msra.mxu0 0.0
    %5847 = vmatprep.subr.mxu0 0.0
    %5848 = vmatpush1.msra.mxu0 0.0
    %5849 = vmatprep.subr.mxu0 0.0
    %5850 = vmatpush1.msra.mxu0 0.0
    %5851 = vmatprep.subr.mxu0 0.0
    %5852 = vmatpush1.msra.mxu0 0.0
    %5853 = vmatprep.subr.mxu0 0.0
    %5854 = vmatpush1.msra.mxu0 0.0
    %5855 = vmatprep.subr.mxu0 0.0
    %5856 = vmatpush1.msra.mxu0 0.0
    %5857 = vmatprep.subr.mxu0 0.0
    %5858 = vmatpush1.msra.mxu0 0.0
    %5859 = vmatprep.subr.mxu0 0.0
    %5860 = vmatpush1.msra.mxu0 0.0
    %5861 = vmatprep.subr.mxu0 0.0
    %5862 = vmatpush1.msra.mxu0 0.0
    %5863 = vmatprep.subr.mxu0 0.0
    %5864 = vmatpush1.msra.mxu0 0.0
    %5865 = vmatprep.subr.mxu0 0.0
    %5866 = vmatpush1.msra.mxu0 0.0
    %5867 = vmatprep.subr.mxu0 0.0
    %5868 = vmatpush1.msra.mxu0 0.0
    %5869 = vmatprep.subr.mxu0 0.0
    %5870 = vmatpush1.msra.mxu0 0.0
    %5871 = vmatprep.subr.mxu0 0.0
    %5872 = vmatpush1.msra.mxu0 0.0
    %5873 = vmatprep.subr.mxu0 0.0
    %5874 = vmatpush1.msra.mxu0 0.0
    %5875 = vmatprep.subr.mxu0 0.0
    %5876 = vmatpush1.msra.mxu0 0.0
    %5877 = vmatprep.subr.mxu0 0.0
    %5878 = vmatpush1.msra.mxu0 0.0
    %5879 = vmatprep.subr.mxu0 0.0
    %5880 = vmatpush1.msra.mxu0 0.0
    %5881 = vmatprep.subr.mxu0 0.0
    %5882 = vmatpush1.msra.mxu0 0.0
    %5883 = vmatprep.subr.mxu0 0.0
    %5884 = vmatpush1.msra.mxu0 0.0
    %5885 = vmatprep.subr.mxu0 0.0
    %5886 = vmatpush1.msra.mxu0 0.0
    %5887 = vmatprep.subr.mxu0 0.0
    %5888 = vmatpush1.msra.mxu0 0.0
    %5889 = vmatprep.subr.mxu0 0.0
    %5890 = vmatpush1.msra.mxu0 0.0
    %5891 = vmatprep.subr.mxu0 0.0
    %5892 = vmatpush1.msra.mxu0 0.0
    %5893 = vmatprep.subr.mxu0 0.0
    %5894 = vmatpush1.msra.mxu0 0.0
    %5895 = vmatprep.subr.mxu0 0.0
    %5896 = vmatpush1.msra.mxu0 0.0
    %5897 = vmatprep.mubr.f32.mxu0 0.0
    %5898 = vmatmul.mubr.f32.gmra.mrb[0].mxu0 %v5828
    %v5899 = vpop.f32.mrb[0].mxu0
    %v5900 = vadd.f32 0.0, %v5899
    %v5901 = vpop.f32.mrb[0].mxu0
    %5902 = vmatprep.mubr.f32.mxu0 0.0
    %5903 = vmatmul.mubr.f32.gmra.mrb[0].mxu0 %v5831
    %v5904 = vpop.f32.mrb[0].mxu0
    %v5905 = vadd.f32 0.0, %v5904
    %v5906 = vpop.f32.mrb[0].mxu0
    %5907 = vdwg.mxu0
    %s5908 = scalar_lea.vmem %s10, 64
    %v5909 = vld [vmem:[%s5908] sm:$0xff]
    %v5910 = vld [vmem:[%s5908 + $0x8] sm:$0xff]
    %v5911 = vld [vmem:[%s5908 + $0x10] sm:$0xff]
    %v5912 = vld [vmem:[%s5908 + $0x18] sm:$0xff]
    %v5914 = vsel %vm540, %v5819, 0
    %v5917 = vsel %vm540, %v5824, 0
    %v5920 = vsel %vm540, %v5900, 0
    %v5923 = vsel %vm540, %v5905, 0
    %5925 = vmatprep.subr.mxu0 0.0
    %5926 = vmatpush1.msra.mxu0 %v5909
    %5927 = vmatprep.subr.mxu0 0.0
    %5928 = vmatpush1.msra.mxu0 %v5910
    %5929 = vmatprep.subr.mxu0 0.0
    %5930 = vmatpush1.msra.mxu0 %v5911
    %5931 = vmatprep.subr.mxu0 0.0
    %5932 = vmatpush1.msra.mxu0 %v5912
    %5933 = vmatprep.subr.mxu0 0.0
    %5934 = vmatpush1.msra.mxu0 0.0
    %5935 = vmatprep.subr.mxu0 0.0
    %5936 = vmatpush1.msra.mxu0 0.0
    %5937 = vmatprep.subr.mxu0 0.0
    %5938 = vmatpush1.msra.mxu0 0.0
    %5939 = vmatprep.subr.mxu0 0.0
    %5940 = vmatpush1.msra.mxu0 0.0
    %5941 = vmatprep.subr.mxu0 0.0
    %5942 = vmatpush1.msra.mxu0 0.0
    %5943 = vmatprep.subr.mxu0 0.0
    %5944 = vmatpush1.msra.mxu0 0.0
    %5945 = vmatprep.subr.mxu0 0.0
    %5946 = vmatpush1.msra.mxu0 0.0
    %5947 = vmatprep.subr.mxu0 0.0
    %5948 = vmatpush1.msra.mxu0 0.0
    %5949 = vmatprep.subr.mxu0 0.0
    %5950 = vmatpush1.msra.mxu0 0.0
    %5951 = vmatprep.subr.mxu0 0.0
    %5952 = vmatpush1.msra.mxu0 0.0
    %5953 = vmatprep.subr.mxu0 0.0
    %5954 = vmatpush1.msra.mxu0 0.0
    %5955 = vmatprep.subr.mxu0 0.0
    %5956 = vmatpush1.msra.mxu0 0.0
    %5957 = vmatprep.subr.mxu0 0.0
    %5958 = vmatpush1.msra.mxu0 0.0
    %5959 = vmatprep.subr.mxu0 0.0
    %5960 = vmatpush1.msra.mxu0 0.0
    %5961 = vmatprep.subr.mxu0 0.0
    %5962 = vmatpush1.msra.mxu0 0.0
    %5963 = vmatprep.subr.mxu0 0.0
    %5964 = vmatpush1.msra.mxu0 0.0
    %5965 = vmatprep.subr.mxu0 0.0
    %5966 = vmatpush1.msra.mxu0 0.0
    %5967 = vmatprep.subr.mxu0 0.0
    %5968 = vmatpush1.msra.mxu0 0.0
    %5969 = vmatprep.subr.mxu0 0.0
    %5970 = vmatpush1.msra.mxu0 0.0
    %5971 = vmatprep.subr.mxu0 0.0
    %5972 = vmatpush1.msra.mxu0 0.0
    %5973 = vmatprep.subr.mxu0 0.0
    %5974 = vmatpush1.msra.mxu0 0.0
    %5975 = vmatprep.subr.mxu0 0.0
    %5976 = vmatpush1.msra.mxu0 0.0
    %5977 = vmatprep.subr.mxu0 0.0
    %5978 = vmatpush1.msra.mxu0 0.0
    %5979 = vmatprep.subr.mxu0 0.0
    %5980 = vmatpush1.msra.mxu0 0.0
    %5981 = vmatprep.subr.mxu0 0.0
    %5982 = vmatpush1.msra.mxu0 0.0
    %5983 = vmatprep.subr.mxu0 0.0
    %5984 = vmatpush1.msra.mxu0 0.0
    %5985 = vmatprep.subr.mxu0 0.0
    %5986 = vmatpush1.msra.mxu0 0.0
    %5987 = vmatprep.subr.mxu0 0.0
    %5988 = vmatpush1.msra.mxu0 0.0
    %5989 = vmatprep.mubr.f32.mxu0 0.0
    %5990 = vmatmul.mubr.f32.gmra.mrb[0].mxu0 %v5914
    %v5991 = vpop.f32.mrb[0].mxu0
    %v5992 = vadd.f32 0.0, %v5991
    %v5993 = vpop.f32.mrb[0].mxu0
    %5994 = vmatprep.mubr.f32.mxu0 0.0
    %5995 = vmatmul.mubr.f32.gmra.mrb[0].mxu0 %v5917
    %v5996 = vpop.f32.mrb[0].mxu0
    %v5997 = vadd.f32 0.0, %v5996
    %v5998 = vpop.f32.mrb[0].mxu0
    %5999 = vmatprep.mubr.f32.mxu0 0.0
    %6000 = vmatmul.mubr.f32.gmra.mrb[0].mxu0 %v5920
    %v6001 = vpop.f32.mrb[0].mxu0
    %v6002 = vadd.f32 0.0, %v6001
    %v6003 = vpop.f32.mrb[0].mxu0
    %6004 = vmatprep.mubr.f32.mxu0 0.0
    %6005 = vmatmul.mubr.f32.gmra.mrb[0].mxu0 %v5923
    %v6006 = vpop.f32.mrb[0].mxu0
    %v6007 = vadd.f32 0.0, %v6006
    %v6008 = vpop.f32.mrb[0].mxu0
    %6009 = vdwg.mxu0
    %v6010 = vadd.f32 %v5180, %v5992
    %v6011 = vadd.f32 %v5185, %v5997
    %v6012 = vadd.f32 %v5190, %v6002
    %v6013 = vadd.f32 %v5195, %v6007
    %s6014 = scalar_lea.vmem %s8, 384
    %v6015 = vld [vmem:[%s6014] sm:$0xff]
    %v6016 = vld [vmem:[%s6014 + $0x8] sm:$0xff]
    %v6017 = vld [vmem:[%s6014 + $0x10] sm:$0xff]
    %v6018 = vld [vmem:[%s6014 + $0x18] sm:$0xff]
    %v6019 = vld [vmem:[%s6014 + $0x20] sm:$0xff]
    %v6020 = vld [vmem:[%s6014 + $0x28] sm:$0xff]
    %v6021 = vld [vmem:[%s6014 + $0x30] sm:$0xff]
    %v6022 = vld [vmem:[%s6014 + $0x38] sm:$0xff]
    %v6023 = vld [vmem:[%s6014 + $0x40] sm:$0xff]
    %v6024 = vld [vmem:[%s6014 + $0x48] sm:$0xff]
    %v6025 = vld [vmem:[%s6014 + $0x50] sm:$0xff]
    %v6026 = vld [vmem:[%s6014 + $0x58] sm:$0xff]
    %v6027 = vld [vmem:[%s6014 + $0x60] sm:$0xff]
    %v6028 = vld [vmem:[%s6014 + $0x68] sm:$0xff]
    %v6029 = vld [vmem:[%s6014 + $0x70] sm:$0xff]
    %v6030 = vld [vmem:[%s6014 + $0x78] sm:$0xff]
    %s6031 = scalar_lea.vmem %s9, 3
    %v6032 = vld [vmem:[%s6031] sm:$0x1]
    %v6034 = vlaneseq
    %v6035 = vshrl.u32 %v6034, 7
    %v6036 = vsub.s32 0, %v6035
    %v6037 = vrot.slane %v6032, %v6036
    %6039 = vmatprep.subr.mxu0 0.0
    %6040 = vmatpush1.msra.mxu0 %v6015
    %6041 = vmatprep.subr.mxu0 0.0
    %6042 = vmatpush1.msra.mxu0 %v6016
    %6043 = vmatprep.subr.mxu0 0.0
    %6044 = vmatpush1.msra.mxu0 %v6017
    %6045 = vmatprep.subr.mxu0 0.0
    %6046 = vmatpush1.msra.mxu0 %v6018
    %6047 = vmatprep.subr.mxu0 0.0
    %6048 = vmatpush1.msra.mxu0 %v6019
    %6049 = vmatprep.subr.mxu0 0.0
    %6050 = vmatpush1.msra.mxu0 %v6020
    %6051 = vmatprep.subr.mxu0 0.0
    %6052 = vmatpush1.msra.mxu0 %v6021
    %6053 = vmatprep.subr.mxu0 0.0
    %6054 = vmatpush1.msra.mxu0 %v6022
    %6055 = vmatprep.subr.mxu0 0.0
    %6056 = vmatpush1.msra.mxu0 %v6023
    %6057 = vmatprep.subr.mxu0 0.0
    %6058 = vmatpush1.msra.mxu0 %v6024
    %6059 = vmatprep.subr.mxu0 0.0
    %6060 = vmatpush1.msra.mxu0 %v6025
    %6061 = vmatprep.subr.mxu0 0.0
    %6062 = vmatpush1.msra.mxu0 %v6026
    %6063 = vmatprep.subr.mxu0 0.0
    %6064 = vmatpush1.msra.mxu0 %v6027
    %6065 = vmatprep.subr.mxu0 0.0
    %6066 = vmatpush1.msra.mxu0 %v6028
    %6067 = vmatprep.subr.mxu0 0.0
    %6068 = vmatpush1.msra.mxu0 %v6029
    %6069 = vmatprep.subr.mxu0 0.0
    %6070 = vmatpush1.msra.mxu0 %v6030
    %6071 = vmatprep.subr.mxu0 0.0
    %6072 = vmatpush1.msra.mxu0 0.0
    %6073 = vmatprep.subr.mxu0 0.0
    %6074 = vmatpush1.msra.mxu0 0.0
    %6075 = vmatprep.subr.mxu0 0.0
    %6076 = vmatpush1.msra.mxu0 0.0
    %6077 = vmatprep.subr.mxu0 0.0
    %6078 = vmatpush1.msra.mxu0 0.0
    %6079 = vmatprep.subr.mxu0 0.0
    %6080 = vmatpush1.msra.mxu0 0.0
    %6081 = vmatprep.subr.mxu0 0.0
    %6082 = vmatpush1.msra.mxu0 0.0
    %6083 = vmatprep.subr.mxu0 0.0
    %6084 = vmatpush1.msra.mxu0 0.0
    %6085 = vmatprep.subr.mxu0 0.0
    %6086 = vmatpush1.msra.mxu0 0.0
    %6087 = vmatprep.subr.mxu0 0.0
    %6088 = vmatpush1.msra.mxu0 0.0
    %6089 = vmatprep.subr.mxu0 0.0
    %6090 = vmatpush1.msra.mxu0 0.0
    %6091 = vmatprep.subr.mxu0 0.0
    %6092 = vmatpush1.msra.mxu0 0.0
    %6093 = vmatprep.subr.mxu0 0.0
    %6094 = vmatpush1.msra.mxu0 0.0
    %6095 = vmatprep.subr.mxu0 0.0
    %6096 = vmatpush1.msra.mxu0 0.0
    %6097 = vmatprep.subr.mxu0 0.0
    %6098 = vmatpush1.msra.mxu0 0.0
    %6099 = vmatprep.subr.mxu0 0.0
    %6100 = vmatpush1.msra.mxu0 0.0
    %6101 = vmatprep.subr.mxu0 0.0
    %6102 = vmatpush1.msra.mxu0 0.0
    %6103 = vmatprep.mubr.f32.mxu0 0.0
    %6104 = vmatmul.mubr.f32.gmra.mrb[0].mxu0 %v3573
    %v6105 = vpop.f32.mrb[0].mxu0
    %v6106 = vadd.f32 %v6037, %v6105
    %v6107 = vpop.f32.mrb[0].mxu0
    %6108 = vmatprep.mubr.f32.mxu0 0.0
    %6109 = vmatmul.mubr.f32.gmra.mrb[0].mxu0 %v3574
    %v6110 = vpop.f32.mrb[0].mxu0
    %v6111 = vadd.f32 %v6037, %v6110
    %v6112 = vpop.f32.mrb[0].mxu0
    %6113 = vmatprep.mubr.f32.mxu0 0.0
    %6114 = vmatmul.mubr.f32.gmra.mrb[0].mxu0 %v3575
    %v6115 = vpop.f32.mrb[0].mxu0
    %v6116 = vadd.f32 %v6037, %v6115
    %v6117 = vpop.f32.mrb[0].mxu0
    %6118 = vmatprep.mubr.f32.mxu0 0.0
    %6119 = vmatmul.mubr.f32.gmra.mrb[0].mxu0 %v3576
    %v6120 = vpop.f32.mrb[0].mxu0
    %v6121 = vadd.f32 %v6037, %v6120
    %v6122 = vpop.f32.mrb[0].mxu0
    %6123 = vdwg.mxu0
    %s6124 = scalar_lea.vmem %s8, 896
    %v6125 = vld [vmem:[%s6124] sm:$0xff]
    %v6126 = vld [vmem:[%s6124 + $0x8] sm:$0xff]
    %v6127 = vld [vmem:[%s6124 + $0x10] sm:$0xff]
    %v6128 = vld [vmem:[%s6124 + $0x18] sm:$0xff]
    %v6129 = vld [vmem:[%s6124 + $0x20] sm:$0xff]
    %v6130 = vld [vmem:[%s6124 + $0x28] sm:$0xff]
    %v6131 = vld [vmem:[%s6124 + $0x30] sm:$0xff]
    %v6132 = vld [vmem:[%s6124 + $0x38] sm:$0xff]
    %v6133 = vld [vmem:[%s6124 + $0x40] sm:$0xff]
    %v6134 = vld [vmem:[%s6124 + $0x48] sm:$0xff]
    %v6135 = vld [vmem:[%s6124 + $0x50] sm:$0xff]
    %v6136 = vld [vmem:[%s6124 + $0x58] sm:$0xff]
    %v6137 = vld [vmem:[%s6124 + $0x60] sm:$0xff]
    %v6138 = vld [vmem:[%s6124 + $0x68] sm:$0xff]
    %v6139 = vld [vmem:[%s6124 + $0x70] sm:$0xff]
    %v6140 = vld [vmem:[%s6124 + $0x78] sm:$0xff]
    %s6141 = scalar_lea.vmem %s9, 7
    %v6142 = vld [vmem:[%s6141] sm:$0x1]
    %v6144 = vlaneseq
    %v6145 = vshrl.u32 %v6144, 7
    %v6146 = vsub.s32 0, %v6145
    %v6147 = vrot.slane %v6142, %v6146
    %6149 = vmatprep.subr.mxu0 0.0
    %6150 = vmatpush1.msra.mxu0 %v6125
    %6151 = vmatprep.subr.mxu0 0.0
    %6152 = vmatpush1.msra.mxu0 %v6126
    %6153 = vmatprep.subr.mxu0 0.0
    %6154 = vmatpush1.msra.mxu0 %v6127
    %6155 = vmatprep.subr.mxu0 0.0
    %6156 = vmatpush1.msra.mxu0 %v6128
    %6157 = vmatprep.subr.mxu0 0.0
    %6158 = vmatpush1.msra.mxu0 %v6129
    %6159 = vmatprep.subr.mxu0 0.0
    %6160 = vmatpush1.msra.mxu0 %v6130
    %6161 = vmatprep.subr.mxu0 0.0
    %6162 = vmatpush1.msra.mxu0 %v6131
    %6163 = vmatprep.subr.mxu0 0.0
    %6164 = vmatpush1.msra.mxu0 %v6132
    %6165 = vmatprep.subr.mxu0 0.0
    %6166 = vmatpush1.msra.mxu0 %v6133
    %6167 = vmatprep.subr.mxu0 0.0
    %6168 = vmatpush1.msra.mxu0 %v6134
    %6169 = vmatprep.subr.mxu0 0.0
    %6170 = vmatpush1.msra.mxu0 %v6135
    %6171 = vmatprep.subr.mxu0 0.0
    %6172 = vmatpush1.msra.mxu0 %v6136
    %6173 = vmatprep.subr.mxu0 0.0
    %6174 = vmatpush1.msra.mxu0 %v6137
    %6175 = vmatprep.subr.mxu0 0.0
    %6176 = vmatpush1.msra.mxu0 %v6138
    %6177 = vmatprep.subr.mxu0 0.0
    %6178 = vmatpush1.msra.mxu0 %v6139
    %6179 = vmatprep.subr.mxu0 0.0
    %6180 = vmatpush1.msra.mxu0 %v6140
    %6181 = vmatprep.subr.mxu0 0.0
    %6182 = vmatpush1.msra.mxu0 0.0
    %6183 = vmatprep.subr.mxu0 0.0
    %6184 = vmatpush1.msra.mxu0 0.0
    %6185 = vmatprep.subr.mxu0 0.0
    %6186 = vmatpush1.msra.mxu0 0.0
    %6187 = vmatprep.subr.mxu0 0.0
    %6188 = vmatpush1.msra.mxu0 0.0
    %6189 = vmatprep.subr.mxu0 0.0
    %6190 = vmatpush1.msra.mxu0 0.0
    %6191 = vmatprep.subr.mxu0 0.0
    %6192 = vmatpush1.msra.mxu0 0.0
    %6193 = vmatprep.subr.mxu0 0.0
    %6194 = vmatpush1.msra.mxu0 0.0
    %6195 = vmatprep.subr.mxu0 0.0
    %6196 = vmatpush1.msra.mxu0 0.0
    %6197 = vmatprep.subr.mxu0 0.0
    %6198 = vmatpush1.msra.mxu0 0.0
    %6199 = vmatprep.subr.mxu0 0.0
    %6200 = vmatpush1.msra.mxu0 0.0
    %6201 = vmatprep.subr.mxu0 0.0
    %6202 = vmatpush1.msra.mxu0 0.0
    %6203 = vmatprep.subr.mxu0 0.0
    %6204 = vmatpush1.msra.mxu0 0.0
    %6205 = vmatprep.subr.mxu0 0.0
    %6206 = vmatpush1.msra.mxu0 0.0
    %6207 = vmatprep.subr.mxu0 0.0
    %6208 = vmatpush1.msra.mxu0 0.0
    %6209 = vmatprep.subr.mxu0 0.0
    %6210 = vmatpush1.msra.mxu0 0.0
    %6211 = vmatprep.subr.mxu0 0.0
    %6212 = vmatpush1.msra.mxu0 0.0
    %6213 = vmatprep.mubr.f32.mxu0 0.0
    %6214 = vmatmul.mubr.f32.gmra.mrb[0].mxu0 %v203
    %v6215 = vpop.f32.mrb[0].mxu0
    %v6216 = vadd.f32 %v6147, %v6215
    %v6217 = vpop.f32.mrb[0].mxu0
    %6218 = vmatprep.mubr.f32.mxu0 0.0
    %6219 = vmatmul.mubr.f32.gmra.mrb[0].mxu0 %v204
    %v6220 = vpop.f32.mrb[0].mxu0
    %v6221 = vadd.f32 %v6147, %v6220
    %v6222 = vpop.f32.mrb[0].mxu0
    %6223 = vmatprep.mubr.f32.mxu0 0.0
    %6224 = vmatmul.mubr.f32.gmra.mrb[0].mxu0 %v205
    %v6225 = vpop.f32.mrb[0].mxu0
    %v6226 = vadd.f32 %v6147, %v6225
    %v6227 = vpop.f32.mrb[0].mxu0
    %6228 = vmatprep.mubr.f32.mxu0 0.0
    %6229 = vmatmul.mubr.f32.gmra.mrb[0].mxu0 %v206
    %v6230 = vpop.f32.mrb[0].mxu0
    %v6231 = vadd.f32 %v6147, %v6230
    %v6232 = vpop.f32.mrb[0].mxu0
    %6233 = vdwg.mxu0
    %s6234 = scalar_lea.vmem %s8, 1408
    %v6235 = vld [vmem:[%s6234] sm:$0xff]
    %v6236 = vld [vmem:[%s6234 + $0x8] sm:$0xff]
    %v6237 = vld [vmem:[%s6234 + $0x10] sm:$0xff]
    %v6238 = vld [vmem:[%s6234 + $0x18] sm:$0xff]
    %v6239 = vld [vmem:[%s6234 + $0x20] sm:$0xff]
    %v6240 = vld [vmem:[%s6234 + $0x28] sm:$0xff]
    %v6241 = vld [vmem:[%s6234 + $0x30] sm:$0xff]
    %v6242 = vld [vmem:[%s6234 + $0x38] sm:$0xff]
    %v6243 = vld [vmem:[%s6234 + $0x40] sm:$0xff]
    %v6244 = vld [vmem:[%s6234 + $0x48] sm:$0xff]
    %v6245 = vld [vmem:[%s6234 + $0x50] sm:$0xff]
    %v6246 = vld [vmem:[%s6234 + $0x58] sm:$0xff]
    %v6247 = vld [vmem:[%s6234 + $0x60] sm:$0xff]
    %v6248 = vld [vmem:[%s6234 + $0x68] sm:$0xff]
    %v6249 = vld [vmem:[%s6234 + $0x70] sm:$0xff]
    %v6250 = vld [vmem:[%s6234 + $0x78] sm:$0xff]
    %s6251 = scalar_lea.vmem %s9, 11
    %v6252 = vld [vmem:[%s6251] sm:$0x1]
    %v6254 = vlaneseq
    %v6255 = vshrl.u32 %v6254, 7
    %v6256 = vsub.s32 0, %v6255
    %v6257 = vrot.slane %v6252, %v6256
    %6259 = vmatprep.subr.mxu0 0.0
    %6260 = vmatpush1.msra.mxu0 %v6235
    %6261 = vmatprep.subr.mxu0 0.0
    %6262 = vmatpush1.msra.mxu0 %v6236
    %6263 = vmatprep.subr.mxu0 0.0
    %6264 = vmatpush1.msra.mxu0 %v6237
    %6265 = vmatprep.subr.mxu0 0.0
    %6266 = vmatpush1.msra.mxu0 %v6238
    %6267 = vmatprep.subr.mxu0 0.0
    %6268 = vmatpush1.msra.mxu0 %v6239
    %6269 = vmatprep.subr.mxu0 0.0
    %6270 = vmatpush1.msra.mxu0 %v6240
    %6271 = vmatprep.subr.mxu0 0.0
    %6272 = vmatpush1.msra.mxu0 %v6241
    %6273 = vmatprep.subr.mxu0 0.0
    %6274 = vmatpush1.msra.mxu0 %v6242
    %6275 = vmatprep.subr.mxu0 0.0
    %6276 = vmatpush1.msra.mxu0 %v6243
    %6277 = vmatprep.subr.mxu0 0.0
    %6278 = vmatpush1.msra.mxu0 %v6244
    %6279 = vmatprep.subr.mxu0 0.0
    %6280 = vmatpush1.msra.mxu0 %v6245
    %6281 = vmatprep.subr.mxu0 0.0
    %6282 = vmatpush1.msra.mxu0 %v6246
    %6283 = vmatprep.subr.mxu0 0.0
    %6284 = vmatpush1.msra.mxu0 %v6247
    %6285 = vmatprep.subr.mxu0 0.0
    %6286 = vmatpush1.msra.mxu0 %v6248
    %6287 = vmatprep.subr.mxu0 0.0
    %6288 = vmatpush1.msra.mxu0 %v6249
    %6289 = vmatprep.subr.mxu0 0.0
    %6290 = vmatpush1.msra.mxu0 %v6250
    %6291 = vmatprep.subr.mxu0 0.0
    %6292 = vmatpush1.msra.mxu0 0.0
    %6293 = vmatprep.subr.mxu0 0.0
    %6294 = vmatpush1.msra.mxu0 0.0
    %6295 = vmatprep.subr.mxu0 0.0
    %6296 = vmatpush1.msra.mxu0 0.0
    %6297 = vmatprep.subr.mxu0 0.0
    %6298 = vmatpush1.msra.mxu0 0.0
    %6299 = vmatprep.subr.mxu0 0.0
    %6300 = vmatpush1.msra.mxu0 0.0
    %6301 = vmatprep.subr.mxu0 0.0
    %6302 = vmatpush1.msra.mxu0 0.0
    %6303 = vmatprep.subr.mxu0 0.0
    %6304 = vmatpush1.msra.mxu0 0.0
    %6305 = vmatprep.subr.mxu0 0.0
    %6306 = vmatpush1.msra.mxu0 0.0
    %6307 = vmatprep.subr.mxu0 0.0
    %6308 = vmatpush1.msra.mxu0 0.0
    %6309 = vmatprep.subr.mxu0 0.0
    %6310 = vmatpush1.msra.mxu0 0.0
    %6311 = vmatprep.subr.mxu0 0.0
    %6312 = vmatpush1.msra.mxu0 0.0
    %6313 = vmatprep.subr.mxu0 0.0
    %6314 = vmatpush1.msra.mxu0 0.0
    %6315 = vmatprep.subr.mxu0 0.0
    %6316 = vmatpush1.msra.mxu0 0.0
    %6317 = vmatprep.subr.mxu0 0.0
    %6318 = vmatpush1.msra.mxu0 0.0
    %6319 = vmatprep.subr.mxu0 0.0
    %6320 = vmatpush1.msra.mxu0 0.0
    %6321 = vmatprep.subr.mxu0 0.0
    %6322 = vmatpush1.msra.mxu0 0.0
    %6323 = vmatprep.mubr.f32.mxu0 0.0
    %6324 = vmatmul.mubr.f32.gmra.mrb[0].mxu0 %v203
    %v6325 = vpop.f32.mrb[0].mxu0
    %v6326 = vadd.f32 %v6257, %v6325
    %v6327 = vpop.f32.mrb[0].mxu0
    %6328 = vmatprep.mubr.f32.mxu0 0.0
    %6329 = vmatmul.mubr.f32.gmra.mrb[0].mxu0 %v204
    %v6330 = vpop.f32.mrb[0].mxu0
    %v6331 = vadd.f32 %v6257, %v6330
    %v6332 = vpop.f32.mrb[0].mxu0
    %6333 = vmatprep.mubr.f32.mxu0 0.0
    %6334 = vmatmul.mubr.f32.gmra.mrb[0].mxu0 %v205
    %v6335 = vpop.f32.mrb[0].mxu0
    %v6336 = vadd.f32 %v6257, %v6335
    %v6337 = vpop.f32.mrb[0].mxu0
    %6338 = vmatprep.mubr.f32.mxu0 0.0
    %6339 = vmatmul.mubr.f32.gmra.mrb[0].mxu0 %v206
    %v6340 = vpop.f32.mrb[0].mxu0
    %v6341 = vadd.f32 %v6257, %v6340
    %v6342 = vpop.f32.mrb[0].mxu0
    %6343 = vdwg.mxu0
    %v6345 = vsel %vm540, %v6106, 0
    %v6348 = vsel %vm540, %v6111, 0
    %v6351 = vsel %vm540, %v6216, 0
    %v6354 = vsel %vm540, %v6221, 0
    %6356 = vmatprep.subr.mxu0 0.0
    %6357 = vmatpush1.xpose.msra.mxu0 %v6351
    %6358 = vmatprep.subr.mxu0 0.0
    %6359 = vmatpush1.xpose.msra.mxu0 %v6354
    %6360 = vmatprep.subr.mxu0 0.0
    %6361 = vmatpush1.xpose.msra.mxu0 0.0
    %6362 = vmatprep.subr.mxu0 0.0
    %6363 = vmatpush1.xpose.msra.mxu0 0.0
    %6364 = vmatprep.subr.mxu0 0.0
    %6365 = vmatpush1.xpose.msra.mxu0 0.0
    %6366 = vmatprep.subr.mxu0 0.0
    %6367 = vmatpush1.xpose.msra.mxu0 0.0
    %6368 = vmatprep.subr.mxu0 0.0
    %6369 = vmatpush1.xpose.msra.mxu0 0.0
    %6370 = vmatprep.subr.mxu0 0.0
    %6371 = vmatpush1.xpose.msra.mxu0 0.0
    %6372 = vmatprep.subr.mxu0 0.0
    %6373 = vmatpush1.xpose.msra.mxu0 0.0
    %6374 = vmatprep.subr.mxu0 0.0
    %6375 = vmatpush1.xpose.msra.mxu0 0.0
    %6376 = vmatprep.subr.mxu0 0.0
    %6377 = vmatpush1.xpose.msra.mxu0 0.0
    %6378 = vmatprep.subr.mxu0 0.0
    %6379 = vmatpush1.xpose.msra.mxu0 0.0
    %6380 = vmatprep.subr.mxu0 0.0
    %6381 = vmatpush1.xpose.msra.mxu0 0.0
    %6382 = vmatprep.subr.mxu0 0.0
    %6383 = vmatpush1.xpose.msra.mxu0 0.0
    %6384 = vmatprep.subr.mxu0 0.0
    %6385 = vmatpush1.xpose.msra.mxu0 0.0
    %6386 = vmatprep.subr.mxu0 0.0
    %6387 = vmatpush1.xpose.msra.mxu0 0.0
    %6388 = vmatprep.subr.mxu0 0.0
    %6389 = vmatpush1.xpose.msra.mxu0 0.0
    %6390 = vmatprep.subr.mxu0 0.0
    %6391 = vmatpush1.xpose.msra.mxu0 0.0
    %6392 = vmatprep.subr.mxu0 0.0
    %6393 = vmatpush1.xpose.msra.mxu0 0.0
    %6394 = vmatprep.subr.mxu0 0.0
    %6395 = vmatpush1.xpose.msra.mxu0 0.0
    %6396 = vmatprep.subr.mxu0 0.0
    %6397 = vmatpush1.xpose.msra.mxu0 0.0
    %6398 = vmatprep.subr.mxu0 0.0
    %6399 = vmatpush1.xpose.msra.mxu0 0.0
    %6400 = vmatprep.subr.mxu0 0.0
    %6401 = vmatpush1.xpose.msra.mxu0 0.0
    %6402 = vmatprep.subr.mxu0 0.0
    %6403 = vmatpush1.xpose.msra.mxu0 0.0
    %6404 = vmatprep.subr.mxu0 0.0
    %6405 = vmatpush1.xpose.msra.mxu0 0.0
    %6406 = vmatprep.subr.mxu0 0.0
    %6407 = vmatpush1.xpose.msra.mxu0 0.0
    %6408 = vmatprep.subr.mxu0 0.0
    %6409 = vmatpush1.xpose.msra.mxu0 0.0
    %6410 = vmatprep.subr.mxu0 0.0
    %6411 = vmatpush1.xpose.msra.mxu0 0.0
    %6412 = vmatprep.subr.mxu0 0.0
    %6413 = vmatpush1.xpose.msra.mxu0 0.0
    %6414 = vmatprep.subr.mxu0 0.0
    %6415 = vmatpush1.xpose.msra.mxu0 0.0
    %6416 = vmatprep.subr.mxu0 0.0
    %6417 = vmatpush1.xpose.msra.mxu0 0.0
    %6418 = vmatprep.subr.mxu0 0.0
    %6419 = vmatpush1.xpose.msra.mxu0 0.0
    %6420 = vmatprep.mubr.f32.mxu0 0.0
    %6421 = vmatmul.mubr.f32.gmra.mrb[0].mxu0 %v6345
    %v6422 = vpop.f32.mrb[0].mxu0
    %v6423 = vadd.f32 0.0, %v6422
    %v6424 = vpop.f32.mrb[0].mxu0
    %6425 = vmatprep.mubr.f32.mxu0 0.0
    %6426 = vmatmul.mubr.f32.gmra.mrb[0].mxu0 %v6348
    %v6427 = vpop.f32.mrb[0].mxu0
    %v6428 = vadd.f32 0.0, %v6427
    %v6429 = vpop.f32.mrb[0].mxu0
    %6430 = vdwg.mxu0
    %v6432 = vsel %vm540, %v6116, 0
    %v6435 = vsel %vm540, %v6121, 0
    %v6438 = vsel %vm540, %v6226, 0
    %v6441 = vsel %vm540, %v6231, 0
    %6443 = vmatprep.subr.mxu0 0.0
    %6444 = vmatpush1.xpose.msra.mxu0 %v6438
    %6445 = vmatprep.subr.mxu0 0.0
    %6446 = vmatpush1.xpose.msra.mxu0 %v6441
    %6447 = vmatprep.subr.mxu0 0.0
    %6448 = vmatpush1.xpose.msra.mxu0 0.0
    %6449 = vmatprep.subr.mxu0 0.0
    %6450 = vmatpush1.xpose.msra.mxu0 0.0
    %6451 = vmatprep.subr.mxu0 0.0
    %6452 = vmatpush1.xpose.msra.mxu0 0.0
    %6453 = vmatprep.subr.mxu0 0.0
    %6454 = vmatpush1.xpose.msra.mxu0 0.0
    %6455 = vmatprep.subr.mxu0 0.0
    %6456 = vmatpush1.xpose.msra.mxu0 0.0
    %6457 = vmatprep.subr.mxu0 0.0
    %6458 = vmatpush1.xpose.msra.mxu0 0.0
    %6459 = vmatprep.subr.mxu0 0.0
    %6460 = vmatpush1.xpose.msra.mxu0 0.0
    %6461 = vmatprep.subr.mxu0 0.0
    %6462 = vmatpush1.xpose.msra.mxu0 0.0
    %6463 = vmatprep.subr.mxu0 0.0
    %6464 = vmatpush1.xpose.msra.mxu0 0.0
    %6465 = vmatprep.subr.mxu0 0.0
    %6466 = vmatpush1.xpose.msra.mxu0 0.0
    %6467 = vmatprep.subr.mxu0 0.0
    %6468 = vmatpush1.xpose.msra.mxu0 0.0
    %6469 = vmatprep.subr.mxu0 0.0
    %6470 = vmatpush1.xpose.msra.mxu0 0.0
    %6471 = vmatprep.subr.mxu0 0.0
    %6472 = vmatpush1.xpose.msra.mxu0 0.0
    %6473 = vmatprep.subr.mxu0 0.0
    %6474 = vmatpush1.xpose.msra.mxu0 0.0
    %6475 = vmatprep.subr.mxu0 0.0
    %6476 = vmatpush1.xpose.msra.mxu0 0.0
    %6477 = vmatprep.subr.mxu0 0.0
    %6478 = vmatpush1.xpose.msra.mxu0 0.0
    %6479 = vmatprep.subr.mxu0 0.0
    %6480 = vmatpush1.xpose.msra.mxu0 0.0
    %6481 = vmatprep.subr.mxu0 0.0
    %6482 = vmatpush1.xpose.msra.mxu0 0.0
    %6483 = vmatprep.subr.mxu0 0.0
    %6484 = vmatpush1.xpose.msra.mxu0 0.0
    %6485 = vmatprep.subr.mxu0 0.0
    %6486 = vmatpush1.xpose.msra.mxu0 0.0
    %6487 = vmatprep.subr.mxu0 0.0
    %6488 = vmatpush1.xpose.msra.mxu0 0.0
    %6489 = vmatprep.subr.mxu0 0.0
    %6490 = vmatpush1.xpose.msra.mxu0 0.0
    %6491 = vmatprep.subr.mxu0 0.0
    %6492 = vmatpush1.xpose.msra.mxu0 0.0
    %6493 = vmatprep.subr.mxu0 0.0
    %6494 = vmatpush1.xpose.msra.mxu0 0.0
    %6495 = vmatprep.subr.mxu0 0.0
    %6496 = vmatpush1.xpose.msra.mxu0 0.0
    %6497 = vmatprep.subr.mxu0 0.0
    %6498 = vmatpush1.xpose.msra.mxu0 0.0
    %6499 = vmatprep.subr.mxu0 0.0
    %6500 = vmatpush1.xpose.msra.mxu0 0.0
    %6501 = vmatprep.subr.mxu0 0.0
    %6502 = vmatpush1.xpose.msra.mxu0 0.0
    %6503 = vmatprep.subr.mxu0 0.0
    %6504 = vmatpush1.xpose.msra.mxu0 0.0
    %6505 = vmatprep.subr.mxu0 0.0
    %6506 = vmatpush1.xpose.msra.mxu0 0.0
    %6507 = vmatprep.mubr.f32.mxu0 0.0
    %6508 = vmatmul.mubr.f32.gmra.mrb[0].mxu0 %v6432
    %v6509 = vpop.f32.mrb[0].mxu0
    %v6510 = vadd.f32 0.0, %v6509
    %v6511 = vpop.f32.mrb[0].mxu0
    %6512 = vmatprep.mubr.f32.mxu0 0.0
    %6513 = vmatmul.mubr.f32.gmra.mrb[0].mxu0 %v6435
    %v6514 = vpop.f32.mrb[0].mxu0
    %v6515 = vadd.f32 0.0, %v6514
    %v6516 = vpop.f32.mrb[0].mxu0
    %6517 = vdwg.mxu0
    %v6518 = vsel %vm723, %v6423, -inf
    %6519 = vmax.xlane.f32.xlu0 %v6518
    %v6520 = vpop.xlane.xlu0 %6519
    %v6521 = vsel %vm723, %v6428, -inf
    %6522 = vmax.xlane.f32.xlu0 %v6521
    %v6523 = vpop.xlane.xlu0 %6522
    %v6524 = vsel %vm723, %v6510, -inf
    %6525 = vmax.xlane.f32.xlu0 %v6524
    %v6526 = vpop.xlane.xlu0 %6525
    %v6527 = vsel %vm723, %v6515, -inf
    %6528 = vmax.xlane.f32.xlu0 %v6527
    %v6529 = vpop.xlane.xlu0 %6528
    %v6530 = vsub.f32 %v6423, %v6520
    %v6531 = vsub.f32 %v6428, %v6523
    %v6532 = vsub.f32 %v6510, %v6526
    %v6533 = vsub.f32 %v6515, %v6529
    %v6534 = vmul.f32 %v6530, 1.442695
    %v6535 = vpow.pop %v6534
    %v6536 = vmul.f32 %v6531, 1.442695
    %v6537 = vpow.pop %v6536
    %v6538 = vmul.f32 %v6532, 1.442695
    %v6539 = vpow.pop %v6538
    %v6540 = vmul.f32 %v6533, 1.442695
    %v6541 = vpow.pop %v6540
    %v6542 = vsel %vm723, %v6535, 0.0
    %6543 = vadd.xlane.f32.xlu0 %v6542
    %v6544 = vpop.xlane.xlu0 %6543
    %v6545 = vsel %vm723, %v6537, 0.0
    %6546 = vadd.xlane.f32.xlu0 %v6545
    %v6547 = vpop.xlane.xlu0 %6546
    %v6548 = vsel %vm723, %v6539, 0.0
    %6549 = vadd.xlane.f32.xlu0 %v6548
    %v6550 = vpop.xlane.xlu0 %6549
    %v6551 = vsel %vm723, %v6541, 0.0
    %6552 = vadd.xlane.f32.xlu0 %v6551
    %v6553 = vpop.xlane.xlu0 %6552
    %v6554 = vrcp.pop %v6544
    %v6555 = vrcp.pop %v6547
    %v6556 = vrcp.pop %v6550
    %v6557 = vrcp.pop %v6553
    %v6558 = vmul.f32 %v6535, %v6554
    %v6559 = vmul.f32 %v6537, %v6555
    %v6560 = vmul.f32 %v6539, %v6556
    %v6561 = vmul.f32 %v6541, %v6557
    %v6563 = vsel %vm723, %v6558, 0
    %v6566 = vsel %vm723, %v6559, 0
    %6568 = vmatprep.subr.mxu0 0.0
    %6569 = vmatpush1.msra.mxu0 %v6326
    %6570 = vmatprep.subr.mxu0 0.0
    %6571 = vmatpush1.msra.mxu0 %v6331
    %6572 = vmatprep.subr.mxu0 0.0
    %6573 = vmatpush1.msra.mxu0 0.0
    %6574 = vmatprep.subr.mxu0 0.0
    %6575 = vmatpush1.msra.mxu0 0.0
    %6576 = vmatprep.subr.mxu0 0.0
    %6577 = vmatpush1.msra.mxu0 0.0
    %6578 = vmatprep.subr.mxu0 0.0
    %6579 = vmatpush1.msra.mxu0 0.0
    %6580 = vmatprep.subr.mxu0 0.0
    %6581 = vmatpush1.msra.mxu0 0.0
    %6582 = vmatprep.subr.mxu0 0.0
    %6583 = vmatpush1.msra.mxu0 0.0
    %6584 = vmatprep.subr.mxu0 0.0
    %6585 = vmatpush1.msra.mxu0 0.0
    %6586 = vmatprep.subr.mxu0 0.0
    %6587 = vmatpush1.msra.mxu0 0.0
    %6588 = vmatprep.subr.mxu0 0.0
    %6589 = vmatpush1.msra.mxu0 0.0
    %6590 = vmatprep.subr.mxu0 0.0
    %6591 = vmatpush1.msra.mxu0 0.0
    %6592 = vmatprep.subr.mxu0 0.0
    %6593 = vmatpush1.msra.mxu0 0.0
    %6594 = vmatprep.subr.mxu0 0.0
    %6595 = vmatpush1.msra.mxu0 0.0
    %6596 = vmatprep.subr.mxu0 0.0
    %6597 = vmatpush1.msra.mxu0 0.0
    %6598 = vmatprep.subr.mxu0 0.0
    %6599 = vmatpush1.msra.mxu0 0.0
    %6600 = vmatprep.subr.mxu0 0.0
    %6601 = vmatpush1.msra.mxu0 0.0
    %6602 = vmatprep.subr.mxu0 0.0
    %6603 = vmatpush1.msra.mxu0 0.0
    %6604 = vmatprep.subr.mxu0 0.0
    %6605 = vmatpush1.msra.mxu0 0.0
    %6606 = vmatprep.subr.mxu0 0.0
    %6607 = vmatpush1.msra.mxu0 0.0
    %6608 = vmatprep.subr.mxu0 0.0
    %6609 = vmatpush1.msra.mxu0 0.0
    %6610 = vmatprep.subr.mxu0 0.0
    %6611 = vmatpush1.msra.mxu0 0.0
    %6612 = vmatprep.subr.mxu0 0.0
    %6613 = vmatpush1.msra.mxu0 0.0
    %6614 = vmatprep.subr.mxu0 0.0
    %6615 = vmatpush1.msra.mxu0 0.0
    %6616 = vmatprep.subr.mxu0 0.0
    %6617 = vmatpush1.msra.mxu0 0.0
    %6618 = vmatprep.subr.mxu0 0.0
    %6619 = vmatpush1.msra.mxu0 0.0
    %6620 = vmatprep.subr.mxu0 0.0
    %6621 = vmatpush1.msra.mxu0 0.0
    %6622 = vmatprep.subr.mxu0 0.0
    %6623 = vmatpush1.msra.mxu0 0.0
    %6624 = vmatprep.subr.mxu0 0.0
    %6625 = vmatpush1.msra.mxu0 0.0
    %6626 = vmatprep.subr.mxu0 0.0
    %6627 = vmatpush1.msra.mxu0 0.0
    %6628 = vmatprep.subr.mxu0 0.0
    %6629 = vmatpush1.msra.mxu0 0.0
    %6630 = vmatprep.subr.mxu0 0.0
    %6631 = vmatpush1.msra.mxu0 0.0
    %6632 = vmatprep.mubr.f32.mxu0 0.0
    %6633 = vmatmul.mubr.f32.gmra.mrb[0].mxu0 %v6563
    %v6634 = vpop.f32.mrb[0].mxu0
    %v6635 = vadd.f32 0.0, %v6634
    %v6636 = vpop.f32.mrb[0].mxu0
    %6637 = vmatprep.mubr.f32.mxu0 0.0
    %6638 = vmatmul.mubr.f32.gmra.mrb[0].mxu0 %v6566
    %v6639 = vpop.f32.mrb[0].mxu0
    %v6640 = vadd.f32 0.0, %v6639
    %v6641 = vpop.f32.mrb[0].mxu0
    %6642 = vdwg.mxu0
    %v6644 = vsel %vm723, %v6560, 0
    %v6647 = vsel %vm723, %v6561, 0
    %6649 = vmatprep.subr.mxu0 0.0
    %6650 = vmatpush1.msra.mxu0 %v6336
    %6651 = vmatprep.subr.mxu0 0.0
    %6652 = vmatpush1.msra.mxu0 %v6341
    %6653 = vmatprep.subr.mxu0 0.0
    %6654 = vmatpush1.msra.mxu0 0.0
    %6655 = vmatprep.subr.mxu0 0.0
    %6656 = vmatpush1.msra.mxu0 0.0
    %6657 = vmatprep.subr.mxu0 0.0
    %6658 = vmatpush1.msra.mxu0 0.0
    %6659 = vmatprep.subr.mxu0 0.0
    %6660 = vmatpush1.msra.mxu0 0.0
    %6661 = vmatprep.subr.mxu0 0.0
    %6662 = vmatpush1.msra.mxu0 0.0
    %6663 = vmatprep.subr.mxu0 0.0
    %6664 = vmatpush1.msra.mxu0 0.0
    %6665 = vmatprep.subr.mxu0 0.0
    %6666 = vmatpush1.msra.mxu0 0.0
    %6667 = vmatprep.subr.mxu0 0.0
    %6668 = vmatpush1.msra.mxu0 0.0
    %6669 = vmatprep.subr.mxu0 0.0
    %6670 = vmatpush1.msra.mxu0 0.0
    %6671 = vmatprep.subr.mxu0 0.0
    %6672 = vmatpush1.msra.mxu0 0.0
    %6673 = vmatprep.subr.mxu0 0.0
    %6674 = vmatpush1.msra.mxu0 0.0
    %6675 = vmatprep.subr.mxu0 0.0
    %6676 = vmatpush1.msra.mxu0 0.0
    %6677 = vmatprep.subr.mxu0 0.0
    %6678 = vmatpush1.msra.mxu0 0.0
    %6679 = vmatprep.subr.mxu0 0.0
    %6680 = vmatpush1.msra.mxu0 0.0
    %6681 = vmatprep.subr.mxu0 0.0
    %6682 = vmatpush1.msra.mxu0 0.0
    %6683 = vmatprep.subr.mxu0 0.0
    %6684 = vmatpush1.msra.mxu0 0.0
    %6685 = vmatprep.subr.mxu0 0.0
    %6686 = vmatpush1.msra.mxu0 0.0
    %6687 = vmatprep.subr.mxu0 0.0
    %6688 = vmatpush1.msra.mxu0 0.0
    %6689 = vmatprep.subr.mxu0 0.0
    %6690 = vmatpush1.msra.mxu0 0.0
    %6691 = vmatprep.subr.mxu0 0.0
    %6692 = vmatpush1.msra.mxu0 0.0
    %6693 = vmatprep.subr.mxu0 0.0
    %6694 = vmatpush1.msra.mxu0 0.0
    %6695 = vmatprep.subr.mxu0 0.0
    %6696 = vmatpush1.msra.mxu0 0.0
    %6697 = vmatprep.subr.mxu0 0.0
    %6698 = vmatpush1.msra.mxu0 0.0
    %6699 = vmatprep.subr.mxu0 0.0
    %6700 = vmatpush1.msra.mxu0 0.0
    %6701 = vmatprep.subr.mxu0 0.0
    %6702 = vmatpush1.msra.mxu0 0.0
    %6703 = vmatprep.subr.mxu0 0.0
    %6704 = vmatpush1.msra.mxu0 0.0
    %6705 = vmatprep.subr.mxu0 0.0
    %6706 = vmatpush1.msra.mxu0 0.0
    %6707 = vmatprep.subr.mxu0 0.0
    %6708 = vmatpush1.msra.mxu0 0.0
    %6709 = vmatprep.subr.mxu0 0.0
    %6710 = vmatpush1.msra.mxu0 0.0
    %6711 = vmatprep.subr.mxu0 0.0
    %6712 = vmatpush1.msra.mxu0 0.0
    %6713 = vmatprep.mubr.f32.mxu0 0.0
    %6714 = vmatmul.mubr.f32.gmra.mrb[0].mxu0 %v6644
    %v6715 = vpop.f32.mrb[0].mxu0
    %v6716 = vadd.f32 0.0, %v6715
    %v6717 = vpop.f32.mrb[0].mxu0
    %6718 = vmatprep.mubr.f32.mxu0 0.0
    %6719 = vmatmul.mubr.f32.gmra.mrb[0].mxu0 %v6647
    %v6720 = vpop.f32.mrb[0].mxu0
    %v6721 = vadd.f32 0.0, %v6720
    %v6722 = vpop.f32.mrb[0].mxu0
    %6723 = vdwg.mxu0
    %s6724 = scalar_lea.vmem %s10, 96
    %v6725 = vld [vmem:[%s6724] sm:$0xff]
    %v6726 = vld [vmem:[%s6724 + $0x8] sm:$0xff]
    %v6727 = vld [vmem:[%s6724 + $0x10] sm:$0xff]
    %v6728 = vld [vmem:[%s6724 + $0x18] sm:$0xff]
    %v6730 = vsel %vm540, %v6635, 0
    %v6733 = vsel %vm540, %v6640, 0
    %v6736 = vsel %vm540, %v6716, 0
    %v6739 = vsel %vm540, %v6721, 0
    %6741 = vmatprep.subr.mxu0 0.0
    %6742 = vmatpush1.msra.mxu0 %v6725
    %6743 = vmatprep.subr.mxu0 0.0
    %6744 = vmatpush1.msra.mxu0 %v6726
    %6745 = vmatprep.subr.mxu0 0.0
    %6746 = vmatpush1.msra.mxu0 %v6727
    %6747 = vmatprep.subr.mxu0 0.0
    %6748 = vmatpush1.msra.mxu0 %v6728
    %6749 = vmatprep.subr.mxu0 0.0
    %6750 = vmatpush1.msra.mxu0 0.0
    %6751 = vmatprep.subr.mxu0 0.0
    %6752 = vmatpush1.msra.mxu0 0.0
    %6753 = vmatprep.subr.mxu0 0.0
    %6754 = vmatpush1.msra.mxu0 0.0
    %6755 = vmatprep.subr.mxu0 0.0
    %6756 = vmatpush1.msra.mxu0 0.0
    %6757 = vmatprep.subr.mxu0 0.0
    %6758 = vmatpush1.msra.mxu0 0.0
    %6759 = vmatprep.subr.mxu0 0.0
    %6760 = vmatpush1.msra.mxu0 0.0
    %6761 = vmatprep.subr.mxu0 0.0
    %6762 = vmatpush1.msra.mxu0 0.0
    %6763 = vmatprep.subr.mxu0 0.0
    %6764 = vmatpush1.msra.mxu0 0.0
    %6765 = vmatprep.subr.mxu0 0.0
    %6766 = vmatpush1.msra.mxu0 0.0
    %6767 = vmatprep.subr.mxu0 0.0
    %6768 = vmatpush1.msra.mxu0 0.0
    %6769 = vmatprep.subr.mxu0 0.0
    %6770 = vmatpush1.msra.mxu0 0.0
    %6771 = vmatprep.subr.mxu0 0.0
    %6772 = vmatpush1.msra.mxu0 0.0
    %6773 = vmatprep.subr.mxu0 0.0
    %6774 = vmatpush1.msra.mxu0 0.0
    %6775 = vmatprep.subr.mxu0 0.0
    %6776 = vmatpush1.msra.mxu0 0.0
    %6777 = vmatprep.subr.mxu0 0.0
    %6778 = vmatpush1.msra.mxu0 0.0
    %6779 = vmatprep.subr.mxu0 0.0
    %6780 = vmatpush1.msra.mxu0 0.0
    %6781 = vmatprep.subr.mxu0 0.0
    %6782 = vmatpush1.msra.mxu0 0.0
    %6783 = vmatprep.subr.mxu0 0.0
    %6784 = vmatpush1.msra.mxu0 0.0
    %6785 = vmatprep.subr.mxu0 0.0
    %6786 = vmatpush1.msra.mxu0 0.0
    %6787 = vmatprep.subr.mxu0 0.0
    %6788 = vmatpush1.msra.mxu0 0.0
    %6789 = vmatprep.subr.mxu0 0.0
    %6790 = vmatpush1.msra.mxu0 0.0
    %6791 = vmatprep.subr.mxu0 0.0
    %6792 = vmatpush1.msra.mxu0 0.0
    %6793 = vmatprep.subr.mxu0 0.0
    %6794 = vmatpush1.msra.mxu0 0.0
    %6795 = vmatprep.subr.mxu0 0.0
    %6796 = vmatpush1.msra.mxu0 0.0
    %6797 = vmatprep.subr.mxu0 0.0
    %6798 = vmatpush1.msra.mxu0 0.0
    %6799 = vmatprep.subr.mxu0 0.0
    %6800 = vmatpush1.msra.mxu0 0.0
    %6801 = vmatprep.subr.mxu0 0.0
    %6802 = vmatpush1.msra.mxu0 0.0
    %6803 = vmatprep.subr.mxu0 0.0
    %6804 = vmatpush1.msra.mxu0 0.0
    %6805 = vmatprep.mubr.f32.mxu0 0.0
    %6806 = vmatmul.mubr.f32.gmra.mrb[0].mxu0 %v6730
    %v6807 = vpop.f32.mrb[0].mxu0
    %v6808 = vadd.f32 0.0, %v6807
    %v6809 = vpop.f32.mrb[0].mxu0
    %6810 = vmatprep.mubr.f32.mxu0 0.0
    %6811 = vmatmul.mubr.f32.gmra.mrb[0].mxu0 %v6733
    %v6812 = vpop.f32.mrb[0].mxu0
    %v6813 = vadd.f32 0.0, %v6812
    %v6814 = vpop.f32.mrb[0].mxu0
    %6815 = vmatprep.mubr.f32.mxu0 0.0
    %6816 = vmatmul.mubr.f32.gmra.mrb[0].mxu0 %v6736
    %v6817 = vpop.f32.mrb[0].mxu0
    %v6818 = vadd.f32 0.0, %v6817
    %v6819 = vpop.f32.mrb[0].mxu0
    %6820 = vmatprep.mubr.f32.mxu0 0.0
    %6821 = vmatmul.mubr.f32.gmra.mrb[0].mxu0 %v6739
    %v6822 = vpop.f32.mrb[0].mxu0
    %v6823 = vadd.f32 0.0, %v6822
    %v6824 = vpop.f32.mrb[0].mxu0
    %6825 = vdwg.mxu0
    %v6826 = vadd.f32 %v6010, %v6808
    %v6827 = vadd.f32 %v6011, %v6813
    %v6828 = vadd.f32 %v6012, %v6818
    %v6829 = vadd.f32 %v6013, %v6823
    %v6830 = vld [vmem:[%s11] sm:$0x1]
    %v6832 = vlaneseq
    %v6833 = vshrl.u32 %v6832, 7
    %v6834 = vsub.s32 0, %v6833
    %v6835 = vrot.slane %v6830, %v6834
    %v6837 = vadd.f32 %v6826, %v6835
    %v6838 = vadd.f32 %v6827, %v6835
    %v6839 = vadd.f32 %v6828, %v6835
    %v6840 = vadd.f32 %v6829, %v6835
    %6841 = vadd.xlane.f32.xlu0 %v6837
    %v6842 = vpop.xlane.xlu0 %6841
    %6843 = vadd.xlane.f32.xlu0 %v6838
    %v6844 = vpop.xlane.xlu0 %6843
    %6845 = vadd.xlane.f32.xlu0 %v6839
    %v6846 = vpop.xlane.xlu0 %6845
    %6847 = vadd.xlane.f32.xlu0 %v6840
    %v6848 = vpop.xlane.xlu0 %6847
    %v6849 = vmul.f32 %v6842, %v3510
    %v6850 = vmul.f32 %v6844, %v3510
    %v6851 = vmul.f32 %v6846, %v3510
    %v6852 = vmul.f32 %v6848, %v3510
    %v6853 = vmul.f32 %v6837, %v6837
    %v6854 = vmul.f32 %v6838, %v6838
    %v6855 = vmul.f32 %v6839, %v6839
    %v6856 = vmul.f32 %v6840, %v6840
    %6857 = vadd.xlane.f32.xlu0 %v6853
    %v6858 = vpop.xlane.xlu0 %6857
    %6859 = vadd.xlane.f32.xlu0 %v6854
    %v6860 = vpop.xlane.xlu0 %6859
    %6861 = vadd.xlane.f32.xlu0 %v6855
    %v6862 = vpop.xlane.xlu0 %6861
    %6863 = vadd.xlane.f32.xlu0 %v6856
    %v6864 = vpop.xlane.xlu0 %6863
    %v6865 = vmul.f32 %v6858, %v3510
    %v6866 = vmul.f32 %v6860, %v3510
    %v6867 = vmul.f32 %v6862, %v3510
    %v6868 = vmul.f32 %v6864, %v3510
    %v6869 = vmul.f32 %v6849, %v6849
    %v6870 = vmul.f32 %v6850, %v6850
    %v6871 = vmul.f32 %v6851, %v6851
    %v6872 = vmul.f32 %v6852, %v6852
    %v6873 = vsub.f32 %v6865, %v6869
    %v6874 = vsub.f32 %v6866, %v6870
    %v6875 = vsub.f32 %v6867, %v6871
    %v6876 = vsub.f32 %v6868, %v6872
    %s6877 = scalar_lea.vmem %s16, 1
    %v6878 = vld [vmem:[%s6877] sm:$0x1]
    %v6879 = vsub.f32 %v6837, %v6849
    %v6880 = vsub.f32 %v6838, %v6850
    %v6881 = vsub.f32 %v6839, %v6851
    %v6882 = vsub.f32 %v6840, %v6852
    %v6883 = vadd.f32 %v6873, 1e-05
    %v6884 = vadd.f32 %v6874, 1e-05
    %v6885 = vadd.f32 %v6875, 1e-05
    %v6886 = vadd.f32 %v6876, 1e-05
    %v6887 = vrsqrt.pop %v6883
    %v6888 = vrsqrt.pop %v6884
    %v6889 = vrsqrt.pop %v6885
    %v6890 = vrsqrt.pop %v6886
    %v6891 = vmul.f32 %v6879, %v6887
    %v6892 = vmul.f32 %v6880, %v6888
    %v6893 = vmul.f32 %v6881, %v6889
    %v6894 = vmul.f32 %v6882, %v6890
    %v6896 = vlaneseq
    %v6897 = vshrl.u32 %v6896, 7
    %v6898 = vsub.s32 0, %v6897
    %v6899 = vrot.slane %v6878, %v6898
    %v6901 = vmul.f32 %v6899, %v6891
    %v6902 = vmul.f32 %v6899, %v6892
    %v6903 = vmul.f32 %v6899, %v6893
    %v6904 = vmul.f32 %v6899, %v6894
    %s6905 = scalar_lea.vmem %s17, 1
    %v6906 = vld [vmem:[%s6905] sm:$0x1]
    %v6908 = vlaneseq
    %v6909 = vshrl.u32 %v6908, 7
    %v6910 = vsub.s32 0, %v6909
    %v6911 = vrot.slane %v6906, %v6910
    %v6913 = vadd.f32 %v6901, %v6911
    %v6914 = vadd.f32 %v6902, %v6911
    %v6915 = vadd.f32 %v6903, %v6911
    %v6916 = vadd.f32 %v6904, %v6911
    %v6917 = vld [vmem:[%s12] sm:$0xff]
    %v6918 = vld [vmem:[%s12 + $0x8] sm:$0xff]
    %v6919 = vld [vmem:[%s12 + $0x10] sm:$0xff]
    %v6920 = vld [vmem:[%s12 + $0x18] sm:$0xff]
    %v6921 = vld [vmem:[%s12 + $0x20] sm:$0xff]
    %v6922 = vld [vmem:[%s12 + $0x28] sm:$0xff]
    %v6923 = vld [vmem:[%s12 + $0x30] sm:$0xff]
    %v6924 = vld [vmem:[%s12 + $0x38] sm:$0xff]
    %v6925 = vld [vmem:[%s12 + $0x40] sm:$0xff]
    %v6926 = vld [vmem:[%s12 + $0x48] sm:$0xff]
    %v6927 = vld [vmem:[%s12 + $0x50] sm:$0xff]
    %v6928 = vld [vmem:[%s12 + $0x58] sm:$0xff]
    %v6929 = vld [vmem:[%s12 + $0x60] sm:$0xff]
    %v6930 = vld [vmem:[%s12 + $0x68] sm:$0xff]
    %v6931 = vld [vmem:[%s12 + $0x70] sm:$0xff]
    %v6932 = vld [vmem:[%s12 + $0x78] sm:$0xff]
    %v6933 = vld [vmem:[%s12 + $0x80] sm:$0xff]
    %v6934 = vld [vmem:[%s12 + $0x88] sm:$0xff]
    %v6935 = vld [vmem:[%s12 + $0x90] sm:$0xff]
    %v6936 = vld [vmem:[%s12 + $0x98] sm:$0xff]
    %v6937 = vld [vmem:[%s12 + $0xa0] sm:$0xff]
    %v6938 = vld [vmem:[%s12 + $0xa8] sm:$0xff]
    %v6939 = vld [vmem:[%s12 + $0xb0] sm:$0xff]
    %v6940 = vld [vmem:[%s12 + $0xb8] sm:$0xff]
    %v6941 = vld [vmem:[%s12 + $0xc0] sm:$0xff]
    %v6942 = vld [vmem:[%s12 + $0xc8] sm:$0xff]
    %v6943 = vld [vmem:[%s12 + $0xd0] sm:$0xff]
    %v6944 = vld [vmem:[%s12 + $0xd8] sm:$0xff]
    %v6945 = vld [vmem:[%s12 + $0xe0] sm:$0xff]
    %v6946 = vld [vmem:[%s12 + $0xe8] sm:$0xff]
    %v6947 = vld [vmem:[%s12 + $0xf0] sm:$0xff]
    %v6948 = vld [vmem:[%s12 + $0xf8] sm:$0xff]
    %v6949 = vld [vmem:[%s13] sm:$0x3]
    %v6951 = vlaneseq
    %v6952 = vshrl.u32 %v6951, 7
    %v6953 = vsub.s32 0, %v6952
    %v6954 = vrot.slane %v6949, %v6953
    %v6955 = vlaneseq
    %v6956 = vshrl.u32 %v6955, 7
    %v6957 = vsub.s32 1, %v6956
    %v6958 = vrot.slane %v6949, %v6957
    %6961 = vmatprep.subr.mxu0 %v6918
    %6962 = vmatpush1.msra.mxu0 %v6917
    %6963 = vmatprep.subr.mxu0 %v6920
    %6964 = vmatpush1.msra.mxu0 %v6919
    %6965 = vmatprep.subr.mxu0 %v6922
    %6966 = vmatpush1.msra.mxu0 %v6921
    %6967 = vmatprep.subr.mxu0 %v6924
    %6968 = vmatpush1.msra.mxu0 %v6923
    %6969 = vmatprep.subr.mxu0 %v6926
    %6970 = vmatpush1.msra.mxu0 %v6925
    %6971 = vmatprep.subr.mxu0 %v6928
    %6972 = vmatpush1.msra.mxu0 %v6927
    %6973 = vmatprep.subr.mxu0 %v6930
    %6974 = vmatpush1.msra.mxu0 %v6929
    %6975 = vmatprep.subr.mxu0 %v6932
    %6976 = vmatpush1.msra.mxu0 %v6931
    %6977 = vmatprep.subr.mxu0 %v6934
    %6978 = vmatpush1.msra.mxu0 %v6933
    %6979 = vmatprep.subr.mxu0 %v6936
    %6980 = vmatpush1.msra.mxu0 %v6935
    %6981 = vmatprep.subr.mxu0 %v6938
    %6982 = vmatpush1.msra.mxu0 %v6937
    %6983 = vmatprep.subr.mxu0 %v6940
    %6984 = vmatpush1.msra.mxu0 %v6939
    %6985 = vmatprep.subr.mxu0 %v6942
    %6986 = vmatpush1.msra.mxu0 %v6941
    %6987 = vmatprep.subr.mxu0 %v6944
    %6988 = vmatpush1.msra.mxu0 %v6943
    %6989 = vmatprep.subr.mxu0 %v6946
    %6990 = vmatpush1.msra.mxu0 %v6945
    %6991 = vmatprep.subr.mxu0 %v6948
    %6992 = vmatpush1.msra.mxu0 %v6947
    %6993 = vmatprep.subr.mxu0 0.0
    %6994 = vmatpush1.msra.mxu0 0.0
    %6995 = vmatprep.subr.mxu0 0.0
    %6996 = vmatpush1.msra.mxu0 0.0
    %6997 = vmatprep.subr.mxu0 0.0
    %6998 = vmatpush1.msra.mxu0 0.0
    %6999 = vmatprep.subr.mxu0 0.0
    %7000 = vmatpush1.msra.mxu0 0.0
    %7001 = vmatprep.subr.mxu0 0.0
    %7002 = vmatpush1.msra.mxu0 0.0
    %7003 = vmatprep.subr.mxu0 0.0
    %7004 = vmatpush1.msra.mxu0 0.0
    %7005 = vmatprep.subr.mxu0 0.0
    %7006 = vmatpush1.msra.mxu0 0.0
    %7007 = vmatprep.subr.mxu0 0.0
    %7008 = vmatpush1.msra.mxu0 0.0
    %7009 = vmatprep.subr.mxu0 0.0
    %7010 = vmatpush1.msra.mxu0 0.0
    %7011 = vmatprep.subr.mxu0 0.0
    %7012 = vmatpush1.msra.mxu0 0.0
    %7013 = vmatprep.subr.mxu0 0.0
    %7014 = vmatpush1.msra.mxu0 0.0
    %7015 = vmatprep.subr.mxu0 0.0
    %7016 = vmatpush1.msra.mxu0 0.0
    %7017 = vmatprep.subr.mxu0 0.0
    %7018 = vmatpush1.msra.mxu0 0.0
    %7019 = vmatprep.subr.mxu0 0.0
    %7020 = vmatpush1.msra.mxu0 0.0
    %7021 = vmatprep.subr.mxu0 0.0
    %7022 = vmatpush1.msra.mxu0 0.0
    %7023 = vmatprep.subr.mxu0 0.0
    %7024 = vmatpush1.msra.mxu0 0.0
    %7025 = vmatprep.mubr.f32.mxu0 0.0
    %7026 = vmatmul.mubr.f32.gmra.mrb[0].mxu0 %v6913
    %v7027 = vpop.f32.mrb[0].mxu0
    %v7028 = vadd.f32 %v6954, %v7027
    %v7029 = vpop.f32.mrb[0].mxu0
    %v7030 = vadd.f32 %v6958, %v7029
    %7031 = vmatprep.mubr.f32.mxu0 0.0
    %7032 = vmatmul.mubr.f32.gmra.mrb[0].mxu0 %v6914
    %v7033 = vpop.f32.mrb[0].mxu0
    %v7034 = vadd.f32 %v6954, %v7033
    %v7035 = vpop.f32.mrb[0].mxu0
    %v7036 = vadd.f32 %v6958, %v7035
    %7037 = vmatprep.mubr.f32.mxu0 0.0
    %7038 = vmatmul.mubr.f32.gmra.mrb[0].mxu0 %v6915
    %v7039 = vpop.f32.mrb[0].mxu0
    %v7040 = vadd.f32 %v6954, %v7039
    %v7041 = vpop.f32.mrb[0].mxu0
    %v7042 = vadd.f32 %v6958, %v7041
    %7043 = vmatprep.mubr.f32.mxu0 0.0
    %7044 = vmatmul.mubr.f32.gmra.mrb[0].mxu0 %v6916
    %v7045 = vpop.f32.mrb[0].mxu0
    %v7046 = vadd.f32 %v6954, %v7045
    %v7047 = vpop.f32.mrb[0].mxu0
    %v7048 = vadd.f32 %v6958, %v7047
    %7049 = vdwg.mxu0
    %v7050 = vmax.f32 %v7028, 0.0
    %v7051 = vmax.f32 %v7030, 0.0
    %v7052 = vmax.f32 %v7034, 0.0
    %v7053 = vmax.f32 %v7036, 0.0
    %v7054 = vmax.f32 %v7040, 0.0
    %v7055 = vmax.f32 %v7042, 0.0
    %v7056 = vmax.f32 %v7046, 0.0
    %v7057 = vmax.f32 %v7048, 0.0
    %v7058 = vld [vmem:[%s14] sm:$0xff]
    %v7059 = vld [vmem:[%s14 + $0x8] sm:$0xff]
    %v7060 = vld [vmem:[%s14 + $0x10] sm:$0xff]
    %v7061 = vld [vmem:[%s14 + $0x18] sm:$0xff]
    %v7062 = vld [vmem:[%s14 + $0x20] sm:$0xff]
    %v7063 = vld [vmem:[%s14 + $0x28] sm:$0xff]
    %v7064 = vld [vmem:[%s14 + $0x30] sm:$0xff]
    %v7065 = vld [vmem:[%s14 + $0x38] sm:$0xff]
    %v7066 = vld [vmem:[%s14 + $0x40] sm:$0xff]
    %v7067 = vld [vmem:[%s14 + $0x48] sm:$0xff]
    %v7068 = vld [vmem:[%s14 + $0x50] sm:$0xff]
    %v7069 = vld [vmem:[%s14 + $0x58] sm:$0xff]
    %v7070 = vld [vmem:[%s14 + $0x60] sm:$0xff]
    %v7071 = vld [vmem:[%s14 + $0x68] sm:$0xff]
    %v7072 = vld [vmem:[%s14 + $0x70] sm:$0xff]
    %v7073 = vld [vmem:[%s14 + $0x78] sm:$0xff]
    %v7074 = vld [vmem:[%s14 + $0x80] sm:$0xff]
    %v7075 = vld [vmem:[%s14 + $0x88] sm:$0xff]
    %v7076 = vld [vmem:[%s14 + $0x90] sm:$0xff]
    %v7077 = vld [vmem:[%s14 + $0x98] sm:$0xff]
    %v7078 = vld [vmem:[%s14 + $0xa0] sm:$0xff]
    %v7079 = vld [vmem:[%s14 + $0xa8] sm:$0xff]
    %v7080 = vld [vmem:[%s14 + $0xb0] sm:$0xff]
    %v7081 = vld [vmem:[%s14 + $0xb8] sm:$0xff]
    %v7082 = vld [vmem:[%s14 + $0xc0] sm:$0xff]
    %v7083 = vld [vmem:[%s14 + $0xc8] sm:$0xff]
    %v7084 = vld [vmem:[%s14 + $0xd0] sm:$0xff]
    %v7085 = vld [vmem:[%s14 + $0xd8] sm:$0xff]
    %v7086 = vld [vmem:[%s14 + $0xe0] sm:$0xff]
    %v7087 = vld [vmem:[%s14 + $0xe8] sm:$0xff]
    %v7088 = vld [vmem:[%s14 + $0xf0] sm:$0xff]
    %v7089 = vld [vmem:[%s14 + $0xf8] sm:$0xff]
    %v7090 = vld [vmem:[%s15] sm:$0x1]
    %v7092 = vlaneseq
    %v7093 = vshrl.u32 %v7092, 7
    %v7094 = vsub.s32 0, %v7093
    %v7095 = vrot.slane %v7090, %v7094
    %7097 = vmatprep.subr.mxu0 0.0
    %7098 = vmatpush1.msra.mxu0 %v7058
    %7099 = vmatprep.subr.mxu0 0.0
    %7100 = vmatpush1.msra.mxu0 %v7059
    %7101 = vmatprep.subr.mxu0 0.0
    %7102 = vmatpush1.msra.mxu0 %v7060
    %7103 = vmatprep.subr.mxu0 0.0
    %7104 = vmatpush1.msra.mxu0 %v7061
    %7105 = vmatprep.subr.mxu0 0.0
    %7106 = vmatpush1.msra.mxu0 %v7062
    %7107 = vmatprep.subr.mxu0 0.0
    %7108 = vmatpush1.msra.mxu0 %v7063
    %7109 = vmatprep.subr.mxu0 0.0
    %7110 = vmatpush1.msra.mxu0 %v7064
    %7111 = vmatprep.subr.mxu0 0.0
    %7112 = vmatpush1.msra.mxu0 %v7065
    %7113 = vmatprep.subr.mxu0 0.0
    %7114 = vmatpush1.msra.mxu0 %v7066
    %7115 = vmatprep.subr.mxu0 0.0
    %7116 = vmatpush1.msra.mxu0 %v7067
    %7117 = vmatprep.subr.mxu0 0.0
    %7118 = vmatpush1.msra.mxu0 %v7068
    %7119 = vmatprep.subr.mxu0 0.0
    %7120 = vmatpush1.msra.mxu0 %v7069
    %7121 = vmatprep.subr.mxu0 0.0
    %7122 = vmatpush1.msra.mxu0 %v7070
    %7123 = vmatprep.subr.mxu0 0.0
    %7124 = vmatpush1.msra.mxu0 %v7071
    %7125 = vmatprep.subr.mxu0 0.0
    %7126 = vmatpush1.msra.mxu0 %v7072
    %7127 = vmatprep.subr.mxu0 0.0
    %7128 = vmatpush1.msra.mxu0 %v7073
    %7129 = vmatprep.subr.mxu0 0.0
    %7130 = vmatpush1.msra.mxu0 %v7074
    %7131 = vmatprep.subr.mxu0 0.0
    %7132 = vmatpush1.msra.mxu0 %v7075
    %7133 = vmatprep.subr.mxu0 0.0
    %7134 = vmatpush1.msra.mxu0 %v7076
    %7135 = vmatprep.subr.mxu0 0.0
    %7136 = vmatpush1.msra.mxu0 %v7077
    %7137 = vmatprep.subr.mxu0 0.0
    %7138 = vmatpush1.msra.mxu0 %v7078
    %7139 = vmatprep.subr.mxu0 0.0
    %7140 = vmatpush1.msra.mxu0 %v7079
    %7141 = vmatprep.subr.mxu0 0.0
    %7142 = vmatpush1.msra.mxu0 %v7080
    %7143 = vmatprep.subr.mxu0 0.0
    %7144 = vmatpush1.msra.mxu0 %v7081
    %7145 = vmatprep.subr.mxu0 0.0
    %7146 = vmatpush1.msra.mxu0 %v7082
    %7147 = vmatprep.subr.mxu0 0.0
    %7148 = vmatpush1.msra.mxu0 %v7083
    %7149 = vmatprep.subr.mxu0 0.0
    %7150 = vmatpush1.msra.mxu0 %v7084
    %7151 = vmatprep.subr.mxu0 0.0
    %7152 = vmatpush1.msra.mxu0 %v7085
    %7153 = vmatprep.subr.mxu0 0.0
    %7154 = vmatpush1.msra.mxu0 %v7086
    %7155 = vmatprep.subr.mxu0 0.0
    %7156 = vmatpush1.msra.mxu0 %v7087
    %7157 = vmatprep.subr.mxu0 0.0
    %7158 = vmatpush1.msra.mxu0 %v7088
    %7159 = vmatprep.subr.mxu0 0.0
    %7160 = vmatpush1.msra.mxu0 %v7089
    %7161 = vmatprep.mubr.f32.mxu0 %v7051
    %7162 = vmatmul.mubr.f32.gmra.mrb[0].mxu0 %v7050
    %v7163 = vpop.f32.mrb[0].mxu0
    %v7164 = vadd.f32 %v7095, %v7163
    %v7165 = vpop.f32.mrb[0].mxu0
    %7166 = vmatprep.mubr.f32.mxu0 %v7053
    %7167 = vmatmul.mubr.f32.gmra.mrb[0].mxu0 %v7052
    %v7168 = vpop.f32.mrb[0].mxu0
    %v7169 = vadd.f32 %v7095, %v7168
    %v7170 = vpop.f32.mrb[0].mxu0
    %7171 = vmatprep.mubr.f32.mxu0 %v7055
    %7172 = vmatmul.mubr.f32.gmra.mrb[0].mxu0 %v7054
    %v7173 = vpop.f32.mrb[0].mxu0
    %v7174 = vadd.f32 %v7095, %v7173
    %v7175 = vpop.f32.mrb[0].mxu0
    %7176 = vmatprep.mubr.f32.mxu0 %v7057
    %7177 = vmatmul.mubr.f32.gmra.mrb[0].mxu0 %v7056
    %v7178 = vpop.f32.mrb[0].mxu0
    %v7179 = vadd.f32 %v7095, %v7178
    %v7180 = vpop.f32.mrb[0].mxu0
    %7181 = vdwg.mxu0
    %v7182 = vadd.f32 %v7164, %v3573
    %v7183 = vadd.f32 %v7169, %v3574
    %v7184 = vadd.f32 %v7174, %v3575
    %v7185 = vadd.f32 %v7179, %v3576
    %7186 = vadd.xlane.f32.xlu0 %v7182
    %v7187 = vpop.xlane.xlu0 %7186
    %7188 = vadd.xlane.f32.xlu0 %v7183
    %v7189 = vpop.xlane.xlu0 %7188
    %7190 = vadd.xlane.f32.xlu0 %v7184
    %v7191 = vpop.xlane.xlu0 %7190
    %7192 = vadd.xlane.f32.xlu0 %v7185
    %v7193 = vpop.xlane.xlu0 %7192
    %v7194 = vmul.f32 %v7187, %v3510
    %v7195 = vmul.f32 %v7189, %v3510
    %v7196 = vmul.f32 %v7191, %v3510
    %v7197 = vmul.f32 %v7193, %v3510
    %v7198 = vmul.f32 %v7182, %v7182
    %v7199 = vmul.f32 %v7183, %v7183
    %v7200 = vmul.f32 %v7184, %v7184
    %v7201 = vmul.f32 %v7185, %v7185
    %7202 = vadd.xlane.f32.xlu0 %v7198
    %v7203 = vpop.xlane.xlu0 %7202
    %7204 = vadd.xlane.f32.xlu0 %v7199
    %v7205 = vpop.xlane.xlu0 %7204
    %7206 = vadd.xlane.f32.xlu0 %v7200
    %v7207 = vpop.xlane.xlu0 %7206
    %7208 = vadd.xlane.f32.xlu0 %v7201
    %v7209 = vpop.xlane.xlu0 %7208
    %v7210 = vmul.f32 %v7203, %v3510
    %v7211 = vmul.f32 %v7205, %v3510
    %v7212 = vmul.f32 %v7207, %v3510
    %v7213 = vmul.f32 %v7209, %v3510
    %v7214 = vmul.f32 %v7194, %v7194
    %v7215 = vmul.f32 %v7195, %v7195
    %v7216 = vmul.f32 %v7196, %v7196
    %v7217 = vmul.f32 %v7197, %v7197
    %v7218 = vsub.f32 %v7210, %v7214
    %v7219 = vsub.f32 %v7211, %v7215
    %v7220 = vsub.f32 %v7212, %v7216
    %v7221 = vsub.f32 %v7213, %v7217
    %s7222 = scalar_lea.vmem %s16, 2
    %v7223 = vld [vmem:[%s7222] sm:$0x1]
    %v7224 = vsub.f32 %v7182, %v7194
    %v7225 = vsub.f32 %v7183, %v7195
    %v7226 = vsub.f32 %v7184, %v7196
    %v7227 = vsub.f32 %v7185, %v7197
    %v7228 = vadd.f32 %v7218, 1e-05
    %v7229 = vadd.f32 %v7219, 1e-05
    %v7230 = vadd.f32 %v7220, 1e-05
    %v7231 = vadd.f32 %v7221, 1e-05
    %v7232 = vrsqrt.pop %v7228
    %v7233 = vrsqrt.pop %v7229
    %v7234 = vrsqrt.pop %v7230
    %v7235 = vrsqrt.pop %v7231
    %v7236 = vmul.f32 %v7224, %v7232
    %v7237 = vmul.f32 %v7225, %v7233
    %v7238 = vmul.f32 %v7226, %v7234
    %v7239 = vmul.f32 %v7227, %v7235
    %v7241 = vlaneseq
    %v7242 = vshrl.u32 %v7241, 7
    %v7243 = vsub.s32 0, %v7242
    %v7244 = vrot.slane %v7223, %v7243
    %v7246 = vmul.f32 %v7244, %v7236
    %v7247 = vmul.f32 %v7244, %v7237
    %v7248 = vmul.f32 %v7244, %v7238
    %v7249 = vmul.f32 %v7244, %v7239
    %s7250 = scalar_lea.vmem %s17, 2
    %v7251 = vld [vmem:[%s7250] sm:$0x1]
    %v7253 = vlaneseq
    %v7254 = vshrl.u32 %v7253, 7
    %v7255 = vsub.s32 0, %v7254
    %v7256 = vrot.slane %v7251, %v7255
    %v7258 = vadd.f32 %v7246, %v7256
    %v7259 = vadd.f32 %v7247, %v7256
    %v7260 = vadd.f32 %v7248, %v7256
    %v7261 = vadd.f32 %v7249, %v7256
    %7262 = vst [vmem:[#allocation2] sm:$0xff] %v7258
    %7263 = vst [vmem:[#allocation2 + $0x8] sm:$0xff] %v7259
    %7264 = vst [vmem:[#allocation2 + $0x10] sm:$0xff] %v7260
    %7265 = vst [vmem:[#allocation2 + $0x18] sm:$0xff] %v7261
    // Predicated region
    $region74: #{tpu_custom_call.1} parent=1 // pred_check
      _
    $region75: #{tpu_custom_call.1} parent=1 // pred_check_branch
      %7267 = sbr.rel (0) target = $region77
    $region76: #{tpu_custom_call.1} parent=1 // pred_region
      %s7269 = ssub.s32 512, 512
      %7270 = vsyncadd [#allocation3], %s7269
      %s7271 = sshll.u32 [#allocation2], 4
      %s7272 = int_to_ptr.vmem [resolvable:$true] %s7271
      %7277 = dma.vmem_to_hbm [thread:$0]  %s7272, 512, %s18, [#allocation3], 128, 128, 8
    $region77: #{tpu_custom_call.1} parent=1 // pred_fallthru
      _
    // Predicated region
    $region78: #{tpu_custom_call.1} parent=1 // pred_check
      _
    $region79: #{tpu_custom_call.1} parent=1 // pred_check_branch
      %7279 = sbr.rel (0) target = $region81
    $region80: #{tpu_custom_call.1} parent=1 // pred_region
      %7280 = dma.done [#allocation3], 512
    $region81: #{tpu_custom_call.1} parent=1 // pred_fallthru
      _
    %7281 = vsyncpa [#allocation3], 1

</llo_original>
